<compile_context>
chip_gen: v7x
topology: tpu7x:2x2x1
jax: 0.10.0
libtpu: 0.0.40
codegen_flags: <defaults>
</compile_context>

<pallas_src>
import functools

import jax
import jax.numpy as jnp
from jax.experimental import pallas as pl
from jax.experimental.pallas import tpu as pltpu


MATMUL_DTYPE = jnp.bfloat16      # MXU operands; accumulation stays f32


def _full_spec(shape):
    # whole-array block, grid=(1,): single program, everything resident in VMEM
    return pl.BlockSpec(shape, lambda *_: (0,) * len(shape))


def _compiler_params():
    return pltpu.CompilerParams(
        dimension_semantics=("arbitrary",),
        vmem_limit_bytes=48 * 1024 * 1024,   # fits v7x's 64 MiB per-TC budget
    )


def _batchnorm(y, gamma, beta):
    # BatchNorm1d, training-mode batch statistics (biased variance), eps=1e-5
    mean = jnp.mean(y, axis=0, keepdims=True)
    var = jnp.mean((y - mean) ** 2, axis=0, keepdims=True)
    return (y - mean) * jax.lax.rsqrt(var + 1e-5) * gamma + beta


# ----------------------------------------------------------------------------
# Kernel 1: fused conv bank (chained convs, in-kernel halo padding, im2col
# single-matmul per conv, BN+ReLU), lane-dense (B, T, K*hid) output.
# ----------------------------------------------------------------------------
def make_bank_kernel(K, B, T, proj, hid):
    PAD = K // 2

    def kernel(*refs):
        x_ref = refs[0]
        out_ref = refs[1 + 4 * K]
        pbuf = refs[2 + 4 * K]                    # (B, T + 2*PAD, max(proj,hid))
        pbuf[...] = jnp.zeros_like(pbuf)          # zero halo once; interior-only
                                                  # writes below keep it zero.

        cur = x_ref[...]                          # (B, T, proj) f32
        cin = proj
        parts = []
        for idx in range(K):
            k = idx + 1
            pad = k // 2
            w = refs[1 + 4 * idx][...]            # (k*cin, hid) bf16, tap-major
            b = refs[2 + 4 * idx][...]            # (1, hid)    f32
            g = refs[3 + 4 * idx][...]
            be = refs[4 + 4 * idx][...]

            if k == 1:
                slab = cur.reshape(B * T, cin)
            else:
                # stage input in the zero-padded time buffer, gather k taps,
                # concatenate along lanes -> one im2col matmul on the MXU.
                # out[t] = sum_j w[j] . x[t + j - pad]  (even k: trimmed frame)
                pbuf[:, PAD:PAD + T, 0:cin] = cur
                taps = [pbuf[:, PAD - pad + j:PAD - pad + j + T, 0:cin]
                        for j in range(k)]
                slab = jnp.concatenate(taps, axis=-1).reshape(B * T, k * cin)

            y = jnp.dot(slab.astype(MATMUL_DTYPE), w,
                        preferred_element_type=jnp.float32) + b
            y = jnp.maximum(_batchnorm(y, g, be), 0.0)
            cur = y.reshape(B, T, hid)
            parts.append(cur)
            cin = hid

        # single lane-dense store of the concatenated bank outputs
        out_ref[...] = jnp.concatenate(parts, axis=-1)   # (B, T, K*hid)
    return kernel


# ----------------------------------------------------------------------------
# Kernel 2: maxpool + proj1(conv3+BN+ReLU) + proj2(conv3+BN)+residual + highway,
# lane-dense (B, T, proj) output.
# ----------------------------------------------------------------------------
def make_proj_highway_kernel(B, T, kh, hid, proj, L):
    def kernel(cat_ref, x_ref, w1_ref, b1_ref, g1_ref, be1_ref,
               w2_ref, b2_ref, g2_ref, be2_ref,
               hw_w1_ref, hw_b1_ref, hw_w2_ref, hw_b2_ref,
               out_ref, pbuf):
        cat = cat_ref[...]                        # (B, T, K*hid)
        pbuf[...] = jnp.zeros_like(pbuf)          # (B, T+2, K*hid)

        # MaxPool1d(k=2, stride=1, pad=1)[:, :, :-1]: out[t]=max(x[t],x[t-1]),
        # out[0]=x[0] (exact -inf-pad semantics via frame-0 replication).
        pbuf[:, 1:T + 1, :] = cat
        pbuf[:, 0:1, :] = cat[:, 0:1, :]
        pooled = jnp.maximum(cat, pbuf[:, 0:T, :])
        pbuf[:, 0:1, :] = jnp.zeros((B, 1, kh), jnp.float32)   # restore zero halo

        def conv3_bn(xin, cin, w_ref, b_ref, g_ref, be_ref, relu):
            # conv3 pad=1: halo frames 0 and T+1 stay zero (never written)
            pbuf[:, 1:T + 1, 0:cin] = xin
            taps = [pbuf[:, j:j + T, 0:cin] for j in range(3)]
            slab = jnp.concatenate(taps, axis=-1).reshape(B * T, 3 * cin)
            y = jnp.dot(slab.astype(MATMUL_DTYPE), w_ref[...],
                        preferred_element_type=jnp.float32) + b_ref[...]
            y = _batchnorm(y, g_ref[...], be_ref[...])
            return jnp.maximum(y, 0.0) if relu else y

        p1 = conv3_bn(pooled, kh, w1_ref, b1_ref, g1_ref, be1_ref, True)        # (B*T, hid)
        p2 = conv3_bn(p1.reshape(B, T, hid), hid, w2_ref, b2_ref, g2_ref, be2_ref, False)
        out = p2 + x_ref[...].reshape(B * T, proj)                              # residual

        hw_w1 = hw_w1_ref[...]; hw_b1 = hw_b1_ref[...]
        hw_w2 = hw_w2_ref[...]; hw_b2 = hw_b2_ref[...]
        for l in range(L):
            ob = out.astype(MATMUL_DTYPE)
            h = jnp.maximum(jnp.dot(ob, hw_w1[l], preferred_element_type=jnp.float32)
                            + hw_b1[l], 0.0)
            t = jax.nn.sigmoid(jnp.dot(ob, hw_w2[l], preferred_element_type=jnp.float32)
                               + hw_b2[l])
            out = out + t * (h - out)             # == h*t + out*(1-t)

        out_ref[...] = out.reshape(B, T, proj)
    return kernel


# ----------------------------------------------------------------------------
# Kernel 3: one bidirectional GRU layer (PyTorch gate order r, z, n).
# Input projection for both directions hoisted out of the time loop; fwd and
# bwd recurrences interleaved in one fori_loop; single (T, B, 2H) output.
# ----------------------------------------------------------------------------
def make_bigru_kernel(T, B, cin, H):
    def kernel(x_ref, wi_ref, bi_ref, whf_ref, bhf_ref, whb_ref, bhb_ref,
               out_ref, gi_buf, hf_buf, hb_buf):
        # gi for ALL timesteps and BOTH directions: one (T*B,cin)x(cin,6H) matmul.
        x = x_ref[...].reshape(T * B, cin).astype(MATMUL_DTYPE)
        gi = jnp.dot(x, wi_ref[...], preferred_element_type=jnp.float32) + bi_ref[...]
        gi_buf[...] = gi.reshape(T, B, 6 * H)

        whf = whf_ref[...]; bhf = bhf_ref[...]
        whb = whb_ref[...]; bhb = bhb_ref[...]

        def cell(gi_t, h, wh, bh):
            gh = jnp.dot(h.astype(MATMUL_DTYPE), wh,
                         preferred_element_type=jnp.float32) + bh
            r = jax.nn.sigmoid(gi_t[:, 0:H] + gh[:, 0:H])
            z = jax.nn.sigmoid(gi_t[:, H:2 * H] + gh[:, H:2 * H])
            n = jnp.tanh(gi_t[:, 2 * H:3 * H] + r * gh[:, 2 * H:3 * H])
            return n + z * (h - n)                # == (1-z)*n + z*h

        def step(i, carry):
            h_f, h_b = carry
            tb = T - 1 - i
            gi_f = gi_buf[i]                      # (B, 6H): fwd gates in [:, :3H]
            gi_b = gi_buf[tb]                     # bwd gates in [:, 3H:]
            h_f = cell(gi_f[:, 0:3 * H], h_f, whf, bhf)
            h_b = cell(gi_b[:, 3 * H:6 * H], h_b, whb, bhb)
            hf_buf[i] = h_f
            hb_buf[tb] = h_b
            return (h_f, h_b)

        h0 = jnp.zeros((B, H), jnp.float32)
        jax.lax.fori_loop(0, T, step, (h0, h0),
                          unroll=True if T <= 32 else 8)

        # lane-dense (2H-wide) output store
        out_ref[...] = jnp.concatenate([hf_buf[...], hb_buf[...]], axis=-1)
    return kernel


# ----------------------------------------------------------------------------
# Full CBHG forward (wrapper: layout transposes only).
# ----------------------------------------------------------------------------
def cbhg_forward(x_ncl, params, *, hid, K):
    B, proj, T = x_ncl.shape
    x = jnp.transpose(x_ncl, (0, 2, 1)).astype(jnp.float32)      # (B, T, proj)

    # --- fused conv bank ---
    PAD = K // 2
    bank_inputs = [x]
    for (w, b, g, be) in params['bank']:
        bank_inputs += [w, b, g, be]
    conv_cat = pl.pallas_call(
        make_bank_kernel(K, B, T, proj, hid),
        out_shape=jax.ShapeDtypeStruct((B, T, K * hid), jnp.float32),
        grid=(1,),
        in_specs=[_full_spec(a.shape) for a in bank_inputs],
        out_specs=_full_spec((B, T, K * hid)),
        scratch_shapes=[pltpu.VMEM((B, T + 2 * PAD, max(proj, hid)), jnp.float32)],
        compiler_params=_compiler_params(),
    )(*bank_inputs)

    # --- fused maxpool + projections + residual + highway ---
    kh = K * hid
    w1, b1, g1, be1 = params['proj1']
    w2, b2, g2, be2 = params['proj2']
    hw_w1, hw_b1, hw_w2, hw_b2 = params['highway']
    L = hw_w1.shape[0]
    proj_inputs = [conv_cat, x, w1, b1, g1, be1, w2, b2, g2, be2,
                   hw_w1, hw_b1, hw_w2, hw_b2]
    hw = pl.pallas_call(
        make_proj_highway_kernel(B, T, kh, hid, proj, L),
        out_shape=jax.ShapeDtypeStruct((B, T, proj), jnp.float32),
        grid=(1,),
        in_specs=[_full_spec(a.shape) for a in proj_inputs],
        out_specs=_full_spec((B, T, proj)),
        scratch_shapes=[pltpu.VMEM((B, T + 2, kh), jnp.float32)],
        compiler_params=_compiler_params(),
    )(*proj_inputs)

    # --- 2-layer bidirectional GRU (time-major inside the kernels) ---
    cur = jnp.transpose(hw, (1, 0, 2))                           # (T, B, proj)
    cin = proj
    for lp in params['gru']:
        gru_inputs = [cur, lp['wi'], lp['bi'],
                      lp['whf'], lp['bhf'], lp['whb'], lp['bhb']]
        cur = pl.pallas_call(
            make_bigru_kernel(T, B, cin, hid),
            out_shape=jax.ShapeDtypeStruct((T, B, 2 * hid), jnp.float32),
            grid=(1,),
            in_specs=[_full_spec(a.shape) for a in gru_inputs],
            out_specs=_full_spec((T, B, 2 * hid)),
            scratch_shapes=[pltpu.VMEM((T, B, 6 * hid), jnp.float32),
                            pltpu.VMEM((T, B, hid), jnp.float32),
                            pltpu.VMEM((T, B, hid), jnp.float32)],
            compiler_params=_compiler_params(),
        )(*gru_inputs)
        cin = 2 * hid
    return jnp.transpose(cur, (1, 0, 2))                         # (B, T, 2*hid)


# ----------------------------------------------------------------------------
# Deterministic parameter init (kernel-ready layout; shapes follow CBHG.__init__).
# Conv weights are stored tap-major im2col: w[j*cin + c, o] == torch_w[o, c, j].
# ----------------------------------------------------------------------------
def init_params(key, proj, hid, K, num_highway=4, num_gru_layers=2):
    keys = iter(jax.random.split(key, 256))

    def nrm(shape, scale=0.08):
        return jax.random.normal(next(keys), shape, jnp.float32) * scale

    def bn(c):
        return jnp.ones((1, c), jnp.float32), jnp.zeros((1, c), jnp.float32)

    params = {}
    bank = []
    cin = proj
    for k in range(1, K + 1):
        w = nrm((k * cin, hid)).astype(MATMUL_DTYPE)
        g, be = bn(hid)
        bank.append((w, nrm((1, hid)), g, be))
        cin = hid
    params['bank'] = bank
    params['proj1'] = (nrm((3 * K * hid, hid)).astype(MATMUL_DTYPE), nrm((1, hid))) + bn(hid)
    params['proj2'] = (nrm((3 * hid, proj)).astype(MATMUL_DTYPE), nrm((1, proj))) + bn(proj)
    params['highway'] = (nrm((num_highway, proj, proj)).astype(MATMUL_DTYPE),
                         nrm((num_highway, 1, proj)),
                         nrm((num_highway, proj, proj)).astype(MATMUL_DTYPE),
                         nrm((num_highway, 1, proj)))
    gru = []
    cin = proj
    for _ in range(num_gru_layers):
        wi_f, wi_b = nrm((cin, 3 * hid)), nrm((cin, 3 * hid))
        bi_f, bi_b = nrm((1, 3 * hid)), nrm((1, 3 * hid))
        gru.append(dict(
            wi=jnp.concatenate([wi_f, wi_b], axis=-1).astype(MATMUL_DTYPE),  # (cin, 6H)
            bi=jnp.concatenate([bi_f, bi_b], axis=-1),                       # (1, 6H)
            whf=nrm((hid, 3 * hid)).astype(MATMUL_DTYPE), bhf=nrm((1, 3 * hid)),
            whb=nrm((hid, 3 * hid)).astype(MATMUL_DTYPE), bhb=nrm((1, 3 * hid)),
        ))
        cin = 2 * hid
    params['gru'] = gru
    return params


if __name__ == "__main__":
    B, T = 2, 16
    proj, hid, K = 128, 64, 4        # small CBHG: projection=128, hidden=64, 4 conv banks
    key = jax.random.PRNGKey(0)
    pkey, xkey = jax.random.split(key)
    params = init_params(pkey, proj, hid, K)
    x = jax.random.normal(xkey, (B, proj, T), jnp.float32)   # PyTorch NCL input

    fwd = jax.jit(functools.partial(cbhg_forward, hid=hid, K=K))
    out = jax.block_until_ready(fwd(x, params))
    assert out.shape == (B, T, 2 * hid), out.shape
    assert bool(jnp.all(jnp.isfinite(out)))
    print("KERNEL_OK")
</pallas_src>

<mosaic_0001>
module attributes {stable_mosaic.version = 11 : i64} {
  func.func @kernel(%arg0: i32, %arg1: memref<2x16x256xf32, #tpu.memory_space<vmem>>, %arg2: memref<2x16x128xf32, #tpu.memory_space<vmem>>, %arg3: memref<768x64xbf16, #tpu.memory_space<vmem>>, %arg4: memref<1x64xf32, #tpu.memory_space<vmem>>, %arg5: memref<1x64xf32, #tpu.memory_space<vmem>>, %arg6: memref<1x64xf32, #tpu.memory_space<vmem>>, %arg7: memref<192x128xbf16, #tpu.memory_space<vmem>>, %arg8: memref<1x128xf32, #tpu.memory_space<vmem>>, %arg9: memref<1x128xf32, #tpu.memory_space<vmem>>, %arg10: memref<1x128xf32, #tpu.memory_space<vmem>>, %arg11: memref<4x128x128xbf16, #tpu.memory_space<vmem>>, %arg12: memref<4x1x128xf32, #tpu.memory_space<vmem>>, %arg13: memref<4x128x128xbf16, #tpu.memory_space<vmem>>, %arg14: memref<4x1x128xf32, #tpu.memory_space<vmem>>, %arg15: memref<2x16x128xf32, #tpu.memory_space<vmem>>, %arg16: memref<2x18x256xf32, #tpu.memory_space<vmem>>) attributes {dimension_semantics = [#tpu.dimension_semantics<arbitrary>], iteration_bounds = array<i64: 1>, scalar_prefetch = 0 : i64, scratch_operands = 1 : i64, tpu.core_type = #tpu.core_type<tc>, window_params = [{pipeline_mode = #tpu.pipeline_mode<synchronous>, transform_indices = @transform_0, window_bounds = array<i64: 2, 16, 256>}, {pipeline_mode = #tpu.pipeline_mode<synchronous>, transform_indices = @transform_1, window_bounds = array<i64: 2, 16, 128>}, {pipeline_mode = #tpu.pipeline_mode<synchronous>, transform_indices = @transform_2, window_bounds = array<i64: 768, 64>}, {pipeline_mode = #tpu.pipeline_mode<synchronous>, transform_indices = @transform_3, window_bounds = array<i64: 1, 64>}, {pipeline_mode = #tpu.pipeline_mode<synchronous>, transform_indices = @transform_4, window_bounds = array<i64: 1, 64>}, {pipeline_mode = #tpu.pipeline_mode<synchronous>, transform_indices = @transform_5, window_bounds = array<i64: 1, 64>}, {pipeline_mode = #tpu.pipeline_mode<synchronous>, transform_indices = @transform_6, window_bounds = array<i64: 192, 128>}, {pipeline_mode = #tpu.pipeline_mode<synchronous>, transform_indices = @transform_7, window_bounds = array<i64: 1, 128>}, {pipeline_mode = #tpu.pipeline_mode<synchronous>, transform_indices = @transform_8, window_bounds = array<i64: 1, 128>}, {pipeline_mode = #tpu.pipeline_mode<synchronous>, transform_indices = @transform_9, window_bounds = array<i64: 1, 128>}, {pipeline_mode = #tpu.pipeline_mode<synchronous>, transform_indices = @transform_10, window_bounds = array<i64: 4, 128, 128>}, {pipeline_mode = #tpu.pipeline_mode<synchronous>, transform_indices = @transform_11, window_bounds = array<i64: 4, 1, 128>}, {pipeline_mode = #tpu.pipeline_mode<synchronous>, transform_indices = @transform_12, window_bounds = array<i64: 4, 128, 128>}, {pipeline_mode = #tpu.pipeline_mode<synchronous>, transform_indices = @transform_13, window_bounds = array<i64: 4, 1, 128>}, {pipeline_mode = #tpu.pipeline_mode<synchronous>, transform_indices = @transform_14, window_bounds = array<i64: 2, 16, 128>}]} {
    %c0 = arith.constant 0 : index
    %c0_0 = arith.constant 0 : index
    %c0_1 = arith.constant 0 : index
    %0 = vector.load %arg1[%c0, %c0_0, %c0_1] : memref<2x16x256xf32, #tpu.memory_space<vmem>>, vector<2x16x256xf32>
    %cst = arith.constant 0.000000e+00 : f32
    %1 = vector.broadcast %cst : f32 to vector<2x18x256xf32>
    %c0_2 = arith.constant 0 : index
    %c0_3 = arith.constant 0 : index
    %c0_4 = arith.constant 0 : index
    %2 = vector.load %arg16[%c0_2, %c0_3, %c0_4] : memref<2x18x256xf32, #tpu.memory_space<vmem>>, vector<2x18x256xf32>
    tpu.vector_store %arg16[%c0_2, %c0_3, %c0_4], %1 {strides = array<i32>} : memref<2x18x256xf32, #tpu.memory_space<vmem>>, vector<2x18x256xf32>,
    %c0_5 = arith.constant 0 : index
    %c1 = arith.constant 1 : index
    %c0_6 = arith.constant 0 : index
    %3 = vector.load %arg16[%c0_5, %c1, %c0_6] : memref<2x18x256xf32, #tpu.memory_space<vmem>>, vector<2x16x256xf32>
    tpu.vector_store %arg16[%c0_5, %c1, %c0_6], %0 {strides = array<i32>} : memref<2x18x256xf32, #tpu.memory_space<vmem>>, vector<2x16x256xf32>,
    %4 = vector.extract_strided_slice %0 {offsets = [0, 0, 0], sizes = [2, 1, 256], strides = [1, 1, 1]} : vector<2x16x256xf32> to vector<2x1x256xf32>
    %c0_7 = arith.constant 0 : index
    %c0_8 = arith.constant 0 : index
    %c0_9 = arith.constant 0 : index
    %5 = vector.load %arg16[%c0_7, %c0_8, %c0_9] : memref<2x18x256xf32, #tpu.memory_space<vmem>>, vector<2x1x256xf32>
    tpu.vector_store %arg16[%c0_7, %c0_8, %c0_9], %4 {strides = array<i32>} : memref<2x18x256xf32, #tpu.memory_space<vmem>>, vector<2x1x256xf32>,
    %c0_10 = arith.constant 0 : index
    %c0_11 = arith.constant 0 : index
    %c0_12 = arith.constant 0 : index
    %6 = vector.load %arg16[%c0_10, %c0_11, %c0_12] : memref<2x18x256xf32, #tpu.memory_space<vmem>>, vector<2x16x256xf32>
    %7 = arith.maximumf %0, %6 : vector<2x16x256xf32>
    %cst_13 = arith.constant 0.000000e+00 : f32
    %8 = vector.broadcast %cst_13 : f32 to vector<2x1x256xf32>
    %c0_14 = arith.constant 0 : index
    %c0_15 = arith.constant 0 : index
    %c0_16 = arith.constant 0 : index
    %9 = vector.load %arg16[%c0_14, %c0_15, %c0_16] : memref<2x18x256xf32, #tpu.memory_space<vmem>>, vector<2x1x256xf32>
    tpu.vector_store %arg16[%c0_14, %c0_15, %c0_16], %8 {strides = array<i32>} : memref<2x18x256xf32, #tpu.memory_space<vmem>>, vector<2x1x256xf32>,
    %c0_17 = arith.constant 0 : index
    %c1_18 = arith.constant 1 : index
    %c0_19 = arith.constant 0 : index
    %10 = vector.load %arg16[%c0_17, %c1_18, %c0_19] : memref<2x18x256xf32, #tpu.memory_space<vmem>>, vector<2x16x256xf32>
    tpu.vector_store %arg16[%c0_17, %c1_18, %c0_19], %7 {strides = array<i32>} : memref<2x18x256xf32, #tpu.memory_space<vmem>>, vector<2x16x256xf32>,
    %c0_20 = arith.constant 0 : index
    %c0_21 = arith.constant 0 : index
    %c0_22 = arith.constant 0 : index
    %11 = vector.load %arg16[%c0_20, %c0_21, %c0_22] : memref<2x18x256xf32, #tpu.memory_space<vmem>>, vector<2x16x256xf32>
    %c0_23 = arith.constant 0 : index
    %c1_24 = arith.constant 1 : index
    %c0_25 = arith.constant 0 : index
    %12 = vector.load %arg16[%c0_23, %c1_24, %c0_25] : memref<2x18x256xf32, #tpu.memory_space<vmem>>, vector<2x16x256xf32>
    %c0_26 = arith.constant 0 : index
    %c2 = arith.constant 2 : index
    %c0_27 = arith.constant 0 : index
    %13 = vector.load %arg16[%c0_26, %c2, %c0_27] : memref<2x18x256xf32, #tpu.memory_space<vmem>>, vector<2x16x256xf32>
    %14 = tpu.concatenate %11, %12, %13 in 2 : vector<2x16x256xf32>, vector<2x16x256xf32>, vector<2x16x256xf32> -> vector<2x16x768xf32>
    %15 = vector.shape_cast %14 : vector<2x16x768xf32> to vector<32x768xf32>
    %16 = arith.truncf %15 : vector<32x768xf32> to vector<32x768xbf16>
    %c0_28 = arith.constant 0 : index
    %c0_29 = arith.constant 0 : index
    %17 = vector.load %arg3[%c0_28, %c0_29] : memref<768x64xbf16, #tpu.memory_space<vmem>>, vector<768x64xbf16>
    %cst_30 = arith.constant dense<0.000000e+00> : vector<32x64xf32>
    %18 = tpu.matmul %16, %17, %cst_30 {dimension_numbers = #tpu.dot_dimension_numbers<[1], [0], [0], [1], [0, 0, 1, 1], [], []>} : vector<32x768xbf16>, vector<768x64xbf16>, vector<32x64xf32> -> vector<32x64xf32>
    %c0_31 = arith.constant 0 : index
    %c0_32 = arith.constant 0 : index
    %19 = vector.load %arg4[%c0_31, %c0_32] : memref<1x64xf32, #tpu.memory_space<vmem>>, vector<1x64xf32>
    %20 = vector.broadcast %19 : vector<1x64xf32> to vector<32x64xf32>
    %21 = arith.addf %18, %20 : vector<32x64xf32>
    %c0_33 = arith.constant 0 : index
    %c0_34 = arith.constant 0 : index
    %22 = vector.load %arg5[%c0_33, %c0_34] : memref<1x64xf32, #tpu.memory_space<vmem>>, vector<1x64xf32>
    %c0_35 = arith.constant 0 : index
    %c0_36 = arith.constant 0 : index
    %23 = vector.load %arg6[%c0_35, %c0_36] : memref<1x64xf32, #tpu.memory_space<vmem>>, vector<1x64xf32>
    %cst_37 = arith.constant dense<0.000000e+00> : vector<64xf32>
    %24 = vector.multi_reduction <add>, %21, %cst_37 [0] : vector<32x64xf32> to vector<64xf32>
    %25 = vector.shape_cast %24 : vector<64xf32> to vector<1x64xf32>
    %cst_38 = arith.constant 3.200000e+01 : f32
    %26 = vector.broadcast %cst_38 : f32 to vector<1x64xf32>
    %27 = arith.divf %25, %26 : vector<1x64xf32>
    %28 = vector.broadcast %27 : vector<1x64xf32> to vector<32x64xf32>
    %29 = arith.subf %21, %28 : vector<32x64xf32>
    %30 = arith.mulf %29, %29 : vector<32x64xf32>
    %cst_39 = arith.constant dense<0.000000e+00> : vector<64xf32>
    %31 = vector.multi_reduction <add>, %30, %cst_39 [0] : vector<32x64xf32> to vector<64xf32>
    %32 = vector.shape_cast %31 : vector<64xf32> to vector<1x64xf32>
    %cst_40 = arith.constant 3.200000e+01 : f32
    %33 = vector.broadcast %cst_40 : f32 to vector<1x64xf32>
    %34 = arith.divf %32, %33 : vector<1x64xf32>
    %35 = vector.broadcast %27 : vector<1x64xf32> to vector<32x64xf32>
    %36 = arith.subf %21, %35 : vector<32x64xf32>
    %cst_41 = arith.constant 9.99999974E-6 : f32
    %37 = vector.broadcast %cst_41 : f32 to vector<1x64xf32>
    %38 = arith.addf %34, %37 : vector<1x64xf32>
    %39 = math.rsqrt %38 : vector<1x64xf32>
    %40 = vector.broadcast %39 : vector<1x64xf32> to vector<32x64xf32>
    %41 = arith.mulf %36, %40 : vector<32x64xf32>
    %42 = vector.broadcast %22 : vector<1x64xf32> to vector<32x64xf32>
    %43 = arith.mulf %41, %42 : vector<32x64xf32>
    %44 = vector.broadcast %23 : vector<1x64xf32> to vector<32x64xf32>
    %45 = arith.addf %43, %44 : vector<32x64xf32>
    %cst_42 = arith.constant 0.000000e+00 : f32
    %46 = vector.broadcast %cst_42 : f32 to vector<32x64xf32>
    %47 = arith.maximumf %45, %46 : vector<32x64xf32>
    %48 = vector.shape_cast %47 : vector<32x64xf32> to vector<2x16x64xf32>
    %c0_43 = arith.constant 0 : index
    %c1_44 = arith.constant 1 : index
    %c0_45 = arith.constant 0 : index
    %49 = vector.load %arg16[%c0_43, %c1_44, %c0_45] : memref<2x18x256xf32, #tpu.memory_space<vmem>>, vector<2x16x64xf32>
    tpu.vector_store %arg16[%c0_43, %c1_44, %c0_45], %48 {strides = array<i32>} : memref<2x18x256xf32, #tpu.memory_space<vmem>>, vector<2x16x64xf32>,
    %c0_46 = arith.constant 0 : index
    %c0_47 = arith.constant 0 : index
    %c0_48 = arith.constant 0 : index
    %50 = vector.load %arg16[%c0_46, %c0_47, %c0_48] : memref<2x18x256xf32, #tpu.memory_space<vmem>>, vector<2x16x64xf32>
    %c0_49 = arith.constant 0 : index
    %c1_50 = arith.constant 1 : index
    %c0_51 = arith.constant 0 : index
    %51 = vector.load %arg16[%c0_49, %c1_50, %c0_51] : memref<2x18x256xf32, #tpu.memory_space<vmem>>, vector<2x16x64xf32>
    %c0_52 = arith.constant 0 : index
    %c2_53 = arith.constant 2 : index
    %c0_54 = arith.constant 0 : index
    %52 = vector.load %arg16[%c0_52, %c2_53, %c0_54] : memref<2x18x256xf32, #tpu.memory_space<vmem>>, vector<2x16x64xf32>
    %53 = tpu.concatenate %50, %51, %52 in 2 : vector<2x16x64xf32>, vector<2x16x64xf32>, vector<2x16x64xf32> -> vector<2x16x192xf32>
    %54 = vector.shape_cast %53 : vector<2x16x192xf32> to vector<32x192xf32>
    %55 = arith.truncf %54 : vector<32x192xf32> to vector<32x192xbf16>
    %c0_55 = arith.constant 0 : index
    %c0_56 = arith.constant 0 : index
    %56 = vector.load %arg7[%c0_55, %c0_56] : memref<192x128xbf16, #tpu.memory_space<vmem>>, vector<192x128xbf16>
    %cst_57 = arith.constant dense<0.000000e+00> : vector<32x128xf32>
    %57 = tpu.matmul %55, %56, %cst_57 {dimension_numbers = #tpu.dot_dimension_numbers<[1], [0], [0], [1], [0, 0, 1, 1], [], []>} : vector<32x192xbf16>, vector<192x128xbf16>, vector<32x128xf32> -> vector<32x128xf32>
    %c0_58 = arith.constant 0 : index
    %c0_59 = arith.constant 0 : index
    %58 = vector.load %arg8[%c0_58, %c0_59] : memref<1x128xf32, #tpu.memory_space<vmem>>, vector<1x128xf32>
    %59 = vector.broadcast %58 : vector<1x128xf32> to vector<32x128xf32>
    %60 = arith.addf %57, %59 : vector<32x128xf32>
    %c0_60 = arith.constant 0 : index
    %c0_61 = arith.constant 0 : index
    %61 = vector.load %arg9[%c0_60, %c0_61] : memref<1x128xf32, #tpu.memory_space<vmem>>, vector<1x128xf32>
    %c0_62 = arith.constant 0 : index
    %c0_63 = arith.constant 0 : index
    %62 = vector.load %arg10[%c0_62, %c0_63] : memref<1x128xf32, #tpu.memory_space<vmem>>, vector<1x128xf32>
    %cst_64 = arith.constant dense<0.000000e+00> : vector<128xf32>
    %63 = vector.multi_reduction <add>, %60, %cst_64 [0] : vector<32x128xf32> to vector<128xf32>
    %64 = vector.shape_cast %63 : vector<128xf32> to vector<1x128xf32>
    %cst_65 = arith.constant 3.200000e+01 : f32
    %65 = vector.broadcast %cst_65 : f32 to vector<1x128xf32>
    %66 = arith.divf %64, %65 : vector<1x128xf32>
    %67 = vector.broadcast %66 : vector<1x128xf32> to vector<32x128xf32>
    %68 = arith.subf %60, %67 : vector<32x128xf32>
    %69 = arith.mulf %68, %68 : vector<32x128xf32>
    %cst_66 = arith.constant dense<0.000000e+00> : vector<128xf32>
    %70 = vector.multi_reduction <add>, %69, %cst_66 [0] : vector<32x128xf32> to vector<128xf32>
    %71 = vector.shape_cast %70 : vector<128xf32> to vector<1x128xf32>
    %cst_67 = arith.constant 3.200000e+01 : f32
    %72 = vector.broadcast %cst_67 : f32 to vector<1x128xf32>
    %73 = arith.divf %71, %72 : vector<1x128xf32>
    %74 = vector.broadcast %66 : vector<1x128xf32> to vector<32x128xf32>
    %75 = arith.subf %60, %74 : vector<32x128xf32>
    %cst_68 = arith.constant 9.99999974E-6 : f32
    %76 = vector.broadcast %cst_68 : f32 to vector<1x128xf32>
    %77 = arith.addf %73, %76 : vector<1x128xf32>
    %78 = math.rsqrt %77 : vector<1x128xf32>
    %79 = vector.broadcast %78 : vector<1x128xf32> to vector<32x128xf32>
    %80 = arith.mulf %75, %79 : vector<32x128xf32>
    %81 = vector.broadcast %61 : vector<1x128xf32> to vector<32x128xf32>
    %82 = arith.mulf %80, %81 : vector<32x128xf32>
    %83 = vector.broadcast %62 : vector<1x128xf32> to vector<32x128xf32>
    %84 = arith.addf %82, %83 : vector<32x128xf32>
    %c0_69 = arith.constant 0 : index
    %c0_70 = arith.constant 0 : index
    %c0_71 = arith.constant 0 : index
    %85 = vector.load %arg2[%c0_69, %c0_70, %c0_71] : memref<2x16x128xf32, #tpu.memory_space<vmem>>, vector<2x16x128xf32>
    %86 = vector.shape_cast %85 : vector<2x16x128xf32> to vector<32x128xf32>
    %87 = arith.addf %84, %86 : vector<32x128xf32>
    %c0_72 = arith.constant 0 : index
    %c0_73 = arith.constant 0 : index
    %c0_74 = arith.constant 0 : index
    %88 = vector.load %arg11[%c0_72, %c0_73, %c0_74] : memref<4x128x128xbf16, #tpu.memory_space<vmem>>, vector<4x128x128xbf16>
    %c0_75 = arith.constant 0 : index
    %c0_76 = arith.constant 0 : index
    %c0_77 = arith.constant 0 : index
    %89 = vector.load %arg12[%c0_75, %c0_76, %c0_77] : memref<4x1x128xf32, #tpu.memory_space<vmem>>, vector<4x1x128xf32>
    %c0_78 = arith.constant 0 : index
    %c0_79 = arith.constant 0 : index
    %c0_80 = arith.constant 0 : index
    %90 = vector.load %arg13[%c0_78, %c0_79, %c0_80] : memref<4x128x128xbf16, #tpu.memory_space<vmem>>, vector<4x128x128xbf16>
    %c0_81 = arith.constant 0 : index
    %c0_82 = arith.constant 0 : index
    %c0_83 = arith.constant 0 : index
    %91 = vector.load %arg14[%c0_81, %c0_82, %c0_83] : memref<4x1x128xf32, #tpu.memory_space<vmem>>, vector<4x1x128xf32>
    %92 = arith.truncf %87 : vector<32x128xf32> to vector<32x128xbf16>
    %93 = vector.extract_strided_slice %88 {offsets = [0, 0, 0], sizes = [1, 128, 128], strides = [1, 1, 1]} : vector<4x128x128xbf16> to vector<1x128x128xbf16>
    %94 = vector.shape_cast %93 : vector<1x128x128xbf16> to vector<128x128xbf16>
    %cst_84 = arith.constant dense<0.000000e+00> : vector<32x128xf32>
    %95 = tpu.matmul %92, %94, %cst_84 {dimension_numbers = #tpu.dot_dimension_numbers<[1], [0], [0], [1], [0, 0, 1, 1], [], []>} : vector<32x128xbf16>, vector<128x128xbf16>, vector<32x128xf32> -> vector<32x128xf32>
    %96 = vector.extract_strided_slice %89 {offsets = [0, 0, 0], sizes = [1, 1, 128], strides = [1, 1, 1]} : vector<4x1x128xf32> to vector<1x1x128xf32>
    %97 = vector.shape_cast %96 : vector<1x1x128xf32> to vector<1x128xf32>
    %98 = vector.broadcast %97 : vector<1x128xf32> to vector<32x128xf32>
    %99 = arith.addf %95, %98 : vector<32x128xf32>
    %cst_85 = arith.constant 0.000000e+00 : f32
    %100 = vector.broadcast %cst_85 : f32 to vector<32x128xf32>
    %101 = arith.maximumf %99, %100 : vector<32x128xf32>
    %102 = vector.extract_strided_slice %90 {offsets = [0, 0, 0], sizes = [1, 128, 128], strides = [1, 1, 1]} : vector<4x128x128xbf16> to vector<1x128x128xbf16>
    %103 = vector.shape_cast %102 : vector<1x128x128xbf16> to vector<128x128xbf16>
    %cst_86 = arith.constant dense<0.000000e+00> : vector<32x128xf32>
    %104 = tpu.matmul %92, %103, %cst_86 {dimension_numbers = #tpu.dot_dimension_numbers<[1], [0], [0], [1], [0, 0, 1, 1], [], []>} : vector<32x128xbf16>, vector<128x128xbf16>, vector<32x128xf32> -> vector<32x128xf32>
    %105 = vector.extract_strided_slice %91 {offsets = [0, 0, 0], sizes = [1, 1, 128], strides = [1, 1, 1]} : vector<4x1x128xf32> to vector<1x1x128xf32>
    %106 = vector.shape_cast %105 : vector<1x1x128xf32> to vector<1x128xf32>
    %107 = vector.broadcast %106 : vector<1x128xf32> to vector<32x128xf32>
    %108 = arith.addf %104, %107 : vector<32x128xf32>
    %109 = arith.negf %108 : vector<32x128xf32>
    %110 = math.exp %109 : vector<32x128xf32>
    %cst_87 = arith.constant 1.000000e+00 : f32
    %111 = vector.broadcast %cst_87 : f32 to vector<32x128xf32>
    %112 = arith.addf %111, %110 : vector<32x128xf32>
    %113 = arith.divf %111, %112 : vector<32x128xf32>
    %114 = arith.subf %101, %87 : vector<32x128xf32>
    %115 = arith.mulf %113, %114 : vector<32x128xf32>
    %116 = arith.addf %87, %115 : vector<32x128xf32>
    %117 = arith.truncf %116 : vector<32x128xf32> to vector<32x128xbf16>
    %118 = vector.extract_strided_slice %88 {offsets = [1, 0, 0], sizes = [1, 128, 128], strides = [1, 1, 1]} : vector<4x128x128xbf16> to vector<1x128x128xbf16>
    %119 = vector.shape_cast %118 : vector<1x128x128xbf16> to vector<128x128xbf16>
    %cst_88 = arith.constant dense<0.000000e+00> : vector<32x128xf32>
    %120 = tpu.matmul %117, %119, %cst_88 {dimension_numbers = #tpu.dot_dimension_numbers<[1], [0], [0], [1], [0, 0, 1, 1], [], []>} : vector<32x128xbf16>, vector<128x128xbf16>, vector<32x128xf32> -> vector<32x128xf32>
    %121 = vector.extract_strided_slice %89 {offsets = [1, 0, 0], sizes = [1, 1, 128], strides = [1, 1, 1]} : vector<4x1x128xf32> to vector<1x1x128xf32>
    %122 = vector.shape_cast %121 : vector<1x1x128xf32> to vector<1x128xf32>
    %123 = vector.broadcast %122 : vector<1x128xf32> to vector<32x128xf32>
    %124 = arith.addf %120, %123 : vector<32x128xf32>
    %cst_89 = arith.constant 0.000000e+00 : f32
    %125 = vector.broadcast %cst_89 : f32 to vector<32x128xf32>
    %126 = arith.maximumf %124, %125 : vector<32x128xf32>
    %127 = vector.extract_strided_slice %90 {offsets = [1, 0, 0], sizes = [1, 128, 128], strides = [1, 1, 1]} : vector<4x128x128xbf16> to vector<1x128x128xbf16>
    %128 = vector.shape_cast %127 : vector<1x128x128xbf16> to vector<128x128xbf16>
    %cst_90 = arith.constant dense<0.000000e+00> : vector<32x128xf32>
    %129 = tpu.matmul %117, %128, %cst_90 {dimension_numbers = #tpu.dot_dimension_numbers<[1], [0], [0], [1], [0, 0, 1, 1], [], []>} : vector<32x128xbf16>, vector<128x128xbf16>, vector<32x128xf32> -> vector<32x128xf32>
    %130 = vector.extract_strided_slice %91 {offsets = [1, 0, 0], sizes = [1, 1, 128], strides = [1, 1, 1]} : vector<4x1x128xf32> to vector<1x1x128xf32>
    %131 = vector.shape_cast %130 : vector<1x1x128xf32> to vector<1x128xf32>
    %132 = vector.broadcast %131 : vector<1x128xf32> to vector<32x128xf32>
    %133 = arith.addf %129, %132 : vector<32x128xf32>
    %134 = arith.negf %133 : vector<32x128xf32>
    %135 = math.exp %134 : vector<32x128xf32>
    %cst_91 = arith.constant 1.000000e+00 : f32
    %136 = vector.broadcast %cst_91 : f32 to vector<32x128xf32>
    %137 = arith.addf %136, %135 : vector<32x128xf32>
    %138 = arith.divf %136, %137 : vector<32x128xf32>
    %139 = arith.subf %126, %116 : vector<32x128xf32>
    %140 = arith.mulf %138, %139 : vector<32x128xf32>
    %141 = arith.addf %116, %140 : vector<32x128xf32>
    %142 = arith.truncf %141 : vector<32x128xf32> to vector<32x128xbf16>
    %143 = vector.extract_strided_slice %88 {offsets = [2, 0, 0], sizes = [1, 128, 128], strides = [1, 1, 1]} : vector<4x128x128xbf16> to vector<1x128x128xbf16>
    %144 = vector.shape_cast %143 : vector<1x128x128xbf16> to vector<128x128xbf16>
    %cst_92 = arith.constant dense<0.000000e+00> : vector<32x128xf32>
    %145 = tpu.matmul %142, %144, %cst_92 {dimension_numbers = #tpu.dot_dimension_numbers<[1], [0], [0], [1], [0, 0, 1, 1], [], []>} : vector<32x128xbf16>, vector<128x128xbf16>, vector<32x128xf32> -> vector<32x128xf32>
    %146 = vector.extract_strided_slice %89 {offsets = [2, 0, 0], sizes = [1, 1, 128], strides = [1, 1, 1]} : vector<4x1x128xf32> to vector<1x1x128xf32>
    %147 = vector.shape_cast %146 : vector<1x1x128xf32> to vector<1x128xf32>
    %148 = vector.broadcast %147 : vector<1x128xf32> to vector<32x128xf32>
    %149 = arith.addf %145, %148 : vector<32x128xf32>
    %cst_93 = arith.constant 0.000000e+00 : f32
    %150 = vector.broadcast %cst_93 : f32 to vector<32x128xf32>
    %151 = arith.maximumf %149, %150 : vector<32x128xf32>
    %152 = vector.extract_strided_slice %90 {offsets = [2, 0, 0], sizes = [1, 128, 128], strides = [1, 1, 1]} : vector<4x128x128xbf16> to vector<1x128x128xbf16>
    %153 = vector.shape_cast %152 : vector<1x128x128xbf16> to vector<128x128xbf16>
    %cst_94 = arith.constant dense<0.000000e+00> : vector<32x128xf32>
    %154 = tpu.matmul %142, %153, %cst_94 {dimension_numbers = #tpu.dot_dimension_numbers<[1], [0], [0], [1], [0, 0, 1, 1], [], []>} : vector<32x128xbf16>, vector<128x128xbf16>, vector<32x128xf32> -> vector<32x128xf32>
    %155 = vector.extract_strided_slice %91 {offsets = [2, 0, 0], sizes = [1, 1, 128], strides = [1, 1, 1]} : vector<4x1x128xf32> to vector<1x1x128xf32>
    %156 = vector.shape_cast %155 : vector<1x1x128xf32> to vector<1x128xf32>
    %157 = vector.broadcast %156 : vector<1x128xf32> to vector<32x128xf32>
    %158 = arith.addf %154, %157 : vector<32x128xf32>
    %159 = arith.negf %158 : vector<32x128xf32>
    %160 = math.exp %159 : vector<32x128xf32>
    %cst_95 = arith.constant 1.000000e+00 : f32
    %161 = vector.broadcast %cst_95 : f32 to vector<32x128xf32>
    %162 = arith.addf %161, %160 : vector<32x128xf32>
    %163 = arith.divf %161, %162 : vector<32x128xf32>
    %164 = arith.subf %151, %141 : vector<32x128xf32>
    %165 = arith.mulf %163, %164 : vector<32x128xf32>
    %166 = arith.addf %141, %165 : vector<32x128xf32>
    %167 = arith.truncf %166 : vector<32x128xf32> to vector<32x128xbf16>
    %168 = vector.extract_strided_slice %88 {offsets = [3, 0, 0], sizes = [1, 128, 128], strides = [1, 1, 1]} : vector<4x128x128xbf16> to vector<1x128x128xbf16>
    %169 = vector.shape_cast %168 : vector<1x128x128xbf16> to vector<128x128xbf16>
    %cst_96 = arith.constant dense<0.000000e+00> : vector<32x128xf32>
    %170 = tpu.matmul %167, %169, %cst_96 {dimension_numbers = #tpu.dot_dimension_numbers<[1], [0], [0], [1], [0, 0, 1, 1], [], []>} : vector<32x128xbf16>, vector<128x128xbf16>, vector<32x128xf32> -> vector<32x128xf32>
    %171 = vector.extract_strided_slice %89 {offsets = [3, 0, 0], sizes = [1, 1, 128], strides = [1, 1, 1]} : vector<4x1x128xf32> to vector<1x1x128xf32>
    %172 = vector.shape_cast %171 : vector<1x1x128xf32> to vector<1x128xf32>
    %173 = vector.broadcast %172 : vector<1x128xf32> to vector<32x128xf32>
    %174 = arith.addf %170, %173 : vector<32x128xf32>
    %cst_97 = arith.constant 0.000000e+00 : f32
    %175 = vector.broadcast %cst_97 : f32 to vector<32x128xf32>
    %176 = arith.maximumf %174, %175 : vector<32x128xf32>
    %177 = vector.extract_strided_slice %90 {offsets = [3, 0, 0], sizes = [1, 128, 128], strides = [1, 1, 1]} : vector<4x128x128xbf16> to vector<1x128x128xbf16>
    %178 = vector.shape_cast %177 : vector<1x128x128xbf16> to vector<128x128xbf16>
    %cst_98 = arith.constant dense<0.000000e+00> : vector<32x128xf32>
    %179 = tpu.matmul %167, %178, %cst_98 {dimension_numbers = #tpu.dot_dimension_numbers<[1], [0], [0], [1], [0, 0, 1, 1], [], []>} : vector<32x128xbf16>, vector<128x128xbf16>, vector<32x128xf32> -> vector<32x128xf32>
    %180 = vector.extract_strided_slice %91 {offsets = [3, 0, 0], sizes = [1, 1, 128], strides = [1, 1, 1]} : vector<4x1x128xf32> to vector<1x1x128xf32>
    %181 = vector.shape_cast %180 : vector<1x1x128xf32> to vector<1x128xf32>
    %182 = vector.broadcast %181 : vector<1x128xf32> to vector<32x128xf32>
    %183 = arith.addf %179, %182 : vector<32x128xf32>
    %184 = arith.negf %183 : vector<32x128xf32>
    %185 = math.exp %184 : vector<32x128xf32>
    %cst_99 = arith.constant 1.000000e+00 : f32
    %186 = vector.broadcast %cst_99 : f32 to vector<32x128xf32>
    %187 = arith.addf %186, %185 : vector<32x128xf32>
    %188 = arith.divf %186, %187 : vector<32x128xf32>
    %189 = arith.subf %176, %166 : vector<32x128xf32>
    %190 = arith.mulf %188, %189 : vector<32x128xf32>
    %191 = arith.addf %166, %190 : vector<32x128xf32>
    %192 = vector.shape_cast %191 : vector<32x128xf32> to vector<2x16x128xf32>
    %c0_100 = arith.constant 0 : index
    %c0_101 = arith.constant 0 : index
    %c0_102 = arith.constant 0 : index
    %193 = vector.load %arg15[%c0_100, %c0_101, %c0_102] : memref<2x16x128xf32, #tpu.memory_space<vmem>>, vector<2x16x128xf32>
    tpu.vector_store %arg15[%c0_100, %c0_101, %c0_102], %192 {strides = array<i32>} : memref<2x16x128xf32, #tpu.memory_space<vmem>>, vector<2x16x128xf32>,
    return
  }
  func.func @transform_0(%arg0: i32) -> (i32, i32, i32) {
    %c0_i32 = arith.constant 0 : i32
    %c0_i32_0 = arith.constant 0 : i32
    %c0_i32_1 = arith.constant 0 : i32
    %c0_i32_2 = arith.constant 0 : i32
    return %c0_i32, %c0_i32_0, %c0_i32_1 : i32, i32, i32
  }
  func.func @transform_1(%arg0: i32) -> (i32, i32, i32) {
    %c0_i32 = arith.constant 0 : i32
    %c0_i32_0 = arith.constant 0 : i32
    %c0_i32_1 = arith.constant 0 : i32
    %c0_i32_2 = arith.constant 0 : i32
    return %c0_i32, %c0_i32_0, %c0_i32_1 : i32, i32, i32
  }
  func.func @transform_2(%arg0: i32) -> (i32, i32) {
    %c0_i32 = arith.constant 0 : i32
    %c0_i32_0 = arith.constant 0 : i32
    %c0_i32_1 = arith.constant 0 : i32
    return %c0_i32, %c0_i32_0 : i32, i32
  }
  func.func @transform_3(%arg0: i32) -> (i32, i32) {
    %c0_i32 = arith.constant 0 : i32
    %c0_i32_0 = arith.constant 0 : i32
    %c0_i32_1 = arith.constant 0 : i32
    return %c0_i32, %c0_i32_0 : i32, i32
  }
  func.func @transform_4(%arg0: i32) -> (i32, i32) {
    %c0_i32 = arith.constant 0 : i32
    %c0_i32_0 = arith.constant 0 : i32
    %c0_i32_1 = arith.constant 0 : i32
    return %c0_i32, %c0_i32_0 : i32, i32
  }
  func.func @transform_5(%arg0: i32) -> (i32, i32) {
    %c0_i32 = arith.constant 0 : i32
    %c0_i32_0 = arith.constant 0 : i32
    %c0_i32_1 = arith.constant 0 : i32
    return %c0_i32, %c0_i32_0 : i32, i32
  }
  func.func @transform_6(%arg0: i32) -> (i32, i32) {
    %c0_i32 = arith.constant 0 : i32
    %c0_i32_0 = arith.constant 0 : i32
    %c0_i32_1 = arith.constant 0 : i32
    return %c0_i32, %c0_i32_0 : i32, i32
  }
  func.func @transform_7(%arg0: i32) -> (i32, i32) {
    %c0_i32 = arith.constant 0 : i32
    %c0_i32_0 = arith.constant 0 : i32
    %c0_i32_1 = arith.constant 0 : i32
    return %c0_i32, %c0_i32_0 : i32, i32
  }
  func.func @transform_8(%arg0: i32) -> (i32, i32) {
    %c0_i32 = arith.constant 0 : i32
    %c0_i32_0 = arith.constant 0 : i32
    %c0_i32_1 = arith.constant 0 : i32
    return %c0_i32, %c0_i32_0 : i32, i32
  }
  func.func @transform_9(%arg0: i32) -> (i32, i32) {
    %c0_i32 = arith.constant 0 : i32
    %c0_i32_0 = arith.constant 0 : i32
    %c0_i32_1 = arith.constant 0 : i32
    return %c0_i32, %c0_i32_0 : i32, i32
  }
  func.func @transform_10(%arg0: i32) -> (i32, i32, i32) {
    %c0_i32 = arith.constant 0 : i32
    %c0_i32_0 = arith.constant 0 : i32
    %c0_i32_1 = arith.constant 0 : i32
    %c0_i32_2 = arith.constant 0 : i32
    return %c0_i32, %c0_i32_0, %c0_i32_1 : i32, i32, i32
  }
  func.func @transform_11(%arg0: i32) -> (i32, i32, i32) {
    %c0_i32 = arith.constant 0 : i32
    %c0_i32_0 = arith.constant 0 : i32
    %c0_i32_1 = arith.constant 0 : i32
    %c0_i32_2 = arith.constant 0 : i32
    return %c0_i32, %c0_i32_0, %c0_i32_1 : i32, i32, i32
  }
  func.func @transform_12(%arg0: i32) -> (i32, i32, i32) {
    %c0_i32 = arith.constant 0 : i32
    %c0_i32_0 = arith.constant 0 : i32
    %c0_i32_1 = arith.constant 0 : i32
    %c0_i32_2 = arith.constant 0 : i32
    return %c0_i32, %c0_i32_0, %c0_i32_1 : i32, i32, i32
  }
  func.func @transform_13(%arg0: i32) -> (i32, i32, i32) {
    %c0_i32 = arith.constant 0 : i32
    %c0_i32_0 = arith.constant 0 : i32
    %c0_i32_1 = arith.constant 0 : i32
    %c0_i32_2 = arith.constant 0 : i32
    return %c0_i32, %c0_i32_0, %c0_i32_1 : i32, i32, i32
  }
  func.func @transform_14(%arg0: i32) -> (i32, i32, i32) {
    %c0_i32 = arith.constant 0 : i32
    %c0_i32_0 = arith.constant 0 : i32
    %c0_i32_1 = arith.constant 0 : i32
    %c0_i32_2 = arith.constant 0 : i32
    return %c0_i32, %c0_i32_0, %c0_i32_1 : i32, i32, i32
  }
}

module attributes {stable_mosaic.version = 11 : i64} {
  func.func @kernel(%arg0: i32, %arg1: memref<2x16x128xf32, #tpu.memory_space<vmem>>, %arg2: memref<128x64xbf16, #tpu.memory_space<vmem>>, %arg3: memref<1x64xf32, #tpu.memory_space<vmem>>, %arg4: memref<1x64xf32, #tpu.memory_space<vmem>>, %arg5: memref<1x64xf32, #tpu.memory_space<vmem>>, %arg6: memref<128x64xbf16, #tpu.memory_space<vmem>>, %arg7: memref<1x64xf32, #tpu.memory_space<vmem>>, %arg8: memref<1x64xf32, #tpu.memory_space<vmem>>, %arg9: memref<1x64xf32, #tpu.memory_space<vmem>>, %arg10: memref<192x64xbf16, #tpu.memory_space<vmem>>, %arg11: memref<1x64xf32, #tpu.memory_space<vmem>>, %arg12: memref<1x64xf32, #tpu.memory_space<vmem>>, %arg13: memref<1x64xf32, #tpu.memory_space<vmem>>, %arg14: memref<256x64xbf16, #tpu.memory_space<vmem>>, %arg15: memref<1x64xf32, #tpu.memory_space<vmem>>, %arg16: memref<1x64xf32, #tpu.memory_space<vmem>>, %arg17: memref<1x64xf32, #tpu.memory_space<vmem>>, %arg18: memref<2x16x256xf32, #tpu.memory_space<vmem>>, %arg19: memref<2x20x128xf32, #tpu.memory_space<vmem>>) attributes {dimension_semantics = [#tpu.dimension_semantics<arbitrary>], iteration_bounds = array<i64: 1>, scalar_prefetch = 0 : i64, scratch_operands = 1 : i64, tpu.core_type = #tpu.core_type<tc>, window_params = [{pipeline_mode = #tpu.pipeline_mode<synchronous>, transform_indices = @transform_0, window_bounds = array<i64: 2, 16, 128>}, {pipeline_mode = #tpu.pipeline_mode<synchronous>, transform_indices = @transform_1, window_bounds = array<i64: 128, 64>}, {pipeline_mode = #tpu.pipeline_mode<synchronous>, transform_indices = @transform_2, window_bounds = array<i64: 1, 64>}, {pipeline_mode = #tpu.pipeline_mode<synchronous>, transform_indices = @transform_3, window_bounds = array<i64: 1, 64>}, {pipeline_mode = #tpu.pipeline_mode<synchronous>, transform_indices = @transform_4, window_bounds = array<i64: 1, 64>}, {pipeline_mode = #tpu.pipeline_mode<synchronous>, transform_indices = @transform_5, window_bounds = array<i64: 128, 64>}, {pipeline_mode = #tpu.pipeline_mode<synchronous>, transform_indices = @transform_6, window_bounds = array<i64: 1, 64>}, {pipeline_mode = #tpu.pipeline_mode<synchronous>, transform_indices = @transform_7, window_bounds = array<i64: 1, 64>}, {pipeline_mode = #tpu.pipeline_mode<synchronous>, transform_indices = @transform_8, window_bounds = array<i64: 1, 64>}, {pipeline_mode = #tpu.pipeline_mode<synchronous>, transform_indices = @transform_9, window_bounds = array<i64: 192, 64>}, {pipeline_mode = #tpu.pipeline_mode<synchronous>, transform_indices = @transform_10, window_bounds = array<i64: 1, 64>}, {pipeline_mode = #tpu.pipeline_mode<synchronous>, transform_indices = @transform_11, window_bounds = array<i64: 1, 64>}, {pipeline_mode = #tpu.pipeline_mode<synchronous>, transform_indices = @transform_12, window_bounds = array<i64: 1, 64>}, {pipeline_mode = #tpu.pipeline_mode<synchronous>, transform_indices = @transform_13, window_bounds = array<i64: 256, 64>}, {pipeline_mode = #tpu.pipeline_mode<synchronous>, transform_indices = @transform_14, window_bounds = array<i64: 1, 64>}, {pipeline_mode = #tpu.pipeline_mode<synchronous>, transform_indices = @transform_15, window_bounds = array<i64: 1, 64>}, {pipeline_mode = #tpu.pipeline_mode<synchronous>, transform_indices = @transform_16, window_bounds = array<i64: 1, 64>}, {pipeline_mode = #tpu.pipeline_mode<synchronous>, transform_indices = @transform_17, window_bounds = array<i64: 2, 16, 256>}]} {
    %cst = arith.constant 0.000000e+00 : f32
    %0 = vector.broadcast %cst : f32 to vector<2x20x128xf32>
    %c0 = arith.constant 0 : index
    %c0_0 = arith.constant 0 : index
    %c0_1 = arith.constant 0 : index
    %1 = vector.load %arg19[%c0, %c0_0, %c0_1] : memref<2x20x128xf32, #tpu.memory_space<vmem>>, vector<2x20x128xf32>
    tpu.vector_store %arg19[%c0, %c0_0, %c0_1], %0 {strides = array<i32>} : memref<2x20x128xf32, #tpu.memory_space<vmem>>, vector<2x20x128xf32>,
    %c0_2 = arith.constant 0 : index
    %c0_3 = arith.constant 0 : index
    %c0_4 = arith.constant 0 : index
    %2 = vector.load %arg1[%c0_2, %c0_3, %c0_4] : memref<2x16x128xf32, #tpu.memory_space<vmem>>, vector<2x16x128xf32>
    %c0_5 = arith.constant 0 : index
    %c0_6 = arith.constant 0 : index
    %3 = vector.load %arg2[%c0_5, %c0_6] : memref<128x64xbf16, #tpu.memory_space<vmem>>, vector<128x64xbf16>
    %c0_7 = arith.constant 0 : index
    %c0_8 = arith.constant 0 : index
    %4 = vector.load %arg3[%c0_7, %c0_8] : memref<1x64xf32, #tpu.memory_space<vmem>>, vector<1x64xf32>
    %c0_9 = arith.constant 0 : index
    %c0_10 = arith.constant 0 : index
    %5 = vector.load %arg4[%c0_9, %c0_10] : memref<1x64xf32, #tpu.memory_space<vmem>>, vector<1x64xf32>
    %c0_11 = arith.constant 0 : index
    %c0_12 = arith.constant 0 : index
    %6 = vector.load %arg5[%c0_11, %c0_12] : memref<1x64xf32, #tpu.memory_space<vmem>>, vector<1x64xf32>
    %7 = vector.shape_cast %2 : vector<2x16x128xf32> to vector<32x128xf32>
    %8 = arith.truncf %7 : vector<32x128xf32> to vector<32x128xbf16>
    %cst_13 = arith.constant dense<0.000000e+00> : vector<32x64xf32>
    %9 = tpu.matmul %8, %3, %cst_13 {dimension_numbers = #tpu.dot_dimension_numbers<[1], [0], [0], [1], [0, 0, 1, 1], [], []>} : vector<32x128xbf16>, vector<128x64xbf16>, vector<32x64xf32> -> vector<32x64xf32>
    %10 = vector.broadcast %4 : vector<1x64xf32> to vector<32x64xf32>
    %11 = arith.addf %9, %10 : vector<32x64xf32>
    %cst_14 = arith.constant dense<0.000000e+00> : vector<64xf32>
    %12 = vector.multi_reduction <add>, %11, %cst_14 [0] : vector<32x64xf32> to vector<64xf32>
    %13 = vector.shape_cast %12 : vector<64xf32> to vector<1x64xf32>
    %cst_15 = arith.constant 3.200000e+01 : f32
    %14 = vector.broadcast %cst_15 : f32 to vector<1x64xf32>
    %15 = arith.divf %13, %14 : vector<1x64xf32>
    %16 = vector.broadcast %15 : vector<1x64xf32> to vector<32x64xf32>
    %17 = arith.subf %11, %16 : vector<32x64xf32>
    %18 = arith.mulf %17, %17 : vector<32x64xf32>
    %cst_16 = arith.constant dense<0.000000e+00> : vector<64xf32>
    %19 = vector.multi_reduction <add>, %18, %cst_16 [0] : vector<32x64xf32> to vector<64xf32>
    %20 = vector.shape_cast %19 : vector<64xf32> to vector<1x64xf32>
    %cst_17 = arith.constant 3.200000e+01 : f32
    %21 = vector.broadcast %cst_17 : f32 to vector<1x64xf32>
    %22 = arith.divf %20, %21 : vector<1x64xf32>
    %23 = vector.broadcast %15 : vector<1x64xf32> to vector<32x64xf32>
    %24 = arith.subf %11, %23 : vector<32x64xf32>
    %cst_18 = arith.constant 9.99999974E-6 : f32
    %25 = vector.broadcast %cst_18 : f32 to vector<1x64xf32>
    %26 = arith.addf %22, %25 : vector<1x64xf32>
    %27 = math.rsqrt %26 : vector<1x64xf32>
    %28 = vector.broadcast %27 : vector<1x64xf32> to vector<32x64xf32>
    %29 = arith.mulf %24, %28 : vector<32x64xf32>
    %30 = vector.broadcast %5 : vector<1x64xf32> to vector<32x64xf32>
    %31 = arith.mulf %29, %30 : vector<32x64xf32>
    %32 = vector.broadcast %6 : vector<1x64xf32> to vector<32x64xf32>
    %33 = arith.addf %31, %32 : vector<32x64xf32>
    %cst_19 = arith.constant 0.000000e+00 : f32
    %34 = vector.broadcast %cst_19 : f32 to vector<32x64xf32>
    %35 = arith.maximumf %33, %34 : vector<32x64xf32>
    %36 = vector.shape_cast %35 : vector<32x64xf32> to vector<2x16x64xf32>
    %c0_20 = arith.constant 0 : index
    %c0_21 = arith.constant 0 : index
    %37 = vector.load %arg6[%c0_20, %c0_21] : memref<128x64xbf16, #tpu.memory_space<vmem>>, vector<128x64xbf16>
    %c0_22 = arith.constant 0 : index
    %c0_23 = arith.constant 0 : index
    %38 = vector.load %arg7[%c0_22, %c0_23] : memref<1x64xf32, #tpu.memory_space<vmem>>, vector<1x64xf32>
    %c0_24 = arith.constant 0 : index
    %c0_25 = arith.constant 0 : index
    %39 = vector.load %arg8[%c0_24, %c0_25] : memref<1x64xf32, #tpu.memory_space<vmem>>, vector<1x64xf32>
    %c0_26 = arith.constant 0 : index
    %c0_27 = arith.constant 0 : index
    %40 = vector.load %arg9[%c0_26, %c0_27] : memref<1x64xf32, #tpu.memory_space<vmem>>, vector<1x64xf32>
    %c0_28 = arith.constant 0 : index
    %c2 = arith.constant 2 : index
    %c0_29 = arith.constant 0 : index
    %41 = vector.load %arg19[%c0_28, %c2, %c0_29] : memref<2x20x128xf32, #tpu.memory_space<vmem>>, vector<2x16x64xf32>
    tpu.vector_store %arg19[%c0_28, %c2, %c0_29], %36 {strides = array<i32>} : memref<2x20x128xf32, #tpu.memory_space<vmem>>, vector<2x16x64xf32>,
    %c0_30 = arith.constant 0 : index
    %c1 = arith.constant 1 : index
    %c0_31 = arith.constant 0 : index
    %42 = vector.load %arg19[%c0_30, %c1, %c0_31] : memref<2x20x128xf32, #tpu.memory_space<vmem>>, vector<2x16x64xf32>
    %c0_32 = arith.constant 0 : index
    %c2_33 = arith.constant 2 : index
    %c0_34 = arith.constant 0 : index
    %43 = vector.load %arg19[%c0_32, %c2_33, %c0_34] : memref<2x20x128xf32, #tpu.memory_space<vmem>>, vector<2x16x64xf32>
    %44 = tpu.concatenate %42, %43 in 2 : vector<2x16x64xf32>, vector<2x16x64xf32> -> vector<2x16x128xf32>
    %45 = vector.shape_cast %44 : vector<2x16x128xf32> to vector<32x128xf32>
    %46 = arith.truncf %45 : vector<32x128xf32> to vector<32x128xbf16>
    %cst_35 = arith.constant dense<0.000000e+00> : vector<32x64xf32>
    %47 = tpu.matmul %46, %37, %cst_35 {dimension_numbers = #tpu.dot_dimension_numbers<[1], [0], [0], [1], [0, 0, 1, 1], [], []>} : vector<32x128xbf16>, vector<128x64xbf16>, vector<32x64xf32> -> vector<32x64xf32>
    %48 = vector.broadcast %38 : vector<1x64xf32> to vector<32x64xf32>
    %49 = arith.addf %47, %48 : vector<32x64xf32>
    %cst_36 = arith.constant dense<0.000000e+00> : vector<64xf32>
    %50 = vector.multi_reduction <add>, %49, %cst_36 [0] : vector<32x64xf32> to vector<64xf32>
    %51 = vector.shape_cast %50 : vector<64xf32> to vector<1x64xf32>
    %cst_37 = arith.constant 3.200000e+01 : f32
    %52 = vector.broadcast %cst_37 : f32 to vector<1x64xf32>
    %53 = arith.divf %51, %52 : vector<1x64xf32>
    %54 = vector.broadcast %53 : vector<1x64xf32> to vector<32x64xf32>
    %55 = arith.subf %49, %54 : vector<32x64xf32>
    %56 = arith.mulf %55, %55 : vector<32x64xf32>
    %cst_38 = arith.constant dense<0.000000e+00> : vector<64xf32>
    %57 = vector.multi_reduction <add>, %56, %cst_38 [0] : vector<32x64xf32> to vector<64xf32>
    %58 = vector.shape_cast %57 : vector<64xf32> to vector<1x64xf32>
    %cst_39 = arith.constant 3.200000e+01 : f32
    %59 = vector.broadcast %cst_39 : f32 to vector<1x64xf32>
    %60 = arith.divf %58, %59 : vector<1x64xf32>
    %61 = vector.broadcast %53 : vector<1x64xf32> to vector<32x64xf32>
    %62 = arith.subf %49, %61 : vector<32x64xf32>
    %cst_40 = arith.constant 9.99999974E-6 : f32
    %63 = vector.broadcast %cst_40 : f32 to vector<1x64xf32>
    %64 = arith.addf %60, %63 : vector<1x64xf32>
    %65 = math.rsqrt %64 : vector<1x64xf32>
    %66 = vector.broadcast %65 : vector<1x64xf32> to vector<32x64xf32>
    %67 = arith.mulf %62, %66 : vector<32x64xf32>
    %68 = vector.broadcast %39 : vector<1x64xf32> to vector<32x64xf32>
    %69 = arith.mulf %67, %68 : vector<32x64xf32>
    %70 = vector.broadcast %40 : vector<1x64xf32> to vector<32x64xf32>
    %71 = arith.addf %69, %70 : vector<32x64xf32>
    %cst_41 = arith.constant 0.000000e+00 : f32
    %72 = vector.broadcast %cst_41 : f32 to vector<32x64xf32>
    %73 = arith.maximumf %71, %72 : vector<32x64xf32>
    %74 = vector.shape_cast %73 : vector<32x64xf32> to vector<2x16x64xf32>
    %c0_42 = arith.constant 0 : index
    %c0_43 = arith.constant 0 : index
    %75 = vector.load %arg10[%c0_42, %c0_43] : memref<192x64xbf16, #tpu.memory_space<vmem>>, vector<192x64xbf16>
    %c0_44 = arith.constant 0 : index
    %c0_45 = arith.constant 0 : index
    %76 = vector.load %arg11[%c0_44, %c0_45] : memref<1x64xf32, #tpu.memory_space<vmem>>, vector<1x64xf32>
    %c0_46 = arith.constant 0 : index
    %c0_47 = arith.constant 0 : index
    %77 = vector.load %arg12[%c0_46, %c0_47] : memref<1x64xf32, #tpu.memory_space<vmem>>, vector<1x64xf32>
    %c0_48 = arith.constant 0 : index
    %c0_49 = arith.constant 0 : index
    %78 = vector.load %arg13[%c0_48, %c0_49] : memref<1x64xf32, #tpu.memory_space<vmem>>, vector<1x64xf32>
    %c0_50 = arith.constant 0 : index
    %c2_51 = arith.constant 2 : index
    %c0_52 = arith.constant 0 : index
    %79 = vector.load %arg19[%c0_50, %c2_51, %c0_52] : memref<2x20x128xf32, #tpu.memory_space<vmem>>, vector<2x16x64xf32>
    tpu.vector_store %arg19[%c0_50, %c2_51, %c0_52], %74 {strides = array<i32>} : memref<2x20x128xf32, #tpu.memory_space<vmem>>, vector<2x16x64xf32>,
    %c0_53 = arith.constant 0 : index
    %c1_54 = arith.constant 1 : index
    %c0_55 = arith.constant 0 : index
    %80 = vector.load %arg19[%c0_53, %c1_54, %c0_55] : memref<2x20x128xf32, #tpu.memory_space<vmem>>, vector<2x16x64xf32>
    %c0_56 = arith.constant 0 : index
    %c2_57 = arith.constant 2 : index
    %c0_58 = arith.constant 0 : index
    %81 = vector.load %arg19[%c0_56, %c2_57, %c0_58] : memref<2x20x128xf32, #tpu.memory_space<vmem>>, vector<2x16x64xf32>
    %c0_59 = arith.constant 0 : index
    %c3 = arith.constant 3 : index
    %c0_60 = arith.constant 0 : index
    %82 = vector.load %arg19[%c0_59, %c3, %c0_60] : memref<2x20x128xf32, #tpu.memory_space<vmem>>, vector<2x16x64xf32>
    %83 = tpu.concatenate %80, %81, %82 in 2 : vector<2x16x64xf32>, vector<2x16x64xf32>, vector<2x16x64xf32> -> vector<2x16x192xf32>
    %84 = vector.shape_cast %83 : vector<2x16x192xf32> to vector<32x192xf32>
    %85 = arith.truncf %84 : vector<32x192xf32> to vector<32x192xbf16>
    %cst_61 = arith.constant dense<0.000000e+00> : vector<32x64xf32>
    %86 = tpu.matmul %85, %75, %cst_61 {dimension_numbers = #tpu.dot_dimension_numbers<[1], [0], [0], [1], [0, 0, 1, 1], [], []>} : vector<32x192xbf16>, vector<192x64xbf16>, vector<32x64xf32> -> vector<32x64xf32>
    %87 = vector.broadcast %76 : vector<1x64xf32> to vector<32x64xf32>
    %88 = arith.addf %86, %87 : vector<32x64xf32>
    %cst_62 = arith.constant dense<0.000000e+00> : vector<64xf32>
    %89 = vector.multi_reduction <add>, %88, %cst_62 [0] : vector<32x64xf32> to vector<64xf32>
    %90 = vector.shape_cast %89 : vector<64xf32> to vector<1x64xf32>
    %cst_63 = arith.constant 3.200000e+01 : f32
    %91 = vector.broadcast %cst_63 : f32 to vector<1x64xf32>
    %92 = arith.divf %90, %91 : vector<1x64xf32>
    %93 = vector.broadcast %92 : vector<1x64xf32> to vector<32x64xf32>
    %94 = arith.subf %88, %93 : vector<32x64xf32>
    %95 = arith.mulf %94, %94 : vector<32x64xf32>
    %cst_64 = arith.constant dense<0.000000e+00> : vector<64xf32>
    %96 = vector.multi_reduction <add>, %95, %cst_64 [0] : vector<32x64xf32> to vector<64xf32>
    %97 = vector.shape_cast %96 : vector<64xf32> to vector<1x64xf32>
    %cst_65 = arith.constant 3.200000e+01 : f32
    %98 = vector.broadcast %cst_65 : f32 to vector<1x64xf32>
    %99 = arith.divf %97, %98 : vector<1x64xf32>
    %100 = vector.broadcast %92 : vector<1x64xf32> to vector<32x64xf32>
    %101 = arith.subf %88, %100 : vector<32x64xf32>
    %cst_66 = arith.constant 9.99999974E-6 : f32
    %102 = vector.broadcast %cst_66 : f32 to vector<1x64xf32>
    %103 = arith.addf %99, %102 : vector<1x64xf32>
    %104 = math.rsqrt %103 : vector<1x64xf32>
    %105 = vector.broadcast %104 : vector<1x64xf32> to vector<32x64xf32>
    %106 = arith.mulf %101, %105 : vector<32x64xf32>
    %107 = vector.broadcast %77 : vector<1x64xf32> to vector<32x64xf32>
    %108 = arith.mulf %106, %107 : vector<32x64xf32>
    %109 = vector.broadcast %78 : vector<1x64xf32> to vector<32x64xf32>
    %110 = arith.addf %108, %109 : vector<32x64xf32>
    %cst_67 = arith.constant 0.000000e+00 : f32
    %111 = vector.broadcast %cst_67 : f32 to vector<32x64xf32>
    %112 = arith.maximumf %110, %111 : vector<32x64xf32>
    %113 = vector.shape_cast %112 : vector<32x64xf32> to vector<2x16x64xf32>
    %c0_68 = arith.constant 0 : index
    %c0_69 = arith.constant 0 : index
    %114 = vector.load %arg14[%c0_68, %c0_69] : memref<256x64xbf16, #tpu.memory_space<vmem>>, vector<256x64xbf16>
    %c0_70 = arith.constant 0 : index
    %c0_71 = arith.constant 0 : index
    %115 = vector.load %arg15[%c0_70, %c0_71] : memref<1x64xf32, #tpu.memory_space<vmem>>, vector<1x64xf32>
    %c0_72 = arith.constant 0 : index
    %c0_73 = arith.constant 0 : index
    %116 = vector.load %arg16[%c0_72, %c0_73] : memref<1x64xf32, #tpu.memory_space<vmem>>, vector<1x64xf32>
    %c0_74 = arith.constant 0 : index
    %c0_75 = arith.constant 0 : index
    %117 = vector.load %arg17[%c0_74, %c0_75] : memref<1x64xf32, #tpu.memory_space<vmem>>, vector<1x64xf32>
    %c0_76 = arith.constant 0 : index
    %c2_77 = arith.constant 2 : index
    %c0_78 = arith.constant 0 : index
    %118 = vector.load %arg19[%c0_76, %c2_77, %c0_78] : memref<2x20x128xf32, #tpu.memory_space<vmem>>, vector<2x16x64xf32>
    tpu.vector_store %arg19[%c0_76, %c2_77, %c0_78], %113 {strides = array<i32>} : memref<2x20x128xf32, #tpu.memory_space<vmem>>, vector<2x16x64xf32>,
    %c0_79 = arith.constant 0 : index
    %c0_80 = arith.constant 0 : index
    %c0_81 = arith.constant 0 : index
    %119 = vector.load %arg19[%c0_79, %c0_80, %c0_81] : memref<2x20x128xf32, #tpu.memory_space<vmem>>, vector<2x16x64xf32>
    %c0_82 = arith.constant 0 : index
    %c1_83 = arith.constant 1 : index
    %c0_84 = arith.constant 0 : index
    %120 = vector.load %arg19[%c0_82, %c1_83, %c0_84] : memref<2x20x128xf32, #tpu.memory_space<vmem>>, vector<2x16x64xf32>
    %c0_85 = arith.constant 0 : index
    %c2_86 = arith.constant 2 : index
    %c0_87 = arith.constant 0 : index
    %121 = vector.load %arg19[%c0_85, %c2_86, %c0_87] : memref<2x20x128xf32, #tpu.memory_space<vmem>>, vector<2x16x64xf32>
    %c0_88 = arith.constant 0 : index
    %c3_89 = arith.constant 3 : index
    %c0_90 = arith.constant 0 : index
    %122 = vector.load %arg19[%c0_88, %c3_89, %c0_90] : memref<2x20x128xf32, #tpu.memory_space<vmem>>, vector<2x16x64xf32>
    %123 = tpu.concatenate %119, %120, %121, %122 in 2 : vector<2x16x64xf32>, vector<2x16x64xf32>, vector<2x16x64xf32>, vector<2x16x64xf32> -> vector<2x16x256xf32>
    %124 = vector.shape_cast %123 : vector<2x16x256xf32> to vector<32x256xf32>
    %125 = arith.truncf %124 : vector<32x256xf32> to vector<32x256xbf16>
    %cst_91 = arith.constant dense<0.000000e+00> : vector<32x64xf32>
    %126 = tpu.matmul %125, %114, %cst_91 {dimension_numbers = #tpu.dot_dimension_numbers<[1], [0], [0], [1], [0, 0, 1, 1], [], []>} : vector<32x256xbf16>, vector<256x64xbf16>, vector<32x64xf32> -> vector<32x64xf32>
    %127 = vector.broadcast %115 : vector<1x64xf32> to vector<32x64xf32>
    %128 = arith.addf %126, %127 : vector<32x64xf32>
    %cst_92 = arith.constant dense<0.000000e+00> : vector<64xf32>
    %129 = vector.multi_reduction <add>, %128, %cst_92 [0] : vector<32x64xf32> to vector<64xf32>
    %130 = vector.shape_cast %129 : vector<64xf32> to vector<1x64xf32>
    %cst_93 = arith.constant 3.200000e+01 : f32
    %131 = vector.broadcast %cst_93 : f32 to vector<1x64xf32>
    %132 = arith.divf %130, %131 : vector<1x64xf32>
    %133 = vector.broadcast %132 : vector<1x64xf32> to vector<32x64xf32>
    %134 = arith.subf %128, %133 : vector<32x64xf32>
    %135 = arith.mulf %134, %134 : vector<32x64xf32>
    %cst_94 = arith.constant dense<0.000000e+00> : vector<64xf32>
    %136 = vector.multi_reduction <add>, %135, %cst_94 [0] : vector<32x64xf32> to vector<64xf32>
    %137 = vector.shape_cast %136 : vector<64xf32> to vector<1x64xf32>
    %cst_95 = arith.constant 3.200000e+01 : f32
    %138 = vector.broadcast %cst_95 : f32 to vector<1x64xf32>
    %139 = arith.divf %137, %138 : vector<1x64xf32>
    %140 = vector.broadcast %132 : vector<1x64xf32> to vector<32x64xf32>
    %141 = arith.subf %128, %140 : vector<32x64xf32>
    %cst_96 = arith.constant 9.99999974E-6 : f32
    %142 = vector.broadcast %cst_96 : f32 to vector<1x64xf32>
    %143 = arith.addf %139, %142 : vector<1x64xf32>
    %144 = math.rsqrt %143 : vector<1x64xf32>
    %145 = vector.broadcast %144 : vector<1x64xf32> to vector<32x64xf32>
    %146 = arith.mulf %141, %145 : vector<32x64xf32>
    %147 = vector.broadcast %116 : vector<1x64xf32> to vector<32x64xf32>
    %148 = arith.mulf %146, %147 : vector<32x64xf32>
    %149 = vector.broadcast %117 : vector<1x64xf32> to vector<32x64xf32>
    %150 = arith.addf %148, %149 : vector<32x64xf32>
    %cst_97 = arith.constant 0.000000e+00 : f32
    %151 = vector.broadcast %cst_97 : f32 to vector<32x64xf32>
    %152 = arith.maximumf %150, %151 : vector<32x64xf32>
    %153 = vector.shape_cast %152 : vector<32x64xf32> to vector<2x16x64xf32>
    %154 = tpu.concatenate %36, %74, %113, %153 in 2 : vector<2x16x64xf32>, vector<2x16x64xf32>, vector<2x16x64xf32>, vector<2x16x64xf32> -> vector<2x16x256xf32>
    %c0_98 = arith.constant 0 : index
    %c0_99 = arith.constant 0 : index
    %c0_100 = arith.constant 0 : index
    %155 = vector.load %arg18[%c0_98, %c0_99, %c0_100] : memref<2x16x256xf32, #tpu.memory_space<vmem>>, vector<2x16x256xf32>
    tpu.vector_store %arg18[%c0_98, %c0_99, %c0_100], %154 {strides = array<i32>} : memref<2x16x256xf32, #tpu.memory_space<vmem>>, vector<2x16x256xf32>,
    return
  }
  func.func @transform_0(%arg0: i32) -> (i32, i32, i32) {
    %c0_i32 = arith.constant 0 : i32
    %c0_i32_0 = arith.constant 0 : i32
    %c0_i32_1 = arith.constant 0 : i32
    %c0_i32_2 = arith.constant 0 : i32
    return %c0_i32, %c0_i32_0, %c0_i32_1 : i32, i32, i32
  }
  func.func @transform_1(%arg0: i32) -> (i32, i32) {
    %c0_i32 = arith.constant 0 : i32
    %c0_i32_0 = arith.constant 0 : i32
    %c0_i32_1 = arith.constant 0 : i32
    return %c0_i32, %c0_i32_0 : i32, i32
  }
  func.func @transform_2(%arg0: i32) -> (i32, i32) {
    %c0_i32 = arith.constant 0 : i32
    %c0_i32_0 = arith.constant 0 : i32
    %c0_i32_1 = arith.constant 0 : i32
    return %c0_i32, %c0_i32_0 : i32, i32
  }
  func.func @transform_3(%arg0: i32) -> (i32, i32) {
    %c0_i32 = arith.constant 0 : i32
    %c0_i32_0 = arith.constant 0 : i32
    %c0_i32_1 = arith.constant 0 : i32
    return %c0_i32, %c0_i32_0 : i32, i32
  }
  func.func @transform_4(%arg0: i32) -> (i32, i32) {
    %c0_i32 = arith.constant 0 : i32
    %c0_i32_0 = arith.constant 0 : i32
    %c0_i32_1 = arith.constant 0 : i32
    return %c0_i32, %c0_i32_0 : i32, i32
  }
  func.func @transform_5(%arg0: i32) -> (i32, i32) {
    %c0_i32 = arith.constant 0 : i32
    %c0_i32_0 = arith.constant 0 : i32
    %c0_i32_1 = arith.constant 0 : i32
    return %c0_i32, %c0_i32_0 : i32, i32
  }
  func.func @transform_6(%arg0: i32) -> (i32, i32) {
    %c0_i32 = arith.constant 0 : i32
    %c0_i32_0 = arith.constant 0 : i32
    %c0_i32_1 = arith.constant 0 : i32
    return %c0_i32, %c0_i32_0 : i32, i32
  }
  func.func @transform_7(%arg0: i32) -> (i32, i32) {
    %c0_i32 = arith.constant 0 : i32
    %c0_i32_0 = arith.constant 0 : i32
    %c0_i32_1 = arith.constant 0 : i32
    return %c0_i32, %c0_i32_0 : i32, i32
  }
  func.func @transform_8(%arg0: i32) -> (i32, i32) {
    %c0_i32 = arith.constant 0 : i32
    %c0_i32_0 = arith.constant 0 : i32
    %c0_i32_1 = arith.constant 0 : i32
    return %c0_i32, %c0_i32_0 : i32, i32
  }
  func.func @transform_9(%arg0: i32) -> (i32, i32) {
    %c0_i32 = arith.constant 0 : i32
    %c0_i32_0 = arith.constant 0 : i32
    %c0_i32_1 = arith.constant 0 : i32
    return %c0_i32, %c0_i32_0 : i32, i32
  }
  func.func @transform_10(%arg0: i32) -> (i32, i32) {
    %c0_i32 = arith.constant 0 : i32
    %c0_i32_0 = arith.constant 0 : i32
    %c0_i32_1 = arith.constant 0 : i32
    return %c0_i32, %c0_i32_0 : i32, i32
  }
  func.func @transform_11(%arg0: i32) -> (i32, i32) {
    %c0_i32 = arith.constant 0 : i32
    %c0_i32_0 = arith.constant 0 : i32
    %c0_i32_1 = arith.constant 0 : i32
    return %c0_i32, %c0_i32_0 : i32, i32
  }
  func.func @transform_12(%arg0: i32) -> (i32, i32) {
    %c0_i32 = arith.constant 0 : i32
    %c0_i32_0 = arith.constant 0 : i32
    %c0_i32_1 = arith.constant 0 : i32
    return %c0_i32, %c0_i32_0 : i32, i32
  }
  func.func @transform_13(%arg0: i32) -> (i32, i32) {
    %c0_i32 = arith.constant 0 : i32
    %c0_i32_0 = arith.constant 0 : i32
    %c0_i32_1 = arith.constant 0 : i32
    return %c0_i32, %c0_i32_0 : i32, i32
  }
  func.func @transform_14(%arg0: i32) -> (i32, i32) {
    %c0_i32 = arith.constant 0 : i32
    %c0_i32_0 = arith.constant 0 : i32
    %c0_i32_1 = arith.constant 0 : i32
    return %c0_i32, %c0_i32_0 : i32, i32
  }
  func.func @transform_15(%arg0: i32) -> (i32, i32) {
    %c0_i32 = arith.constant 0 : i32
    %c0_i32_0 = arith.constant 0 : i32
    %c0_i32_1 = arith.constant 0 : i32
    return %c0_i32, %c0_i32_0 : i32, i32
  }
  func.func @transform_16(%arg0: i32) -> (i32, i32) {
    %c0_i32 = arith.constant 0 : i32
    %c0_i32_0 = arith.constant 0 : i32
    %c0_i32_1 = arith.constant 0 : i32
    return %c0_i32, %c0_i32_0 : i32, i32
  }
  func.func @transform_17(%arg0: i32) -> (i32, i32, i32) {
    %c0_i32 = arith.constant 0 : i32
    %c0_i32_0 = arith.constant 0 : i32
    %c0_i32_1 = arith.constant 0 : i32
    %c0_i32_2 = arith.constant 0 : i32
    return %c0_i32, %c0_i32_0, %c0_i32_1 : i32, i32, i32
  }
}

module attributes {stable_mosaic.version = 11 : i64} {
  func.func @kernel(%arg0: i32, %arg1: memref<16x2x128xf32, #tpu.memory_space<vmem>>, %arg2: memref<128x384xbf16, #tpu.memory_space<vmem>>, %arg3: memref<1x384xf32, #tpu.memory_space<vmem>>, %arg4: memref<64x192xbf16, #tpu.memory_space<vmem>>, %arg5: memref<1x192xf32, #tpu.memory_space<vmem>>, %arg6: memref<64x192xbf16, #tpu.memory_space<vmem>>, %arg7: memref<1x192xf32, #tpu.memory_space<vmem>>, %arg8: memref<16x2x128xf32, #tpu.memory_space<vmem>>, %arg9: memref<16x2x384xf32, #tpu.memory_space<vmem>>, %arg10: memref<16x2x64xf32, #tpu.memory_space<vmem>>, %arg11: memref<16x2x64xf32, #tpu.memory_space<vmem>>) attributes {dimension_semantics = [#tpu.dimension_semantics<arbitrary>], iteration_bounds = array<i64: 1>, scalar_prefetch = 0 : i64, scratch_operands = 3 : i64, tpu.core_type = #tpu.core_type<tc>, window_params = [{pipeline_mode = #tpu.pipeline_mode<synchronous>, transform_indices = @transform_0, window_bounds = array<i64: 16, 2, 128>}, {pipeline_mode = #tpu.pipeline_mode<synchronous>, transform_indices = @transform_1, window_bounds = array<i64: 128, 384>}, {pipeline_mode = #tpu.pipeline_mode<synchronous>, transform_indices = @transform_2, window_bounds = array<i64: 1, 384>}, {pipeline_mode = #tpu.pipeline_mode<synchronous>, transform_indices = @transform_3, window_bounds = array<i64: 64, 192>}, {pipeline_mode = #tpu.pipeline_mode<synchronous>, transform_indices = @transform_4, window_bounds = array<i64: 1, 192>}, {pipeline_mode = #tpu.pipeline_mode<synchronous>, transform_indices = @transform_5, window_bounds = array<i64: 64, 192>}, {pipeline_mode = #tpu.pipeline_mode<synchronous>, transform_indices = @transform_6, window_bounds = array<i64: 1, 192>}, {pipeline_mode = #tpu.pipeline_mode<synchronous>, transform_indices = @transform_7, window_bounds = array<i64: 16, 2, 128>}]} {
    %c0 = arith.constant 0 : index
    %c0_0 = arith.constant 0 : index
    %c0_1 = arith.constant 0 : index
    %0 = vector.load %arg1[%c0, %c0_0, %c0_1] : memref<16x2x128xf32, #tpu.memory_space<vmem>>, vector<16x2x128xf32>
    %1 = vector.shape_cast %0 : vector<16x2x128xf32> to vector<32x128xf32>
    %2 = arith.truncf %1 : vector<32x128xf32> to vector<32x128xbf16>
    %c0_2 = arith.constant 0 : index
    %c0_3 = arith.constant 0 : index
    %3 = vector.load %arg2[%c0_2, %c0_3] : memref<128x384xbf16, #tpu.memory_space<vmem>>, vector<128x384xbf16>
    %cst = arith.constant dense<0.000000e+00> : vector<32x384xf32>
    %4 = tpu.matmul %2, %3, %cst {dimension_numbers = #tpu.dot_dimension_numbers<[1], [0], [0], [1], [0, 0, 1, 1], [], []>} : vector<32x128xbf16>, vector<128x384xbf16>, vector<32x384xf32> -> vector<32x384xf32>
    %c0_4 = arith.constant 0 : index
    %c0_5 = arith.constant 0 : index
    %5 = vector.load %arg3[%c0_4, %c0_5] : memref<1x384xf32, #tpu.memory_space<vmem>>, vector<1x384xf32>
    %6 = vector.broadcast %5 : vector<1x384xf32> to vector<32x384xf32>
    %7 = arith.addf %4, %6 : vector<32x384xf32>
    %8 = vector.shape_cast %7 : vector<32x384xf32> to vector<16x2x384xf32>
    %c0_6 = arith.constant 0 : index
    %c0_7 = arith.constant 0 : index
    %c0_8 = arith.constant 0 : index
    %9 = vector.load %arg9[%c0_6, %c0_7, %c0_8] : memref<16x2x384xf32, #tpu.memory_space<vmem>>, vector<16x2x384xf32>
    tpu.vector_store %arg9[%c0_6, %c0_7, %c0_8], %8 {strides = array<i32>} : memref<16x2x384xf32, #tpu.memory_space<vmem>>, vector<16x2x384xf32>,
    %c0_9 = arith.constant 0 : index
    %c0_10 = arith.constant 0 : index
    %10 = vector.load %arg4[%c0_9, %c0_10] : memref<64x192xbf16, #tpu.memory_space<vmem>>, vector<64x192xbf16>
    %c0_11 = arith.constant 0 : index
    %c0_12 = arith.constant 0 : index
    %11 = vector.load %arg5[%c0_11, %c0_12] : memref<1x192xf32, #tpu.memory_space<vmem>>, vector<1x192xf32>
    %c0_13 = arith.constant 0 : index
    %c0_14 = arith.constant 0 : index
    %12 = vector.load %arg6[%c0_13, %c0_14] : memref<64x192xbf16, #tpu.memory_space<vmem>>, vector<64x192xbf16>
    %c0_15 = arith.constant 0 : index
    %c0_16 = arith.constant 0 : index
    %13 = vector.load %arg7[%c0_15, %c0_16] : memref<1x192xf32, #tpu.memory_space<vmem>>, vector<1x192xf32>
    %cst_17 = arith.constant 0.000000e+00 : f32
    %14 = vector.broadcast %cst_17 : f32 to vector<2x64xf32>
    %c0_i32 = arith.constant 0 : i32
    %c15_i32 = arith.constant 15 : i32
    %15 = arith.subi %c15_i32, %c0_i32 : i32
    %16 = arith.index_cast %c0_i32 : i32 to index
    %c0_18 = arith.constant 0 : index
    %c0_19 = arith.constant 0 : index
    %17 = vector.load %arg9[%16, %c0_18, %c0_19] : memref<16x2x384xf32, #tpu.memory_space<vmem>>, vector<1x2x384xf32>
    %18 = vector.shape_cast %17 : vector<1x2x384xf32> to vector<2x384xf32>
    %19 = arith.index_cast %15 : i32 to index
    %c0_20 = arith.constant 0 : index
    %c0_21 = arith.constant 0 : index
    %20 = vector.load %arg9[%19, %c0_20, %c0_21] : memref<16x2x384xf32, #tpu.memory_space<vmem>>, vector<1x2x384xf32>
    %21 = vector.shape_cast %20 : vector<1x2x384xf32> to vector<2x384xf32>
    %22 = vector.extract_strided_slice %18 {offsets = [0, 0], sizes = [2, 192], strides = [1, 1]} : vector<2x384xf32> to vector<2x192xf32>
    %23 = arith.truncf %14 : vector<2x64xf32> to vector<2x64xbf16>
    %cst_22 = arith.constant dense<0.000000e+00> : vector<2x192xf32>
    %24 = tpu.matmul %23, %10, %cst_22 {dimension_numbers = #tpu.dot_dimension_numbers<[1], [0], [0], [1], [0, 0, 1, 1], [], []>} : vector<2x64xbf16>, vector<64x192xbf16>, vector<2x192xf32> -> vector<2x192xf32>
    %25 = vector.broadcast %11 : vector<1x192xf32> to vector<2x192xf32>
    %26 = arith.addf %24, %25 : vector<2x192xf32>
    %27 = vector.extract_strided_slice %22 {offsets = [0, 0], sizes = [2, 64], strides = [1, 1]} : vector<2x192xf32> to vector<2x64xf32>
    %28 = vector.extract_strided_slice %26 {offsets = [0, 0], sizes = [2, 64], strides = [1, 1]} : vector<2x192xf32> to vector<2x64xf32>
    %29 = arith.addf %27, %28 : vector<2x64xf32>
    %30 = arith.negf %29 : vector<2x64xf32>
    %31 = math.exp %30 : vector<2x64xf32>
    %cst_23 = arith.constant 1.000000e+00 : f32
    %32 = vector.broadcast %cst_23 : f32 to vector<2x64xf32>
    %33 = arith.addf %32, %31 : vector<2x64xf32>
    %34 = arith.divf %32, %33 : vector<2x64xf32>
    %35 = vector.extract_strided_slice %22 {offsets = [0, 64], sizes = [2, 64], strides = [1, 1]} : vector<2x192xf32> to vector<2x64xf32>
    %36 = vector.extract_strided_slice %26 {offsets = [0, 64], sizes = [2, 64], strides = [1, 1]} : vector<2x192xf32> to vector<2x64xf32>
    %37 = arith.addf %35, %36 : vector<2x64xf32>
    %38 = arith.negf %37 : vector<2x64xf32>
    %39 = math.exp %38 : vector<2x64xf32>
    %cst_24 = arith.constant 1.000000e+00 : f32
    %40 = vector.broadcast %cst_24 : f32 to vector<2x64xf32>
    %41 = arith.addf %40, %39 : vector<2x64xf32>
    %42 = arith.divf %40, %41 : vector<2x64xf32>
    %43 = vector.extract_strided_slice %22 {offsets = [0, 128], sizes = [2, 64], strides = [1, 1]} : vector<2x192xf32> to vector<2x64xf32>
    %44 = vector.extract_strided_slice %26 {offsets = [0, 128], sizes = [2, 64], strides = [1, 1]} : vector<2x192xf32> to vector<2x64xf32>
    %45 = arith.mulf %34, %44 : vector<2x64xf32>
    %46 = arith.addf %43, %45 : vector<2x64xf32>
    %47 = math.tanh %46 : vector<2x64xf32>
    %48 = arith.subf %14, %47 : vector<2x64xf32>
    %49 = arith.mulf %42, %48 : vector<2x64xf32>
    %50 = arith.addf %47, %49 : vector<2x64xf32>
    %51 = vector.extract_strided_slice %21 {offsets = [0, 192], sizes = [2, 192], strides = [1, 1]} : vector<2x384xf32> to vector<2x192xf32>
    %52 = arith.truncf %14 : vector<2x64xf32> to vector<2x64xbf16>
    %cst_25 = arith.constant dense<0.000000e+00> : vector<2x192xf32>
    %53 = tpu.matmul %52, %12, %cst_25 {dimension_numbers = #tpu.dot_dimension_numbers<[1], [0], [0], [1], [0, 0, 1, 1], [], []>} : vector<2x64xbf16>, vector<64x192xbf16>, vector<2x192xf32> -> vector<2x192xf32>
    %54 = vector.broadcast %13 : vector<1x192xf32> to vector<2x192xf32>
    %55 = arith.addf %53, %54 : vector<2x192xf32>
    %56 = vector.extract_strided_slice %51 {offsets = [0, 0], sizes = [2, 64], strides = [1, 1]} : vector<2x192xf32> to vector<2x64xf32>
    %57 = vector.extract_strided_slice %55 {offsets = [0, 0], sizes = [2, 64], strides = [1, 1]} : vector<2x192xf32> to vector<2x64xf32>
    %58 = arith.addf %56, %57 : vector<2x64xf32>
    %59 = arith.negf %58 : vector<2x64xf32>
    %60 = math.exp %59 : vector<2x64xf32>
    %cst_26 = arith.constant 1.000000e+00 : f32
    %61 = vector.broadcast %cst_26 : f32 to vector<2x64xf32>
    %62 = arith.addf %61, %60 : vector<2x64xf32>
    %63 = arith.divf %61, %62 : vector<2x64xf32>
    %64 = vector.extract_strided_slice %51 {offsets = [0, 64], sizes = [2, 64], strides = [1, 1]} : vector<2x192xf32> to vector<2x64xf32>
    %65 = vector.extract_strided_slice %55 {offsets = [0, 64], sizes = [2, 64], strides = [1, 1]} : vector<2x192xf32> to vector<2x64xf32>
    %66 = arith.addf %64, %65 : vector<2x64xf32>
    %67 = arith.negf %66 : vector<2x64xf32>
    %68 = math.exp %67 : vector<2x64xf32>
    %cst_27 = arith.constant 1.000000e+00 : f32
    %69 = vector.broadcast %cst_27 : f32 to vector<2x64xf32>
    %70 = arith.addf %69, %68 : vector<2x64xf32>
    %71 = arith.divf %69, %70 : vector<2x64xf32>
    %72 = vector.extract_strided_slice %51 {offsets = [0, 128], sizes = [2, 64], strides = [1, 1]} : vector<2x192xf32> to vector<2x64xf32>
    %73 = vector.extract_strided_slice %55 {offsets = [0, 128], sizes = [2, 64], strides = [1, 1]} : vector<2x192xf32> to vector<2x64xf32>
    %74 = arith.mulf %63, %73 : vector<2x64xf32>
    %75 = arith.addf %72, %74 : vector<2x64xf32>
    %76 = math.tanh %75 : vector<2x64xf32>
    %77 = arith.subf %14, %76 : vector<2x64xf32>
    %78 = arith.mulf %71, %77 : vector<2x64xf32>
    %79 = arith.addf %76, %78 : vector<2x64xf32>
    %80 = arith.index_cast %c0_i32 : i32 to index
    %c0_28 = arith.constant 0 : index
    %c0_29 = arith.constant 0 : index
    %81 = vector.load %arg10[%80, %c0_28, %c0_29] : memref<16x2x64xf32, #tpu.memory_space<vmem>>, vector<1x2x64xf32>
    %82 = vector.shape_cast %81 : vector<1x2x64xf32> to vector<2x64xf32>
    %83 = vector.shape_cast %50 : vector<2x64xf32> to vector<1x2x64xf32>
    tpu.vector_store %arg10[%80, %c0_28, %c0_29], %83 {strides = array<i32>} : memref<16x2x64xf32, #tpu.memory_space<vmem>>, vector<1x2x64xf32>,
    %84 = arith.index_cast %15 : i32 to index
    %c0_30 = arith.constant 0 : index
    %c0_31 = arith.constant 0 : index
    %85 = vector.load %arg11[%84, %c0_30, %c0_31] : memref<16x2x64xf32, #tpu.memory_space<vmem>>, vector<1x2x64xf32>
    %86 = vector.shape_cast %85 : vector<1x2x64xf32> to vector<2x64xf32>
    %87 = vector.shape_cast %79 : vector<2x64xf32> to vector<1x2x64xf32>
    tpu.vector_store %arg11[%84, %c0_30, %c0_31], %87 {strides = array<i32>} : memref<16x2x64xf32, #tpu.memory_space<vmem>>, vector<1x2x64xf32>,
    %c1_i32 = arith.constant 1 : i32
    %c15_i32_32 = arith.constant 15 : i32
    %88 = arith.subi %c15_i32_32, %c1_i32 : i32
    %89 = arith.index_cast %c1_i32 : i32 to index
    %c0_33 = arith.constant 0 : index
    %c0_34 = arith.constant 0 : index
    %90 = vector.load %arg9[%89, %c0_33, %c0_34] : memref<16x2x384xf32, #tpu.memory_space<vmem>>, vector<1x2x384xf32>
    %91 = vector.shape_cast %90 : vector<1x2x384xf32> to vector<2x384xf32>
    %92 = arith.index_cast %88 : i32 to index
    %c0_35 = arith.constant 0 : index
    %c0_36 = arith.constant 0 : index
    %93 = vector.load %arg9[%92, %c0_35, %c0_36] : memref<16x2x384xf32, #tpu.memory_space<vmem>>, vector<1x2x384xf32>
    %94 = vector.shape_cast %93 : vector<1x2x384xf32> to vector<2x384xf32>
    %95 = vector.extract_strided_slice %91 {offsets = [0, 0], sizes = [2, 192], strides = [1, 1]} : vector<2x384xf32> to vector<2x192xf32>
    %96 = arith.truncf %50 : vector<2x64xf32> to vector<2x64xbf16>
    %cst_37 = arith.constant dense<0.000000e+00> : vector<2x192xf32>
    %97 = tpu.matmul %96, %10, %cst_37 {dimension_numbers = #tpu.dot_dimension_numbers<[1], [0], [0], [1], [0, 0, 1, 1], [], []>} : vector<2x64xbf16>, vector<64x192xbf16>, vector<2x192xf32> -> vector<2x192xf32>
    %98 = vector.broadcast %11 : vector<1x192xf32> to vector<2x192xf32>
    %99 = arith.addf %97, %98 : vector<2x192xf32>
    %100 = vector.extract_strided_slice %95 {offsets = [0, 0], sizes = [2, 64], strides = [1, 1]} : vector<2x192xf32> to vector<2x64xf32>
    %101 = vector.extract_strided_slice %99 {offsets = [0, 0], sizes = [2, 64], strides = [1, 1]} : vector<2x192xf32> to vector<2x64xf32>
    %102 = arith.addf %100, %101 : vector<2x64xf32>
    %103 = arith.negf %102 : vector<2x64xf32>
    %104 = math.exp %103 : vector<2x64xf32>
    %cst_38 = arith.constant 1.000000e+00 : f32
    %105 = vector.broadcast %cst_38 : f32 to vector<2x64xf32>
    %106 = arith.addf %105, %104 : vector<2x64xf32>
    %107 = arith.divf %105, %106 : vector<2x64xf32>
    %108 = vector.extract_strided_slice %95 {offsets = [0, 64], sizes = [2, 64], strides = [1, 1]} : vector<2x192xf32> to vector<2x64xf32>
    %109 = vector.extract_strided_slice %99 {offsets = [0, 64], sizes = [2, 64], strides = [1, 1]} : vector<2x192xf32> to vector<2x64xf32>
    %110 = arith.addf %108, %109 : vector<2x64xf32>
    %111 = arith.negf %110 : vector<2x64xf32>
    %112 = math.exp %111 : vector<2x64xf32>
    %cst_39 = arith.constant 1.000000e+00 : f32
    %113 = vector.broadcast %cst_39 : f32 to vector<2x64xf32>
    %114 = arith.addf %113, %112 : vector<2x64xf32>
    %115 = arith.divf %113, %114 : vector<2x64xf32>
    %116 = vector.extract_strided_slice %95 {offsets = [0, 128], sizes = [2, 64], strides = [1, 1]} : vector<2x192xf32> to vector<2x64xf32>
    %117 = vector.extract_strided_slice %99 {offsets = [0, 128], sizes = [2, 64], strides = [1, 1]} : vector<2x192xf32> to vector<2x64xf32>
    %118 = arith.mulf %107, %117 : vector<2x64xf32>
    %119 = arith.addf %116, %118 : vector<2x64xf32>
    %120 = math.tanh %119 : vector<2x64xf32>
    %121 = arith.subf %50, %120 : vector<2x64xf32>
    %122 = arith.mulf %115, %121 : vector<2x64xf32>
    %123 = arith.addf %120, %122 : vector<2x64xf32>
    %124 = vector.extract_strided_slice %94 {offsets = [0, 192], sizes = [2, 192], strides = [1, 1]} : vector<2x384xf32> to vector<2x192xf32>
    %125 = arith.truncf %79 : vector<2x64xf32> to vector<2x64xbf16>
    %cst_40 = arith.constant dense<0.000000e+00> : vector<2x192xf32>
    %126 = tpu.matmul %125, %12, %cst_40 {dimension_numbers = #tpu.dot_dimension_numbers<[1], [0], [0], [1], [0, 0, 1, 1], [], []>} : vector<2x64xbf16>, vector<64x192xbf16>, vector<2x192xf32> -> vector<2x192xf32>
    %127 = vector.broadcast %13 : vector<1x192xf32> to vector<2x192xf32>
    %128 = arith.addf %126, %127 : vector<2x192xf32>
    %129 = vector.extract_strided_slice %124 {offsets = [0, 0], sizes = [2, 64], strides = [1, 1]} : vector<2x192xf32> to vector<2x64xf32>
    %130 = vector.extract_strided_slice %128 {offsets = [0, 0], sizes = [2, 64], strides = [1, 1]} : vector<2x192xf32> to vector<2x64xf32>
    %131 = arith.addf %129, %130 : vector<2x64xf32>
    %132 = arith.negf %131 : vector<2x64xf32>
    %133 = math.exp %132 : vector<2x64xf32>
    %cst_41 = arith.constant 1.000000e+00 : f32
    %134 = vector.broadcast %cst_41 : f32 to vector<2x64xf32>
    %135 = arith.addf %134, %133 : vector<2x64xf32>
    %136 = arith.divf %134, %135 : vector<2x64xf32>
    %137 = vector.extract_strided_slice %124 {offsets = [0, 64], sizes = [2, 64], strides = [1, 1]} : vector<2x192xf32> to vector<2x64xf32>
    %138 = vector.extract_strided_slice %128 {offsets = [0, 64], sizes = [2, 64], strides = [1, 1]} : vector<2x192xf32> to vector<2x64xf32>
    %139 = arith.addf %137, %138 : vector<2x64xf32>
    %140 = arith.negf %139 : vector<2x64xf32>
    %141 = math.exp %140 : vector<2x64xf32>
    %cst_42 = arith.constant 1.000000e+00 : f32
    %142 = vector.broadcast %cst_42 : f32 to vector<2x64xf32>
    %143 = arith.addf %142, %141 : vector<2x64xf32>
    %144 = arith.divf %142, %143 : vector<2x64xf32>
    %145 = vector.extract_strided_slice %124 {offsets = [0, 128], sizes = [2, 64], strides = [1, 1]} : vector<2x192xf32> to vector<2x64xf32>
    %146 = vector.extract_strided_slice %128 {offsets = [0, 128], sizes = [2, 64], strides = [1, 1]} : vector<2x192xf32> to vector<2x64xf32>
    %147 = arith.mulf %136, %146 : vector<2x64xf32>
    %148 = arith.addf %145, %147 : vector<2x64xf32>
    %149 = math.tanh %148 : vector<2x64xf32>
    %150 = arith.subf %79, %149 : vector<2x64xf32>
    %151 = arith.mulf %144, %150 : vector<2x64xf32>
    %152 = arith.addf %149, %151 : vector<2x64xf32>
    %153 = arith.index_cast %c1_i32 : i32 to index
    %c0_43 = arith.constant 0 : index
    %c0_44 = arith.constant 0 : index
    %154 = vector.load %arg10[%153, %c0_43, %c0_44] : memref<16x2x64xf32, #tpu.memory_space<vmem>>, vector<1x2x64xf32>
    %155 = vector.shape_cast %154 : vector<1x2x64xf32> to vector<2x64xf32>
    %156 = vector.shape_cast %123 : vector<2x64xf32> to vector<1x2x64xf32>
    tpu.vector_store %arg10[%153, %c0_43, %c0_44], %156 {strides = array<i32>} : memref<16x2x64xf32, #tpu.memory_space<vmem>>, vector<1x2x64xf32>,
    %157 = arith.index_cast %88 : i32 to index
    %c0_45 = arith.constant 0 : index
    %c0_46 = arith.constant 0 : index
    %158 = vector.load %arg11[%157, %c0_45, %c0_46] : memref<16x2x64xf32, #tpu.memory_space<vmem>>, vector<1x2x64xf32>
    %159 = vector.shape_cast %158 : vector<1x2x64xf32> to vector<2x64xf32>
    %160 = vector.shape_cast %152 : vector<2x64xf32> to vector<1x2x64xf32>
    tpu.vector_store %arg11[%157, %c0_45, %c0_46], %160 {strides = array<i32>} : memref<16x2x64xf32, #tpu.memory_space<vmem>>, vector<1x2x64xf32>,
    %c2_i32 = arith.constant 2 : i32
    %c15_i32_47 = arith.constant 15 : i32
    %161 = arith.subi %c15_i32_47, %c2_i32 : i32
    %162 = arith.index_cast %c2_i32 : i32 to index
    %c0_48 = arith.constant 0 : index
    %c0_49 = arith.constant 0 : index
    %163 = vector.load %arg9[%162, %c0_48, %c0_49] : memref<16x2x384xf32, #tpu.memory_space<vmem>>, vector<1x2x384xf32>
    %164 = vector.shape_cast %163 : vector<1x2x384xf32> to vector<2x384xf32>
    %165 = arith.index_cast %161 : i32 to index
    %c0_50 = arith.constant 0 : index
    %c0_51 = arith.constant 0 : index
    %166 = vector.load %arg9[%165, %c0_50, %c0_51] : memref<16x2x384xf32, #tpu.memory_space<vmem>>, vector<1x2x384xf32>
    %167 = vector.shape_cast %166 : vector<1x2x384xf32> to vector<2x384xf32>
    %168 = vector.extract_strided_slice %164 {offsets = [0, 0], sizes = [2, 192], strides = [1, 1]} : vector<2x384xf32> to vector<2x192xf32>
    %169 = arith.truncf %123 : vector<2x64xf32> to vector<2x64xbf16>
    %cst_52 = arith.constant dense<0.000000e+00> : vector<2x192xf32>
    %170 = tpu.matmul %169, %10, %cst_52 {dimension_numbers = #tpu.dot_dimension_numbers<[1], [0], [0], [1], [0, 0, 1, 1], [], []>} : vector<2x64xbf16>, vector<64x192xbf16>, vector<2x192xf32> -> vector<2x192xf32>
    %171 = vector.broadcast %11 : vector<1x192xf32> to vector<2x192xf32>
    %172 = arith.addf %170, %171 : vector<2x192xf32>
    %173 = vector.extract_strided_slice %168 {offsets = [0, 0], sizes = [2, 64], strides = [1, 1]} : vector<2x192xf32> to vector<2x64xf32>
    %174 = vector.extract_strided_slice %172 {offsets = [0, 0], sizes = [2, 64], strides = [1, 1]} : vector<2x192xf32> to vector<2x64xf32>
    %175 = arith.addf %173, %174 : vector<2x64xf32>
    %176 = arith.negf %175 : vector<2x64xf32>
    %177 = math.exp %176 : vector<2x64xf32>
    %cst_53 = arith.constant 1.000000e+00 : f32
    %178 = vector.broadcast %cst_53 : f32 to vector<2x64xf32>
    %179 = arith.addf %178, %177 : vector<2x64xf32>
    %180 = arith.divf %178, %179 : vector<2x64xf32>
    %181 = vector.extract_strided_slice %168 {offsets = [0, 64], sizes = [2, 64], strides = [1, 1]} : vector<2x192xf32> to vector<2x64xf32>
    %182 = vector.extract_strided_slice %172 {offsets = [0, 64], sizes = [2, 64], strides = [1, 1]} : vector<2x192xf32> to vector<2x64xf32>
    %183 = arith.addf %181, %182 : vector<2x64xf32>
    %184 = arith.negf %183 : vector<2x64xf32>
    %185 = math.exp %184 : vector<2x64xf32>
    %cst_54 = arith.constant 1.000000e+00 : f32
    %186 = vector.broadcast %cst_54 : f32 to vector<2x64xf32>
    %187 = arith.addf %186, %185 : vector<2x64xf32>
    %188 = arith.divf %186, %187 : vector<2x64xf32>
    %189 = vector.extract_strided_slice %168 {offsets = [0, 128], sizes = [2, 64], strides = [1, 1]} : vector<2x192xf32> to vector<2x64xf32>
    %190 = vector.extract_strided_slice %172 {offsets = [0, 128], sizes = [2, 64], strides = [1, 1]} : vector<2x192xf32> to vector<2x64xf32>
    %191 = arith.mulf %180, %190 : vector<2x64xf32>
    %192 = arith.addf %189, %191 : vector<2x64xf32>
    %193 = math.tanh %192 : vector<2x64xf32>
    %194 = arith.subf %123, %193 : vector<2x64xf32>
    %195 = arith.mulf %188, %194 : vector<2x64xf32>
    %196 = arith.addf %193, %195 : vector<2x64xf32>
    %197 = vector.extract_strided_slice %167 {offsets = [0, 192], sizes = [2, 192], strides = [1, 1]} : vector<2x384xf32> to vector<2x192xf32>
    %198 = arith.truncf %152 : vector<2x64xf32> to vector<2x64xbf16>
    %cst_55 = arith.constant dense<0.000000e+00> : vector<2x192xf32>
    %199 = tpu.matmul %198, %12, %cst_55 {dimension_numbers = #tpu.dot_dimension_numbers<[1], [0], [0], [1], [0, 0, 1, 1], [], []>} : vector<2x64xbf16>, vector<64x192xbf16>, vector<2x192xf32> -> vector<2x192xf32>
    %200 = vector.broadcast %13 : vector<1x192xf32> to vector<2x192xf32>
    %201 = arith.addf %199, %200 : vector<2x192xf32>
    %202 = vector.extract_strided_slice %197 {offsets = [0, 0], sizes = [2, 64], strides = [1, 1]} : vector<2x192xf32> to vector<2x64xf32>
    %203 = vector.extract_strided_slice %201 {offsets = [0, 0], sizes = [2, 64], strides = [1, 1]} : vector<2x192xf32> to vector<2x64xf32>
    %204 = arith.addf %202, %203 : vector<2x64xf32>
    %205 = arith.negf %204 : vector<2x64xf32>
    %206 = math.exp %205 : vector<2x64xf32>
    %cst_56 = arith.constant 1.000000e+00 : f32
    %207 = vector.broadcast %cst_56 : f32 to vector<2x64xf32>
    %208 = arith.addf %207, %206 : vector<2x64xf32>
    %209 = arith.divf %207, %208 : vector<2x64xf32>
    %210 = vector.extract_strided_slice %197 {offsets = [0, 64], sizes = [2, 64], strides = [1, 1]} : vector<2x192xf32> to vector<2x64xf32>
    %211 = vector.extract_strided_slice %201 {offsets = [0, 64], sizes = [2, 64], strides = [1, 1]} : vector<2x192xf32> to vector<2x64xf32>
    %212 = arith.addf %210, %211 : vector<2x64xf32>
    %213 = arith.negf %212 : vector<2x64xf32>
    %214 = math.exp %213 : vector<2x64xf32>
    %cst_57 = arith.constant 1.000000e+00 : f32
    %215 = vector.broadcast %cst_57 : f32 to vector<2x64xf32>
    %216 = arith.addf %215, %214 : vector<2x64xf32>
    %217 = arith.divf %215, %216 : vector<2x64xf32>
    %218 = vector.extract_strided_slice %197 {offsets = [0, 128], sizes = [2, 64], strides = [1, 1]} : vector<2x192xf32> to vector<2x64xf32>
    %219 = vector.extract_strided_slice %201 {offsets = [0, 128], sizes = [2, 64], strides = [1, 1]} : vector<2x192xf32> to vector<2x64xf32>
    %220 = arith.mulf %209, %219 : vector<2x64xf32>
    %221 = arith.addf %218, %220 : vector<2x64xf32>
    %222 = math.tanh %221 : vector<2x64xf32>
    %223 = arith.subf %152, %222 : vector<2x64xf32>
    %224 = arith.mulf %217, %223 : vector<2x64xf32>
    %225 = arith.addf %222, %224 : vector<2x64xf32>
    %226 = arith.index_cast %c2_i32 : i32 to index
    %c0_58 = arith.constant 0 : index
    %c0_59 = arith.constant 0 : index
    %227 = vector.load %arg10[%226, %c0_58, %c0_59] : memref<16x2x64xf32, #tpu.memory_space<vmem>>, vector<1x2x64xf32>
    %228 = vector.shape_cast %227 : vector<1x2x64xf32> to vector<2x64xf32>
    %229 = vector.shape_cast %196 : vector<2x64xf32> to vector<1x2x64xf32>
    tpu.vector_store %arg10[%226, %c0_58, %c0_59], %229 {strides = array<i32>} : memref<16x2x64xf32, #tpu.memory_space<vmem>>, vector<1x2x64xf32>,
    %230 = arith.index_cast %161 : i32 to index
    %c0_60 = arith.constant 0 : index
    %c0_61 = arith.constant 0 : index
    %231 = vector.load %arg11[%230, %c0_60, %c0_61] : memref<16x2x64xf32, #tpu.memory_space<vmem>>, vector<1x2x64xf32>
    %232 = vector.shape_cast %231 : vector<1x2x64xf32> to vector<2x64xf32>
    %233 = vector.shape_cast %225 : vector<2x64xf32> to vector<1x2x64xf32>
    tpu.vector_store %arg11[%230, %c0_60, %c0_61], %233 {strides = array<i32>} : memref<16x2x64xf32, #tpu.memory_space<vmem>>, vector<1x2x64xf32>,
    %c3_i32 = arith.constant 3 : i32
    %c15_i32_62 = arith.constant 15 : i32
    %234 = arith.subi %c15_i32_62, %c3_i32 : i32
    %235 = arith.index_cast %c3_i32 : i32 to index
    %c0_63 = arith.constant 0 : index
    %c0_64 = arith.constant 0 : index
    %236 = vector.load %arg9[%235, %c0_63, %c0_64] : memref<16x2x384xf32, #tpu.memory_space<vmem>>, vector<1x2x384xf32>
    %237 = vector.shape_cast %236 : vector<1x2x384xf32> to vector<2x384xf32>
    %238 = arith.index_cast %234 : i32 to index
    %c0_65 = arith.constant 0 : index
    %c0_66 = arith.constant 0 : index
    %239 = vector.load %arg9[%238, %c0_65, %c0_66] : memref<16x2x384xf32, #tpu.memory_space<vmem>>, vector<1x2x384xf32>
    %240 = vector.shape_cast %239 : vector<1x2x384xf32> to vector<2x384xf32>
    %241 = vector.extract_strided_slice %237 {offsets = [0, 0], sizes = [2, 192], strides = [1, 1]} : vector<2x384xf32> to vector<2x192xf32>
    %242 = arith.truncf %196 : vector<2x64xf32> to vector<2x64xbf16>
    %cst_67 = arith.constant dense<0.000000e+00> : vector<2x192xf32>
    %243 = tpu.matmul %242, %10, %cst_67 {dimension_numbers = #tpu.dot_dimension_numbers<[1], [0], [0], [1], [0, 0, 1, 1], [], []>} : vector<2x64xbf16>, vector<64x192xbf16>, vector<2x192xf32> -> vector<2x192xf32>
    %244 = vector.broadcast %11 : vector<1x192xf32> to vector<2x192xf32>
    %245 = arith.addf %243, %244 : vector<2x192xf32>
    %246 = vector.extract_strided_slice %241 {offsets = [0, 0], sizes = [2, 64], strides = [1, 1]} : vector<2x192xf32> to vector<2x64xf32>
    %247 = vector.extract_strided_slice %245 {offsets = [0, 0], sizes = [2, 64], strides = [1, 1]} : vector<2x192xf32> to vector<2x64xf32>
    %248 = arith.addf %246, %247 : vector<2x64xf32>
    %249 = arith.negf %248 : vector<2x64xf32>
    %250 = math.exp %249 : vector<2x64xf32>
    %cst_68 = arith.constant 1.000000e+00 : f32
    %251 = vector.broadcast %cst_68 : f32 to vector<2x64xf32>
    %252 = arith.addf %251, %250 : vector<2x64xf32>
    %253 = arith.divf %251, %252 : vector<2x64xf32>
    %254 = vector.extract_strided_slice %241 {offsets = [0, 64], sizes = [2, 64], strides = [1, 1]} : vector<2x192xf32> to vector<2x64xf32>
    %255 = vector.extract_strided_slice %245 {offsets = [0, 64], sizes = [2, 64], strides = [1, 1]} : vector<2x192xf32> to vector<2x64xf32>
    %256 = arith.addf %254, %255 : vector<2x64xf32>
    %257 = arith.negf %256 : vector<2x64xf32>
    %258 = math.exp %257 : vector<2x64xf32>
    %cst_69 = arith.constant 1.000000e+00 : f32
    %259 = vector.broadcast %cst_69 : f32 to vector<2x64xf32>
    %260 = arith.addf %259, %258 : vector<2x64xf32>
    %261 = arith.divf %259, %260 : vector<2x64xf32>
    %262 = vector.extract_strided_slice %241 {offsets = [0, 128], sizes = [2, 64], strides = [1, 1]} : vector<2x192xf32> to vector<2x64xf32>
    %263 = vector.extract_strided_slice %245 {offsets = [0, 128], sizes = [2, 64], strides = [1, 1]} : vector<2x192xf32> to vector<2x64xf32>
    %264 = arith.mulf %253, %263 : vector<2x64xf32>
    %265 = arith.addf %262, %264 : vector<2x64xf32>
    %266 = math.tanh %265 : vector<2x64xf32>
    %267 = arith.subf %196, %266 : vector<2x64xf32>
    %268 = arith.mulf %261, %267 : vector<2x64xf32>
    %269 = arith.addf %266, %268 : vector<2x64xf32>
    %270 = vector.extract_strided_slice %240 {offsets = [0, 192], sizes = [2, 192], strides = [1, 1]} : vector<2x384xf32> to vector<2x192xf32>
    %271 = arith.truncf %225 : vector<2x64xf32> to vector<2x64xbf16>
    %cst_70 = arith.constant dense<0.000000e+00> : vector<2x192xf32>
    %272 = tpu.matmul %271, %12, %cst_70 {dimension_numbers = #tpu.dot_dimension_numbers<[1], [0], [0], [1], [0, 0, 1, 1], [], []>} : vector<2x64xbf16>, vector<64x192xbf16>, vector<2x192xf32> -> vector<2x192xf32>
    %273 = vector.broadcast %13 : vector<1x192xf32> to vector<2x192xf32>
    %274 = arith.addf %272, %273 : vector<2x192xf32>
    %275 = vector.extract_strided_slice %270 {offsets = [0, 0], sizes = [2, 64], strides = [1, 1]} : vector<2x192xf32> to vector<2x64xf32>
    %276 = vector.extract_strided_slice %274 {offsets = [0, 0], sizes = [2, 64], strides = [1, 1]} : vector<2x192xf32> to vector<2x64xf32>
    %277 = arith.addf %275, %276 : vector<2x64xf32>
    %278 = arith.negf %277 : vector<2x64xf32>
    %279 = math.exp %278 : vector<2x64xf32>
    %cst_71 = arith.constant 1.000000e+00 : f32
    %280 = vector.broadcast %cst_71 : f32 to vector<2x64xf32>
    %281 = arith.addf %280, %279 : vector<2x64xf32>
    %282 = arith.divf %280, %281 : vector<2x64xf32>
    %283 = vector.extract_strided_slice %270 {offsets = [0, 64], sizes = [2, 64], strides = [1, 1]} : vector<2x192xf32> to vector<2x64xf32>
    %284 = vector.extract_strided_slice %274 {offsets = [0, 64], sizes = [2, 64], strides = [1, 1]} : vector<2x192xf32> to vector<2x64xf32>
    %285 = arith.addf %283, %284 : vector<2x64xf32>
    %286 = arith.negf %285 : vector<2x64xf32>
    %287 = math.exp %286 : vector<2x64xf32>
    %cst_72 = arith.constant 1.000000e+00 : f32
    %288 = vector.broadcast %cst_72 : f32 to vector<2x64xf32>
    %289 = arith.addf %288, %287 : vector<2x64xf32>
    %290 = arith.divf %288, %289 : vector<2x64xf32>
    %291 = vector.extract_strided_slice %270 {offsets = [0, 128], sizes = [2, 64], strides = [1, 1]} : vector<2x192xf32> to vector<2x64xf32>
    %292 = vector.extract_strided_slice %274 {offsets = [0, 128], sizes = [2, 64], strides = [1, 1]} : vector<2x192xf32> to vector<2x64xf32>
    %293 = arith.mulf %282, %292 : vector<2x64xf32>
    %294 = arith.addf %291, %293 : vector<2x64xf32>
    %295 = math.tanh %294 : vector<2x64xf32>
    %296 = arith.subf %225, %295 : vector<2x64xf32>
    %297 = arith.mulf %290, %296 : vector<2x64xf32>
    %298 = arith.addf %295, %297 : vector<2x64xf32>
    %299 = arith.index_cast %c3_i32 : i32 to index
    %c0_73 = arith.constant 0 : index
    %c0_74 = arith.constant 0 : index
    %300 = vector.load %arg10[%299, %c0_73, %c0_74] : memref<16x2x64xf32, #tpu.memory_space<vmem>>, vector<1x2x64xf32>
    %301 = vector.shape_cast %300 : vector<1x2x64xf32> to vector<2x64xf32>
    %302 = vector.shape_cast %269 : vector<2x64xf32> to vector<1x2x64xf32>
    tpu.vector_store %arg10[%299, %c0_73, %c0_74], %302 {strides = array<i32>} : memref<16x2x64xf32, #tpu.memory_space<vmem>>, vector<1x2x64xf32>,
    %303 = arith.index_cast %234 : i32 to index
    %c0_75 = arith.constant 0 : index
    %c0_76 = arith.constant 0 : index
    %304 = vector.load %arg11[%303, %c0_75, %c0_76] : memref<16x2x64xf32, #tpu.memory_space<vmem>>, vector<1x2x64xf32>
    %305 = vector.shape_cast %304 : vector<1x2x64xf32> to vector<2x64xf32>
    %306 = vector.shape_cast %298 : vector<2x64xf32> to vector<1x2x64xf32>
    tpu.vector_store %arg11[%303, %c0_75, %c0_76], %306 {strides = array<i32>} : memref<16x2x64xf32, #tpu.memory_space<vmem>>, vector<1x2x64xf32>,
    %c4_i32 = arith.constant 4 : i32
    %c15_i32_77 = arith.constant 15 : i32
    %307 = arith.subi %c15_i32_77, %c4_i32 : i32
    %308 = arith.index_cast %c4_i32 : i32 to index
    %c0_78 = arith.constant 0 : index
    %c0_79 = arith.constant 0 : index
    %309 = vector.load %arg9[%308, %c0_78, %c0_79] : memref<16x2x384xf32, #tpu.memory_space<vmem>>, vector<1x2x384xf32>
    %310 = vector.shape_cast %309 : vector<1x2x384xf32> to vector<2x384xf32>
    %311 = arith.index_cast %307 : i32 to index
    %c0_80 = arith.constant 0 : index
    %c0_81 = arith.constant 0 : index
    %312 = vector.load %arg9[%311, %c0_80, %c0_81] : memref<16x2x384xf32, #tpu.memory_space<vmem>>, vector<1x2x384xf32>
    %313 = vector.shape_cast %312 : vector<1x2x384xf32> to vector<2x384xf32>
    %314 = vector.extract_strided_slice %310 {offsets = [0, 0], sizes = [2, 192], strides = [1, 1]} : vector<2x384xf32> to vector<2x192xf32>
    %315 = arith.truncf %269 : vector<2x64xf32> to vector<2x64xbf16>
    %cst_82 = arith.constant dense<0.000000e+00> : vector<2x192xf32>
    %316 = tpu.matmul %315, %10, %cst_82 {dimension_numbers = #tpu.dot_dimension_numbers<[1], [0], [0], [1], [0, 0, 1, 1], [], []>} : vector<2x64xbf16>, vector<64x192xbf16>, vector<2x192xf32> -> vector<2x192xf32>
    %317 = vector.broadcast %11 : vector<1x192xf32> to vector<2x192xf32>
    %318 = arith.addf %316, %317 : vector<2x192xf32>
    %319 = vector.extract_strided_slice %314 {offsets = [0, 0], sizes = [2, 64], strides = [1, 1]} : vector<2x192xf32> to vector<2x64xf32>
    %320 = vector.extract_strided_slice %318 {offsets = [0, 0], sizes = [2, 64], strides = [1, 1]} : vector<2x192xf32> to vector<2x64xf32>
    %321 = arith.addf %319, %320 : vector<2x64xf32>
    %322 = arith.negf %321 : vector<2x64xf32>
    %323 = math.exp %322 : vector<2x64xf32>
    %cst_83 = arith.constant 1.000000e+00 : f32
    %324 = vector.broadcast %cst_83 : f32 to vector<2x64xf32>
    %325 = arith.addf %324, %323 : vector<2x64xf32>
    %326 = arith.divf %324, %325 : vector<2x64xf32>
    %327 = vector.extract_strided_slice %314 {offsets = [0, 64], sizes = [2, 64], strides = [1, 1]} : vector<2x192xf32> to vector<2x64xf32>
    %328 = vector.extract_strided_slice %318 {offsets = [0, 64], sizes = [2, 64], strides = [1, 1]} : vector<2x192xf32> to vector<2x64xf32>
    %329 = arith.addf %327, %328 : vector<2x64xf32>
    %330 = arith.negf %329 : vector<2x64xf32>
    %331 = math.exp %330 : vector<2x64xf32>
    %cst_84 = arith.constant 1.000000e+00 : f32
    %332 = vector.broadcast %cst_84 : f32 to vector<2x64xf32>
    %333 = arith.addf %332, %331 : vector<2x64xf32>
    %334 = arith.divf %332, %333 : vector<2x64xf32>
    %335 = vector.extract_strided_slice %314 {offsets = [0, 128], sizes = [2, 64], strides = [1, 1]} : vector<2x192xf32> to vector<2x64xf32>
    %336 = vector.extract_strided_slice %318 {offsets = [0, 128], sizes = [2, 64], strides = [1, 1]} : vector<2x192xf32> to vector<2x64xf32>
    %337 = arith.mulf %326, %336 : vector<2x64xf32>
    %338 = arith.addf %335, %337 : vector<2x64xf32>
    %339 = math.tanh %338 : vector<2x64xf32>
    %340 = arith.subf %269, %339 : vector<2x64xf32>
    %341 = arith.mulf %334, %340 : vector<2x64xf32>
    %342 = arith.addf %339, %341 : vector<2x64xf32>
    %343 = vector.extract_strided_slice %313 {offsets = [0, 192], sizes = [2, 192], strides = [1, 1]} : vector<2x384xf32> to vector<2x192xf32>
    %344 = arith.truncf %298 : vector<2x64xf32> to vector<2x64xbf16>
    %cst_85 = arith.constant dense<0.000000e+00> : vector<2x192xf32>
    %345 = tpu.matmul %344, %12, %cst_85 {dimension_numbers = #tpu.dot_dimension_numbers<[1], [0], [0], [1], [0, 0, 1, 1], [], []>} : vector<2x64xbf16>, vector<64x192xbf16>, vector<2x192xf32> -> vector<2x192xf32>
    %346 = vector.broadcast %13 : vector<1x192xf32> to vector<2x192xf32>
    %347 = arith.addf %345, %346 : vector<2x192xf32>
    %348 = vector.extract_strided_slice %343 {offsets = [0, 0], sizes = [2, 64], strides = [1, 1]} : vector<2x192xf32> to vector<2x64xf32>
    %349 = vector.extract_strided_slice %347 {offsets = [0, 0], sizes = [2, 64], strides = [1, 1]} : vector<2x192xf32> to vector<2x64xf32>
    %350 = arith.addf %348, %349 : vector<2x64xf32>
    %351 = arith.negf %350 : vector<2x64xf32>
    %352 = math.exp %351 : vector<2x64xf32>
    %cst_86 = arith.constant 1.000000e+00 : f32
    %353 = vector.broadcast %cst_86 : f32 to vector<2x64xf32>
    %354 = arith.addf %353, %352 : vector<2x64xf32>
    %355 = arith.divf %353, %354 : vector<2x64xf32>
    %356 = vector.extract_strided_slice %343 {offsets = [0, 64], sizes = [2, 64], strides = [1, 1]} : vector<2x192xf32> to vector<2x64xf32>
    %357 = vector.extract_strided_slice %347 {offsets = [0, 64], sizes = [2, 64], strides = [1, 1]} : vector<2x192xf32> to vector<2x64xf32>
    %358 = arith.addf %356, %357 : vector<2x64xf32>
    %359 = arith.negf %358 : vector<2x64xf32>
    %360 = math.exp %359 : vector<2x64xf32>
    %cst_87 = arith.constant 1.000000e+00 : f32
    %361 = vector.broadcast %cst_87 : f32 to vector<2x64xf32>
    %362 = arith.addf %361, %360 : vector<2x64xf32>
    %363 = arith.divf %361, %362 : vector<2x64xf32>
    %364 = vector.extract_strided_slice %343 {offsets = [0, 128], sizes = [2, 64], strides = [1, 1]} : vector<2x192xf32> to vector<2x64xf32>
    %365 = vector.extract_strided_slice %347 {offsets = [0, 128], sizes = [2, 64], strides = [1, 1]} : vector<2x192xf32> to vector<2x64xf32>
    %366 = arith.mulf %355, %365 : vector<2x64xf32>
    %367 = arith.addf %364, %366 : vector<2x64xf32>
    %368 = math.tanh %367 : vector<2x64xf32>
    %369 = arith.subf %298, %368 : vector<2x64xf32>
    %370 = arith.mulf %363, %369 : vector<2x64xf32>
    %371 = arith.addf %368, %370 : vector<2x64xf32>
    %372 = arith.index_cast %c4_i32 : i32 to index
    %c0_88 = arith.constant 0 : index
    %c0_89 = arith.constant 0 : index
    %373 = vector.load %arg10[%372, %c0_88, %c0_89] : memref<16x2x64xf32, #tpu.memory_space<vmem>>, vector<1x2x64xf32>
    %374 = vector.shape_cast %373 : vector<1x2x64xf32> to vector<2x64xf32>
    %375 = vector.shape_cast %342 : vector<2x64xf32> to vector<1x2x64xf32>
    tpu.vector_store %arg10[%372, %c0_88, %c0_89], %375 {strides = array<i32>} : memref<16x2x64xf32, #tpu.memory_space<vmem>>, vector<1x2x64xf32>,
    %376 = arith.index_cast %307 : i32 to index
    %c0_90 = arith.constant 0 : index
    %c0_91 = arith.constant 0 : index
    %377 = vector.load %arg11[%376, %c0_90, %c0_91] : memref<16x2x64xf32, #tpu.memory_space<vmem>>, vector<1x2x64xf32>
    %378 = vector.shape_cast %377 : vector<1x2x64xf32> to vector<2x64xf32>
    %379 = vector.shape_cast %371 : vector<2x64xf32> to vector<1x2x64xf32>
    tpu.vector_store %arg11[%376, %c0_90, %c0_91], %379 {strides = array<i32>} : memref<16x2x64xf32, #tpu.memory_space<vmem>>, vector<1x2x64xf32>,
    %c5_i32 = arith.constant 5 : i32
    %c15_i32_92 = arith.constant 15 : i32
    %380 = arith.subi %c15_i32_92, %c5_i32 : i32
    %381 = arith.index_cast %c5_i32 : i32 to index
    %c0_93 = arith.constant 0 : index
    %c0_94 = arith.constant 0 : index
    %382 = vector.load %arg9[%381, %c0_93, %c0_94] : memref<16x2x384xf32, #tpu.memory_space<vmem>>, vector<1x2x384xf32>
    %383 = vector.shape_cast %382 : vector<1x2x384xf32> to vector<2x384xf32>
    %384 = arith.index_cast %380 : i32 to index
    %c0_95 = arith.constant 0 : index
    %c0_96 = arith.constant 0 : index
    %385 = vector.load %arg9[%384, %c0_95, %c0_96] : memref<16x2x384xf32, #tpu.memory_space<vmem>>, vector<1x2x384xf32>
    %386 = vector.shape_cast %385 : vector<1x2x384xf32> to vector<2x384xf32>
    %387 = vector.extract_strided_slice %383 {offsets = [0, 0], sizes = [2, 192], strides = [1, 1]} : vector<2x384xf32> to vector<2x192xf32>
    %388 = arith.truncf %342 : vector<2x64xf32> to vector<2x64xbf16>
    %cst_97 = arith.constant dense<0.000000e+00> : vector<2x192xf32>
    %389 = tpu.matmul %388, %10, %cst_97 {dimension_numbers = #tpu.dot_dimension_numbers<[1], [0], [0], [1], [0, 0, 1, 1], [], []>} : vector<2x64xbf16>, vector<64x192xbf16>, vector<2x192xf32> -> vector<2x192xf32>
    %390 = vector.broadcast %11 : vector<1x192xf32> to vector<2x192xf32>
    %391 = arith.addf %389, %390 : vector<2x192xf32>
    %392 = vector.extract_strided_slice %387 {offsets = [0, 0], sizes = [2, 64], strides = [1, 1]} : vector<2x192xf32> to vector<2x64xf32>
    %393 = vector.extract_strided_slice %391 {offsets = [0, 0], sizes = [2, 64], strides = [1, 1]} : vector<2x192xf32> to vector<2x64xf32>
    %394 = arith.addf %392, %393 : vector<2x64xf32>
    %395 = arith.negf %394 : vector<2x64xf32>
    %396 = math.exp %395 : vector<2x64xf32>
    %cst_98 = arith.constant 1.000000e+00 : f32
    %397 = vector.broadcast %cst_98 : f32 to vector<2x64xf32>
    %398 = arith.addf %397, %396 : vector<2x64xf32>
    %399 = arith.divf %397, %398 : vector<2x64xf32>
    %400 = vector.extract_strided_slice %387 {offsets = [0, 64], sizes = [2, 64], strides = [1, 1]} : vector<2x192xf32> to vector<2x64xf32>
    %401 = vector.extract_strided_slice %391 {offsets = [0, 64], sizes = [2, 64], strides = [1, 1]} : vector<2x192xf32> to vector<2x64xf32>
    %402 = arith.addf %400, %401 : vector<2x64xf32>
    %403 = arith.negf %402 : vector<2x64xf32>
    %404 = math.exp %403 : vector<2x64xf32>
    %cst_99 = arith.constant 1.000000e+00 : f32
    %405 = vector.broadcast %cst_99 : f32 to vector<2x64xf32>
    %406 = arith.addf %405, %404 : vector<2x64xf32>
    %407 = arith.divf %405, %406 : vector<2x64xf32>
    %408 = vector.extract_strided_slice %387 {offsets = [0, 128], sizes = [2, 64], strides = [1, 1]} : vector<2x192xf32> to vector<2x64xf32>
    %409 = vector.extract_strided_slice %391 {offsets = [0, 128], sizes = [2, 64], strides = [1, 1]} : vector<2x192xf32> to vector<2x64xf32>
    %410 = arith.mulf %399, %409 : vector<2x64xf32>
    %411 = arith.addf %408, %410 : vector<2x64xf32>
    %412 = math.tanh %411 : vector<2x64xf32>
    %413 = arith.subf %342, %412 : vector<2x64xf32>
    %414 = arith.mulf %407, %413 : vector<2x64xf32>
    %415 = arith.addf %412, %414 : vector<2x64xf32>
    %416 = vector.extract_strided_slice %386 {offsets = [0, 192], sizes = [2, 192], strides = [1, 1]} : vector<2x384xf32> to vector<2x192xf32>
    %417 = arith.truncf %371 : vector<2x64xf32> to vector<2x64xbf16>
    %cst_100 = arith.constant dense<0.000000e+00> : vector<2x192xf32>
    %418 = tpu.matmul %417, %12, %cst_100 {dimension_numbers = #tpu.dot_dimension_numbers<[1], [0], [0], [1], [0, 0, 1, 1], [], []>} : vector<2x64xbf16>, vector<64x192xbf16>, vector<2x192xf32> -> vector<2x192xf32>
    %419 = vector.broadcast %13 : vector<1x192xf32> to vector<2x192xf32>
    %420 = arith.addf %418, %419 : vector<2x192xf32>
    %421 = vector.extract_strided_slice %416 {offsets = [0, 0], sizes = [2, 64], strides = [1, 1]} : vector<2x192xf32> to vector<2x64xf32>
    %422 = vector.extract_strided_slice %420 {offsets = [0, 0], sizes = [2, 64], strides = [1, 1]} : vector<2x192xf32> to vector<2x64xf32>
    %423 = arith.addf %421, %422 : vector<2x64xf32>
    %424 = arith.negf %423 : vector<2x64xf32>
    %425 = math.exp %424 : vector<2x64xf32>
    %cst_101 = arith.constant 1.000000e+00 : f32
    %426 = vector.broadcast %cst_101 : f32 to vector<2x64xf32>
    %427 = arith.addf %426, %425 : vector<2x64xf32>
    %428 = arith.divf %426, %427 : vector<2x64xf32>
    %429 = vector.extract_strided_slice %416 {offsets = [0, 64], sizes = [2, 64], strides = [1, 1]} : vector<2x192xf32> to vector<2x64xf32>
    %430 = vector.extract_strided_slice %420 {offsets = [0, 64], sizes = [2, 64], strides = [1, 1]} : vector<2x192xf32> to vector<2x64xf32>
    %431 = arith.addf %429, %430 : vector<2x64xf32>
    %432 = arith.negf %431 : vector<2x64xf32>
    %433 = math.exp %432 : vector<2x64xf32>
    %cst_102 = arith.constant 1.000000e+00 : f32
    %434 = vector.broadcast %cst_102 : f32 to vector<2x64xf32>
    %435 = arith.addf %434, %433 : vector<2x64xf32>
    %436 = arith.divf %434, %435 : vector<2x64xf32>
    %437 = vector.extract_strided_slice %416 {offsets = [0, 128], sizes = [2, 64], strides = [1, 1]} : vector<2x192xf32> to vector<2x64xf32>
    %438 = vector.extract_strided_slice %420 {offsets = [0, 128], sizes = [2, 64], strides = [1, 1]} : vector<2x192xf32> to vector<2x64xf32>
    %439 = arith.mulf %428, %438 : vector<2x64xf32>
    %440 = arith.addf %437, %439 : vector<2x64xf32>
    %441 = math.tanh %440 : vector<2x64xf32>
    %442 = arith.subf %371, %441 : vector<2x64xf32>
    %443 = arith.mulf %436, %442 : vector<2x64xf32>
    %444 = arith.addf %441, %443 : vector<2x64xf32>
    %445 = arith.index_cast %c5_i32 : i32 to index
    %c0_103 = arith.constant 0 : index
    %c0_104 = arith.constant 0 : index
    %446 = vector.load %arg10[%445, %c0_103, %c0_104] : memref<16x2x64xf32, #tpu.memory_space<vmem>>, vector<1x2x64xf32>
    %447 = vector.shape_cast %446 : vector<1x2x64xf32> to vector<2x64xf32>
    %448 = vector.shape_cast %415 : vector<2x64xf32> to vector<1x2x64xf32>
    tpu.vector_store %arg10[%445, %c0_103, %c0_104], %448 {strides = array<i32>} : memref<16x2x64xf32, #tpu.memory_space<vmem>>, vector<1x2x64xf32>,
    %449 = arith.index_cast %380 : i32 to index
    %c0_105 = arith.constant 0 : index
    %c0_106 = arith.constant 0 : index
    %450 = vector.load %arg11[%449, %c0_105, %c0_106] : memref<16x2x64xf32, #tpu.memory_space<vmem>>, vector<1x2x64xf32>
    %451 = vector.shape_cast %450 : vector<1x2x64xf32> to vector<2x64xf32>
    %452 = vector.shape_cast %444 : vector<2x64xf32> to vector<1x2x64xf32>
    tpu.vector_store %arg11[%449, %c0_105, %c0_106], %452 {strides = array<i32>} : memref<16x2x64xf32, #tpu.memory_space<vmem>>, vector<1x2x64xf32>,
    %c6_i32 = arith.constant 6 : i32
    %c15_i32_107 = arith.constant 15 : i32
    %453 = arith.subi %c15_i32_107, %c6_i32 : i32
    %454 = arith.index_cast %c6_i32 : i32 to index
    %c0_108 = arith.constant 0 : index
    %c0_109 = arith.constant 0 : index
    %455 = vector.load %arg9[%454, %c0_108, %c0_109] : memref<16x2x384xf32, #tpu.memory_space<vmem>>, vector<1x2x384xf32>
    %456 = vector.shape_cast %455 : vector<1x2x384xf32> to vector<2x384xf32>
    %457 = arith.index_cast %453 : i32 to index
    %c0_110 = arith.constant 0 : index
    %c0_111 = arith.constant 0 : index
    %458 = vector.load %arg9[%457, %c0_110, %c0_111] : memref<16x2x384xf32, #tpu.memory_space<vmem>>, vector<1x2x384xf32>
    %459 = vector.shape_cast %458 : vector<1x2x384xf32> to vector<2x384xf32>
    %460 = vector.extract_strided_slice %456 {offsets = [0, 0], sizes = [2, 192], strides = [1, 1]} : vector<2x384xf32> to vector<2x192xf32>
    %461 = arith.truncf %415 : vector<2x64xf32> to vector<2x64xbf16>
    %cst_112 = arith.constant dense<0.000000e+00> : vector<2x192xf32>
    %462 = tpu.matmul %461, %10, %cst_112 {dimension_numbers = #tpu.dot_dimension_numbers<[1], [0], [0], [1], [0, 0, 1, 1], [], []>} : vector<2x64xbf16>, vector<64x192xbf16>, vector<2x192xf32> -> vector<2x192xf32>
    %463 = vector.broadcast %11 : vector<1x192xf32> to vector<2x192xf32>
    %464 = arith.addf %462, %463 : vector<2x192xf32>
    %465 = vector.extract_strided_slice %460 {offsets = [0, 0], sizes = [2, 64], strides = [1, 1]} : vector<2x192xf32> to vector<2x64xf32>
    %466 = vector.extract_strided_slice %464 {offsets = [0, 0], sizes = [2, 64], strides = [1, 1]} : vector<2x192xf32> to vector<2x64xf32>
    %467 = arith.addf %465, %466 : vector<2x64xf32>
    %468 = arith.negf %467 : vector<2x64xf32>
    %469 = math.exp %468 : vector<2x64xf32>
    %cst_113 = arith.constant 1.000000e+00 : f32
    %470 = vector.broadcast %cst_113 : f32 to vector<2x64xf32>
    %471 = arith.addf %470, %469 : vector<2x64xf32>
    %472 = arith.divf %470, %471 : vector<2x64xf32>
    %473 = vector.extract_strided_slice %460 {offsets = [0, 64], sizes = [2, 64], strides = [1, 1]} : vector<2x192xf32> to vector<2x64xf32>
    %474 = vector.extract_strided_slice %464 {offsets = [0, 64], sizes = [2, 64], strides = [1, 1]} : vector<2x192xf32> to vector<2x64xf32>
    %475 = arith.addf %473, %474 : vector<2x64xf32>
    %476 = arith.negf %475 : vector<2x64xf32>
    %477 = math.exp %476 : vector<2x64xf32>
    %cst_114 = arith.constant 1.000000e+00 : f32
    %478 = vector.broadcast %cst_114 : f32 to vector<2x64xf32>
    %479 = arith.addf %478, %477 : vector<2x64xf32>
    %480 = arith.divf %478, %479 : vector<2x64xf32>
    %481 = vector.extract_strided_slice %460 {offsets = [0, 128], sizes = [2, 64], strides = [1, 1]} : vector<2x192xf32> to vector<2x64xf32>
    %482 = vector.extract_strided_slice %464 {offsets = [0, 128], sizes = [2, 64], strides = [1, 1]} : vector<2x192xf32> to vector<2x64xf32>
    %483 = arith.mulf %472, %482 : vector<2x64xf32>
    %484 = arith.addf %481, %483 : vector<2x64xf32>
    %485 = math.tanh %484 : vector<2x64xf32>
    %486 = arith.subf %415, %485 : vector<2x64xf32>
    %487 = arith.mulf %480, %486 : vector<2x64xf32>
    %488 = arith.addf %485, %487 : vector<2x64xf32>
    %489 = vector.extract_strided_slice %459 {offsets = [0, 192], sizes = [2, 192], strides = [1, 1]} : vector<2x384xf32> to vector<2x192xf32>
    %490 = arith.truncf %444 : vector<2x64xf32> to vector<2x64xbf16>
    %cst_115 = arith.constant dense<0.000000e+00> : vector<2x192xf32>
    %491 = tpu.matmul %490, %12, %cst_115 {dimension_numbers = #tpu.dot_dimension_numbers<[1], [0], [0], [1], [0, 0, 1, 1], [], []>} : vector<2x64xbf16>, vector<64x192xbf16>, vector<2x192xf32> -> vector<2x192xf32>
    %492 = vector.broadcast %13 : vector<1x192xf32> to vector<2x192xf32>
    %493 = arith.addf %491, %492 : vector<2x192xf32>
    %494 = vector.extract_strided_slice %489 {offsets = [0, 0], sizes = [2, 64], strides = [1, 1]} : vector<2x192xf32> to vector<2x64xf32>
    %495 = vector.extract_strided_slice %493 {offsets = [0, 0], sizes = [2, 64], strides = [1, 1]} : vector<2x192xf32> to vector<2x64xf32>
    %496 = arith.addf %494, %495 : vector<2x64xf32>
    %497 = arith.negf %496 : vector<2x64xf32>
    %498 = math.exp %497 : vector<2x64xf32>
    %cst_116 = arith.constant 1.000000e+00 : f32
    %499 = vector.broadcast %cst_116 : f32 to vector<2x64xf32>
    %500 = arith.addf %499, %498 : vector<2x64xf32>
    %501 = arith.divf %499, %500 : vector<2x64xf32>
    %502 = vector.extract_strided_slice %489 {offsets = [0, 64], sizes = [2, 64], strides = [1, 1]} : vector<2x192xf32> to vector<2x64xf32>
    %503 = vector.extract_strided_slice %493 {offsets = [0, 64], sizes = [2, 64], strides = [1, 1]} : vector<2x192xf32> to vector<2x64xf32>
    %504 = arith.addf %502, %503 : vector<2x64xf32>
    %505 = arith.negf %504 : vector<2x64xf32>
    %506 = math.exp %505 : vector<2x64xf32>
    %cst_117 = arith.constant 1.000000e+00 : f32
    %507 = vector.broadcast %cst_117 : f32 to vector<2x64xf32>
    %508 = arith.addf %507, %506 : vector<2x64xf32>
    %509 = arith.divf %507, %508 : vector<2x64xf32>
    %510 = vector.extract_strided_slice %489 {offsets = [0, 128], sizes = [2, 64], strides = [1, 1]} : vector<2x192xf32> to vector<2x64xf32>
    %511 = vector.extract_strided_slice %493 {offsets = [0, 128], sizes = [2, 64], strides = [1, 1]} : vector<2x192xf32> to vector<2x64xf32>
    %512 = arith.mulf %501, %511 : vector<2x64xf32>
    %513 = arith.addf %510, %512 : vector<2x64xf32>
    %514 = math.tanh %513 : vector<2x64xf32>
    %515 = arith.subf %444, %514 : vector<2x64xf32>
    %516 = arith.mulf %509, %515 : vector<2x64xf32>
    %517 = arith.addf %514, %516 : vector<2x64xf32>
    %518 = arith.index_cast %c6_i32 : i32 to index
    %c0_118 = arith.constant 0 : index
    %c0_119 = arith.constant 0 : index
    %519 = vector.load %arg10[%518, %c0_118, %c0_119] : memref<16x2x64xf32, #tpu.memory_space<vmem>>, vector<1x2x64xf32>
    %520 = vector.shape_cast %519 : vector<1x2x64xf32> to vector<2x64xf32>
    %521 = vector.shape_cast %488 : vector<2x64xf32> to vector<1x2x64xf32>
    tpu.vector_store %arg10[%518, %c0_118, %c0_119], %521 {strides = array<i32>} : memref<16x2x64xf32, #tpu.memory_space<vmem>>, vector<1x2x64xf32>,
    %522 = arith.index_cast %453 : i32 to index
    %c0_120 = arith.constant 0 : index
    %c0_121 = arith.constant 0 : index
    %523 = vector.load %arg11[%522, %c0_120, %c0_121] : memref<16x2x64xf32, #tpu.memory_space<vmem>>, vector<1x2x64xf32>
    %524 = vector.shape_cast %523 : vector<1x2x64xf32> to vector<2x64xf32>
    %525 = vector.shape_cast %517 : vector<2x64xf32> to vector<1x2x64xf32>
    tpu.vector_store %arg11[%522, %c0_120, %c0_121], %525 {strides = array<i32>} : memref<16x2x64xf32, #tpu.memory_space<vmem>>, vector<1x2x64xf32>,
    %c7_i32 = arith.constant 7 : i32
    %c15_i32_122 = arith.constant 15 : i32
    %526 = arith.subi %c15_i32_122, %c7_i32 : i32
    %527 = arith.index_cast %c7_i32 : i32 to index
    %c0_123 = arith.constant 0 : index
    %c0_124 = arith.constant 0 : index
    %528 = vector.load %arg9[%527, %c0_123, %c0_124] : memref<16x2x384xf32, #tpu.memory_space<vmem>>, vector<1x2x384xf32>
    %529 = vector.shape_cast %528 : vector<1x2x384xf32> to vector<2x384xf32>
    %530 = arith.index_cast %526 : i32 to index
    %c0_125 = arith.constant 0 : index
    %c0_126 = arith.constant 0 : index
    %531 = vector.load %arg9[%530, %c0_125, %c0_126] : memref<16x2x384xf32, #tpu.memory_space<vmem>>, vector<1x2x384xf32>
    %532 = vector.shape_cast %531 : vector<1x2x384xf32> to vector<2x384xf32>
    %533 = vector.extract_strided_slice %529 {offsets = [0, 0], sizes = [2, 192], strides = [1, 1]} : vector<2x384xf32> to vector<2x192xf32>
    %534 = arith.truncf %488 : vector<2x64xf32> to vector<2x64xbf16>
    %cst_127 = arith.constant dense<0.000000e+00> : vector<2x192xf32>
    %535 = tpu.matmul %534, %10, %cst_127 {dimension_numbers = #tpu.dot_dimension_numbers<[1], [0], [0], [1], [0, 0, 1, 1], [], []>} : vector<2x64xbf16>, vector<64x192xbf16>, vector<2x192xf32> -> vector<2x192xf32>
    %536 = vector.broadcast %11 : vector<1x192xf32> to vector<2x192xf32>
    %537 = arith.addf %535, %536 : vector<2x192xf32>
    %538 = vector.extract_strided_slice %533 {offsets = [0, 0], sizes = [2, 64], strides = [1, 1]} : vector<2x192xf32> to vector<2x64xf32>
    %539 = vector.extract_strided_slice %537 {offsets = [0, 0], sizes = [2, 64], strides = [1, 1]} : vector<2x192xf32> to vector<2x64xf32>
    %540 = arith.addf %538, %539 : vector<2x64xf32>
    %541 = arith.negf %540 : vector<2x64xf32>
    %542 = math.exp %541 : vector<2x64xf32>
    %cst_128 = arith.constant 1.000000e+00 : f32
    %543 = vector.broadcast %cst_128 : f32 to vector<2x64xf32>
    %544 = arith.addf %543, %542 : vector<2x64xf32>
    %545 = arith.divf %543, %544 : vector<2x64xf32>
    %546 = vector.extract_strided_slice %533 {offsets = [0, 64], sizes = [2, 64], strides = [1, 1]} : vector<2x192xf32> to vector<2x64xf32>
    %547 = vector.extract_strided_slice %537 {offsets = [0, 64], sizes = [2, 64], strides = [1, 1]} : vector<2x192xf32> to vector<2x64xf32>
    %548 = arith.addf %546, %547 : vector<2x64xf32>
    %549 = arith.negf %548 : vector<2x64xf32>
    %550 = math.exp %549 : vector<2x64xf32>
    %cst_129 = arith.constant 1.000000e+00 : f32
    %551 = vector.broadcast %cst_129 : f32 to vector<2x64xf32>
    %552 = arith.addf %551, %550 : vector<2x64xf32>
    %553 = arith.divf %551, %552 : vector<2x64xf32>
    %554 = vector.extract_strided_slice %533 {offsets = [0, 128], sizes = [2, 64], strides = [1, 1]} : vector<2x192xf32> to vector<2x64xf32>
    %555 = vector.extract_strided_slice %537 {offsets = [0, 128], sizes = [2, 64], strides = [1, 1]} : vector<2x192xf32> to vector<2x64xf32>
    %556 = arith.mulf %545, %555 : vector<2x64xf32>
    %557 = arith.addf %554, %556 : vector<2x64xf32>
    %558 = math.tanh %557 : vector<2x64xf32>
    %559 = arith.subf %488, %558 : vector<2x64xf32>
    %560 = arith.mulf %553, %559 : vector<2x64xf32>
    %561 = arith.addf %558, %560 : vector<2x64xf32>
    %562 = vector.extract_strided_slice %532 {offsets = [0, 192], sizes = [2, 192], strides = [1, 1]} : vector<2x384xf32> to vector<2x192xf32>
    %563 = arith.truncf %517 : vector<2x64xf32> to vector<2x64xbf16>
    %cst_130 = arith.constant dense<0.000000e+00> : vector<2x192xf32>
    %564 = tpu.matmul %563, %12, %cst_130 {dimension_numbers = #tpu.dot_dimension_numbers<[1], [0], [0], [1], [0, 0, 1, 1], [], []>} : vector<2x64xbf16>, vector<64x192xbf16>, vector<2x192xf32> -> vector<2x192xf32>
    %565 = vector.broadcast %13 : vector<1x192xf32> to vector<2x192xf32>
    %566 = arith.addf %564, %565 : vector<2x192xf32>
    %567 = vector.extract_strided_slice %562 {offsets = [0, 0], sizes = [2, 64], strides = [1, 1]} : vector<2x192xf32> to vector<2x64xf32>
    %568 = vector.extract_strided_slice %566 {offsets = [0, 0], sizes = [2, 64], strides = [1, 1]} : vector<2x192xf32> to vector<2x64xf32>
    %569 = arith.addf %567, %568 : vector<2x64xf32>
    %570 = arith.negf %569 : vector<2x64xf32>
    %571 = math.exp %570 : vector<2x64xf32>
    %cst_131 = arith.constant 1.000000e+00 : f32
    %572 = vector.broadcast %cst_131 : f32 to vector<2x64xf32>
    %573 = arith.addf %572, %571 : vector<2x64xf32>
    %574 = arith.divf %572, %573 : vector<2x64xf32>
    %575 = vector.extract_strided_slice %562 {offsets = [0, 64], sizes = [2, 64], strides = [1, 1]} : vector<2x192xf32> to vector<2x64xf32>
    %576 = vector.extract_strided_slice %566 {offsets = [0, 64], sizes = [2, 64], strides = [1, 1]} : vector<2x192xf32> to vector<2x64xf32>
    %577 = arith.addf %575, %576 : vector<2x64xf32>
    %578 = arith.negf %577 : vector<2x64xf32>
    %579 = math.exp %578 : vector<2x64xf32>
    %cst_132 = arith.constant 1.000000e+00 : f32
    %580 = vector.broadcast %cst_132 : f32 to vector<2x64xf32>
    %581 = arith.addf %580, %579 : vector<2x64xf32>
    %582 = arith.divf %580, %581 : vector<2x64xf32>
    %583 = vector.extract_strided_slice %562 {offsets = [0, 128], sizes = [2, 64], strides = [1, 1]} : vector<2x192xf32> to vector<2x64xf32>
    %584 = vector.extract_strided_slice %566 {offsets = [0, 128], sizes = [2, 64], strides = [1, 1]} : vector<2x192xf32> to vector<2x64xf32>
    %585 = arith.mulf %574, %584 : vector<2x64xf32>
    %586 = arith.addf %583, %585 : vector<2x64xf32>
    %587 = math.tanh %586 : vector<2x64xf32>
    %588 = arith.subf %517, %587 : vector<2x64xf32>
    %589 = arith.mulf %582, %588 : vector<2x64xf32>
    %590 = arith.addf %587, %589 : vector<2x64xf32>
    %591 = arith.index_cast %c7_i32 : i32 to index
    %c0_133 = arith.constant 0 : index
    %c0_134 = arith.constant 0 : index
    %592 = vector.load %arg10[%591, %c0_133, %c0_134] : memref<16x2x64xf32, #tpu.memory_space<vmem>>, vector<1x2x64xf32>
    %593 = vector.shape_cast %592 : vector<1x2x64xf32> to vector<2x64xf32>
    %594 = vector.shape_cast %561 : vector<2x64xf32> to vector<1x2x64xf32>
    tpu.vector_store %arg10[%591, %c0_133, %c0_134], %594 {strides = array<i32>} : memref<16x2x64xf32, #tpu.memory_space<vmem>>, vector<1x2x64xf32>,
    %595 = arith.index_cast %526 : i32 to index
    %c0_135 = arith.constant 0 : index
    %c0_136 = arith.constant 0 : index
    %596 = vector.load %arg11[%595, %c0_135, %c0_136] : memref<16x2x64xf32, #tpu.memory_space<vmem>>, vector<1x2x64xf32>
    %597 = vector.shape_cast %596 : vector<1x2x64xf32> to vector<2x64xf32>
    %598 = vector.shape_cast %590 : vector<2x64xf32> to vector<1x2x64xf32>
    tpu.vector_store %arg11[%595, %c0_135, %c0_136], %598 {strides = array<i32>} : memref<16x2x64xf32, #tpu.memory_space<vmem>>, vector<1x2x64xf32>,
    %c8_i32 = arith.constant 8 : i32
    %c15_i32_137 = arith.constant 15 : i32
    %599 = arith.subi %c15_i32_137, %c8_i32 : i32
    %600 = arith.index_cast %c8_i32 : i32 to index
    %c0_138 = arith.constant 0 : index
    %c0_139 = arith.constant 0 : index
    %601 = vector.load %arg9[%600, %c0_138, %c0_139] : memref<16x2x384xf32, #tpu.memory_space<vmem>>, vector<1x2x384xf32>
    %602 = vector.shape_cast %601 : vector<1x2x384xf32> to vector<2x384xf32>
    %603 = arith.index_cast %599 : i32 to index
    %c0_140 = arith.constant 0 : index
    %c0_141 = arith.constant 0 : index
    %604 = vector.load %arg9[%603, %c0_140, %c0_141] : memref<16x2x384xf32, #tpu.memory_space<vmem>>, vector<1x2x384xf32>
    %605 = vector.shape_cast %604 : vector<1x2x384xf32> to vector<2x384xf32>
    %606 = vector.extract_strided_slice %602 {offsets = [0, 0], sizes = [2, 192], strides = [1, 1]} : vector<2x384xf32> to vector<2x192xf32>
    %607 = arith.truncf %561 : vector<2x64xf32> to vector<2x64xbf16>
    %cst_142 = arith.constant dense<0.000000e+00> : vector<2x192xf32>
    %608 = tpu.matmul %607, %10, %cst_142 {dimension_numbers = #tpu.dot_dimension_numbers<[1], [0], [0], [1], [0, 0, 1, 1], [], []>} : vector<2x64xbf16>, vector<64x192xbf16>, vector<2x192xf32> -> vector<2x192xf32>
    %609 = vector.broadcast %11 : vector<1x192xf32> to vector<2x192xf32>
    %610 = arith.addf %608, %609 : vector<2x192xf32>
    %611 = vector.extract_strided_slice %606 {offsets = [0, 0], sizes = [2, 64], strides = [1, 1]} : vector<2x192xf32> to vector<2x64xf32>
    %612 = vector.extract_strided_slice %610 {offsets = [0, 0], sizes = [2, 64], strides = [1, 1]} : vector<2x192xf32> to vector<2x64xf32>
    %613 = arith.addf %611, %612 : vector<2x64xf32>
    %614 = arith.negf %613 : vector<2x64xf32>
    %615 = math.exp %614 : vector<2x64xf32>
    %cst_143 = arith.constant 1.000000e+00 : f32
    %616 = vector.broadcast %cst_143 : f32 to vector<2x64xf32>
    %617 = arith.addf %616, %615 : vector<2x64xf32>
    %618 = arith.divf %616, %617 : vector<2x64xf32>
    %619 = vector.extract_strided_slice %606 {offsets = [0, 64], sizes = [2, 64], strides = [1, 1]} : vector<2x192xf32> to vector<2x64xf32>
    %620 = vector.extract_strided_slice %610 {offsets = [0, 64], sizes = [2, 64], strides = [1, 1]} : vector<2x192xf32> to vector<2x64xf32>
    %621 = arith.addf %619, %620 : vector<2x64xf32>
    %622 = arith.negf %621 : vector<2x64xf32>
    %623 = math.exp %622 : vector<2x64xf32>
    %cst_144 = arith.constant 1.000000e+00 : f32
    %624 = vector.broadcast %cst_144 : f32 to vector<2x64xf32>
    %625 = arith.addf %624, %623 : vector<2x64xf32>
    %626 = arith.divf %624, %625 : vector<2x64xf32>
    %627 = vector.extract_strided_slice %606 {offsets = [0, 128], sizes = [2, 64], strides = [1, 1]} : vector<2x192xf32> to vector<2x64xf32>
    %628 = vector.extract_strided_slice %610 {offsets = [0, 128], sizes = [2, 64], strides = [1, 1]} : vector<2x192xf32> to vector<2x64xf32>
    %629 = arith.mulf %618, %628 : vector<2x64xf32>
    %630 = arith.addf %627, %629 : vector<2x64xf32>
    %631 = math.tanh %630 : vector<2x64xf32>
    %632 = arith.subf %561, %631 : vector<2x64xf32>
    %633 = arith.mulf %626, %632 : vector<2x64xf32>
    %634 = arith.addf %631, %633 : vector<2x64xf32>
    %635 = vector.extract_strided_slice %605 {offsets = [0, 192], sizes = [2, 192], strides = [1, 1]} : vector<2x384xf32> to vector<2x192xf32>
    %636 = arith.truncf %590 : vector<2x64xf32> to vector<2x64xbf16>
    %cst_145 = arith.constant dense<0.000000e+00> : vector<2x192xf32>
    %637 = tpu.matmul %636, %12, %cst_145 {dimension_numbers = #tpu.dot_dimension_numbers<[1], [0], [0], [1], [0, 0, 1, 1], [], []>} : vector<2x64xbf16>, vector<64x192xbf16>, vector<2x192xf32> -> vector<2x192xf32>
    %638 = vector.broadcast %13 : vector<1x192xf32> to vector<2x192xf32>
    %639 = arith.addf %637, %638 : vector<2x192xf32>
    %640 = vector.extract_strided_slice %635 {offsets = [0, 0], sizes = [2, 64], strides = [1, 1]} : vector<2x192xf32> to vector<2x64xf32>
    %641 = vector.extract_strided_slice %639 {offsets = [0, 0], sizes = [2, 64], strides = [1, 1]} : vector<2x192xf32> to vector<2x64xf32>
    %642 = arith.addf %640, %641 : vector<2x64xf32>
    %643 = arith.negf %642 : vector<2x64xf32>
    %644 = math.exp %643 : vector<2x64xf32>
    %cst_146 = arith.constant 1.000000e+00 : f32
    %645 = vector.broadcast %cst_146 : f32 to vector<2x64xf32>
    %646 = arith.addf %645, %644 : vector<2x64xf32>
    %647 = arith.divf %645, %646 : vector<2x64xf32>
    %648 = vector.extract_strided_slice %635 {offsets = [0, 64], sizes = [2, 64], strides = [1, 1]} : vector<2x192xf32> to vector<2x64xf32>
    %649 = vector.extract_strided_slice %639 {offsets = [0, 64], sizes = [2, 64], strides = [1, 1]} : vector<2x192xf32> to vector<2x64xf32>
    %650 = arith.addf %648, %649 : vector<2x64xf32>
    %651 = arith.negf %650 : vector<2x64xf32>
    %652 = math.exp %651 : vector<2x64xf32>
    %cst_147 = arith.constant 1.000000e+00 : f32
    %653 = vector.broadcast %cst_147 : f32 to vector<2x64xf32>
    %654 = arith.addf %653, %652 : vector<2x64xf32>
    %655 = arith.divf %653, %654 : vector<2x64xf32>
    %656 = vector.extract_strided_slice %635 {offsets = [0, 128], sizes = [2, 64], strides = [1, 1]} : vector<2x192xf32> to vector<2x64xf32>
    %657 = vector.extract_strided_slice %639 {offsets = [0, 128], sizes = [2, 64], strides = [1, 1]} : vector<2x192xf32> to vector<2x64xf32>
    %658 = arith.mulf %647, %657 : vector<2x64xf32>
    %659 = arith.addf %656, %658 : vector<2x64xf32>
    %660 = math.tanh %659 : vector<2x64xf32>
    %661 = arith.subf %590, %660 : vector<2x64xf32>
    %662 = arith.mulf %655, %661 : vector<2x64xf32>
    %663 = arith.addf %660, %662 : vector<2x64xf32>
    %664 = arith.index_cast %c8_i32 : i32 to index
    %c0_148 = arith.constant 0 : index
    %c0_149 = arith.constant 0 : index
    %665 = vector.load %arg10[%664, %c0_148, %c0_149] : memref<16x2x64xf32, #tpu.memory_space<vmem>>, vector<1x2x64xf32>
    %666 = vector.shape_cast %665 : vector<1x2x64xf32> to vector<2x64xf32>
    %667 = vector.shape_cast %634 : vector<2x64xf32> to vector<1x2x64xf32>
    tpu.vector_store %arg10[%664, %c0_148, %c0_149], %667 {strides = array<i32>} : memref<16x2x64xf32, #tpu.memory_space<vmem>>, vector<1x2x64xf32>,
    %668 = arith.index_cast %599 : i32 to index
    %c0_150 = arith.constant 0 : index
    %c0_151 = arith.constant 0 : index
    %669 = vector.load %arg11[%668, %c0_150, %c0_151] : memref<16x2x64xf32, #tpu.memory_space<vmem>>, vector<1x2x64xf32>
    %670 = vector.shape_cast %669 : vector<1x2x64xf32> to vector<2x64xf32>
    %671 = vector.shape_cast %663 : vector<2x64xf32> to vector<1x2x64xf32>
    tpu.vector_store %arg11[%668, %c0_150, %c0_151], %671 {strides = array<i32>} : memref<16x2x64xf32, #tpu.memory_space<vmem>>, vector<1x2x64xf32>,
    %c9_i32 = arith.constant 9 : i32
    %c15_i32_152 = arith.constant 15 : i32
    %672 = arith.subi %c15_i32_152, %c9_i32 : i32
    %673 = arith.index_cast %c9_i32 : i32 to index
    %c0_153 = arith.constant 0 : index
    %c0_154 = arith.constant 0 : index
    %674 = vector.load %arg9[%673, %c0_153, %c0_154] : memref<16x2x384xf32, #tpu.memory_space<vmem>>, vector<1x2x384xf32>
    %675 = vector.shape_cast %674 : vector<1x2x384xf32> to vector<2x384xf32>
    %676 = arith.index_cast %672 : i32 to index
    %c0_155 = arith.constant 0 : index
    %c0_156 = arith.constant 0 : index
    %677 = vector.load %arg9[%676, %c0_155, %c0_156] : memref<16x2x384xf32, #tpu.memory_space<vmem>>, vector<1x2x384xf32>
    %678 = vector.shape_cast %677 : vector<1x2x384xf32> to vector<2x384xf32>
    %679 = vector.extract_strided_slice %675 {offsets = [0, 0], sizes = [2, 192], strides = [1, 1]} : vector<2x384xf32> to vector<2x192xf32>
    %680 = arith.truncf %634 : vector<2x64xf32> to vector<2x64xbf16>
    %cst_157 = arith.constant dense<0.000000e+00> : vector<2x192xf32>
    %681 = tpu.matmul %680, %10, %cst_157 {dimension_numbers = #tpu.dot_dimension_numbers<[1], [0], [0], [1], [0, 0, 1, 1], [], []>} : vector<2x64xbf16>, vector<64x192xbf16>, vector<2x192xf32> -> vector<2x192xf32>
    %682 = vector.broadcast %11 : vector<1x192xf32> to vector<2x192xf32>
    %683 = arith.addf %681, %682 : vector<2x192xf32>
    %684 = vector.extract_strided_slice %679 {offsets = [0, 0], sizes = [2, 64], strides = [1, 1]} : vector<2x192xf32> to vector<2x64xf32>
    %685 = vector.extract_strided_slice %683 {offsets = [0, 0], sizes = [2, 64], strides = [1, 1]} : vector<2x192xf32> to vector<2x64xf32>
    %686 = arith.addf %684, %685 : vector<2x64xf32>
    %687 = arith.negf %686 : vector<2x64xf32>
    %688 = math.exp %687 : vector<2x64xf32>
    %cst_158 = arith.constant 1.000000e+00 : f32
    %689 = vector.broadcast %cst_158 : f32 to vector<2x64xf32>
    %690 = arith.addf %689, %688 : vector<2x64xf32>
    %691 = arith.divf %689, %690 : vector<2x64xf32>
    %692 = vector.extract_strided_slice %679 {offsets = [0, 64], sizes = [2, 64], strides = [1, 1]} : vector<2x192xf32> to vector<2x64xf32>
    %693 = vector.extract_strided_slice %683 {offsets = [0, 64], sizes = [2, 64], strides = [1, 1]} : vector<2x192xf32> to vector<2x64xf32>
    %694 = arith.addf %692, %693 : vector<2x64xf32>
    %695 = arith.negf %694 : vector<2x64xf32>
    %696 = math.exp %695 : vector<2x64xf32>
    %cst_159 = arith.constant 1.000000e+00 : f32
    %697 = vector.broadcast %cst_159 : f32 to vector<2x64xf32>
    %698 = arith.addf %697, %696 : vector<2x64xf32>
    %699 = arith.divf %697, %698 : vector<2x64xf32>
    %700 = vector.extract_strided_slice %679 {offsets = [0, 128], sizes = [2, 64], strides = [1, 1]} : vector<2x192xf32> to vector<2x64xf32>
    %701 = vector.extract_strided_slice %683 {offsets = [0, 128], sizes = [2, 64], strides = [1, 1]} : vector<2x192xf32> to vector<2x64xf32>
    %702 = arith.mulf %691, %701 : vector<2x64xf32>
    %703 = arith.addf %700, %702 : vector<2x64xf32>
    %704 = math.tanh %703 : vector<2x64xf32>
    %705 = arith.subf %634, %704 : vector<2x64xf32>
    %706 = arith.mulf %699, %705 : vector<2x64xf32>
    %707 = arith.addf %704, %706 : vector<2x64xf32>
    %708 = vector.extract_strided_slice %678 {offsets = [0, 192], sizes = [2, 192], strides = [1, 1]} : vector<2x384xf32> to vector<2x192xf32>
    %709 = arith.truncf %663 : vector<2x64xf32> to vector<2x64xbf16>
    %cst_160 = arith.constant dense<0.000000e+00> : vector<2x192xf32>
    %710 = tpu.matmul %709, %12, %cst_160 {dimension_numbers = #tpu.dot_dimension_numbers<[1], [0], [0], [1], [0, 0, 1, 1], [], []>} : vector<2x64xbf16>, vector<64x192xbf16>, vector<2x192xf32> -> vector<2x192xf32>
    %711 = vector.broadcast %13 : vector<1x192xf32> to vector<2x192xf32>
    %712 = arith.addf %710, %711 : vector<2x192xf32>
    %713 = vector.extract_strided_slice %708 {offsets = [0, 0], sizes = [2, 64], strides = [1, 1]} : vector<2x192xf32> to vector<2x64xf32>
    %714 = vector.extract_strided_slice %712 {offsets = [0, 0], sizes = [2, 64], strides = [1, 1]} : vector<2x192xf32> to vector<2x64xf32>
    %715 = arith.addf %713, %714 : vector<2x64xf32>
    %716 = arith.negf %715 : vector<2x64xf32>
    %717 = math.exp %716 : vector<2x64xf32>
    %cst_161 = arith.constant 1.000000e+00 : f32
    %718 = vector.broadcast %cst_161 : f32 to vector<2x64xf32>
    %719 = arith.addf %718, %717 : vector<2x64xf32>
    %720 = arith.divf %718, %719 : vector<2x64xf32>
    %721 = vector.extract_strided_slice %708 {offsets = [0, 64], sizes = [2, 64], strides = [1, 1]} : vector<2x192xf32> to vector<2x64xf32>
    %722 = vector.extract_strided_slice %712 {offsets = [0, 64], sizes = [2, 64], strides = [1, 1]} : vector<2x192xf32> to vector<2x64xf32>
    %723 = arith.addf %721, %722 : vector<2x64xf32>
    %724 = arith.negf %723 : vector<2x64xf32>
    %725 = math.exp %724 : vector<2x64xf32>
    %cst_162 = arith.constant 1.000000e+00 : f32
    %726 = vector.broadcast %cst_162 : f32 to vector<2x64xf32>
    %727 = arith.addf %726, %725 : vector<2x64xf32>
    %728 = arith.divf %726, %727 : vector<2x64xf32>
    %729 = vector.extract_strided_slice %708 {offsets = [0, 128], sizes = [2, 64], strides = [1, 1]} : vector<2x192xf32> to vector<2x64xf32>
    %730 = vector.extract_strided_slice %712 {offsets = [0, 128], sizes = [2, 64], strides = [1, 1]} : vector<2x192xf32> to vector<2x64xf32>
    %731 = arith.mulf %720, %730 : vector<2x64xf32>
    %732 = arith.addf %729, %731 : vector<2x64xf32>
    %733 = math.tanh %732 : vector<2x64xf32>
    %734 = arith.subf %663, %733 : vector<2x64xf32>
    %735 = arith.mulf %728, %734 : vector<2x64xf32>
    %736 = arith.addf %733, %735 : vector<2x64xf32>
    %737 = arith.index_cast %c9_i32 : i32 to index
    %c0_163 = arith.constant 0 : index
    %c0_164 = arith.constant 0 : index
    %738 = vector.load %arg10[%737, %c0_163, %c0_164] : memref<16x2x64xf32, #tpu.memory_space<vmem>>, vector<1x2x64xf32>
    %739 = vector.shape_cast %738 : vector<1x2x64xf32> to vector<2x64xf32>
    %740 = vector.shape_cast %707 : vector<2x64xf32> to vector<1x2x64xf32>
    tpu.vector_store %arg10[%737, %c0_163, %c0_164], %740 {strides = array<i32>} : memref<16x2x64xf32, #tpu.memory_space<vmem>>, vector<1x2x64xf32>,
    %741 = arith.index_cast %672 : i32 to index
    %c0_165 = arith.constant 0 : index
    %c0_166 = arith.constant 0 : index
    %742 = vector.load %arg11[%741, %c0_165, %c0_166] : memref<16x2x64xf32, #tpu.memory_space<vmem>>, vector<1x2x64xf32>
    %743 = vector.shape_cast %742 : vector<1x2x64xf32> to vector<2x64xf32>
    %744 = vector.shape_cast %736 : vector<2x64xf32> to vector<1x2x64xf32>
    tpu.vector_store %arg11[%741, %c0_165, %c0_166], %744 {strides = array<i32>} : memref<16x2x64xf32, #tpu.memory_space<vmem>>, vector<1x2x64xf32>,
    %c10_i32 = arith.constant 10 : i32
    %c15_i32_167 = arith.constant 15 : i32
    %745 = arith.subi %c15_i32_167, %c10_i32 : i32
    %746 = arith.index_cast %c10_i32 : i32 to index
    %c0_168 = arith.constant 0 : index
    %c0_169 = arith.constant 0 : index
    %747 = vector.load %arg9[%746, %c0_168, %c0_169] : memref<16x2x384xf32, #tpu.memory_space<vmem>>, vector<1x2x384xf32>
    %748 = vector.shape_cast %747 : vector<1x2x384xf32> to vector<2x384xf32>
    %749 = arith.index_cast %745 : i32 to index
    %c0_170 = arith.constant 0 : index
    %c0_171 = arith.constant 0 : index
    %750 = vector.load %arg9[%749, %c0_170, %c0_171] : memref<16x2x384xf32, #tpu.memory_space<vmem>>, vector<1x2x384xf32>
    %751 = vector.shape_cast %750 : vector<1x2x384xf32> to vector<2x384xf32>
    %752 = vector.extract_strided_slice %748 {offsets = [0, 0], sizes = [2, 192], strides = [1, 1]} : vector<2x384xf32> to vector<2x192xf32>
    %753 = arith.truncf %707 : vector<2x64xf32> to vector<2x64xbf16>
    %cst_172 = arith.constant dense<0.000000e+00> : vector<2x192xf32>
    %754 = tpu.matmul %753, %10, %cst_172 {dimension_numbers = #tpu.dot_dimension_numbers<[1], [0], [0], [1], [0, 0, 1, 1], [], []>} : vector<2x64xbf16>, vector<64x192xbf16>, vector<2x192xf32> -> vector<2x192xf32>
    %755 = vector.broadcast %11 : vector<1x192xf32> to vector<2x192xf32>
    %756 = arith.addf %754, %755 : vector<2x192xf32>
    %757 = vector.extract_strided_slice %752 {offsets = [0, 0], sizes = [2, 64], strides = [1, 1]} : vector<2x192xf32> to vector<2x64xf32>
    %758 = vector.extract_strided_slice %756 {offsets = [0, 0], sizes = [2, 64], strides = [1, 1]} : vector<2x192xf32> to vector<2x64xf32>
    %759 = arith.addf %757, %758 : vector<2x64xf32>
    %760 = arith.negf %759 : vector<2x64xf32>
    %761 = math.exp %760 : vector<2x64xf32>
    %cst_173 = arith.constant 1.000000e+00 : f32
    %762 = vector.broadcast %cst_173 : f32 to vector<2x64xf32>
    %763 = arith.addf %762, %761 : vector<2x64xf32>
    %764 = arith.divf %762, %763 : vector<2x64xf32>
    %765 = vector.extract_strided_slice %752 {offsets = [0, 64], sizes = [2, 64], strides = [1, 1]} : vector<2x192xf32> to vector<2x64xf32>
    %766 = vector.extract_strided_slice %756 {offsets = [0, 64], sizes = [2, 64], strides = [1, 1]} : vector<2x192xf32> to vector<2x64xf32>
    %767 = arith.addf %765, %766 : vector<2x64xf32>
    %768 = arith.negf %767 : vector<2x64xf32>
    %769 = math.exp %768 : vector<2x64xf32>
    %cst_174 = arith.constant 1.000000e+00 : f32
    %770 = vector.broadcast %cst_174 : f32 to vector<2x64xf32>
    %771 = arith.addf %770, %769 : vector<2x64xf32>
    %772 = arith.divf %770, %771 : vector<2x64xf32>
    %773 = vector.extract_strided_slice %752 {offsets = [0, 128], sizes = [2, 64], strides = [1, 1]} : vector<2x192xf32> to vector<2x64xf32>
    %774 = vector.extract_strided_slice %756 {offsets = [0, 128], sizes = [2, 64], strides = [1, 1]} : vector<2x192xf32> to vector<2x64xf32>
    %775 = arith.mulf %764, %774 : vector<2x64xf32>
    %776 = arith.addf %773, %775 : vector<2x64xf32>
    %777 = math.tanh %776 : vector<2x64xf32>
    %778 = arith.subf %707, %777 : vector<2x64xf32>
    %779 = arith.mulf %772, %778 : vector<2x64xf32>
    %780 = arith.addf %777, %779 : vector<2x64xf32>
    %781 = vector.extract_strided_slice %751 {offsets = [0, 192], sizes = [2, 192], strides = [1, 1]} : vector<2x384xf32> to vector<2x192xf32>
    %782 = arith.truncf %736 : vector<2x64xf32> to vector<2x64xbf16>
    %cst_175 = arith.constant dense<0.000000e+00> : vector<2x192xf32>
    %783 = tpu.matmul %782, %12, %cst_175 {dimension_numbers = #tpu.dot_dimension_numbers<[1], [0], [0], [1], [0, 0, 1, 1], [], []>} : vector<2x64xbf16>, vector<64x192xbf16>, vector<2x192xf32> -> vector<2x192xf32>
    %784 = vector.broadcast %13 : vector<1x192xf32> to vector<2x192xf32>
    %785 = arith.addf %783, %784 : vector<2x192xf32>
    %786 = vector.extract_strided_slice %781 {offsets = [0, 0], sizes = [2, 64], strides = [1, 1]} : vector<2x192xf32> to vector<2x64xf32>
    %787 = vector.extract_strided_slice %785 {offsets = [0, 0], sizes = [2, 64], strides = [1, 1]} : vector<2x192xf32> to vector<2x64xf32>
    %788 = arith.addf %786, %787 : vector<2x64xf32>
    %789 = arith.negf %788 : vector<2x64xf32>
    %790 = math.exp %789 : vector<2x64xf32>
    %cst_176 = arith.constant 1.000000e+00 : f32
    %791 = vector.broadcast %cst_176 : f32 to vector<2x64xf32>
    %792 = arith.addf %791, %790 : vector<2x64xf32>
    %793 = arith.divf %791, %792 : vector<2x64xf32>
    %794 = vector.extract_strided_slice %781 {offsets = [0, 64], sizes = [2, 64], strides = [1, 1]} : vector<2x192xf32> to vector<2x64xf32>
    %795 = vector.extract_strided_slice %785 {offsets = [0, 64], sizes = [2, 64], strides = [1, 1]} : vector<2x192xf32> to vector<2x64xf32>
    %796 = arith.addf %794, %795 : vector<2x64xf32>
    %797 = arith.negf %796 : vector<2x64xf32>
    %798 = math.exp %797 : vector<2x64xf32>
    %cst_177 = arith.constant 1.000000e+00 : f32
    %799 = vector.broadcast %cst_177 : f32 to vector<2x64xf32>
    %800 = arith.addf %799, %798 : vector<2x64xf32>
    %801 = arith.divf %799, %800 : vector<2x64xf32>
    %802 = vector.extract_strided_slice %781 {offsets = [0, 128], sizes = [2, 64], strides = [1, 1]} : vector<2x192xf32> to vector<2x64xf32>
    %803 = vector.extract_strided_slice %785 {offsets = [0, 128], sizes = [2, 64], strides = [1, 1]} : vector<2x192xf32> to vector<2x64xf32>
    %804 = arith.mulf %793, %803 : vector<2x64xf32>
    %805 = arith.addf %802, %804 : vector<2x64xf32>
    %806 = math.tanh %805 : vector<2x64xf32>
    %807 = arith.subf %736, %806 : vector<2x64xf32>
    %808 = arith.mulf %801, %807 : vector<2x64xf32>
    %809 = arith.addf %806, %808 : vector<2x64xf32>
    %810 = arith.index_cast %c10_i32 : i32 to index
    %c0_178 = arith.constant 0 : index
    %c0_179 = arith.constant 0 : index
    %811 = vector.load %arg10[%810, %c0_178, %c0_179] : memref<16x2x64xf32, #tpu.memory_space<vmem>>, vector<1x2x64xf32>
    %812 = vector.shape_cast %811 : vector<1x2x64xf32> to vector<2x64xf32>
    %813 = vector.shape_cast %780 : vector<2x64xf32> to vector<1x2x64xf32>
    tpu.vector_store %arg10[%810, %c0_178, %c0_179], %813 {strides = array<i32>} : memref<16x2x64xf32, #tpu.memory_space<vmem>>, vector<1x2x64xf32>,
    %814 = arith.index_cast %745 : i32 to index
    %c0_180 = arith.constant 0 : index
    %c0_181 = arith.constant 0 : index
    %815 = vector.load %arg11[%814, %c0_180, %c0_181] : memref<16x2x64xf32, #tpu.memory_space<vmem>>, vector<1x2x64xf32>
    %816 = vector.shape_cast %815 : vector<1x2x64xf32> to vector<2x64xf32>
    %817 = vector.shape_cast %809 : vector<2x64xf32> to vector<1x2x64xf32>
    tpu.vector_store %arg11[%814, %c0_180, %c0_181], %817 {strides = array<i32>} : memref<16x2x64xf32, #tpu.memory_space<vmem>>, vector<1x2x64xf32>,
    %c11_i32 = arith.constant 11 : i32
    %c15_i32_182 = arith.constant 15 : i32
    %818 = arith.subi %c15_i32_182, %c11_i32 : i32
    %819 = arith.index_cast %c11_i32 : i32 to index
    %c0_183 = arith.constant 0 : index
    %c0_184 = arith.constant 0 : index
    %820 = vector.load %arg9[%819, %c0_183, %c0_184] : memref<16x2x384xf32, #tpu.memory_space<vmem>>, vector<1x2x384xf32>
    %821 = vector.shape_cast %820 : vector<1x2x384xf32> to vector<2x384xf32>
    %822 = arith.index_cast %818 : i32 to index
    %c0_185 = arith.constant 0 : index
    %c0_186 = arith.constant 0 : index
    %823 = vector.load %arg9[%822, %c0_185, %c0_186] : memref<16x2x384xf32, #tpu.memory_space<vmem>>, vector<1x2x384xf32>
    %824 = vector.shape_cast %823 : vector<1x2x384xf32> to vector<2x384xf32>
    %825 = vector.extract_strided_slice %821 {offsets = [0, 0], sizes = [2, 192], strides = [1, 1]} : vector<2x384xf32> to vector<2x192xf32>
    %826 = arith.truncf %780 : vector<2x64xf32> to vector<2x64xbf16>
    %cst_187 = arith.constant dense<0.000000e+00> : vector<2x192xf32>
    %827 = tpu.matmul %826, %10, %cst_187 {dimension_numbers = #tpu.dot_dimension_numbers<[1], [0], [0], [1], [0, 0, 1, 1], [], []>} : vector<2x64xbf16>, vector<64x192xbf16>, vector<2x192xf32> -> vector<2x192xf32>
    %828 = vector.broadcast %11 : vector<1x192xf32> to vector<2x192xf32>
    %829 = arith.addf %827, %828 : vector<2x192xf32>
    %830 = vector.extract_strided_slice %825 {offsets = [0, 0], sizes = [2, 64], strides = [1, 1]} : vector<2x192xf32> to vector<2x64xf32>
    %831 = vector.extract_strided_slice %829 {offsets = [0, 0], sizes = [2, 64], strides = [1, 1]} : vector<2x192xf32> to vector<2x64xf32>
    %832 = arith.addf %830, %831 : vector<2x64xf32>
    %833 = arith.negf %832 : vector<2x64xf32>
    %834 = math.exp %833 : vector<2x64xf32>
    %cst_188 = arith.constant 1.000000e+00 : f32
    %835 = vector.broadcast %cst_188 : f32 to vector<2x64xf32>
    %836 = arith.addf %835, %834 : vector<2x64xf32>
    %837 = arith.divf %835, %836 : vector<2x64xf32>
    %838 = vector.extract_strided_slice %825 {offsets = [0, 64], sizes = [2, 64], strides = [1, 1]} : vector<2x192xf32> to vector<2x64xf32>
    %839 = vector.extract_strided_slice %829 {offsets = [0, 64], sizes = [2, 64], strides = [1, 1]} : vector<2x192xf32> to vector<2x64xf32>
    %840 = arith.addf %838, %839 : vector<2x64xf32>
    %841 = arith.negf %840 : vector<2x64xf32>
    %842 = math.exp %841 : vector<2x64xf32>
    %cst_189 = arith.constant 1.000000e+00 : f32
    %843 = vector.broadcast %cst_189 : f32 to vector<2x64xf32>
    %844 = arith.addf %843, %842 : vector<2x64xf32>
    %845 = arith.divf %843, %844 : vector<2x64xf32>
    %846 = vector.extract_strided_slice %825 {offsets = [0, 128], sizes = [2, 64], strides = [1, 1]} : vector<2x192xf32> to vector<2x64xf32>
    %847 = vector.extract_strided_slice %829 {offsets = [0, 128], sizes = [2, 64], strides = [1, 1]} : vector<2x192xf32> to vector<2x64xf32>
    %848 = arith.mulf %837, %847 : vector<2x64xf32>
    %849 = arith.addf %846, %848 : vector<2x64xf32>
    %850 = math.tanh %849 : vector<2x64xf32>
    %851 = arith.subf %780, %850 : vector<2x64xf32>
    %852 = arith.mulf %845, %851 : vector<2x64xf32>
    %853 = arith.addf %850, %852 : vector<2x64xf32>
    %854 = vector.extract_strided_slice %824 {offsets = [0, 192], sizes = [2, 192], strides = [1, 1]} : vector<2x384xf32> to vector<2x192xf32>
    %855 = arith.truncf %809 : vector<2x64xf32> to vector<2x64xbf16>
    %cst_190 = arith.constant dense<0.000000e+00> : vector<2x192xf32>
    %856 = tpu.matmul %855, %12, %cst_190 {dimension_numbers = #tpu.dot_dimension_numbers<[1], [0], [0], [1], [0, 0, 1, 1], [], []>} : vector<2x64xbf16>, vector<64x192xbf16>, vector<2x192xf32> -> vector<2x192xf32>
    %857 = vector.broadcast %13 : vector<1x192xf32> to vector<2x192xf32>
    %858 = arith.addf %856, %857 : vector<2x192xf32>
    %859 = vector.extract_strided_slice %854 {offsets = [0, 0], sizes = [2, 64], strides = [1, 1]} : vector<2x192xf32> to vector<2x64xf32>
    %860 = vector.extract_strided_slice %858 {offsets = [0, 0], sizes = [2, 64], strides = [1, 1]} : vector<2x192xf32> to vector<2x64xf32>
    %861 = arith.addf %859, %860 : vector<2x64xf32>
    %862 = arith.negf %861 : vector<2x64xf32>
    %863 = math.exp %862 : vector<2x64xf32>
    %cst_191 = arith.constant 1.000000e+00 : f32
    %864 = vector.broadcast %cst_191 : f32 to vector<2x64xf32>
    %865 = arith.addf %864, %863 : vector<2x64xf32>
    %866 = arith.divf %864, %865 : vector<2x64xf32>
    %867 = vector.extract_strided_slice %854 {offsets = [0, 64], sizes = [2, 64], strides = [1, 1]} : vector<2x192xf32> to vector<2x64xf32>
    %868 = vector.extract_strided_slice %858 {offsets = [0, 64], sizes = [2, 64], strides = [1, 1]} : vector<2x192xf32> to vector<2x64xf32>
    %869 = arith.addf %867, %868 : vector<2x64xf32>
    %870 = arith.negf %869 : vector<2x64xf32>
    %871 = math.exp %870 : vector<2x64xf32>
    %cst_192 = arith.constant 1.000000e+00 : f32
    %872 = vector.broadcast %cst_192 : f32 to vector<2x64xf32>
    %873 = arith.addf %872, %871 : vector<2x64xf32>
    %874 = arith.divf %872, %873 : vector<2x64xf32>
    %875 = vector.extract_strided_slice %854 {offsets = [0, 128], sizes = [2, 64], strides = [1, 1]} : vector<2x192xf32> to vector<2x64xf32>
    %876 = vector.extract_strided_slice %858 {offsets = [0, 128], sizes = [2, 64], strides = [1, 1]} : vector<2x192xf32> to vector<2x64xf32>
    %877 = arith.mulf %866, %876 : vector<2x64xf32>
    %878 = arith.addf %875, %877 : vector<2x64xf32>
    %879 = math.tanh %878 : vector<2x64xf32>
    %880 = arith.subf %809, %879 : vector<2x64xf32>
    %881 = arith.mulf %874, %880 : vector<2x64xf32>
    %882 = arith.addf %879, %881 : vector<2x64xf32>
    %883 = arith.index_cast %c11_i32 : i32 to index
    %c0_193 = arith.constant 0 : index
    %c0_194 = arith.constant 0 : index
    %884 = vector.load %arg10[%883, %c0_193, %c0_194] : memref<16x2x64xf32, #tpu.memory_space<vmem>>, vector<1x2x64xf32>
    %885 = vector.shape_cast %884 : vector<1x2x64xf32> to vector<2x64xf32>
    %886 = vector.shape_cast %853 : vector<2x64xf32> to vector<1x2x64xf32>
    tpu.vector_store %arg10[%883, %c0_193, %c0_194], %886 {strides = array<i32>} : memref<16x2x64xf32, #tpu.memory_space<vmem>>, vector<1x2x64xf32>,
    %887 = arith.index_cast %818 : i32 to index
    %c0_195 = arith.constant 0 : index
    %c0_196 = arith.constant 0 : index
    %888 = vector.load %arg11[%887, %c0_195, %c0_196] : memref<16x2x64xf32, #tpu.memory_space<vmem>>, vector<1x2x64xf32>
    %889 = vector.shape_cast %888 : vector<1x2x64xf32> to vector<2x64xf32>
    %890 = vector.shape_cast %882 : vector<2x64xf32> to vector<1x2x64xf32>
    tpu.vector_store %arg11[%887, %c0_195, %c0_196], %890 {strides = array<i32>} : memref<16x2x64xf32, #tpu.memory_space<vmem>>, vector<1x2x64xf32>,
    %c12_i32 = arith.constant 12 : i32
    %c15_i32_197 = arith.constant 15 : i32
    %891 = arith.subi %c15_i32_197, %c12_i32 : i32
    %892 = arith.index_cast %c12_i32 : i32 to index
    %c0_198 = arith.constant 0 : index
    %c0_199 = arith.constant 0 : index
    %893 = vector.load %arg9[%892, %c0_198, %c0_199] : memref<16x2x384xf32, #tpu.memory_space<vmem>>, vector<1x2x384xf32>
    %894 = vector.shape_cast %893 : vector<1x2x384xf32> to vector<2x384xf32>
    %895 = arith.index_cast %891 : i32 to index
    %c0_200 = arith.constant 0 : index
    %c0_201 = arith.constant 0 : index
    %896 = vector.load %arg9[%895, %c0_200, %c0_201] : memref<16x2x384xf32, #tpu.memory_space<vmem>>, vector<1x2x384xf32>
    %897 = vector.shape_cast %896 : vector<1x2x384xf32> to vector<2x384xf32>
    %898 = vector.extract_strided_slice %894 {offsets = [0, 0], sizes = [2, 192], strides = [1, 1]} : vector<2x384xf32> to vector<2x192xf32>
    %899 = arith.truncf %853 : vector<2x64xf32> to vector<2x64xbf16>
    %cst_202 = arith.constant dense<0.000000e+00> : vector<2x192xf32>
    %900 = tpu.matmul %899, %10, %cst_202 {dimension_numbers = #tpu.dot_dimension_numbers<[1], [0], [0], [1], [0, 0, 1, 1], [], []>} : vector<2x64xbf16>, vector<64x192xbf16>, vector<2x192xf32> -> vector<2x192xf32>
    %901 = vector.broadcast %11 : vector<1x192xf32> to vector<2x192xf32>
    %902 = arith.addf %900, %901 : vector<2x192xf32>
    %903 = vector.extract_strided_slice %898 {offsets = [0, 0], sizes = [2, 64], strides = [1, 1]} : vector<2x192xf32> to vector<2x64xf32>
    %904 = vector.extract_strided_slice %902 {offsets = [0, 0], sizes = [2, 64], strides = [1, 1]} : vector<2x192xf32> to vector<2x64xf32>
    %905 = arith.addf %903, %904 : vector<2x64xf32>
    %906 = arith.negf %905 : vector<2x64xf32>
    %907 = math.exp %906 : vector<2x64xf32>
    %cst_203 = arith.constant 1.000000e+00 : f32
    %908 = vector.broadcast %cst_203 : f32 to vector<2x64xf32>
    %909 = arith.addf %908, %907 : vector<2x64xf32>
    %910 = arith.divf %908, %909 : vector<2x64xf32>
    %911 = vector.extract_strided_slice %898 {offsets = [0, 64], sizes = [2, 64], strides = [1, 1]} : vector<2x192xf32> to vector<2x64xf32>
    %912 = vector.extract_strided_slice %902 {offsets = [0, 64], sizes = [2, 64], strides = [1, 1]} : vector<2x192xf32> to vector<2x64xf32>
    %913 = arith.addf %911, %912 : vector<2x64xf32>
    %914 = arith.negf %913 : vector<2x64xf32>
    %915 = math.exp %914 : vector<2x64xf32>
    %cst_204 = arith.constant 1.000000e+00 : f32
    %916 = vector.broadcast %cst_204 : f32 to vector<2x64xf32>
    %917 = arith.addf %916, %915 : vector<2x64xf32>
    %918 = arith.divf %916, %917 : vector<2x64xf32>
    %919 = vector.extract_strided_slice %898 {offsets = [0, 128], sizes = [2, 64], strides = [1, 1]} : vector<2x192xf32> to vector<2x64xf32>
    %920 = vector.extract_strided_slice %902 {offsets = [0, 128], sizes = [2, 64], strides = [1, 1]} : vector<2x192xf32> to vector<2x64xf32>
    %921 = arith.mulf %910, %920 : vector<2x64xf32>
    %922 = arith.addf %919, %921 : vector<2x64xf32>
    %923 = math.tanh %922 : vector<2x64xf32>
    %924 = arith.subf %853, %923 : vector<2x64xf32>
    %925 = arith.mulf %918, %924 : vector<2x64xf32>
    %926 = arith.addf %923, %925 : vector<2x64xf32>
    %927 = vector.extract_strided_slice %897 {offsets = [0, 192], sizes = [2, 192], strides = [1, 1]} : vector<2x384xf32> to vector<2x192xf32>
    %928 = arith.truncf %882 : vector<2x64xf32> to vector<2x64xbf16>
    %cst_205 = arith.constant dense<0.000000e+00> : vector<2x192xf32>
    %929 = tpu.matmul %928, %12, %cst_205 {dimension_numbers = #tpu.dot_dimension_numbers<[1], [0], [0], [1], [0, 0, 1, 1], [], []>} : vector<2x64xbf16>, vector<64x192xbf16>, vector<2x192xf32> -> vector<2x192xf32>
    %930 = vector.broadcast %13 : vector<1x192xf32> to vector<2x192xf32>
    %931 = arith.addf %929, %930 : vector<2x192xf32>
    %932 = vector.extract_strided_slice %927 {offsets = [0, 0], sizes = [2, 64], strides = [1, 1]} : vector<2x192xf32> to vector<2x64xf32>
    %933 = vector.extract_strided_slice %931 {offsets = [0, 0], sizes = [2, 64], strides = [1, 1]} : vector<2x192xf32> to vector<2x64xf32>
    %934 = arith.addf %932, %933 : vector<2x64xf32>
    %935 = arith.negf %934 : vector<2x64xf32>
    %936 = math.exp %935 : vector<2x64xf32>
    %cst_206 = arith.constant 1.000000e+00 : f32
    %937 = vector.broadcast %cst_206 : f32 to vector<2x64xf32>
    %938 = arith.addf %937, %936 : vector<2x64xf32>
    %939 = arith.divf %937, %938 : vector<2x64xf32>
    %940 = vector.extract_strided_slice %927 {offsets = [0, 64], sizes = [2, 64], strides = [1, 1]} : vector<2x192xf32> to vector<2x64xf32>
    %941 = vector.extract_strided_slice %931 {offsets = [0, 64], sizes = [2, 64], strides = [1, 1]} : vector<2x192xf32> to vector<2x64xf32>
    %942 = arith.addf %940, %941 : vector<2x64xf32>
    %943 = arith.negf %942 : vector<2x64xf32>
    %944 = math.exp %943 : vector<2x64xf32>
    %cst_207 = arith.constant 1.000000e+00 : f32
    %945 = vector.broadcast %cst_207 : f32 to vector<2x64xf32>
    %946 = arith.addf %945, %944 : vector<2x64xf32>
    %947 = arith.divf %945, %946 : vector<2x64xf32>
    %948 = vector.extract_strided_slice %927 {offsets = [0, 128], sizes = [2, 64], strides = [1, 1]} : vector<2x192xf32> to vector<2x64xf32>
    %949 = vector.extract_strided_slice %931 {offsets = [0, 128], sizes = [2, 64], strides = [1, 1]} : vector<2x192xf32> to vector<2x64xf32>
    %950 = arith.mulf %939, %949 : vector<2x64xf32>
    %951 = arith.addf %948, %950 : vector<2x64xf32>
    %952 = math.tanh %951 : vector<2x64xf32>
    %953 = arith.subf %882, %952 : vector<2x64xf32>
    %954 = arith.mulf %947, %953 : vector<2x64xf32>
    %955 = arith.addf %952, %954 : vector<2x64xf32>
    %956 = arith.index_cast %c12_i32 : i32 to index
    %c0_208 = arith.constant 0 : index
    %c0_209 = arith.constant 0 : index
    %957 = vector.load %arg10[%956, %c0_208, %c0_209] : memref<16x2x64xf32, #tpu.memory_space<vmem>>, vector<1x2x64xf32>
    %958 = vector.shape_cast %957 : vector<1x2x64xf32> to vector<2x64xf32>
    %959 = vector.shape_cast %926 : vector<2x64xf32> to vector<1x2x64xf32>
    tpu.vector_store %arg10[%956, %c0_208, %c0_209], %959 {strides = array<i32>} : memref<16x2x64xf32, #tpu.memory_space<vmem>>, vector<1x2x64xf32>,
    %960 = arith.index_cast %891 : i32 to index
    %c0_210 = arith.constant 0 : index
    %c0_211 = arith.constant 0 : index
    %961 = vector.load %arg11[%960, %c0_210, %c0_211] : memref<16x2x64xf32, #tpu.memory_space<vmem>>, vector<1x2x64xf32>
    %962 = vector.shape_cast %961 : vector<1x2x64xf32> to vector<2x64xf32>
    %963 = vector.shape_cast %955 : vector<2x64xf32> to vector<1x2x64xf32>
    tpu.vector_store %arg11[%960, %c0_210, %c0_211], %963 {strides = array<i32>} : memref<16x2x64xf32, #tpu.memory_space<vmem>>, vector<1x2x64xf32>,
    %c13_i32 = arith.constant 13 : i32
    %c15_i32_212 = arith.constant 15 : i32
    %964 = arith.subi %c15_i32_212, %c13_i32 : i32
    %965 = arith.index_cast %c13_i32 : i32 to index
    %c0_213 = arith.constant 0 : index
    %c0_214 = arith.constant 0 : index
    %966 = vector.load %arg9[%965, %c0_213, %c0_214] : memref<16x2x384xf32, #tpu.memory_space<vmem>>, vector<1x2x384xf32>
    %967 = vector.shape_cast %966 : vector<1x2x384xf32> to vector<2x384xf32>
    %968 = arith.index_cast %964 : i32 to index
    %c0_215 = arith.constant 0 : index
    %c0_216 = arith.constant 0 : index
    %969 = vector.load %arg9[%968, %c0_215, %c0_216] : memref<16x2x384xf32, #tpu.memory_space<vmem>>, vector<1x2x384xf32>
    %970 = vector.shape_cast %969 : vector<1x2x384xf32> to vector<2x384xf32>
    %971 = vector.extract_strided_slice %967 {offsets = [0, 0], sizes = [2, 192], strides = [1, 1]} : vector<2x384xf32> to vector<2x192xf32>
    %972 = arith.truncf %926 : vector<2x64xf32> to vector<2x64xbf16>
    %cst_217 = arith.constant dense<0.000000e+00> : vector<2x192xf32>
    %973 = tpu.matmul %972, %10, %cst_217 {dimension_numbers = #tpu.dot_dimension_numbers<[1], [0], [0], [1], [0, 0, 1, 1], [], []>} : vector<2x64xbf16>, vector<64x192xbf16>, vector<2x192xf32> -> vector<2x192xf32>
    %974 = vector.broadcast %11 : vector<1x192xf32> to vector<2x192xf32>
    %975 = arith.addf %973, %974 : vector<2x192xf32>
    %976 = vector.extract_strided_slice %971 {offsets = [0, 0], sizes = [2, 64], strides = [1, 1]} : vector<2x192xf32> to vector<2x64xf32>
    %977 = vector.extract_strided_slice %975 {offsets = [0, 0], sizes = [2, 64], strides = [1, 1]} : vector<2x192xf32> to vector<2x64xf32>
    %978 = arith.addf %976, %977 : vector<2x64xf32>
    %979 = arith.negf %978 : vector<2x64xf32>
    %980 = math.exp %979 : vector<2x64xf32>
    %cst_218 = arith.constant 1.000000e+00 : f32
    %981 = vector.broadcast %cst_218 : f32 to vector<2x64xf32>
    %982 = arith.addf %981, %980 : vector<2x64xf32>
    %983 = arith.divf %981, %982 : vector<2x64xf32>
    %984 = vector.extract_strided_slice %971 {offsets = [0, 64], sizes = [2, 64], strides = [1, 1]} : vector<2x192xf32> to vector<2x64xf32>
    %985 = vector.extract_strided_slice %975 {offsets = [0, 64], sizes = [2, 64], strides = [1, 1]} : vector<2x192xf32> to vector<2x64xf32>
    %986 = arith.addf %984, %985 : vector<2x64xf32>
    %987 = arith.negf %986 : vector<2x64xf32>
    %988 = math.exp %987 : vector<2x64xf32>
    %cst_219 = arith.constant 1.000000e+00 : f32
    %989 = vector.broadcast %cst_219 : f32 to vector<2x64xf32>
    %990 = arith.addf %989, %988 : vector<2x64xf32>
    %991 = arith.divf %989, %990 : vector<2x64xf32>
    %992 = vector.extract_strided_slice %971 {offsets = [0, 128], sizes = [2, 64], strides = [1, 1]} : vector<2x192xf32> to vector<2x64xf32>
    %993 = vector.extract_strided_slice %975 {offsets = [0, 128], sizes = [2, 64], strides = [1, 1]} : vector<2x192xf32> to vector<2x64xf32>
    %994 = arith.mulf %983, %993 : vector<2x64xf32>
    %995 = arith.addf %992, %994 : vector<2x64xf32>
    %996 = math.tanh %995 : vector<2x64xf32>
    %997 = arith.subf %926, %996 : vector<2x64xf32>
    %998 = arith.mulf %991, %997 : vector<2x64xf32>
    %999 = arith.addf %996, %998 : vector<2x64xf32>
    %1000 = vector.extract_strided_slice %970 {offsets = [0, 192], sizes = [2, 192], strides = [1, 1]} : vector<2x384xf32> to vector<2x192xf32>
    %1001 = arith.truncf %955 : vector<2x64xf32> to vector<2x64xbf16>
    %cst_220 = arith.constant dense<0.000000e+00> : vector<2x192xf32>
    %1002 = tpu.matmul %1001, %12, %cst_220 {dimension_numbers = #tpu.dot_dimension_numbers<[1], [0], [0], [1], [0, 0, 1, 1], [], []>} : vector<2x64xbf16>, vector<64x192xbf16>, vector<2x192xf32> -> vector<2x192xf32>
    %1003 = vector.broadcast %13 : vector<1x192xf32> to vector<2x192xf32>
    %1004 = arith.addf %1002, %1003 : vector<2x192xf32>
    %1005 = vector.extract_strided_slice %1000 {offsets = [0, 0], sizes = [2, 64], strides = [1, 1]} : vector<2x192xf32> to vector<2x64xf32>
    %1006 = vector.extract_strided_slice %1004 {offsets = [0, 0], sizes = [2, 64], strides = [1, 1]} : vector<2x192xf32> to vector<2x64xf32>
    %1007 = arith.addf %1005, %1006 : vector<2x64xf32>
    %1008 = arith.negf %1007 : vector<2x64xf32>
    %1009 = math.exp %1008 : vector<2x64xf32>
    %cst_221 = arith.constant 1.000000e+00 : f32
    %1010 = vector.broadcast %cst_221 : f32 to vector<2x64xf32>
    %1011 = arith.addf %1010, %1009 : vector<2x64xf32>
    %1012 = arith.divf %1010, %1011 : vector<2x64xf32>
    %1013 = vector.extract_strided_slice %1000 {offsets = [0, 64], sizes = [2, 64], strides = [1, 1]} : vector<2x192xf32> to vector<2x64xf32>
    %1014 = vector.extract_strided_slice %1004 {offsets = [0, 64], sizes = [2, 64], strides = [1, 1]} : vector<2x192xf32> to vector<2x64xf32>
    %1015 = arith.addf %1013, %1014 : vector<2x64xf32>
    %1016 = arith.negf %1015 : vector<2x64xf32>
    %1017 = math.exp %1016 : vector<2x64xf32>
    %cst_222 = arith.constant 1.000000e+00 : f32
    %1018 = vector.broadcast %cst_222 : f32 to vector<2x64xf32>
    %1019 = arith.addf %1018, %1017 : vector<2x64xf32>
    %1020 = arith.divf %1018, %1019 : vector<2x64xf32>
    %1021 = vector.extract_strided_slice %1000 {offsets = [0, 128], sizes = [2, 64], strides = [1, 1]} : vector<2x192xf32> to vector<2x64xf32>
    %1022 = vector.extract_strided_slice %1004 {offsets = [0, 128], sizes = [2, 64], strides = [1, 1]} : vector<2x192xf32> to vector<2x64xf32>
    %1023 = arith.mulf %1012, %1022 : vector<2x64xf32>
    %1024 = arith.addf %1021, %1023 : vector<2x64xf32>
    %1025 = math.tanh %1024 : vector<2x64xf32>
    %1026 = arith.subf %955, %1025 : vector<2x64xf32>
    %1027 = arith.mulf %1020, %1026 : vector<2x64xf32>
    %1028 = arith.addf %1025, %1027 : vector<2x64xf32>
    %1029 = arith.index_cast %c13_i32 : i32 to index
    %c0_223 = arith.constant 0 : index
    %c0_224 = arith.constant 0 : index
    %1030 = vector.load %arg10[%1029, %c0_223, %c0_224] : memref<16x2x64xf32, #tpu.memory_space<vmem>>, vector<1x2x64xf32>
    %1031 = vector.shape_cast %1030 : vector<1x2x64xf32> to vector<2x64xf32>
    %1032 = vector.shape_cast %999 : vector<2x64xf32> to vector<1x2x64xf32>
    tpu.vector_store %arg10[%1029, %c0_223, %c0_224], %1032 {strides = array<i32>} : memref<16x2x64xf32, #tpu.memory_space<vmem>>, vector<1x2x64xf32>,
    %1033 = arith.index_cast %964 : i32 to index
    %c0_225 = arith.constant 0 : index
    %c0_226 = arith.constant 0 : index
    %1034 = vector.load %arg11[%1033, %c0_225, %c0_226] : memref<16x2x64xf32, #tpu.memory_space<vmem>>, vector<1x2x64xf32>
    %1035 = vector.shape_cast %1034 : vector<1x2x64xf32> to vector<2x64xf32>
    %1036 = vector.shape_cast %1028 : vector<2x64xf32> to vector<1x2x64xf32>
    tpu.vector_store %arg11[%1033, %c0_225, %c0_226], %1036 {strides = array<i32>} : memref<16x2x64xf32, #tpu.memory_space<vmem>>, vector<1x2x64xf32>,
    %c14_i32 = arith.constant 14 : i32
    %c15_i32_227 = arith.constant 15 : i32
    %1037 = arith.subi %c15_i32_227, %c14_i32 : i32
    %1038 = arith.index_cast %c14_i32 : i32 to index
    %c0_228 = arith.constant 0 : index
    %c0_229 = arith.constant 0 : index
    %1039 = vector.load %arg9[%1038, %c0_228, %c0_229] : memref<16x2x384xf32, #tpu.memory_space<vmem>>, vector<1x2x384xf32>
    %1040 = vector.shape_cast %1039 : vector<1x2x384xf32> to vector<2x384xf32>
    %1041 = arith.index_cast %1037 : i32 to index
    %c0_230 = arith.constant 0 : index
    %c0_231 = arith.constant 0 : index
    %1042 = vector.load %arg9[%1041, %c0_230, %c0_231] : memref<16x2x384xf32, #tpu.memory_space<vmem>>, vector<1x2x384xf32>
    %1043 = vector.shape_cast %1042 : vector<1x2x384xf32> to vector<2x384xf32>
    %1044 = vector.extract_strided_slice %1040 {offsets = [0, 0], sizes = [2, 192], strides = [1, 1]} : vector<2x384xf32> to vector<2x192xf32>
    %1045 = arith.truncf %999 : vector<2x64xf32> to vector<2x64xbf16>
    %cst_232 = arith.constant dense<0.000000e+00> : vector<2x192xf32>
    %1046 = tpu.matmul %1045, %10, %cst_232 {dimension_numbers = #tpu.dot_dimension_numbers<[1], [0], [0], [1], [0, 0, 1, 1], [], []>} : vector<2x64xbf16>, vector<64x192xbf16>, vector<2x192xf32> -> vector<2x192xf32>
    %1047 = vector.broadcast %11 : vector<1x192xf32> to vector<2x192xf32>
    %1048 = arith.addf %1046, %1047 : vector<2x192xf32>
    %1049 = vector.extract_strided_slice %1044 {offsets = [0, 0], sizes = [2, 64], strides = [1, 1]} : vector<2x192xf32> to vector<2x64xf32>
    %1050 = vector.extract_strided_slice %1048 {offsets = [0, 0], sizes = [2, 64], strides = [1, 1]} : vector<2x192xf32> to vector<2x64xf32>
    %1051 = arith.addf %1049, %1050 : vector<2x64xf32>
    %1052 = arith.negf %1051 : vector<2x64xf32>
    %1053 = math.exp %1052 : vector<2x64xf32>
    %cst_233 = arith.constant 1.000000e+00 : f32
    %1054 = vector.broadcast %cst_233 : f32 to vector<2x64xf32>
    %1055 = arith.addf %1054, %1053 : vector<2x64xf32>
    %1056 = arith.divf %1054, %1055 : vector<2x64xf32>
    %1057 = vector.extract_strided_slice %1044 {offsets = [0, 64], sizes = [2, 64], strides = [1, 1]} : vector<2x192xf32> to vector<2x64xf32>
    %1058 = vector.extract_strided_slice %1048 {offsets = [0, 64], sizes = [2, 64], strides = [1, 1]} : vector<2x192xf32> to vector<2x64xf32>
    %1059 = arith.addf %1057, %1058 : vector<2x64xf32>
    %1060 = arith.negf %1059 : vector<2x64xf32>
    %1061 = math.exp %1060 : vector<2x64xf32>
    %cst_234 = arith.constant 1.000000e+00 : f32
    %1062 = vector.broadcast %cst_234 : f32 to vector<2x64xf32>
    %1063 = arith.addf %1062, %1061 : vector<2x64xf32>
    %1064 = arith.divf %1062, %1063 : vector<2x64xf32>
    %1065 = vector.extract_strided_slice %1044 {offsets = [0, 128], sizes = [2, 64], strides = [1, 1]} : vector<2x192xf32> to vector<2x64xf32>
    %1066 = vector.extract_strided_slice %1048 {offsets = [0, 128], sizes = [2, 64], strides = [1, 1]} : vector<2x192xf32> to vector<2x64xf32>
    %1067 = arith.mulf %1056, %1066 : vector<2x64xf32>
    %1068 = arith.addf %1065, %1067 : vector<2x64xf32>
    %1069 = math.tanh %1068 : vector<2x64xf32>
    %1070 = arith.subf %999, %1069 : vector<2x64xf32>
    %1071 = arith.mulf %1064, %1070 : vector<2x64xf32>
    %1072 = arith.addf %1069, %1071 : vector<2x64xf32>
    %1073 = vector.extract_strided_slice %1043 {offsets = [0, 192], sizes = [2, 192], strides = [1, 1]} : vector<2x384xf32> to vector<2x192xf32>
    %1074 = arith.truncf %1028 : vector<2x64xf32> to vector<2x64xbf16>
    %cst_235 = arith.constant dense<0.000000e+00> : vector<2x192xf32>
    %1075 = tpu.matmul %1074, %12, %cst_235 {dimension_numbers = #tpu.dot_dimension_numbers<[1], [0], [0], [1], [0, 0, 1, 1], [], []>} : vector<2x64xbf16>, vector<64x192xbf16>, vector<2x192xf32> -> vector<2x192xf32>
    %1076 = vector.broadcast %13 : vector<1x192xf32> to vector<2x192xf32>
    %1077 = arith.addf %1075, %1076 : vector<2x192xf32>
    %1078 = vector.extract_strided_slice %1073 {offsets = [0, 0], sizes = [2, 64], strides = [1, 1]} : vector<2x192xf32> to vector<2x64xf32>
    %1079 = vector.extract_strided_slice %1077 {offsets = [0, 0], sizes = [2, 64], strides = [1, 1]} : vector<2x192xf32> to vector<2x64xf32>
    %1080 = arith.addf %1078, %1079 : vector<2x64xf32>
    %1081 = arith.negf %1080 : vector<2x64xf32>
    %1082 = math.exp %1081 : vector<2x64xf32>
    %cst_236 = arith.constant 1.000000e+00 : f32
    %1083 = vector.broadcast %cst_236 : f32 to vector<2x64xf32>
    %1084 = arith.addf %1083, %1082 : vector<2x64xf32>
    %1085 = arith.divf %1083, %1084 : vector<2x64xf32>
    %1086 = vector.extract_strided_slice %1073 {offsets = [0, 64], sizes = [2, 64], strides = [1, 1]} : vector<2x192xf32> to vector<2x64xf32>
    %1087 = vector.extract_strided_slice %1077 {offsets = [0, 64], sizes = [2, 64], strides = [1, 1]} : vector<2x192xf32> to vector<2x64xf32>
    %1088 = arith.addf %1086, %1087 : vector<2x64xf32>
    %1089 = arith.negf %1088 : vector<2x64xf32>
    %1090 = math.exp %1089 : vector<2x64xf32>
    %cst_237 = arith.constant 1.000000e+00 : f32
    %1091 = vector.broadcast %cst_237 : f32 to vector<2x64xf32>
    %1092 = arith.addf %1091, %1090 : vector<2x64xf32>
    %1093 = arith.divf %1091, %1092 : vector<2x64xf32>
    %1094 = vector.extract_strided_slice %1073 {offsets = [0, 128], sizes = [2, 64], strides = [1, 1]} : vector<2x192xf32> to vector<2x64xf32>
    %1095 = vector.extract_strided_slice %1077 {offsets = [0, 128], sizes = [2, 64], strides = [1, 1]} : vector<2x192xf32> to vector<2x64xf32>
    %1096 = arith.mulf %1085, %1095 : vector<2x64xf32>
    %1097 = arith.addf %1094, %1096 : vector<2x64xf32>
    %1098 = math.tanh %1097 : vector<2x64xf32>
    %1099 = arith.subf %1028, %1098 : vector<2x64xf32>
    %1100 = arith.mulf %1093, %1099 : vector<2x64xf32>
    %1101 = arith.addf %1098, %1100 : vector<2x64xf32>
    %1102 = arith.index_cast %c14_i32 : i32 to index
    %c0_238 = arith.constant 0 : index
    %c0_239 = arith.constant 0 : index
    %1103 = vector.load %arg10[%1102, %c0_238, %c0_239] : memref<16x2x64xf32, #tpu.memory_space<vmem>>, vector<1x2x64xf32>
    %1104 = vector.shape_cast %1103 : vector<1x2x64xf32> to vector<2x64xf32>
    %1105 = vector.shape_cast %1072 : vector<2x64xf32> to vector<1x2x64xf32>
    tpu.vector_store %arg10[%1102, %c0_238, %c0_239], %1105 {strides = array<i32>} : memref<16x2x64xf32, #tpu.memory_space<vmem>>, vector<1x2x64xf32>,
    %1106 = arith.index_cast %1037 : i32 to index
    %c0_240 = arith.constant 0 : index
    %c0_241 = arith.constant 0 : index
    %1107 = vector.load %arg11[%1106, %c0_240, %c0_241] : memref<16x2x64xf32, #tpu.memory_space<vmem>>, vector<1x2x64xf32>
    %1108 = vector.shape_cast %1107 : vector<1x2x64xf32> to vector<2x64xf32>
    %1109 = vector.shape_cast %1101 : vector<2x64xf32> to vector<1x2x64xf32>
    tpu.vector_store %arg11[%1106, %c0_240, %c0_241], %1109 {strides = array<i32>} : memref<16x2x64xf32, #tpu.memory_space<vmem>>, vector<1x2x64xf32>,
    %c15_i32_242 = arith.constant 15 : i32
    %c15_i32_243 = arith.constant 15 : i32
    %1110 = arith.subi %c15_i32_243, %c15_i32_242 : i32
    %1111 = arith.index_cast %c15_i32_242 : i32 to index
    %c0_244 = arith.constant 0 : index
    %c0_245 = arith.constant 0 : index
    %1112 = vector.load %arg9[%1111, %c0_244, %c0_245] : memref<16x2x384xf32, #tpu.memory_space<vmem>>, vector<1x2x384xf32>
    %1113 = vector.shape_cast %1112 : vector<1x2x384xf32> to vector<2x384xf32>
    %1114 = arith.index_cast %1110 : i32 to index
    %c0_246 = arith.constant 0 : index
    %c0_247 = arith.constant 0 : index
    %1115 = vector.load %arg9[%1114, %c0_246, %c0_247] : memref<16x2x384xf32, #tpu.memory_space<vmem>>, vector<1x2x384xf32>
    %1116 = vector.shape_cast %1115 : vector<1x2x384xf32> to vector<2x384xf32>
    %1117 = vector.extract_strided_slice %1113 {offsets = [0, 0], sizes = [2, 192], strides = [1, 1]} : vector<2x384xf32> to vector<2x192xf32>
    %1118 = arith.truncf %1072 : vector<2x64xf32> to vector<2x64xbf16>
    %cst_248 = arith.constant dense<0.000000e+00> : vector<2x192xf32>
    %1119 = tpu.matmul %1118, %10, %cst_248 {dimension_numbers = #tpu.dot_dimension_numbers<[1], [0], [0], [1], [0, 0, 1, 1], [], []>} : vector<2x64xbf16>, vector<64x192xbf16>, vector<2x192xf32> -> vector<2x192xf32>
    %1120 = vector.broadcast %11 : vector<1x192xf32> to vector<2x192xf32>
    %1121 = arith.addf %1119, %1120 : vector<2x192xf32>
    %1122 = vector.extract_strided_slice %1117 {offsets = [0, 0], sizes = [2, 64], strides = [1, 1]} : vector<2x192xf32> to vector<2x64xf32>
    %1123 = vector.extract_strided_slice %1121 {offsets = [0, 0], sizes = [2, 64], strides = [1, 1]} : vector<2x192xf32> to vector<2x64xf32>
    %1124 = arith.addf %1122, %1123 : vector<2x64xf32>
    %1125 = arith.negf %1124 : vector<2x64xf32>
    %1126 = math.exp %1125 : vector<2x64xf32>
    %cst_249 = arith.constant 1.000000e+00 : f32
    %1127 = vector.broadcast %cst_249 : f32 to vector<2x64xf32>
    %1128 = arith.addf %1127, %1126 : vector<2x64xf32>
    %1129 = arith.divf %1127, %1128 : vector<2x64xf32>
    %1130 = vector.extract_strided_slice %1117 {offsets = [0, 64], sizes = [2, 64], strides = [1, 1]} : vector<2x192xf32> to vector<2x64xf32>
    %1131 = vector.extract_strided_slice %1121 {offsets = [0, 64], sizes = [2, 64], strides = [1, 1]} : vector<2x192xf32> to vector<2x64xf32>
    %1132 = arith.addf %1130, %1131 : vector<2x64xf32>
    %1133 = arith.negf %1132 : vector<2x64xf32>
    %1134 = math.exp %1133 : vector<2x64xf32>
    %cst_250 = arith.constant 1.000000e+00 : f32
    %1135 = vector.broadcast %cst_250 : f32 to vector<2x64xf32>
    %1136 = arith.addf %1135, %1134 : vector<2x64xf32>
    %1137 = arith.divf %1135, %1136 : vector<2x64xf32>
    %1138 = vector.extract_strided_slice %1117 {offsets = [0, 128], sizes = [2, 64], strides = [1, 1]} : vector<2x192xf32> to vector<2x64xf32>
    %1139 = vector.extract_strided_slice %1121 {offsets = [0, 128], sizes = [2, 64], strides = [1, 1]} : vector<2x192xf32> to vector<2x64xf32>
    %1140 = arith.mulf %1129, %1139 : vector<2x64xf32>
    %1141 = arith.addf %1138, %1140 : vector<2x64xf32>
    %1142 = math.tanh %1141 : vector<2x64xf32>
    %1143 = arith.subf %1072, %1142 : vector<2x64xf32>
    %1144 = arith.mulf %1137, %1143 : vector<2x64xf32>
    %1145 = arith.addf %1142, %1144 : vector<2x64xf32>
    %1146 = vector.extract_strided_slice %1116 {offsets = [0, 192], sizes = [2, 192], strides = [1, 1]} : vector<2x384xf32> to vector<2x192xf32>
    %1147 = arith.truncf %1101 : vector<2x64xf32> to vector<2x64xbf16>
    %cst_251 = arith.constant dense<0.000000e+00> : vector<2x192xf32>
    %1148 = tpu.matmul %1147, %12, %cst_251 {dimension_numbers = #tpu.dot_dimension_numbers<[1], [0], [0], [1], [0, 0, 1, 1], [], []>} : vector<2x64xbf16>, vector<64x192xbf16>, vector<2x192xf32> -> vector<2x192xf32>
    %1149 = vector.broadcast %13 : vector<1x192xf32> to vector<2x192xf32>
    %1150 = arith.addf %1148, %1149 : vector<2x192xf32>
    %1151 = vector.extract_strided_slice %1146 {offsets = [0, 0], sizes = [2, 64], strides = [1, 1]} : vector<2x192xf32> to vector<2x64xf32>
    %1152 = vector.extract_strided_slice %1150 {offsets = [0, 0], sizes = [2, 64], strides = [1, 1]} : vector<2x192xf32> to vector<2x64xf32>
    %1153 = arith.addf %1151, %1152 : vector<2x64xf32>
    %1154 = arith.negf %1153 : vector<2x64xf32>
    %1155 = math.exp %1154 : vector<2x64xf32>
    %cst_252 = arith.constant 1.000000e+00 : f32
    %1156 = vector.broadcast %cst_252 : f32 to vector<2x64xf32>
    %1157 = arith.addf %1156, %1155 : vector<2x64xf32>
    %1158 = arith.divf %1156, %1157 : vector<2x64xf32>
    %1159 = vector.extract_strided_slice %1146 {offsets = [0, 64], sizes = [2, 64], strides = [1, 1]} : vector<2x192xf32> to vector<2x64xf32>
    %1160 = vector.extract_strided_slice %1150 {offsets = [0, 64], sizes = [2, 64], strides = [1, 1]} : vector<2x192xf32> to vector<2x64xf32>
    %1161 = arith.addf %1159, %1160 : vector<2x64xf32>
    %1162 = arith.negf %1161 : vector<2x64xf32>
    %1163 = math.exp %1162 : vector<2x64xf32>
    %cst_253 = arith.constant 1.000000e+00 : f32
    %1164 = vector.broadcast %cst_253 : f32 to vector<2x64xf32>
    %1165 = arith.addf %1164, %1163 : vector<2x64xf32>
    %1166 = arith.divf %1164, %1165 : vector<2x64xf32>
    %1167 = vector.extract_strided_slice %1146 {offsets = [0, 128], sizes = [2, 64], strides = [1, 1]} : vector<2x192xf32> to vector<2x64xf32>
    %1168 = vector.extract_strided_slice %1150 {offsets = [0, 128], sizes = [2, 64], strides = [1, 1]} : vector<2x192xf32> to vector<2x64xf32>
    %1169 = arith.mulf %1158, %1168 : vector<2x64xf32>
    %1170 = arith.addf %1167, %1169 : vector<2x64xf32>
    %1171 = math.tanh %1170 : vector<2x64xf32>
    %1172 = arith.subf %1101, %1171 : vector<2x64xf32>
    %1173 = arith.mulf %1166, %1172 : vector<2x64xf32>
    %1174 = arith.addf %1171, %1173 : vector<2x64xf32>
    %1175 = arith.index_cast %c15_i32_242 : i32 to index
    %c0_254 = arith.constant 0 : index
    %c0_255 = arith.constant 0 : index
    %1176 = vector.load %arg10[%1175, %c0_254, %c0_255] : memref<16x2x64xf32, #tpu.memory_space<vmem>>, vector<1x2x64xf32>
    %1177 = vector.shape_cast %1176 : vector<1x2x64xf32> to vector<2x64xf32>
    %1178 = vector.shape_cast %1145 : vector<2x64xf32> to vector<1x2x64xf32>
    tpu.vector_store %arg10[%1175, %c0_254, %c0_255], %1178 {strides = array<i32>} : memref<16x2x64xf32, #tpu.memory_space<vmem>>, vector<1x2x64xf32>,
    %1179 = arith.index_cast %1110 : i32 to index
    %c0_256 = arith.constant 0 : index
    %c0_257 = arith.constant 0 : index
    %1180 = vector.load %arg11[%1179, %c0_256, %c0_257] : memref<16x2x64xf32, #tpu.memory_space<vmem>>, vector<1x2x64xf32>
    %1181 = vector.shape_cast %1180 : vector<1x2x64xf32> to vector<2x64xf32>
    %1182 = vector.shape_cast %1174 : vector<2x64xf32> to vector<1x2x64xf32>
    tpu.vector_store %arg11[%1179, %c0_256, %c0_257], %1182 {strides = array<i32>} : memref<16x2x64xf32, #tpu.memory_space<vmem>>, vector<1x2x64xf32>,
    %c16_i32 = arith.constant 16 : i32
    %c0_258 = arith.constant 0 : index
    %c0_259 = arith.constant 0 : index
    %c0_260 = arith.constant 0 : index
    %1183 = vector.load %arg10[%c0_258, %c0_259, %c0_260] : memref<16x2x64xf32, #tpu.memory_space<vmem>>, vector<16x2x64xf32>
    %c0_261 = arith.constant 0 : index
    %c0_262 = arith.constant 0 : index
    %c0_263 = arith.constant 0 : index
    %1184 = vector.load %arg11[%c0_261, %c0_262, %c0_263] : memref<16x2x64xf32, #tpu.memory_space<vmem>>, vector<16x2x64xf32>
    %1185 = tpu.concatenate %1183, %1184 in 2 : vector<16x2x64xf32>, vector<16x2x64xf32> -> vector<16x2x128xf32>
    %c0_264 = arith.constant 0 : index
    %c0_265 = arith.constant 0 : index
    %c0_266 = arith.constant 0 : index
    %1186 = vector.load %arg8[%c0_264, %c0_265, %c0_266] : memref<16x2x128xf32, #tpu.memory_space<vmem>>, vector<16x2x128xf32>
    tpu.vector_store %arg8[%c0_264, %c0_265, %c0_266], %1185 {strides = array<i32>} : memref<16x2x128xf32, #tpu.memory_space<vmem>>, vector<16x2x128xf32>,
    return
  }
  func.func @transform_0(%arg0: i32) -> (i32, i32, i32) {
    %c0_i32 = arith.constant 0 : i32
    %c0_i32_0 = arith.constant 0 : i32
    %c0_i32_1 = arith.constant 0 : i32
    %c0_i32_2 = arith.constant 0 : i32
    return %c0_i32, %c0_i32_0, %c0_i32_1 : i32, i32, i32
  }
  func.func @transform_1(%arg0: i32) -> (i32, i32) {
    %c0_i32 = arith.constant 0 : i32
    %c0_i32_0 = arith.constant 0 : i32
    %c0_i32_1 = arith.constant 0 : i32
    return %c0_i32, %c0_i32_0 : i32, i32
  }
  func.func @transform_2(%arg0: i32) -> (i32, i32) {
    %c0_i32 = arith.constant 0 : i32
    %c0_i32_0 = arith.constant 0 : i32
    %c0_i32_1 = arith.constant 0 : i32
    return %c0_i32, %c0_i32_0 : i32, i32
  }
  func.func @transform_3(%arg0: i32) -> (i32, i32) {
    %c0_i32 = arith.constant 0 : i32
    %c0_i32_0 = arith.constant 0 : i32
    %c0_i32_1 = arith.constant 0 : i32
    return %c0_i32, %c0_i32_0 : i32, i32
  }
  func.func @transform_4(%arg0: i32) -> (i32, i32) {
    %c0_i32 = arith.constant 0 : i32
    %c0_i32_0 = arith.constant 0 : i32
    %c0_i32_1 = arith.constant 0 : i32
    return %c0_i32, %c0_i32_0 : i32, i32
  }
  func.func @transform_5(%arg0: i32) -> (i32, i32) {
    %c0_i32 = arith.constant 0 : i32
    %c0_i32_0 = arith.constant 0 : i32
    %c0_i32_1 = arith.constant 0 : i32
    return %c0_i32, %c0_i32_0 : i32, i32
  }
  func.func @transform_6(%arg0: i32) -> (i32, i32) {
    %c0_i32 = arith.constant 0 : i32
    %c0_i32_0 = arith.constant 0 : i32
    %c0_i32_1 = arith.constant 0 : i32
    return %c0_i32, %c0_i32_0 : i32, i32
  }
  func.func @transform_7(%arg0: i32) -> (i32, i32, i32) {
    %c0_i32 = arith.constant 0 : i32
    %c0_i32_0 = arith.constant 0 : i32
    %c0_i32_1 = arith.constant 0 : i32
    %c0_i32_2 = arith.constant 0 : i32
    return %c0_i32, %c0_i32_0, %c0_i32_1 : i32, i32, i32
  }
}

</mosaic_0001>

<llo_original>
// kernel: cbhg_forward.4
$region0: #{cbhg_forward.4}
  #allocation0 [shape = 'u32[]', space=smem, size = 0x4, offset = 0x4, fixed_abs, tag = 'smem constant byte address 0x4 - core index']
  #allocation1 [shape = 'u32[144,128]{1,0:T(1,128)}', space=vmem, size = 0x12000, scoped, tag = 'internal scratch']
  #allocation2 [shape = 'f32[2,20,128]{2,1,0:T(8,128)}', space=vmem, size = 0x6000, scoped, tag = 'scratch operand']
  %s0 = inlined_call_operand.vmem [shape: f32[2,16,128], index: 0, kind: input, shape index: {}]
  %s1 = inlined_call_operand.vmem [shape: bf16[128,64], index: 1, kind: input, shape index: {}]
  %s2 = inlined_call_operand.vmem [shape: f32[1,64], index: 2, kind: input, shape index: {}]
  %s3 = inlined_call_operand.vmem [shape: f32[1,64], index: 3, kind: input, shape index: {}]
  %s4 = inlined_call_operand.vmem [shape: f32[1,64], index: 4, kind: input, shape index: {}]
  %s5 = inlined_call_operand.vmem [shape: bf16[128,64], index: 5, kind: input, shape index: {}]
  %s6 = inlined_call_operand.vmem [shape: f32[1,64], index: 6, kind: input, shape index: {}]
  %s7 = inlined_call_operand.vmem [shape: f32[1,64], index: 7, kind: input, shape index: {}]
  %s8 = inlined_call_operand.vmem [shape: f32[1,64], index: 8, kind: input, shape index: {}]
  %s9 = inlined_call_operand.vmem [shape: bf16[192,64], index: 9, kind: input, shape index: {}]
  %s10 = inlined_call_operand.vmem [shape: f32[1,64], index: 10, kind: input, shape index: {}]
  %s11 = inlined_call_operand.vmem [shape: f32[1,64], index: 11, kind: input, shape index: {}]
  %s12 = inlined_call_operand.vmem [shape: f32[1,64], index: 12, kind: input, shape index: {}]
  %s13 = inlined_call_operand.vmem [shape: bf16[256,64], index: 13, kind: input, shape index: {}]
  %s14 = inlined_call_operand.vmem [shape: f32[1,64], index: 14, kind: input, shape index: {}]
  %s15 = inlined_call_operand.vmem [shape: f32[1,64], index: 15, kind: input, shape index: {}]
  %s16 = inlined_call_operand.vmem [shape: f32[1,64], index: 16, kind: input, shape index: {}]
  %s17 = inlined_call_operand.vmem [shape: f32[2,16,256], index: 17, kind: output, shape index: {}]
  %s18 = sld [smem:[#allocation0]]
  $region78: #{cbhg_forward.4} parent=0
    _
  %s20 = ssub.s32 1, %s18
  %s21 = scalar_select 0, %s20, %s18
  // Predicated region
  $region2: #{cbhg_forward.4} parent=0 // pred_check
    _
  $region3: #{cbhg_forward.4} parent=0 // pred_check_branch
    %23 = sbr.rel (0) target = $region5
  $region4: #{cbhg_forward.4} parent=0 // pred_region
    _
  $region5: #{cbhg_forward.4} parent=0 // pred_fallthru
    _
  // Predicated region
  $region6: #{cbhg_forward.4} parent=0 // pred_check
    _
  $region7: #{cbhg_forward.4} parent=0 // pred_check_branch
    %25 = sbr.rel (0) target = $region9
  $region8: #{cbhg_forward.4} parent=0 // pred_region
    _
  $region9: #{cbhg_forward.4} parent=0 // pred_fallthru
    _
  // Predicated region
  $region10: #{cbhg_forward.4} parent=0 // pred_check
    _
  $region11: #{cbhg_forward.4} parent=0 // pred_check_branch
    %27 = sbr.rel (0) target = $region13
  $region12: #{cbhg_forward.4} parent=0 // pred_region
    _
  $region13: #{cbhg_forward.4} parent=0 // pred_fallthru
    _
  // Predicated region
  $region14: #{cbhg_forward.4} parent=0 // pred_check
    _
  $region15: #{cbhg_forward.4} parent=0 // pred_check_branch
    %29 = sbr.rel (0) target = $region17
  $region16: #{cbhg_forward.4} parent=0 // pred_region
    _
  $region17: #{cbhg_forward.4} parent=0 // pred_fallthru
    _
  // Predicated region
  $region18: #{cbhg_forward.4} parent=0 // pred_check
    _
  $region19: #{cbhg_forward.4} parent=0 // pred_check_branch
    %31 = sbr.rel (0) target = $region21
  $region20: #{cbhg_forward.4} parent=0 // pred_region
    _
  $region21: #{cbhg_forward.4} parent=0 // pred_fallthru
    _
  // Predicated region
  $region22: #{cbhg_forward.4} parent=0 // pred_check
    _
  $region23: #{cbhg_forward.4} parent=0 // pred_check_branch
    %33 = sbr.rel (0) target = $region25
  $region24: #{cbhg_forward.4} parent=0 // pred_region
    _
  $region25: #{cbhg_forward.4} parent=0 // pred_fallthru
    _
  // Predicated region
  $region26: #{cbhg_forward.4} parent=0 // pred_check
    _
  $region27: #{cbhg_forward.4} parent=0 // pred_check_branch
    %35 = sbr.rel (0) target = $region29
  $region28: #{cbhg_forward.4} parent=0 // pred_region
    _
  $region29: #{cbhg_forward.4} parent=0 // pred_fallthru
    _
  // Predicated region
  $region30: #{cbhg_forward.4} parent=0 // pred_check
    _
  $region31: #{cbhg_forward.4} parent=0 // pred_check_branch
    %37 = sbr.rel (0) target = $region33
  $region32: #{cbhg_forward.4} parent=0 // pred_region
    _
  $region33: #{cbhg_forward.4} parent=0 // pred_fallthru
    _
  // Predicated region
  $region34: #{cbhg_forward.4} parent=0 // pred_check
    _
  $region35: #{cbhg_forward.4} parent=0 // pred_check_branch
    %39 = sbr.rel (0) target = $region37
  $region36: #{cbhg_forward.4} parent=0 // pred_region
    _
  $region37: #{cbhg_forward.4} parent=0 // pred_fallthru
    _
  // Predicated region
  $region38: #{cbhg_forward.4} parent=0 // pred_check
    _
  $region39: #{cbhg_forward.4} parent=0 // pred_check_branch
    %41 = sbr.rel (0) target = $region41
  $region40: #{cbhg_forward.4} parent=0 // pred_region
    _
  $region41: #{cbhg_forward.4} parent=0 // pred_fallthru
    _
  // Predicated region
  $region42: #{cbhg_forward.4} parent=0 // pred_check
    _
  $region43: #{cbhg_forward.4} parent=0 // pred_check_branch
    %43 = sbr.rel (0) target = $region45
  $region44: #{cbhg_forward.4} parent=0 // pred_region
    _
  $region45: #{cbhg_forward.4} parent=0 // pred_fallthru
    _
  // Predicated region
  $region46: #{cbhg_forward.4} parent=0 // pred_check
    _
  $region47: #{cbhg_forward.4} parent=0 // pred_check_branch
    %45 = sbr.rel (0) target = $region49
  $region48: #{cbhg_forward.4} parent=0 // pred_region
    _
  $region49: #{cbhg_forward.4} parent=0 // pred_fallthru
    _
  // Predicated region
  $region50: #{cbhg_forward.4} parent=0 // pred_check
    _
  $region51: #{cbhg_forward.4} parent=0 // pred_check_branch
    %47 = sbr.rel (0) target = $region53
  $region52: #{cbhg_forward.4} parent=0 // pred_region
    _
  $region53: #{cbhg_forward.4} parent=0 // pred_fallthru
    _
  // Predicated region
  $region54: #{cbhg_forward.4} parent=0 // pred_check
    _
  $region55: #{cbhg_forward.4} parent=0 // pred_check_branch
    %49 = sbr.rel (0) target = $region57
  $region56: #{cbhg_forward.4} parent=0 // pred_region
    _
  $region57: #{cbhg_forward.4} parent=0 // pred_fallthru
    _
  // Predicated region
  $region58: #{cbhg_forward.4} parent=0 // pred_check
    _
  $region59: #{cbhg_forward.4} parent=0 // pred_check_branch
    %51 = sbr.rel (0) target = $region61
  $region60: #{cbhg_forward.4} parent=0 // pred_region
    _
  $region61: #{cbhg_forward.4} parent=0 // pred_fallthru
    _
  // Predicated region
  $region62: #{cbhg_forward.4} parent=0 // pred_check
    _
  $region63: #{cbhg_forward.4} parent=0 // pred_check_branch
    %53 = sbr.rel (0) target = $region65
  $region64: #{cbhg_forward.4} parent=0 // pred_region
    _
  $region65: #{cbhg_forward.4} parent=0 // pred_fallthru
    _
  // Predicated region
  $region66: #{cbhg_forward.4} parent=0 // pred_check
    _
  $region67: #{cbhg_forward.4} parent=0 // pred_check_branch
    %55 = sbr.rel (0) target = $region69
  $region68: #{cbhg_forward.4} parent=0 // pred_region
    _
  $region69: #{cbhg_forward.4} parent=0 // pred_fallthru
    _
  %57 = vst [vmem:[#allocation2] sm:$0xff] 0.0
  %58 = vst [vmem:[#allocation2 + $0x8] sm:$0xff] 0.0
  %59 = vst [vmem:[#allocation2 + $0x10] sm:$0xf] 0.0
  %60 = vst [vmem:[#allocation2 + $0x18] sm:$0xff] 0.0
  %61 = vst [vmem:[#allocation2 + $0x20] sm:$0xff] 0.0
  %62 = vst [vmem:[#allocation2 + $0x28] sm:$0xf] 0.0
  %v63 = vld [vmem:[%s0] sm:$0xff]
  %v64 = vld [vmem:[%s0 + $0x8] sm:$0xff]
  %v65 = vld [vmem:[%s0 + $0x10] sm:$0xff]
  %v66 = vld [vmem:[%s0 + $0x18] sm:$0xff]
  %v67 = vld [vmem:[%s1] sm:$0xf]
  %v68 = vld [vmem:[%s1 + $0x4] sm:$0xf]
  %v69 = vld [vmem:[%s1 + $0x8] sm:$0xf]
  %v70 = vld [vmem:[%s1 + $0xc] sm:$0xf]
  %v71 = vld [vmem:[%s1 + $0x10] sm:$0xf]
  %v72 = vld [vmem:[%s1 + $0x14] sm:$0xf]
  %v73 = vld [vmem:[%s1 + $0x18] sm:$0xf]
  %v74 = vld [vmem:[%s1 + $0x1c] sm:$0xf]
  %v75 = vld [vmem:[%s1 + $0x20] sm:$0xf]
  %v76 = vld [vmem:[%s1 + $0x24] sm:$0xf]
  %v77 = vld [vmem:[%s1 + $0x28] sm:$0xf]
  %v78 = vld [vmem:[%s1 + $0x2c] sm:$0xf]
  %v79 = vld [vmem:[%s1 + $0x30] sm:$0xf]
  %v80 = vld [vmem:[%s1 + $0x34] sm:$0xf]
  %v81 = vld [vmem:[%s1 + $0x38] sm:$0xf]
  %v82 = vld [vmem:[%s1 + $0x3c] sm:$0xf]
  %v83 = vld [vmem:[%s2] sm:$0x1]
  %v84 = vld [vmem:[%s3] sm:$0x1]
  %v85 = vld [vmem:[%s4] sm:$0x1]
  %v86 = vpack.c.bf16 %v64, %v63
  %v87 = vpack.c.bf16 %v66, %v65
  %v89 = vlaneseq
  %v90 = vshrl.u32 %v89, 7
  %v91 = vsub.s32 0, %v90
  %v92 = vrot.slane %v83, %v91
  %v110 = vunpack.c.l.b16 %v67
  %v111 = vunpack.c.l.b16 %v68
  %v112 = vunpack.c.l.b16 %v69
  %v113 = vunpack.c.l.b16 %v70
  %v114 = vunpack.c.l.b16 %v71
  %v115 = vunpack.c.l.b16 %v72
  %v116 = vunpack.c.l.b16 %v73
  %v117 = vunpack.c.l.b16 %v74
  %v118 = vunpack.c.l.b16 %v75
  %v119 = vunpack.c.l.b16 %v76
  %v120 = vunpack.c.l.b16 %v77
  %v121 = vunpack.c.l.b16 %v78
  %v122 = vunpack.c.l.b16 %v79
  %v123 = vunpack.c.l.b16 %v80
  %v124 = vunpack.c.l.b16 %v81
  %v125 = vunpack.c.l.b16 %v82
  %v126 = vpack.c.b16 %v111, %v110
  %v127 = vpack.c.b16 %v113, %v112
  %v128 = vpack.c.b16 %v115, %v114
  %v129 = vpack.c.b16 %v117, %v116
  %v130 = vpack.c.b16 %v119, %v118
  %v131 = vpack.c.b16 %v121, %v120
  %v132 = vpack.c.b16 %v123, %v122
  %v133 = vpack.c.b16 %v125, %v124
  %142 = vmatprep.subr.bf16.mxu0 0
  %143 = vmatpush1.bf16.msra.mxu0 %v126
  %144 = vmatprep.subr.bf16.mxu0 0
  %145 = vmatpush1.bf16.msra.mxu0 %v127
  %146 = vmatprep.subr.bf16.mxu0 0
  %147 = vmatpush1.bf16.msra.mxu0 %v128
  %148 = vmatprep.subr.bf16.mxu0 0
  %149 = vmatpush1.bf16.msra.mxu0 %v129
  %150 = vmatprep.subr.bf16.mxu0 0
  %151 = vmatpush1.bf16.msra.mxu0 %v130
  %152 = vmatprep.subr.bf16.mxu0 0
  %153 = vmatpush1.bf16.msra.mxu0 %v131
  %154 = vmatprep.subr.bf16.mxu0 0
  %155 = vmatpush1.bf16.msra.mxu0 %v132
  %156 = vmatprep.subr.bf16.mxu0 0
  %157 = vmatpush1.bf16.msra.mxu0 %v133
  %158 = vmatprep.subr.bf16.mxu0 0
  %159 = vmatpush1.bf16.msra.mxu0 0
  %160 = vmatprep.subr.bf16.mxu0 0
  %161 = vmatpush1.bf16.msra.mxu0 0
  %162 = vmatprep.subr.bf16.mxu0 0
  %163 = vmatpush1.bf16.msra.mxu0 0
  %164 = vmatprep.subr.bf16.mxu0 0
  %165 = vmatpush1.bf16.msra.mxu0 0
  %166 = vmatprep.subr.bf16.mxu0 0
  %167 = vmatpush1.bf16.msra.mxu0 0
  %168 = vmatprep.subr.bf16.mxu0 0
  %169 = vmatpush1.bf16.msra.mxu0 0
  %170 = vmatprep.subr.bf16.mxu0 0
  %171 = vmatpush1.bf16.msra.mxu0 0
  %172 = vmatprep.subr.bf16.mxu0 0
  %173 = vmatpush1.bf16.msra.mxu0 0
  %174 = vmatprep.mubr.bf16.mxu0 0
  %175 = vmatmul.mubr.bf16.gmra.mrb[0].mxu0 %v86
  %v176 = vpop.f32.mrb[0].mxu0
  %v177 = vadd.f32 %v92, %v176
  %v178 = vpop.f32.mrb[0].mxu0
  %v179 = vpop.f32.mrb[0].mxu0
  %v180 = vadd.f32 %v92, %v179
  %v181 = vpop.f32.mrb[0].mxu0
  %182 = vmatprep.mubr.bf16.mxu0 0
  %183 = vmatmul.mubr.bf16.gmra.mrb[0].mxu0 %v87
  %v184 = vpop.f32.mrb[0].mxu0
  %v185 = vadd.f32 %v92, %v184
  %v186 = vpop.f32.mrb[0].mxu0
  %v187 = vpop.f32.mrb[0].mxu0
  %v188 = vadd.f32 %v92, %v187
  %v189 = vpop.f32.mrb[0].mxu0
  %190 = vdwg.mxu0
  %vm191 = vcmask 523264
  %v192 = vsel %vm191, %v177, 0.0
  %v193 = vsel %vm191, %v180, 0.0
  %v194 = vadd.f32 %v192, %v193
  %v195 = vsel %vm191, %v185, 0.0
  %v196 = vadd.f32 %v194, %v195
  %v197 = vsel %vm191, %v188, 0.0
  %v198 = vadd.f32 %v196, %v197
  %v199 = vrot.slane %v198, 4
  %v200 = vadd.f32 %v198, %v199
  %v201 = vrot.slane %v200, 2
  %v202 = vadd.f32 %v200, %v201
  %v203 = vrot.slane %v202, 1
  %v204 = vadd.f32 %v202, %v203
  %v205 = vrcp.pop 32.0
  %v206 = vmul.f32 %v204, %v205
  %v207 = vsub.f32 %v177, %v206
  %v208 = vsub.f32 %v180, %v206
  %v209 = vsub.f32 %v185, %v206
  %v210 = vsub.f32 %v188, %v206
  %v211 = vmul.f32 %v207, %v207
  %v212 = vmul.f32 %v208, %v208
  %v213 = vmul.f32 %v209, %v209
  %v214 = vmul.f32 %v210, %v210
  %v215 = vsel %vm191, %v211, 0.0
  %v216 = vsel %vm191, %v212, 0.0
  %v217 = vadd.f32 %v215, %v216
  %v218 = vsel %vm191, %v213, 0.0
  %v219 = vadd.f32 %v217, %v218
  %v220 = vsel %vm191, %v214, 0.0
  %v221 = vadd.f32 %v219, %v220
  %v222 = vrot.slane %v221, 4
  %v223 = vadd.f32 %v221, %v222
  %v224 = vrot.slane %v223, 2
  %v225 = vadd.f32 %v223, %v224
  %v226 = vrot.slane %v225, 1
  %v227 = vadd.f32 %v225, %v226
  %v228 = vmul.f32 %v227, %v205
  %v229 = vadd.f32 %v228, 1e-05
  %v230 = vrsqrt.pop %v229
  %v231 = vmul.f32 %v207, %v230
  %v232 = vmul.f32 %v208, %v230
  %v233 = vmul.f32 %v209, %v230
  %v234 = vmul.f32 %v210, %v230
  %v236 = vlaneseq
  %v237 = vshrl.u32 %v236, 7
  %v238 = vsub.s32 0, %v237
  %v239 = vrot.slane %v84, %v238
  %v241 = vmul.f32 %v231, %v239
  %v242 = vmul.f32 %v232, %v239
  %v243 = vmul.f32 %v233, %v239
  %v244 = vmul.f32 %v234, %v239
  %v246 = vlaneseq
  %v247 = vshrl.u32 %v246, 7
  %v248 = vsub.s32 0, %v247
  %v249 = vrot.slane %v85, %v248
  %v251 = vadd.f32 %v241, %v249
  %v252 = vadd.f32 %v242, %v249
  %v253 = vadd.f32 %v243, %v249
  %v254 = vadd.f32 %v244, %v249
  %v255 = vmax.f32 %v251, 0.0
  %v256 = vmax.f32 %v252, 0.0
  %v257 = vmax.f32 %v253, 0.0
  %v258 = vmax.f32 %v254, 0.0
  %v259 = vld [vmem:[%s5] sm:$0xf]
  %v260 = vld [vmem:[%s5 + $0x4] sm:$0xf]
  %v261 = vld [vmem:[%s5 + $0x8] sm:$0xf]
  %v262 = vld [vmem:[%s5 + $0xc] sm:$0xf]
  %v263 = vld [vmem:[%s5 + $0x10] sm:$0xf]
  %v264 = vld [vmem:[%s5 + $0x14] sm:$0xf]
  %v265 = vld [vmem:[%s5 + $0x18] sm:$0xf]
  %v266 = vld [vmem:[%s5 + $0x1c] sm:$0xf]
  %v267 = vld [vmem:[%s5 + $0x20] sm:$0xf]
  %v268 = vld [vmem:[%s5 + $0x24] sm:$0xf]
  %v269 = vld [vmem:[%s5 + $0x28] sm:$0xf]
  %v270 = vld [vmem:[%s5 + $0x2c] sm:$0xf]
  %v271 = vld [vmem:[%s5 + $0x30] sm:$0xf]
  %v272 = vld [vmem:[%s5 + $0x34] sm:$0xf]
  %v273 = vld [vmem:[%s5 + $0x38] sm:$0xf]
  %v274 = vld [vmem:[%s5 + $0x3c] sm:$0xf]
  %v275 = vld [vmem:[%s6] sm:$0x1]
  %v276 = vld [vmem:[%s7] sm:$0x1]
  %v277 = vld [vmem:[%s8] sm:$0x1]
  %278 = vst.msk [vmem:[#allocation2 + $0x2] sm:$0xff] %vm191, %v255
  %279 = vst.msk [vmem:[#allocation2 + $0xa] sm:$0xff] %vm191, %v256
  %280 = vst.msk [vmem:[#allocation2 + $0x1a] sm:$0xff] %vm191, %v257
  %281 = vst.msk [vmem:[#allocation2 + $0x22] sm:$0xff] %vm191, %v258
  %v282 = vld [vmem:[#allocation2 + $0x1] sm:$0xff]
  %v283 = vld [vmem:[#allocation2 + $0x9] sm:$0xff]
  %v284 = vld [vmem:[#allocation2 + $0x19] sm:$0xff]
  %v285 = vld [vmem:[#allocation2 + $0x21] sm:$0xff]
  %v286 = vld [vmem:[#allocation2 + $0x2] sm:$0xff]
  %v287 = vld [vmem:[#allocation2 + $0xa] sm:$0xff]
  %v288 = vld [vmem:[#allocation2 + $0x1a] sm:$0xff]
  %v289 = vld [vmem:[#allocation2 + $0x22] sm:$0xff]
  %294 = vrot.lane.b32.xlu0 %v286, 64
  %v295 = vpop.permute.xlu0 %294
  %296 = vrot.lane.b32.xlu0 %v287, 64
  %v297 = vpop.permute.xlu0 %296
  %298 = vrot.lane.b32.xlu0 %v288, 64
  %v299 = vpop.permute.xlu0 %298
  %300 = vrot.lane.b32.xlu0 %v289, 64
  %v301 = vpop.permute.xlu0 %300
  %v306 = vsel %vm191, %v282, %v295
  %v307 = vsel %vm191, %v283, %v297
  %v308 = vsel %vm191, %v284, %v299
  %v309 = vsel %vm191, %v285, %v301
  %v310 = vpack.c.bf16 %v307, %v306
  %v311 = vpack.c.bf16 %v309, %v308
  %v313 = vlaneseq
  %v314 = vshrl.u32 %v313, 7
  %v315 = vsub.s32 0, %v314
  %v316 = vrot.slane %v275, %v315
  %v334 = vunpack.c.l.b16 %v259
  %v335 = vunpack.c.l.b16 %v260
  %v336 = vunpack.c.l.b16 %v261
  %v337 = vunpack.c.l.b16 %v262
  %v338 = vunpack.c.l.b16 %v263
  %v339 = vunpack.c.l.b16 %v264
  %v340 = vunpack.c.l.b16 %v265
  %v341 = vunpack.c.l.b16 %v266
  %v342 = vunpack.c.l.b16 %v267
  %v343 = vunpack.c.l.b16 %v268
  %v344 = vunpack.c.l.b16 %v269
  %v345 = vunpack.c.l.b16 %v270
  %v346 = vunpack.c.l.b16 %v271
  %v347 = vunpack.c.l.b16 %v272
  %v348 = vunpack.c.l.b16 %v273
  %v349 = vunpack.c.l.b16 %v274
  %v350 = vpack.c.b16 %v335, %v334
  %v351 = vpack.c.b16 %v337, %v336
  %v352 = vpack.c.b16 %v339, %v338
  %v353 = vpack.c.b16 %v341, %v340
  %v354 = vpack.c.b16 %v343, %v342
  %v355 = vpack.c.b16 %v345, %v344
  %v356 = vpack.c.b16 %v347, %v346
  %v357 = vpack.c.b16 %v349, %v348
  %366 = vmatprep.subr.bf16.mxu0 0
  %367 = vmatpush1.bf16.msra.mxu0 %v350
  %368 = vmatprep.subr.bf16.mxu0 0
  %369 = vmatpush1.bf16.msra.mxu0 %v351
  %370 = vmatprep.subr.bf16.mxu0 0
  %371 = vmatpush1.bf16.msra.mxu0 %v352
  %372 = vmatprep.subr.bf16.mxu0 0
  %373 = vmatpush1.bf16.msra.mxu0 %v353
  %374 = vmatprep.subr.bf16.mxu0 0
  %375 = vmatpush1.bf16.msra.mxu0 %v354
  %376 = vmatprep.subr.bf16.mxu0 0
  %377 = vmatpush1.bf16.msra.mxu0 %v355
  %378 = vmatprep.subr.bf16.mxu0 0
  %379 = vmatpush1.bf16.msra.mxu0 %v356
  %380 = vmatprep.subr.bf16.mxu0 0
  %381 = vmatpush1.bf16.msra.mxu0 %v357
  %382 = vmatprep.subr.bf16.mxu0 0
  %383 = vmatpush1.bf16.msra.mxu0 0
  %384 = vmatprep.subr.bf16.mxu0 0
  %385 = vmatpush1.bf16.msra.mxu0 0
  %386 = vmatprep.subr.bf16.mxu0 0
  %387 = vmatpush1.bf16.msra.mxu0 0
  %388 = vmatprep.subr.bf16.mxu0 0
  %389 = vmatpush1.bf16.msra.mxu0 0
  %390 = vmatprep.subr.bf16.mxu0 0
  %391 = vmatpush1.bf16.msra.mxu0 0
  %392 = vmatprep.subr.bf16.mxu0 0
  %393 = vmatpush1.bf16.msra.mxu0 0
  %394 = vmatprep.subr.bf16.mxu0 0
  %395 = vmatpush1.bf16.msra.mxu0 0
  %396 = vmatprep.subr.bf16.mxu0 0
  %397 = vmatpush1.bf16.msra.mxu0 0
  %398 = vmatprep.mubr.bf16.mxu0 0
  %399 = vmatmul.mubr.bf16.gmra.mrb[0].mxu0 %v310
  %v400 = vpop.f32.mrb[0].mxu0
  %v401 = vadd.f32 %v316, %v400
  %v402 = vpop.f32.mrb[0].mxu0
  %v403 = vpop.f32.mrb[0].mxu0
  %v404 = vadd.f32 %v316, %v403
  %v405 = vpop.f32.mrb[0].mxu0
  %406 = vmatprep.mubr.bf16.mxu0 0
  %407 = vmatmul.mubr.bf16.gmra.mrb[0].mxu0 %v311
  %v408 = vpop.f32.mrb[0].mxu0
  %v409 = vadd.f32 %v316, %v408
  %v410 = vpop.f32.mrb[0].mxu0
  %v411 = vpop.f32.mrb[0].mxu0
  %v412 = vadd.f32 %v316, %v411
  %v413 = vpop.f32.mrb[0].mxu0
  %414 = vdwg.mxu0
  %v415 = vsel %vm191, %v401, 0.0
  %v416 = vsel %vm191, %v404, 0.0
  %v417 = vadd.f32 %v415, %v416
  %v418 = vsel %vm191, %v409, 0.0
  %v419 = vadd.f32 %v417, %v418
  %v420 = vsel %vm191, %v412, 0.0
  %v421 = vadd.f32 %v419, %v420
  %v422 = vrot.slane %v421, 4
  %v423 = vadd.f32 %v421, %v422
  %v424 = vrot.slane %v423, 2
  %v425 = vadd.f32 %v423, %v424
  %v426 = vrot.slane %v425, 1
  %v427 = vadd.f32 %v425, %v426
  %v428 = vmul.f32 %v427, %v205
  %v429 = vsub.f32 %v401, %v428
  %v430 = vsub.f32 %v404, %v428
  %v431 = vsub.f32 %v409, %v428
  %v432 = vsub.f32 %v412, %v428
  %v433 = vmul.f32 %v429, %v429
  %v434 = vmul.f32 %v430, %v430
  %v435 = vmul.f32 %v431, %v431
  %v436 = vmul.f32 %v432, %v432
  %v437 = vsel %vm191, %v433, 0.0
  %v438 = vsel %vm191, %v434, 0.0
  %v439 = vadd.f32 %v437, %v438
  %v440 = vsel %vm191, %v435, 0.0
  %v441 = vadd.f32 %v439, %v440
  %v442 = vsel %vm191, %v436, 0.0
  %v443 = vadd.f32 %v441, %v442
  %v444 = vrot.slane %v443, 4
  %v445 = vadd.f32 %v443, %v444
  %v446 = vrot.slane %v445, 2
  %v447 = vadd.f32 %v445, %v446
  %v448 = vrot.slane %v447, 1
  %v449 = vadd.f32 %v447, %v448
  %v450 = vmul.f32 %v449, %v205
  %v451 = vadd.f32 %v450, 1e-05
  %v452 = vrsqrt.pop %v451
  %v453 = vmul.f32 %v429, %v452
  %v454 = vmul.f32 %v430, %v452
  %v455 = vmul.f32 %v431, %v452
  %v456 = vmul.f32 %v432, %v452
  %v458 = vlaneseq
  %v459 = vshrl.u32 %v458, 7
  %v460 = vsub.s32 0, %v459
  %v461 = vrot.slane %v276, %v460
  %v463 = vmul.f32 %v453, %v461
  %v464 = vmul.f32 %v454, %v461
  %v465 = vmul.f32 %v455, %v461
  %v466 = vmul.f32 %v456, %v461
  %v468 = vlaneseq
  %v469 = vshrl.u32 %v468, 7
  %v470 = vsub.s32 0, %v469
  %v471 = vrot.slane %v277, %v470
  %v473 = vadd.f32 %v463, %v471
  %v474 = vadd.f32 %v464, %v471
  %v475 = vadd.f32 %v465, %v471
  %v476 = vadd.f32 %v466, %v471
  %v477 = vmax.f32 %v473, 0.0
  %v478 = vmax.f32 %v474, 0.0
  %v479 = vmax.f32 %v475, 0.0
  %v480 = vmax.f32 %v476, 0.0
  %v481 = vld [vmem:[%s9] sm:$0xf]
  %v482 = vld [vmem:[%s9 + $0x4] sm:$0xf]
  %v483 = vld [vmem:[%s9 + $0x8] sm:$0xf]
  %v484 = vld [vmem:[%s9 + $0xc] sm:$0xf]
  %v485 = vld [vmem:[%s9 + $0x10] sm:$0xf]
  %v486 = vld [vmem:[%s9 + $0x14] sm:$0xf]
  %v487 = vld [vmem:[%s9 + $0x18] sm:$0xf]
  %v488 = vld [vmem:[%s9 + $0x1c] sm:$0xf]
  %v489 = vld [vmem:[%s9 + $0x20] sm:$0xf]
  %v490 = vld [vmem:[%s9 + $0x24] sm:$0xf]
  %v491 = vld [vmem:[%s9 + $0x28] sm:$0xf]
  %v492 = vld [vmem:[%s9 + $0x2c] sm:$0xf]
  %v493 = vld [vmem:[%s9 + $0x30] sm:$0xf]
  %v494 = vld [vmem:[%s9 + $0x34] sm:$0xf]
  %v495 = vld [vmem:[%s9 + $0x38] sm:$0xf]
  %v496 = vld [vmem:[%s9 + $0x3c] sm:$0xf]
  %v497 = vld [vmem:[%s9 + $0x40] sm:$0xf]
  %v498 = vld [vmem:[%s9 + $0x44] sm:$0xf]
  %v499 = vld [vmem:[%s9 + $0x48] sm:$0xf]
  %v500 = vld [vmem:[%s9 + $0x4c] sm:$0xf]
  %v501 = vld [vmem:[%s9 + $0x50] sm:$0xf]
  %v502 = vld [vmem:[%s9 + $0x54] sm:$0xf]
  %v503 = vld [vmem:[%s9 + $0x58] sm:$0xf]
  %v504 = vld [vmem:[%s9 + $0x5c] sm:$0xf]
  %v505 = vld [vmem:[%s10] sm:$0x1]
  %v506 = vld [vmem:[%s11] sm:$0x1]
  %v507 = vld [vmem:[%s12] sm:$0x1]
  %508 = vst.msk [vmem:[#allocation2 + $0x2] sm:$0xff] %vm191, %v477
  %509 = vst.msk [vmem:[#allocation2 + $0xa] sm:$0xff] %vm191, %v478
  %510 = vst.msk [vmem:[#allocation2 + $0x1a] sm:$0xff] %vm191, %v479
  %511 = vst.msk [vmem:[#allocation2 + $0x22] sm:$0xff] %vm191, %v480
  %v512 = vld [vmem:[#allocation2 + $0x1] sm:$0xff]
  %v513 = vld [vmem:[#allocation2 + $0x9] sm:$0xff]
  %v514 = vld [vmem:[#allocation2 + $0x19] sm:$0xff]
  %v515 = vld [vmem:[#allocation2 + $0x21] sm:$0xff]
  %v516 = vld [vmem:[#allocation2 + $0x2] sm:$0xff]
  %v517 = vld [vmem:[#allocation2 + $0xa] sm:$0xff]
  %v518 = vld [vmem:[#allocation2 + $0x1a] sm:$0xff]
  %v519 = vld [vmem:[#allocation2 + $0x22] sm:$0xff]
  %v520 = vld [vmem:[#allocation2 + $0x3] sm:$0xff]
  %v521 = vld [vmem:[#allocation2 + $0xb] sm:$0xff]
  %v522 = vld [vmem:[#allocation2 + $0x1b] sm:$0xff]
  %v523 = vld [vmem:[#allocation2 + $0x23] sm:$0xff]
  %528 = vrot.lane.b32.xlu0 %v516, 64
  %v529 = vpop.permute.xlu0 %528
  %530 = vrot.lane.b32.xlu0 %v517, 64
  %v531 = vpop.permute.xlu0 %530
  %532 = vrot.lane.b32.xlu0 %v518, 64
  %v533 = vpop.permute.xlu0 %532
  %534 = vrot.lane.b32.xlu0 %v519, 64
  %v535 = vpop.permute.xlu0 %534
  %v540 = vsel %vm191, %v512, %v529
  %v541 = vsel %vm191, %v513, %v531
  %v542 = vsel %vm191, %v514, %v533
  %v543 = vsel %vm191, %v515, %v535
  %v544 = vpack.c.bf16 %v541, %v540
  %v545 = vpack.c.bf16 %v521, %v520
  %v546 = vpack.c.bf16 %v543, %v542
  %v547 = vpack.c.bf16 %v523, %v522
  %v549 = vlaneseq
  %v550 = vshrl.u32 %v549, 7
  %v551 = vsub.s32 0, %v550
  %v552 = vrot.slane %v505, %v551
  %v578 = vunpack.c.l.b16 %v481
  %v579 = vunpack.c.l.b16 %v482
  %v580 = vunpack.c.l.b16 %v483
  %v581 = vunpack.c.l.b16 %v484
  %v582 = vunpack.c.l.b16 %v485
  %v583 = vunpack.c.l.b16 %v486
  %v584 = vunpack.c.l.b16 %v487
  %v585 = vunpack.c.l.b16 %v488
  %v586 = vunpack.c.l.b16 %v489
  %v587 = vunpack.c.l.b16 %v490
  %v588 = vunpack.c.l.b16 %v491
  %v589 = vunpack.c.l.b16 %v492
  %v590 = vunpack.c.l.b16 %v493
  %v591 = vunpack.c.l.b16 %v494
  %v592 = vunpack.c.l.b16 %v495
  %v593 = vunpack.c.l.b16 %v496
  %v594 = vunpack.c.l.b16 %v497
  %v595 = vunpack.c.l.b16 %v498
  %v596 = vunpack.c.l.b16 %v499
  %v597 = vunpack.c.l.b16 %v500
  %v598 = vunpack.c.l.b16 %v501
  %v599 = vunpack.c.l.b16 %v502
  %v600 = vunpack.c.l.b16 %v503
  %v601 = vunpack.c.l.b16 %v504
  %v602 = vpack.c.b16 %v579, %v578
  %v603 = vpack.c.b16 %v581, %v580
  %v604 = vpack.c.b16 %v583, %v582
  %v605 = vpack.c.b16 %v585, %v584
  %v606 = vpack.c.b16 %v587, %v586
  %v607 = vpack.c.b16 %v589, %v588
  %v608 = vpack.c.b16 %v591, %v590
  %v609 = vpack.c.b16 %v593, %v592
  %v610 = vpack.c.b16 %v595, %v594
  %v611 = vpack.c.b16 %v597, %v596
  %v612 = vpack.c.b16 %v599, %v598
  %v613 = vpack.c.b16 %v601, %v600
  %v627 = vsel %vm191, %v545, 0
  %v630 = vsel %vm191, %v547, 0
  %632 = vmatprep.subr.bf16.mxu0 0
  %633 = vmatpush1.bf16.msra.mxu0 %v602
  %634 = vmatprep.subr.bf16.mxu0 0
  %635 = vmatpush1.bf16.msra.mxu0 %v603
  %636 = vmatprep.subr.bf16.mxu0 0
  %637 = vmatpush1.bf16.msra.mxu0 %v604
  %638 = vmatprep.subr.bf16.mxu0 0
  %639 = vmatpush1.bf16.msra.mxu0 %v605
  %640 = vmatprep.subr.bf16.mxu0 0
  %641 = vmatpush1.bf16.msra.mxu0 %v606
  %642 = vmatprep.subr.bf16.mxu0 0
  %643 = vmatpush1.bf16.msra.mxu0 %v607
  %644 = vmatprep.subr.bf16.mxu0 0
  %645 = vmatpush1.bf16.msra.mxu0 %v608
  %646 = vmatprep.subr.bf16.mxu0 0
  %647 = vmatpush1.bf16.msra.mxu0 %v609
  %648 = vmatprep.subr.bf16.mxu0 0
  %649 = vmatpush1.bf16.msra.mxu0 %v610
  %650 = vmatprep.subr.bf16.mxu0 0
  %651 = vmatpush1.bf16.msra.mxu0 %v611
  %652 = vmatprep.subr.bf16.mxu0 0
  %653 = vmatpush1.bf16.msra.mxu0 %v612
  %654 = vmatprep.subr.bf16.mxu0 0
  %655 = vmatpush1.bf16.msra.mxu0 %v613
  %656 = vmatprep.subr.bf16.mxu0 0
  %657 = vmatpush1.bf16.msra.mxu0 0
  %658 = vmatprep.subr.bf16.mxu0 0
  %659 = vmatpush1.bf16.msra.mxu0 0
  %660 = vmatprep.subr.bf16.mxu0 0
  %661 = vmatpush1.bf16.msra.mxu0 0
  %662 = vmatprep.subr.bf16.mxu0 0
  %663 = vmatpush1.bf16.msra.mxu0 0
  %664 = vmatprep.mubr.bf16.mxu0 %v627
  %665 = vmatmul.mubr.bf16.gmra.mrb[0].mxu0 %v544
  %v666 = vpop.f32.mrb[0].mxu0
  %v667 = vadd.f32 %v552, %v666
  %v668 = vpop.f32.mrb[0].mxu0
  %v669 = vpop.f32.mrb[0].mxu0
  %v670 = vadd.f32 %v552, %v669
  %v671 = vpop.f32.mrb[0].mxu0
  %672 = vmatprep.mubr.bf16.mxu0 %v630
  %673 = vmatmul.mubr.bf16.gmra.mrb[0].mxu0 %v546
  %v674 = vpop.f32.mrb[0].mxu0
  %v675 = vadd.f32 %v552, %v674
  %v676 = vpop.f32.mrb[0].mxu0
  %v677 = vpop.f32.mrb[0].mxu0
  %v678 = vadd.f32 %v552, %v677
  %v679 = vpop.f32.mrb[0].mxu0
  %680 = vdwg.mxu0
  %v681 = vsel %vm191, %v667, 0.0
  %v682 = vsel %vm191, %v670, 0.0
  %v683 = vadd.f32 %v681, %v682
  %v684 = vsel %vm191, %v675, 0.0
  %v685 = vadd.f32 %v683, %v684
  %v686 = vsel %vm191, %v678, 0.0
  %v687 = vadd.f32 %v685, %v686
  %v688 = vrot.slane %v687, 4
  %v689 = vadd.f32 %v687, %v688
  %v690 = vrot.slane %v689, 2
  %v691 = vadd.f32 %v689, %v690
  %v692 = vrot.slane %v691, 1
  %v693 = vadd.f32 %v691, %v692
  %v694 = vmul.f32 %v693, %v205
  %v695 = vsub.f32 %v667, %v694
  %v696 = vsub.f32 %v670, %v694
  %v697 = vsub.f32 %v675, %v694
  %v698 = vsub.f32 %v678, %v694
  %v699 = vmul.f32 %v695, %v695
  %v700 = vmul.f32 %v696, %v696
  %v701 = vmul.f32 %v697, %v697
  %v702 = vmul.f32 %v698, %v698
  %v703 = vsel %vm191, %v699, 0.0
  %v704 = vsel %vm191, %v700, 0.0
  %v705 = vadd.f32 %v703, %v704
  %v706 = vsel %vm191, %v701, 0.0
  %v707 = vadd.f32 %v705, %v706
  %v708 = vsel %vm191, %v702, 0.0
  %v709 = vadd.f32 %v707, %v708
  %v710 = vrot.slane %v709, 4
  %v711 = vadd.f32 %v709, %v710
  %v712 = vrot.slane %v711, 2
  %v713 = vadd.f32 %v711, %v712
  %v714 = vrot.slane %v713, 1
  %v715 = vadd.f32 %v713, %v714
  %v716 = vmul.f32 %v715, %v205
  %v717 = vadd.f32 %v716, 1e-05
  %v718 = vrsqrt.pop %v717
  %v719 = vmul.f32 %v695, %v718
  %v720 = vmul.f32 %v696, %v718
  %v721 = vmul.f32 %v697, %v718
  %v722 = vmul.f32 %v698, %v718
  %v724 = vlaneseq
  %v725 = vshrl.u32 %v724, 7
  %v726 = vsub.s32 0, %v725
  %v727 = vrot.slane %v506, %v726
  %v729 = vmul.f32 %v719, %v727
  %v730 = vmul.f32 %v720, %v727
  %v731 = vmul.f32 %v721, %v727
  %v732 = vmul.f32 %v722, %v727
  %v734 = vlaneseq
  %v735 = vshrl.u32 %v734, 7
  %v736 = vsub.s32 0, %v735
  %v737 = vrot.slane %v507, %v736
  %v739 = vadd.f32 %v729, %v737
  %v740 = vadd.f32 %v730, %v737
  %v741 = vadd.f32 %v731, %v737
  %v742 = vadd.f32 %v732, %v737
  %v743 = vmax.f32 %v739, 0.0
  %v744 = vmax.f32 %v740, 0.0
  %v745 = vmax.f32 %v741, 0.0
  %v746 = vmax.f32 %v742, 0.0
  %v747 = vld [vmem:[%s13] sm:$0xf]
  %v748 = vld [vmem:[%s13 + $0x4] sm:$0xf]
  %v749 = vld [vmem:[%s13 + $0x8] sm:$0xf]
  %v750 = vld [vmem:[%s13 + $0xc] sm:$0xf]
  %v751 = vld [vmem:[%s13 + $0x10] sm:$0xf]
  %v752 = vld [vmem:[%s13 + $0x14] sm:$0xf]
  %v753 = vld [vmem:[%s13 + $0x18] sm:$0xf]
  %v754 = vld [vmem:[%s13 + $0x1c] sm:$0xf]
  %v755 = vld [vmem:[%s13 + $0x20] sm:$0xf]
  %v756 = vld [vmem:[%s13 + $0x24] sm:$0xf]
  %v757 = vld [vmem:[%s13 + $0x28] sm:$0xf]
  %v758 = vld [vmem:[%s13 + $0x2c] sm:$0xf]
  %v759 = vld [vmem:[%s13 + $0x30] sm:$0xf]
  %v760 = vld [vmem:[%s13 + $0x34] sm:$0xf]
  %v761 = vld [vmem:[%s13 + $0x38] sm:$0xf]
  %v762 = vld [vmem:[%s13 + $0x3c] sm:$0xf]
  %v763 = vld [vmem:[%s13 + $0x40] sm:$0xf]
  %v764 = vld [vmem:[%s13 + $0x44] sm:$0xf]
  %v765 = vld [vmem:[%s13 + $0x48] sm:$0xf]
  %v766 = vld [vmem:[%s13 + $0x4c] sm:$0xf]
  %v767 = vld [vmem:[%s13 + $0x50] sm:$0xf]
  %v768 = vld [vmem:[%s13 + $0x54] sm:$0xf]
  %v769 = vld [vmem:[%s13 + $0x58] sm:$0xf]
  %v770 = vld [vmem:[%s13 + $0x5c] sm:$0xf]
  %v771 = vld [vmem:[%s13 + $0x60] sm:$0xf]
  %v772 = vld [vmem:[%s13 + $0x64] sm:$0xf]
  %v773 = vld [vmem:[%s13 + $0x68] sm:$0xf]
  %v774 = vld [vmem:[%s13 + $0x6c] sm:$0xf]
  %v775 = vld [vmem:[%s13 + $0x70] sm:$0xf]
  %v776 = vld [vmem:[%s13 + $0x74] sm:$0xf]
  %v777 = vld [vmem:[%s13 + $0x78] sm:$0xf]
  %v778 = vld [vmem:[%s13 + $0x7c] sm:$0xf]
  %v779 = vld [vmem:[%s14] sm:$0x1]
  %v780 = vld [vmem:[%s15] sm:$0x1]
  %v781 = vld [vmem:[%s16] sm:$0x1]
  %782 = vst.msk [vmem:[#allocation2 + $0x2] sm:$0xff] %vm191, %v743
  %783 = vst.msk [vmem:[#allocation2 + $0xa] sm:$0xff] %vm191, %v744
  %784 = vst.msk [vmem:[#allocation2 + $0x1a] sm:$0xff] %vm191, %v745
  %785 = vst.msk [vmem:[#allocation2 + $0x22] sm:$0xff] %vm191, %v746
  %v786 = vld [vmem:[#allocation2] sm:$0xff]
  %v787 = vld [vmem:[#allocation2 + $0x8] sm:$0xff]
  %v788 = vld [vmem:[#allocation2 + $0x18] sm:$0xff]
  %v789 = vld [vmem:[#allocation2 + $0x20] sm:$0xff]
  %v790 = vld [vmem:[#allocation2 + $0x1] sm:$0xff]
  %v791 = vld [vmem:[#allocation2 + $0x9] sm:$0xff]
  %v792 = vld [vmem:[#allocation2 + $0x19] sm:$0xff]
  %v793 = vld [vmem:[#allocation2 + $0x21] sm:$0xff]
  %v794 = vld [vmem:[#allocation2 + $0x2] sm:$0xff]
  %v795 = vld [vmem:[#allocation2 + $0xa] sm:$0xff]
  %v796 = vld [vmem:[#allocation2 + $0x1a] sm:$0xff]
  %v797 = vld [vmem:[#allocation2 + $0x22] sm:$0xff]
  %v798 = vld [vmem:[#allocation2 + $0x3] sm:$0xff]
  %v799 = vld [vmem:[#allocation2 + $0xb] sm:$0xff]
  %v800 = vld [vmem:[#allocation2 + $0x1b] sm:$0xff]
  %v801 = vld [vmem:[#allocation2 + $0x23] sm:$0xff]
  %806 = vrot.lane.b32.xlu0 %v790, 64
  %v807 = vpop.permute.xlu0 %806
  %808 = vrot.lane.b32.xlu0 %v791, 64
  %v809 = vpop.permute.xlu0 %808
  %810 = vrot.lane.b32.xlu0 %v792, 64
  %v811 = vpop.permute.xlu0 %810
  %812 = vrot.lane.b32.xlu0 %v793, 64
  %v813 = vpop.permute.xlu0 %812
  %822 = vrot.lane.b32.xlu0 %v798, 64
  %v823 = vpop.permute.xlu0 %822
  %824 = vrot.lane.b32.xlu0 %v799, 64
  %v825 = vpop.permute.xlu0 %824
  %826 = vrot.lane.b32.xlu0 %v800, 64
  %v827 = vpop.permute.xlu0 %826
  %828 = vrot.lane.b32.xlu0 %v801, 64
  %v829 = vpop.permute.xlu0 %828
  %v834 = vsel %vm191, %v786, %v807
  %v835 = vsel %vm191, %v787, %v809
  %v836 = vsel %vm191, %v788, %v811
  %v837 = vsel %vm191, %v789, %v813
  %v838 = vsel %vm191, %v794, %v823
  %v839 = vsel %vm191, %v795, %v825
  %v840 = vsel %vm191, %v796, %v827
  %v841 = vsel %vm191, %v797, %v829
  %v842 = vpack.c.bf16 %v835, %v834
  %v843 = vpack.c.bf16 %v839, %v838
  %v844 = vpack.c.bf16 %v837, %v836
  %v845 = vpack.c.bf16 %v841, %v840
  %v847 = vlaneseq
  %v848 = vshrl.u32 %v847, 7
  %v849 = vsub.s32 0, %v848
  %v850 = vrot.slane %v779, %v849
  %v884 = vunpack.c.l.b16 %v747
  %v885 = vunpack.c.l.b16 %v748
  %v886 = vunpack.c.l.b16 %v749
  %v887 = vunpack.c.l.b16 %v750
  %v888 = vunpack.c.l.b16 %v751
  %v889 = vunpack.c.l.b16 %v752
  %v890 = vunpack.c.l.b16 %v753
  %v891 = vunpack.c.l.b16 %v754
  %v892 = vunpack.c.l.b16 %v755
  %v893 = vunpack.c.l.b16 %v756
  %v894 = vunpack.c.l.b16 %v757
  %v895 = vunpack.c.l.b16 %v758
  %v896 = vunpack.c.l.b16 %v759
  %v897 = vunpack.c.l.b16 %v760
  %v898 = vunpack.c.l.b16 %v761
  %v899 = vunpack.c.l.b16 %v762
  %v900 = vunpack.c.l.b16 %v763
  %v901 = vunpack.c.l.b16 %v764
  %v902 = vunpack.c.l.b16 %v765
  %v903 = vunpack.c.l.b16 %v766
  %v904 = vunpack.c.l.b16 %v767
  %v905 = vunpack.c.l.b16 %v768
  %v906 = vunpack.c.l.b16 %v769
  %v907 = vunpack.c.l.b16 %v770
  %v908 = vunpack.c.l.b16 %v771
  %v909 = vunpack.c.l.b16 %v772
  %v910 = vunpack.c.l.b16 %v773
  %v911 = vunpack.c.l.b16 %v774
  %v912 = vunpack.c.l.b16 %v775
  %v913 = vunpack.c.l.b16 %v776
  %v914 = vunpack.c.l.b16 %v777
  %v915 = vunpack.c.l.b16 %v778
  %v916 = vpack.c.b16 %v885, %v884
  %v917 = vpack.c.b16 %v887, %v886
  %v918 = vpack.c.b16 %v889, %v888
  %v919 = vpack.c.b16 %v891, %v890
  %v920 = vpack.c.b16 %v893, %v892
  %v921 = vpack.c.b16 %v895, %v894
  %v922 = vpack.c.b16 %v897, %v896
  %v923 = vpack.c.b16 %v899, %v898
  %v924 = vpack.c.b16 %v901, %v900
  %v925 = vpack.c.b16 %v903, %v902
  %v926 = vpack.c.b16 %v905, %v904
  %v927 = vpack.c.b16 %v907, %v906
  %v928 = vpack.c.b16 %v909, %v908
  %v929 = vpack.c.b16 %v911, %v910
  %v930 = vpack.c.b16 %v913, %v912
  %v931 = vpack.c.b16 %v915, %v914
  %948 = vmatprep.subr.bf16.mxu0 0
  %949 = vmatpush1.bf16.msra.mxu0 %v916
  %950 = vmatprep.subr.bf16.mxu0 0
  %951 = vmatpush1.bf16.msra.mxu0 %v917
  %952 = vmatprep.subr.bf16.mxu0 0
  %953 = vmatpush1.bf16.msra.mxu0 %v918
  %954 = vmatprep.subr.bf16.mxu0 0
  %955 = vmatpush1.bf16.msra.mxu0 %v919
  %956 = vmatprep.subr.bf16.mxu0 0
  %957 = vmatpush1.bf16.msra.mxu0 %v920
  %958 = vmatprep.subr.bf16.mxu0 0
  %959 = vmatpush1.bf16.msra.mxu0 %v921
  %960 = vmatprep.subr.bf16.mxu0 0
  %961 = vmatpush1.bf16.msra.mxu0 %v922
  %962 = vmatprep.subr.bf16.mxu0 0
  %963 = vmatpush1.bf16.msra.mxu0 %v923
  %964 = vmatprep.subr.bf16.mxu0 0
  %965 = vmatpush1.bf16.msra.mxu0 %v924
  %966 = vmatprep.subr.bf16.mxu0 0
  %967 = vmatpush1.bf16.msra.mxu0 %v925
  %968 = vmatprep.subr.bf16.mxu0 0
  %969 = vmatpush1.bf16.msra.mxu0 %v926
  %970 = vmatprep.subr.bf16.mxu0 0
  %971 = vmatpush1.bf16.msra.mxu0 %v927
  %972 = vmatprep.subr.bf16.mxu0 0
  %973 = vmatpush1.bf16.msra.mxu0 %v928
  %974 = vmatprep.subr.bf16.mxu0 0
  %975 = vmatpush1.bf16.msra.mxu0 %v929
  %976 = vmatprep.subr.bf16.mxu0 0
  %977 = vmatpush1.bf16.msra.mxu0 %v930
  %978 = vmatprep.subr.bf16.mxu0 0
  %979 = vmatpush1.bf16.msra.mxu0 %v931
  %980 = vmatprep.mubr.bf16.mxu0 %v843
  %981 = vmatmul.mubr.bf16.gmra.mrb[0].mxu0 %v842
  %v982 = vpop.f32.mrb[0].mxu0
  %v983 = vadd.f32 %v850, %v982
  %v984 = vpop.f32.mrb[0].mxu0
  %v985 = vpop.f32.mrb[0].mxu0
  %v986 = vadd.f32 %v850, %v985
  %v987 = vpop.f32.mrb[0].mxu0
  %988 = vmatprep.mubr.bf16.mxu0 %v845
  %989 = vmatmul.mubr.bf16.gmra.mrb[0].mxu0 %v844
  %v990 = vpop.f32.mrb[0].mxu0
  %v991 = vadd.f32 %v850, %v990
  %v992 = vpop.f32.mrb[0].mxu0
  %v993 = vpop.f32.mrb[0].mxu0
  %v994 = vadd.f32 %v850, %v993
  %v995 = vpop.f32.mrb[0].mxu0
  %996 = vdwg.mxu0
  %v997 = vsel %vm191, %v983, 0.0
  %v998 = vsel %vm191, %v986, 0.0
  %v999 = vadd.f32 %v997, %v998
  %v1000 = vsel %vm191, %v991, 0.0
  %v1001 = vadd.f32 %v999, %v1000
  %v1002 = vsel %vm191, %v994, 0.0
  %v1003 = vadd.f32 %v1001, %v1002
  %v1004 = vrot.slane %v1003, 4
  %v1005 = vadd.f32 %v1003, %v1004
  %v1006 = vrot.slane %v1005, 2
  %v1007 = vadd.f32 %v1005, %v1006
  %v1008 = vrot.slane %v1007, 1
  %v1009 = vadd.f32 %v1007, %v1008
  %v1010 = vmul.f32 %v1009, %v205
  %v1011 = vsub.f32 %v983, %v1010
  %v1012 = vsub.f32 %v986, %v1010
  %v1013 = vsub.f32 %v991, %v1010
  %v1014 = vsub.f32 %v994, %v1010
  %v1015 = vmul.f32 %v1011, %v1011
  %v1016 = vmul.f32 %v1012, %v1012
  %v1017 = vmul.f32 %v1013, %v1013
  %v1018 = vmul.f32 %v1014, %v1014
  %v1019 = vsel %vm191, %v1015, 0.0
  %v1020 = vsel %vm191, %v1016, 0.0
  %v1021 = vadd.f32 %v1019, %v1020
  %v1022 = vsel %vm191, %v1017, 0.0
  %v1023 = vadd.f32 %v1021, %v1022
  %v1024 = vsel %vm191, %v1018, 0.0
  %v1025 = vadd.f32 %v1023, %v1024
  %v1026 = vrot.slane %v1025, 4
  %v1027 = vadd.f32 %v1025, %v1026
  %v1028 = vrot.slane %v1027, 2
  %v1029 = vadd.f32 %v1027, %v1028
  %v1030 = vrot.slane %v1029, 1
  %v1031 = vadd.f32 %v1029, %v1030
  %v1032 = vmul.f32 %v1031, %v205
  %v1033 = vadd.f32 %v1032, 1e-05
  %v1034 = vrsqrt.pop %v1033
  %v1035 = vmul.f32 %v1011, %v1034
  %v1036 = vmul.f32 %v1012, %v1034
  %v1037 = vmul.f32 %v1013, %v1034
  %v1038 = vmul.f32 %v1014, %v1034
  %v1040 = vlaneseq
  %v1041 = vshrl.u32 %v1040, 7
  %v1042 = vsub.s32 0, %v1041
  %v1043 = vrot.slane %v780, %v1042
  %v1045 = vmul.f32 %v1035, %v1043
  %v1046 = vmul.f32 %v1036, %v1043
  %v1047 = vmul.f32 %v1037, %v1043
  %v1048 = vmul.f32 %v1038, %v1043
  %v1050 = vlaneseq
  %v1051 = vshrl.u32 %v1050, 7
  %v1052 = vsub.s32 0, %v1051
  %v1053 = vrot.slane %v781, %v1052
  %v1055 = vadd.f32 %v1045, %v1053
  %v1056 = vadd.f32 %v1046, %v1053
  %v1057 = vadd.f32 %v1047, %v1053
  %v1058 = vadd.f32 %v1048, %v1053
  %v1059 = vmax.f32 %v1055, 0.0
  %v1060 = vmax.f32 %v1056, 0.0
  %v1061 = vmax.f32 %v1057, 0.0
  %v1062 = vmax.f32 %v1058, 0.0
  %1067 = vrot.lane.b32.xlu0 %v477, 64
  %v1068 = vpop.permute.xlu0 %1067
  %1069 = vrot.lane.b32.xlu0 %v478, 64
  %v1070 = vpop.permute.xlu0 %1069
  %1071 = vrot.lane.b32.xlu0 %v479, 64
  %v1072 = vpop.permute.xlu0 %1071
  %1073 = vrot.lane.b32.xlu0 %v480, 64
  %v1074 = vpop.permute.xlu0 %1073
  %1083 = vrot.lane.b32.xlu0 %v1059, 64
  %v1084 = vpop.permute.xlu0 %1083
  %1085 = vrot.lane.b32.xlu0 %v1060, 64
  %v1086 = vpop.permute.xlu0 %1085
  %1087 = vrot.lane.b32.xlu0 %v1061, 64
  %v1088 = vpop.permute.xlu0 %1087
  %1089 = vrot.lane.b32.xlu0 %v1062, 64
  %v1090 = vpop.permute.xlu0 %1089
  %v1095 = vsel %vm191, %v255, %v1068
  %v1096 = vsel %vm191, %v256, %v1070
  %v1097 = vsel %vm191, %v257, %v1072
  %v1098 = vsel %vm191, %v258, %v1074
  %v1099 = vsel %vm191, %v743, %v1084
  %v1100 = vsel %vm191, %v744, %v1086
  %v1101 = vsel %vm191, %v745, %v1088
  %v1102 = vsel %vm191, %v746, %v1090
  %1103 = vst [vmem:[%s17] sm:$0xff] %v1095
  %1104 = vst [vmem:[%s17 + $0x8] sm:$0xff] %v1099
  %1105 = vst [vmem:[%s17 + $0x10] sm:$0xff] %v1096
  %1106 = vst [vmem:[%s17 + $0x18] sm:$0xff] %v1100
  %1107 = vst [vmem:[%s17 + $0x20] sm:$0xff] %v1097
  %1108 = vst [vmem:[%s17 + $0x28] sm:$0xff] %v1101
  %1109 = vst [vmem:[%s17 + $0x30] sm:$0xff] %v1098
  %1110 = vst [vmem:[%s17 + $0x38] sm:$0xff] %v1102
  // Predicated region
  $region70: #{cbhg_forward.4} parent=0 // pred_check
    _
  $region71: #{cbhg_forward.4} parent=0 // pred_check_branch
    %1112 = sbr.rel (0) target = $region73
  $region72: #{cbhg_forward.4} parent=0 // pred_region
    _
  $region73: #{cbhg_forward.4} parent=0 // pred_fallthru
    _
  // Predicated region
  $region74: #{cbhg_forward.4} parent=0 // pred_check
    _
  $region75: #{cbhg_forward.4} parent=0 // pred_check_branch
    %1114 = sbr.rel (0) target = $region77
  $region76: #{cbhg_forward.4} parent=0 // pred_region
    _
  $region77: #{cbhg_forward.4} parent=0 // pred_fallthru
    _

// kernel: cbhg_forward.5
$region0: #{cbhg_forward.5}
  #allocation0 [shape = 'u32[]', space=smem, size = 0x4, offset = 0x4, fixed_abs, tag = 'smem constant byte address 0x4 - core index']
  #allocation1 [shape = 'u32[144,128]{1,0:T(1,128)}', space=vmem, size = 0x12000, scoped, tag = 'internal scratch']
  #allocation2 [shape = 'f32[2,18,256]{2,1,0:T(8,128)}', space=vmem, size = 0xc000, scoped, tag = 'scratch operand']
  %s0 = inlined_call_operand.vmem [shape: f32[2,16,256], index: 0, kind: input, shape index: {}]
  %s1 = inlined_call_operand.vmem [shape: f32[2,16,128], index: 1, kind: input, shape index: {}]
  %s2 = inlined_call_operand.vmem [shape: bf16[768,64], index: 2, kind: input, shape index: {}]
  %s3 = inlined_call_operand.vmem [shape: f32[1,64], index: 3, kind: input, shape index: {}]
  %s4 = inlined_call_operand.vmem [shape: f32[1,64], index: 4, kind: input, shape index: {}]
  %s5 = inlined_call_operand.vmem [shape: f32[1,64], index: 5, kind: input, shape index: {}]
  %s6 = inlined_call_operand.vmem [shape: bf16[192,128], index: 6, kind: input, shape index: {}]
  %s7 = inlined_call_operand.vmem [shape: f32[1,128], index: 7, kind: input, shape index: {}]
  %s8 = inlined_call_operand.vmem [shape: f32[1,128], index: 8, kind: input, shape index: {}]
  %s9 = inlined_call_operand.vmem [shape: f32[1,128], index: 9, kind: input, shape index: {}]
  %s10 = inlined_call_operand.vmem [shape: bf16[4,128,128], index: 10, kind: input, shape index: {}]
  %s11 = inlined_call_operand.vmem [shape: f32[4,1,128], index: 11, kind: input, shape index: {}]
  %s12 = inlined_call_operand.vmem [shape: bf16[4,128,128], index: 12, kind: input, shape index: {}]
  %s13 = inlined_call_operand.vmem [shape: f32[4,1,128], index: 13, kind: input, shape index: {}]
  %s14 = inlined_call_operand.vmem [shape: f32[2,16,128], index: 14, kind: output, shape index: {}]
  %s15 = sld [smem:[#allocation0]]
  $region66: #{cbhg_forward.5} parent=0
    _
  %s17 = ssub.s32 1, %s15
  %s18 = scalar_select 0, %s17, %s15
  // Predicated region
  $region2: #{cbhg_forward.5} parent=0 // pred_check
    _
  $region3: #{cbhg_forward.5} parent=0 // pred_check_branch
    %20 = sbr.rel (0) target = $region5
  $region4: #{cbhg_forward.5} parent=0 // pred_region
    _
  $region5: #{cbhg_forward.5} parent=0 // pred_fallthru
    _
  // Predicated region
  $region6: #{cbhg_forward.5} parent=0 // pred_check
    _
  $region7: #{cbhg_forward.5} parent=0 // pred_check_branch
    %22 = sbr.rel (0) target = $region9
  $region8: #{cbhg_forward.5} parent=0 // pred_region
    _
  $region9: #{cbhg_forward.5} parent=0 // pred_fallthru
    _
  // Predicated region
  $region10: #{cbhg_forward.5} parent=0 // pred_check
    _
  $region11: #{cbhg_forward.5} parent=0 // pred_check_branch
    %24 = sbr.rel (0) target = $region13
  $region12: #{cbhg_forward.5} parent=0 // pred_region
    _
  $region13: #{cbhg_forward.5} parent=0 // pred_fallthru
    _
  // Predicated region
  $region14: #{cbhg_forward.5} parent=0 // pred_check
    _
  $region15: #{cbhg_forward.5} parent=0 // pred_check_branch
    %26 = sbr.rel (0) target = $region17
  $region16: #{cbhg_forward.5} parent=0 // pred_region
    _
  $region17: #{cbhg_forward.5} parent=0 // pred_fallthru
    _
  // Predicated region
  $region18: #{cbhg_forward.5} parent=0 // pred_check
    _
  $region19: #{cbhg_forward.5} parent=0 // pred_check_branch
    %28 = sbr.rel (0) target = $region21
  $region20: #{cbhg_forward.5} parent=0 // pred_region
    _
  $region21: #{cbhg_forward.5} parent=0 // pred_fallthru
    _
  // Predicated region
  $region22: #{cbhg_forward.5} parent=0 // pred_check
    _
  $region23: #{cbhg_forward.5} parent=0 // pred_check_branch
    %30 = sbr.rel (0) target = $region25
  $region24: #{cbhg_forward.5} parent=0 // pred_region
    _
  $region25: #{cbhg_forward.5} parent=0 // pred_fallthru
    _
  // Predicated region
  $region26: #{cbhg_forward.5} parent=0 // pred_check
    _
  $region27: #{cbhg_forward.5} parent=0 // pred_check_branch
    %32 = sbr.rel (0) target = $region29
  $region28: #{cbhg_forward.5} parent=0 // pred_region
    _
  $region29: #{cbhg_forward.5} parent=0 // pred_fallthru
    _
  // Predicated region
  $region30: #{cbhg_forward.5} parent=0 // pred_check
    _
  $region31: #{cbhg_forward.5} parent=0 // pred_check_branch
    %34 = sbr.rel (0) target = $region33
  $region32: #{cbhg_forward.5} parent=0 // pred_region
    _
  $region33: #{cbhg_forward.5} parent=0 // pred_fallthru
    _
  // Predicated region
  $region34: #{cbhg_forward.5} parent=0 // pred_check
    _
  $region35: #{cbhg_forward.5} parent=0 // pred_check_branch
    %36 = sbr.rel (0) target = $region37
  $region36: #{cbhg_forward.5} parent=0 // pred_region
    _
  $region37: #{cbhg_forward.5} parent=0 // pred_fallthru
    _
  // Predicated region
  $region38: #{cbhg_forward.5} parent=0 // pred_check
    _
  $region39: #{cbhg_forward.5} parent=0 // pred_check_branch
    %38 = sbr.rel (0) target = $region41
  $region40: #{cbhg_forward.5} parent=0 // pred_region
    _
  $region41: #{cbhg_forward.5} parent=0 // pred_fallthru
    _
  // Predicated region
  $region42: #{cbhg_forward.5} parent=0 // pred_check
    _
  $region43: #{cbhg_forward.5} parent=0 // pred_check_branch
    %40 = sbr.rel (0) target = $region45
  $region44: #{cbhg_forward.5} parent=0 // pred_region
    _
  $region45: #{cbhg_forward.5} parent=0 // pred_fallthru
    _
  // Predicated region
  $region46: #{cbhg_forward.5} parent=0 // pred_check
    _
  $region47: #{cbhg_forward.5} parent=0 // pred_check_branch
    %42 = sbr.rel (0) target = $region49
  $region48: #{cbhg_forward.5} parent=0 // pred_region
    _
  $region49: #{cbhg_forward.5} parent=0 // pred_fallthru
    _
  // Predicated region
  $region50: #{cbhg_forward.5} parent=0 // pred_check
    _
  $region51: #{cbhg_forward.5} parent=0 // pred_check_branch
    %44 = sbr.rel (0) target = $region53
  $region52: #{cbhg_forward.5} parent=0 // pred_region
    _
  $region53: #{cbhg_forward.5} parent=0 // pred_fallthru
    _
  // Predicated region
  $region54: #{cbhg_forward.5} parent=0 // pred_check
    _
  $region55: #{cbhg_forward.5} parent=0 // pred_check_branch
    %46 = sbr.rel (0) target = $region57
  $region56: #{cbhg_forward.5} parent=0 // pred_region
    _
  $region57: #{cbhg_forward.5} parent=0 // pred_fallthru
    _
  %v48 = vld [vmem:[%s0] sm:$0xff]
  %v49 = vld [vmem:[%s0 + $0x8] sm:$0xff]
  %v50 = vld [vmem:[%s0 + $0x10] sm:$0xff]
  %v51 = vld [vmem:[%s0 + $0x18] sm:$0xff]
  %v52 = vld [vmem:[%s0 + $0x20] sm:$0xff]
  %v53 = vld [vmem:[%s0 + $0x28] sm:$0xff]
  %v54 = vld [vmem:[%s0 + $0x30] sm:$0xff]
  %v55 = vld [vmem:[%s0 + $0x38] sm:$0xff]
  %56 = vst [vmem:[#allocation2] sm:$0xff] 0.0
  %57 = vst [vmem:[#allocation2 + $0x8] sm:$0xff] 0.0
  %58 = vst [vmem:[#allocation2 + $0x10] sm:$0xff] 0.0
  %59 = vst [vmem:[#allocation2 + $0x18] sm:$0xff] 0.0
  %60 = vst [vmem:[#allocation2 + $0x20] sm:$0x3] 0.0
  %61 = vst [vmem:[#allocation2 + $0x28] sm:$0x3] 0.0
  %62 = vst [vmem:[#allocation2 + $0x30] sm:$0xff] 0.0
  %63 = vst [vmem:[#allocation2 + $0x38] sm:$0xff] 0.0
  %64 = vst [vmem:[#allocation2 + $0x40] sm:$0xff] 0.0
  %65 = vst [vmem:[#allocation2 + $0x48] sm:$0xff] 0.0
  %66 = vst [vmem:[#allocation2 + $0x50] sm:$0x3] 0.0
  %67 = vst [vmem:[#allocation2 + $0x58] sm:$0x3] 0.0
  %vm76 = vcmask 1040384
  %v77 = vrot.slane %v48, 7
  %v78 = vrot.slane %v49, 7
  %v79 = vrot.slane %v50, 7
  %v80 = vsel %vm76, %v77, %v79
  %v81 = vrot.slane %v51, 7
  %v82 = vsel %vm76, %v78, %v81
  %v83 = vrot.slane %v52, 7
  %v84 = vrot.slane %v53, 7
  %v85 = vrot.slane %v54, 7
  %v86 = vsel %vm76, %v83, %v85
  %v87 = vrot.slane %v55, 7
  %v88 = vsel %vm76, %v84, %v87
  %101 = vst [vmem:[#allocation2] sm:$0xfe] %v77
  %102 = vst [vmem:[#allocation2 + $0x8] sm:$0xfe] %v78
  %103 = vst [vmem:[#allocation2 + $0x10] sm:$0xff] %v80
  %104 = vst [vmem:[#allocation2 + $0x18] sm:$0xff] %v82
  %105 = vst [vmem:[#allocation2 + $0x20] sm:$0x1] %v79
  %106 = vst [vmem:[#allocation2 + $0x28] sm:$0x1] %v81
  %107 = vst [vmem:[#allocation2 + $0x30] sm:$0xfe] %v83
  %108 = vst [vmem:[#allocation2 + $0x38] sm:$0xfe] %v84
  %109 = vst [vmem:[#allocation2 + $0x40] sm:$0xff] %v86
  %110 = vst [vmem:[#allocation2 + $0x48] sm:$0xff] %v88
  %111 = vst [vmem:[#allocation2 + $0x50] sm:$0x1] %v85
  %112 = vst [vmem:[#allocation2 + $0x58] sm:$0x1] %v87
  %v113 = vcombine.low %v48, %v49
  %v115 = vunpack.c.l.s4 1966171168
  %v116 = vunpack.c.0.s8 %v115
  %v117 = vlaneseq
  %v118 = vshrl.u32 %v117, 7
  %v119 = vsub.s32 %v116, %v118
  %v120 = vrot.slane %v113, %v119
  %v122 = vunpack.c.l.s4 1966171168
  %v123 = vunpack.c.0.s8 %v122
  %v124 = vlaneseq
  %v125 = vshrl.u32 %v124, 7
  %v126 = vsub.s32 %v123, %v125
  %v127 = vrot.slane %v120, %v126
  %v128 = vcombine.low %v52, %v53
  %v130 = vunpack.c.l.s4 1966171168
  %v131 = vunpack.c.0.s8 %v130
  %v132 = vlaneseq
  %v133 = vshrl.u32 %v132, 7
  %v134 = vsub.s32 %v131, %v133
  %v135 = vrot.slane %v128, %v134
  %v137 = vunpack.c.l.s4 1966171168
  %v138 = vunpack.c.0.s8 %v137
  %v139 = vlaneseq
  %v140 = vshrl.u32 %v139, 7
  %v141 = vsub.s32 %v138, %v140
  %v142 = vrot.slane %v135, %v141
  %v145 = vlaneseq
  %vm146 = vcmp.ge.s32.totalorder %v145, 0
  %vm147 = vcmp.lt.s32.totalorder %v145, 256
  %vm148 = vmand %vm146, %vm147
  %149 = vst.msk [vmem:[#allocation2] ss:$8 sm:$0x3] %vm148, %v127
  %150 = vst.msk [vmem:[#allocation2] ss:$8 sm:$0x0] %vm148, %v127
  %s151 = scalar_lea.vmem [#allocation2], 48
  %152 = vst.msk [vmem:[%s151] ss:$8 sm:$0x3] %vm148, %v142
  %153 = vst.msk [vmem:[%s151] ss:$8 sm:$0x0] %vm148, %v142
  %v154 = vld [vmem:[#allocation2] sm:$0xff]
  %v155 = vld [vmem:[#allocation2 + $0x8] sm:$0xff]
  %v156 = vld [vmem:[#allocation2 + $0x10] sm:$0xff]
  %v157 = vld [vmem:[#allocation2 + $0x18] sm:$0xff]
  %v158 = vld [vmem:[#allocation2 + $0x30] sm:$0xff]
  %v159 = vld [vmem:[#allocation2 + $0x38] sm:$0xff]
  %v160 = vld [vmem:[#allocation2 + $0x40] sm:$0xff]
  %v161 = vld [vmem:[#allocation2 + $0x48] sm:$0xff]
  %v162 = vmax.f32 %v48, %v154
  %v163 = vmax.f32 %v49, %v155
  %v164 = vmax.f32 %v50, %v156
  %v165 = vmax.f32 %v51, %v157
  %v166 = vmax.f32 %v52, %v158
  %v167 = vmax.f32 %v53, %v159
  %v168 = vmax.f32 %v54, %v160
  %v169 = vmax.f32 %v55, %v161
  %170 = vst.msk [vmem:[#allocation2] ss:$8 sm:$0x3] %vm148, 0.0
  %171 = vst.msk [vmem:[#allocation2] ss:$8 sm:$0x0] %vm148, 0.0
  %172 = vst.msk [vmem:[%s151] ss:$8 sm:$0x3] %vm148, 0.0
  %173 = vst.msk [vmem:[%s151] ss:$8 sm:$0x0] %vm148, 0.0
  %v182 = vrot.slane %v162, 7
  %v183 = vrot.slane %v163, 7
  %v184 = vrot.slane %v164, 7
  %v185 = vsel %vm76, %v182, %v184
  %v186 = vrot.slane %v165, 7
  %v187 = vsel %vm76, %v183, %v186
  %v188 = vrot.slane %v166, 7
  %v189 = vrot.slane %v167, 7
  %v190 = vrot.slane %v168, 7
  %v191 = vsel %vm76, %v188, %v190
  %v192 = vrot.slane %v169, 7
  %v193 = vsel %vm76, %v189, %v192
  %206 = vst [vmem:[#allocation2] sm:$0xfe] %v182
  %207 = vst [vmem:[#allocation2 + $0x8] sm:$0xfe] %v183
  %208 = vst [vmem:[#allocation2 + $0x10] sm:$0xff] %v185
  %209 = vst [vmem:[#allocation2 + $0x18] sm:$0xff] %v187
  %210 = vst [vmem:[#allocation2 + $0x20] sm:$0x1] %v184
  %211 = vst [vmem:[#allocation2 + $0x28] sm:$0x1] %v186
  %212 = vst [vmem:[#allocation2 + $0x30] sm:$0xfe] %v188
  %213 = vst [vmem:[#allocation2 + $0x38] sm:$0xfe] %v189
  %214 = vst [vmem:[#allocation2 + $0x40] sm:$0xff] %v191
  %215 = vst [vmem:[#allocation2 + $0x48] sm:$0xff] %v193
  %216 = vst [vmem:[#allocation2 + $0x50] sm:$0x1] %v190
  %217 = vst [vmem:[#allocation2 + $0x58] sm:$0x1] %v192
  %v218 = vld [vmem:[#allocation2] sm:$0xff]
  %v219 = vld [vmem:[#allocation2 + $0x8] sm:$0xff]
  %v220 = vld [vmem:[#allocation2 + $0x10] sm:$0xff]
  %v221 = vld [vmem:[#allocation2 + $0x18] sm:$0xff]
  %v222 = vld [vmem:[#allocation2 + $0x30] sm:$0xff]
  %v223 = vld [vmem:[#allocation2 + $0x38] sm:$0xff]
  %v224 = vld [vmem:[#allocation2 + $0x40] sm:$0xff]
  %v225 = vld [vmem:[#allocation2 + $0x48] sm:$0xff]
  %v226 = vld [vmem:[#allocation2] sm:$0xfe]
  %v227 = vld [vmem:[#allocation2 + $0x8] sm:$0xfe]
  %v228 = vld [vmem:[#allocation2 + $0x20] sm:$0x1]
  %v229 = vld [vmem:[#allocation2 + $0x28] sm:$0x1]
  %v230 = vld [vmem:[#allocation2 + $0x30] sm:$0xfe]
  %v231 = vld [vmem:[#allocation2 + $0x38] sm:$0xfe]
  %v232 = vld [vmem:[#allocation2 + $0x50] sm:$0x1]
  %v233 = vld [vmem:[#allocation2 + $0x58] sm:$0x1]
  %v234 = vld [vmem:[#allocation2] sm:$0xfc]
  %v235 = vld [vmem:[#allocation2 + $0x8] sm:$0xfc]
  %v236 = vld [vmem:[#allocation2 + $0x20] sm:$0x3]
  %v237 = vld [vmem:[#allocation2 + $0x28] sm:$0x3]
  %v238 = vld [vmem:[#allocation2 + $0x30] sm:$0xfc]
  %v239 = vld [vmem:[#allocation2 + $0x38] sm:$0xfc]
  %v240 = vld [vmem:[#allocation2 + $0x50] sm:$0x3]
  %v241 = vld [vmem:[#allocation2 + $0x58] sm:$0x3]
  %vm254 = vcmask 1046528
  %v255 = vrot.slane %v226, 1
  %v256 = vrot.slane %v220, 1
  %v257 = vsel %vm254, %v255, %v256
  %v258 = vrot.slane %v227, 1
  %v259 = vrot.slane %v221, 1
  %v260 = vsel %vm254, %v258, %v259
  %v261 = vrot.slane %v228, 1
  %v262 = vsel %vm254, %v256, %v261
  %v263 = vrot.slane %v229, 1
  %v264 = vsel %vm254, %v259, %v263
  %v265 = vrot.slane %v230, 1
  %v266 = vrot.slane %v224, 1
  %v267 = vsel %vm254, %v265, %v266
  %v268 = vrot.slane %v231, 1
  %v269 = vrot.slane %v225, 1
  %v270 = vsel %vm254, %v268, %v269
  %v271 = vrot.slane %v232, 1
  %v272 = vsel %vm254, %v266, %v271
  %v273 = vrot.slane %v233, 1
  %v274 = vsel %vm254, %v269, %v273
  %vm291 = vcmask 1045504
  %v292 = vrot.slane %v234, 2
  %v293 = vrot.slane %v220, 2
  %v294 = vsel %vm291, %v292, %v293
  %v295 = vrot.slane %v235, 2
  %v296 = vrot.slane %v221, 2
  %v297 = vsel %vm291, %v295, %v296
  %v298 = vrot.slane %v236, 2
  %v299 = vsel %vm291, %v293, %v298
  %v300 = vrot.slane %v237, 2
  %v301 = vsel %vm291, %v296, %v300
  %v302 = vrot.slane %v238, 2
  %v303 = vrot.slane %v224, 2
  %v304 = vsel %vm291, %v302, %v303
  %v305 = vrot.slane %v239, 2
  %v306 = vrot.slane %v225, 2
  %v307 = vsel %vm291, %v305, %v306
  %v308 = vrot.slane %v240, 2
  %v309 = vsel %vm291, %v303, %v308
  %v310 = vrot.slane %v241, 2
  %v311 = vsel %vm291, %v306, %v310
  %v320 = vpack.c.bf16 %v220, %v218
  %v321 = vpack.c.bf16 %v221, %v219
  %v322 = vpack.c.bf16 %v262, %v257
  %v323 = vpack.c.bf16 %v264, %v260
  %v324 = vpack.c.bf16 %v299, %v294
  %v325 = vpack.c.bf16 %v301, %v297
  %v326 = vpack.c.bf16 %v224, %v222
  %v327 = vpack.c.bf16 %v225, %v223
  %v328 = vpack.c.bf16 %v272, %v267
  %v329 = vpack.c.bf16 %v274, %v270
  %v330 = vpack.c.bf16 %v309, %v304
  %v331 = vpack.c.bf16 %v311, %v307
  %v332 = vld [vmem:[%s2] sm:$0xf]
  %v333 = vld [vmem:[%s2 + $0x4] sm:$0xf]
  %v334 = vld [vmem:[%s2 + $0x8] sm:$0xf]
  %v335 = vld [vmem:[%s2 + $0xc] sm:$0xf]
  %v336 = vld [vmem:[%s2 + $0x10] sm:$0xf]
  %v337 = vld [vmem:[%s2 + $0x14] sm:$0xf]
  %v338 = vld [vmem:[%s2 + $0x18] sm:$0xf]
  %v339 = vld [vmem:[%s2 + $0x1c] sm:$0xf]
  %v340 = vld [vmem:[%s2 + $0x20] sm:$0xf]
  %v341 = vld [vmem:[%s2 + $0x24] sm:$0xf]
  %v342 = vld [vmem:[%s2 + $0x28] sm:$0xf]
  %v343 = vld [vmem:[%s2 + $0x2c] sm:$0xf]
  %v344 = vld [vmem:[%s2 + $0x30] sm:$0xf]
  %v345 = vld [vmem:[%s2 + $0x34] sm:$0xf]
  %v346 = vld [vmem:[%s2 + $0x38] sm:$0xf]
  %v347 = vld [vmem:[%s2 + $0x3c] sm:$0xf]
  %v348 = vld [vmem:[%s2 + $0x40] sm:$0xf]
  %v349 = vld [vmem:[%s2 + $0x44] sm:$0xf]
  %v350 = vld [vmem:[%s2 + $0x48] sm:$0xf]
  %v351 = vld [vmem:[%s2 + $0x4c] sm:$0xf]
  %v352 = vld [vmem:[%s2 + $0x50] sm:$0xf]
  %v353 = vld [vmem:[%s2 + $0x54] sm:$0xf]
  %v354 = vld [vmem:[%s2 + $0x58] sm:$0xf]
  %v355 = vld [vmem:[%s2 + $0x5c] sm:$0xf]
  %v356 = vld [vmem:[%s2 + $0x60] sm:$0xf]
  %v357 = vld [vmem:[%s2 + $0x64] sm:$0xf]
  %v358 = vld [vmem:[%s2 + $0x68] sm:$0xf]
  %v359 = vld [vmem:[%s2 + $0x6c] sm:$0xf]
  %v360 = vld [vmem:[%s2 + $0x70] sm:$0xf]
  %v361 = vld [vmem:[%s2 + $0x74] sm:$0xf]
  %v362 = vld [vmem:[%s2 + $0x78] sm:$0xf]
  %v363 = vld [vmem:[%s2 + $0x7c] sm:$0xf]
  %v364 = vld [vmem:[%s2 + $0x80] sm:$0xf]
  %v365 = vld [vmem:[%s2 + $0x84] sm:$0xf]
  %v366 = vld [vmem:[%s2 + $0x88] sm:$0xf]
  %v367 = vld [vmem:[%s2 + $0x8c] sm:$0xf]
  %v368 = vld [vmem:[%s2 + $0x90] sm:$0xf]
  %v369 = vld [vmem:[%s2 + $0x94] sm:$0xf]
  %v370 = vld [vmem:[%s2 + $0x98] sm:$0xf]
  %v371 = vld [vmem:[%s2 + $0x9c] sm:$0xf]
  %v372 = vld [vmem:[%s2 + $0xa0] sm:$0xf]
  %v373 = vld [vmem:[%s2 + $0xa4] sm:$0xf]
  %v374 = vld [vmem:[%s2 + $0xa8] sm:$0xf]
  %v375 = vld [vmem:[%s2 + $0xac] sm:$0xf]
  %v376 = vld [vmem:[%s2 + $0xb0] sm:$0xf]
  %v377 = vld [vmem:[%s2 + $0xb4] sm:$0xf]
  %v378 = vld [vmem:[%s2 + $0xb8] sm:$0xf]
  %v379 = vld [vmem:[%s2 + $0xbc] sm:$0xf]
  %v380 = vld [vmem:[%s2 + $0xc0] sm:$0xf]
  %v381 = vld [vmem:[%s2 + $0xc4] sm:$0xf]
  %v382 = vld [vmem:[%s2 + $0xc8] sm:$0xf]
  %v383 = vld [vmem:[%s2 + $0xcc] sm:$0xf]
  %v384 = vld [vmem:[%s2 + $0xd0] sm:$0xf]
  %v385 = vld [vmem:[%s2 + $0xd4] sm:$0xf]
  %v386 = vld [vmem:[%s2 + $0xd8] sm:$0xf]
  %v387 = vld [vmem:[%s2 + $0xdc] sm:$0xf]
  %v388 = vld [vmem:[%s2 + $0xe0] sm:$0xf]
  %v389 = vld [vmem:[%s2 + $0xe4] sm:$0xf]
  %v390 = vld [vmem:[%s2 + $0xe8] sm:$0xf]
  %v391 = vld [vmem:[%s2 + $0xec] sm:$0xf]
  %v392 = vld [vmem:[%s2 + $0xf0] sm:$0xf]
  %v393 = vld [vmem:[%s2 + $0xf4] sm:$0xf]
  %v394 = vld [vmem:[%s2 + $0xf8] sm:$0xf]
  %v395 = vld [vmem:[%s2 + $0xfc] sm:$0xf]
  %v396 = vld [vmem:[%s2 + $0x100] sm:$0xf]
  %v397 = vld [vmem:[%s2 + $0x104] sm:$0xf]
  %v398 = vld [vmem:[%s2 + $0x108] sm:$0xf]
  %v399 = vld [vmem:[%s2 + $0x10c] sm:$0xf]
  %v400 = vld [vmem:[%s2 + $0x110] sm:$0xf]
  %v401 = vld [vmem:[%s2 + $0x114] sm:$0xf]
  %v402 = vld [vmem:[%s2 + $0x118] sm:$0xf]
  %v403 = vld [vmem:[%s2 + $0x11c] sm:$0xf]
  %v404 = vld [vmem:[%s2 + $0x120] sm:$0xf]
  %v405 = vld [vmem:[%s2 + $0x124] sm:$0xf]
  %v406 = vld [vmem:[%s2 + $0x128] sm:$0xf]
  %v407 = vld [vmem:[%s2 + $0x12c] sm:$0xf]
  %v408 = vld [vmem:[%s2 + $0x130] sm:$0xf]
  %v409 = vld [vmem:[%s2 + $0x134] sm:$0xf]
  %v410 = vld [vmem:[%s2 + $0x138] sm:$0xf]
  %v411 = vld [vmem:[%s2 + $0x13c] sm:$0xf]
  %v412 = vld [vmem:[%s2 + $0x140] sm:$0xf]
  %v413 = vld [vmem:[%s2 + $0x144] sm:$0xf]
  %v414 = vld [vmem:[%s2 + $0x148] sm:$0xf]
  %v415 = vld [vmem:[%s2 + $0x14c] sm:$0xf]
  %v416 = vld [vmem:[%s2 + $0x150] sm:$0xf]
  %v417 = vld [vmem:[%s2 + $0x154] sm:$0xf]
  %v418 = vld [vmem:[%s2 + $0x158] sm:$0xf]
  %v419 = vld [vmem:[%s2 + $0x15c] sm:$0xf]
  %v420 = vld [vmem:[%s2 + $0x160] sm:$0xf]
  %v421 = vld [vmem:[%s2 + $0x164] sm:$0xf]
  %v422 = vld [vmem:[%s2 + $0x168] sm:$0xf]
  %v423 = vld [vmem:[%s2 + $0x16c] sm:$0xf]
  %v424 = vld [vmem:[%s2 + $0x170] sm:$0xf]
  %v425 = vld [vmem:[%s2 + $0x174] sm:$0xf]
  %v426 = vld [vmem:[%s2 + $0x178] sm:$0xf]
  %v427 = vld [vmem:[%s2 + $0x17c] sm:$0xf]
  %v428 = vld [vmem:[%s3] sm:$0x1]
  %v430 = vlaneseq
  %v431 = vshrl.u32 %v430, 7
  %v432 = vsub.s32 0, %v431
  %v433 = vrot.slane %v428, %v432
  %v531 = vunpack.c.l.b16 %v332
  %v532 = vunpack.c.l.b16 %v333
  %v533 = vunpack.c.l.b16 %v334
  %v534 = vunpack.c.l.b16 %v335
  %v535 = vunpack.c.l.b16 %v336
  %v536 = vunpack.c.l.b16 %v337
  %v537 = vunpack.c.l.b16 %v338
  %v538 = vunpack.c.l.b16 %v339
  %v539 = vunpack.c.l.b16 %v340
  %v540 = vunpack.c.l.b16 %v341
  %v541 = vunpack.c.l.b16 %v342
  %v542 = vunpack.c.l.b16 %v343
  %v543 = vunpack.c.l.b16 %v344
  %v544 = vunpack.c.l.b16 %v345
  %v545 = vunpack.c.l.b16 %v346
  %v546 = vunpack.c.l.b16 %v347
  %v547 = vunpack.c.l.b16 %v348
  %v548 = vunpack.c.l.b16 %v349
  %v549 = vunpack.c.l.b16 %v350
  %v550 = vunpack.c.l.b16 %v351
  %v551 = vunpack.c.l.b16 %v352
  %v552 = vunpack.c.l.b16 %v353
  %v553 = vunpack.c.l.b16 %v354
  %v554 = vunpack.c.l.b16 %v355
  %v555 = vunpack.c.l.b16 %v356
  %v556 = vunpack.c.l.b16 %v357
  %v557 = vunpack.c.l.b16 %v358
  %v558 = vunpack.c.l.b16 %v359
  %v559 = vunpack.c.l.b16 %v360
  %v560 = vunpack.c.l.b16 %v361
  %v561 = vunpack.c.l.b16 %v362
  %v562 = vunpack.c.l.b16 %v363
  %v563 = vunpack.c.l.b16 %v364
  %v564 = vunpack.c.l.b16 %v365
  %v565 = vunpack.c.l.b16 %v366
  %v566 = vunpack.c.l.b16 %v367
  %v567 = vunpack.c.l.b16 %v368
  %v568 = vunpack.c.l.b16 %v369
  %v569 = vunpack.c.l.b16 %v370
  %v570 = vunpack.c.l.b16 %v371
  %v571 = vunpack.c.l.b16 %v372
  %v572 = vunpack.c.l.b16 %v373
  %v573 = vunpack.c.l.b16 %v374
  %v574 = vunpack.c.l.b16 %v375
  %v575 = vunpack.c.l.b16 %v376
  %v576 = vunpack.c.l.b16 %v377
  %v577 = vunpack.c.l.b16 %v378
  %v578 = vunpack.c.l.b16 %v379
  %v579 = vunpack.c.l.b16 %v380
  %v580 = vunpack.c.l.b16 %v381
  %v581 = vunpack.c.l.b16 %v382
  %v582 = vunpack.c.l.b16 %v383
  %v583 = vunpack.c.l.b16 %v384
  %v584 = vunpack.c.l.b16 %v385
  %v585 = vunpack.c.l.b16 %v386
  %v586 = vunpack.c.l.b16 %v387
  %v587 = vunpack.c.l.b16 %v388
  %v588 = vunpack.c.l.b16 %v389
  %v589 = vunpack.c.l.b16 %v390
  %v590 = vunpack.c.l.b16 %v391
  %v591 = vunpack.c.l.b16 %v392
  %v592 = vunpack.c.l.b16 %v393
  %v593 = vunpack.c.l.b16 %v394
  %v594 = vunpack.c.l.b16 %v395
  %v595 = vunpack.c.l.b16 %v396
  %v596 = vunpack.c.l.b16 %v397
  %v597 = vunpack.c.l.b16 %v398
  %v598 = vunpack.c.l.b16 %v399
  %v599 = vunpack.c.l.b16 %v400
  %v600 = vunpack.c.l.b16 %v401
  %v601 = vunpack.c.l.b16 %v402
  %v602 = vunpack.c.l.b16 %v403
  %v603 = vunpack.c.l.b16 %v404
  %v604 = vunpack.c.l.b16 %v405
  %v605 = vunpack.c.l.b16 %v406
  %v606 = vunpack.c.l.b16 %v407
  %v607 = vunpack.c.l.b16 %v408
  %v608 = vunpack.c.l.b16 %v409
  %v609 = vunpack.c.l.b16 %v410
  %v610 = vunpack.c.l.b16 %v411
  %v611 = vunpack.c.l.b16 %v412
  %v612 = vunpack.c.l.b16 %v413
  %v613 = vunpack.c.l.b16 %v414
  %v614 = vunpack.c.l.b16 %v415
  %v615 = vunpack.c.l.b16 %v416
  %v616 = vunpack.c.l.b16 %v417
  %v617 = vunpack.c.l.b16 %v418
  %v618 = vunpack.c.l.b16 %v419
  %v619 = vunpack.c.l.b16 %v420
  %v620 = vunpack.c.l.b16 %v421
  %v621 = vunpack.c.l.b16 %v422
  %v622 = vunpack.c.l.b16 %v423
  %v623 = vunpack.c.l.b16 %v424
  %v624 = vunpack.c.l.b16 %v425
  %v625 = vunpack.c.l.b16 %v426
  %v626 = vunpack.c.l.b16 %v427
  %v627 = vpack.c.b16 %v532, %v531
  %v628 = vpack.c.b16 %v534, %v533
  %v629 = vpack.c.b16 %v536, %v535
  %v630 = vpack.c.b16 %v538, %v537
  %v631 = vpack.c.b16 %v540, %v539
  %v632 = vpack.c.b16 %v542, %v541
  %v633 = vpack.c.b16 %v544, %v543
  %v634 = vpack.c.b16 %v546, %v545
  %v635 = vpack.c.b16 %v548, %v547
  %v636 = vpack.c.b16 %v550, %v549
  %v637 = vpack.c.b16 %v552, %v551
  %v638 = vpack.c.b16 %v554, %v553
  %v639 = vpack.c.b16 %v556, %v555
  %v640 = vpack.c.b16 %v558, %v557
  %v641 = vpack.c.b16 %v560, %v559
  %v642 = vpack.c.b16 %v562, %v561
  %v643 = vpack.c.b16 %v564, %v563
  %v644 = vpack.c.b16 %v566, %v565
  %v645 = vpack.c.b16 %v568, %v567
  %v646 = vpack.c.b16 %v570, %v569
  %v647 = vpack.c.b16 %v572, %v571
  %v648 = vpack.c.b16 %v574, %v573
  %v649 = vpack.c.b16 %v576, %v575
  %v650 = vpack.c.b16 %v578, %v577
  %v651 = vpack.c.b16 %v580, %v579
  %v652 = vpack.c.b16 %v582, %v581
  %v653 = vpack.c.b16 %v584, %v583
  %v654 = vpack.c.b16 %v586, %v585
  %v655 = vpack.c.b16 %v588, %v587
  %v656 = vpack.c.b16 %v590, %v589
  %v657 = vpack.c.b16 %v592, %v591
  %v658 = vpack.c.b16 %v594, %v593
  %v659 = vpack.c.b16 %v596, %v595
  %v660 = vpack.c.b16 %v598, %v597
  %v661 = vpack.c.b16 %v600, %v599
  %v662 = vpack.c.b16 %v602, %v601
  %v663 = vpack.c.b16 %v604, %v603
  %v664 = vpack.c.b16 %v606, %v605
  %v665 = vpack.c.b16 %v608, %v607
  %v666 = vpack.c.b16 %v610, %v609
  %v667 = vpack.c.b16 %v612, %v611
  %v668 = vpack.c.b16 %v614, %v613
  %v669 = vpack.c.b16 %v616, %v615
  %v670 = vpack.c.b16 %v618, %v617
  %v671 = vpack.c.b16 %v620, %v619
  %v672 = vpack.c.b16 %v622, %v621
  %v673 = vpack.c.b16 %v624, %v623
  %v674 = vpack.c.b16 %v626, %v625
  %723 = vmatprep.subr.bf16.mxu0 0
  %724 = vmatpush1.bf16.msra.mxu0 %v627
  %725 = vmatprep.subr.bf16.mxu0 0
  %726 = vmatpush1.bf16.msra.mxu0 %v628
  %727 = vmatprep.subr.bf16.mxu0 0
  %728 = vmatpush1.bf16.msra.mxu0 %v629
  %729 = vmatprep.subr.bf16.mxu0 0
  %730 = vmatpush1.bf16.msra.mxu0 %v630
  %731 = vmatprep.subr.bf16.mxu0 0
  %732 = vmatpush1.bf16.msra.mxu0 %v631
  %733 = vmatprep.subr.bf16.mxu0 0
  %734 = vmatpush1.bf16.msra.mxu0 %v632
  %735 = vmatprep.subr.bf16.mxu0 0
  %736 = vmatpush1.bf16.msra.mxu0 %v633
  %737 = vmatprep.subr.bf16.mxu0 0
  %738 = vmatpush1.bf16.msra.mxu0 %v634
  %739 = vmatprep.subr.bf16.mxu0 0
  %740 = vmatpush1.bf16.msra.mxu0 %v635
  %741 = vmatprep.subr.bf16.mxu0 0
  %742 = vmatpush1.bf16.msra.mxu0 %v636
  %743 = vmatprep.subr.bf16.mxu0 0
  %744 = vmatpush1.bf16.msra.mxu0 %v637
  %745 = vmatprep.subr.bf16.mxu0 0
  %746 = vmatpush1.bf16.msra.mxu0 %v638
  %747 = vmatprep.subr.bf16.mxu0 0
  %748 = vmatpush1.bf16.msra.mxu0 %v639
  %749 = vmatprep.subr.bf16.mxu0 0
  %750 = vmatpush1.bf16.msra.mxu0 %v640
  %751 = vmatprep.subr.bf16.mxu0 0
  %752 = vmatpush1.bf16.msra.mxu0 %v641
  %753 = vmatprep.subr.bf16.mxu0 0
  %754 = vmatpush1.bf16.msra.mxu0 %v642
  %755 = vmatprep.mubr.bf16.mxu0 %v321
  %756 = vmatmul.mubr.bf16.gmra.mrb[0].mxu0 %v320
  %v757 = vpop.f32.mrb[0].mxu0
  %v758 = vadd.f32 %v433, %v757
  %v759 = vpop.f32.mrb[0].mxu0
  %v760 = vpop.f32.mrb[0].mxu0
  %v761 = vadd.f32 %v433, %v760
  %v762 = vpop.f32.mrb[0].mxu0
  %763 = vmatprep.mubr.bf16.mxu0 %v327
  %764 = vmatmul.mubr.bf16.gmra.mrb[0].mxu0 %v326
  %v765 = vpop.f32.mrb[0].mxu0
  %v766 = vadd.f32 %v433, %v765
  %v767 = vpop.f32.mrb[0].mxu0
  %v768 = vpop.f32.mrb[0].mxu0
  %v769 = vadd.f32 %v433, %v768
  %v770 = vpop.f32.mrb[0].mxu0
  %771 = vdwg.mxu0
  %772 = vmatprep.subr.bf16.mxu0 0
  %773 = vmatpush1.bf16.msra.mxu0 %v643
  %774 = vmatprep.subr.bf16.mxu0 0
  %775 = vmatpush1.bf16.msra.mxu0 %v644
  %776 = vmatprep.subr.bf16.mxu0 0
  %777 = vmatpush1.bf16.msra.mxu0 %v645
  %778 = vmatprep.subr.bf16.mxu0 0
  %779 = vmatpush1.bf16.msra.mxu0 %v646
  %780 = vmatprep.subr.bf16.mxu0 0
  %781 = vmatpush1.bf16.msra.mxu0 %v647
  %782 = vmatprep.subr.bf16.mxu0 0
  %783 = vmatpush1.bf16.msra.mxu0 %v648
  %784 = vmatprep.subr.bf16.mxu0 0
  %785 = vmatpush1.bf16.msra.mxu0 %v649
  %786 = vmatprep.subr.bf16.mxu0 0
  %787 = vmatpush1.bf16.msra.mxu0 %v650
  %788 = vmatprep.subr.bf16.mxu0 0
  %789 = vmatpush1.bf16.msra.mxu0 %v651
  %790 = vmatprep.subr.bf16.mxu0 0
  %791 = vmatpush1.bf16.msra.mxu0 %v652
  %792 = vmatprep.subr.bf16.mxu0 0
  %793 = vmatpush1.bf16.msra.mxu0 %v653
  %794 = vmatprep.subr.bf16.mxu0 0
  %795 = vmatpush1.bf16.msra.mxu0 %v654
  %796 = vmatprep.subr.bf16.mxu0 0
  %797 = vmatpush1.bf16.msra.mxu0 %v655
  %798 = vmatprep.subr.bf16.mxu0 0
  %799 = vmatpush1.bf16.msra.mxu0 %v656
  %800 = vmatprep.subr.bf16.mxu0 0
  %801 = vmatpush1.bf16.msra.mxu0 %v657
  %802 = vmatprep.subr.bf16.mxu0 0
  %803 = vmatpush1.bf16.msra.mxu0 %v658
  %804 = vmatprep.mubr.bf16.mxu0 %v323
  %805 = vmatmul.mubr.bf16.gmra.mrb[0].mxu0 %v322
  %v806 = vpop.f32.mrb[0].mxu0
  %v807 = vadd.f32 %v758, %v806
  %v808 = vpop.f32.mrb[0].mxu0
  %v809 = vpop.f32.mrb[0].mxu0
  %v810 = vadd.f32 %v761, %v809
  %v811 = vpop.f32.mrb[0].mxu0
  %812 = vmatprep.mubr.bf16.mxu0 %v329
  %813 = vmatmul.mubr.bf16.gmra.mrb[0].mxu0 %v328
  %v814 = vpop.f32.mrb[0].mxu0
  %v815 = vadd.f32 %v766, %v814
  %v816 = vpop.f32.mrb[0].mxu0
  %v817 = vpop.f32.mrb[0].mxu0
  %v818 = vadd.f32 %v769, %v817
  %v819 = vpop.f32.mrb[0].mxu0
  %820 = vdwg.mxu0
  %821 = vmatprep.subr.bf16.mxu0 0
  %822 = vmatpush1.bf16.msra.mxu0 %v659
  %823 = vmatprep.subr.bf16.mxu0 0
  %824 = vmatpush1.bf16.msra.mxu0 %v660
  %825 = vmatprep.subr.bf16.mxu0 0
  %826 = vmatpush1.bf16.msra.mxu0 %v661
  %827 = vmatprep.subr.bf16.mxu0 0
  %828 = vmatpush1.bf16.msra.mxu0 %v662
  %829 = vmatprep.subr.bf16.mxu0 0
  %830 = vmatpush1.bf16.msra.mxu0 %v663
  %831 = vmatprep.subr.bf16.mxu0 0
  %832 = vmatpush1.bf16.msra.mxu0 %v664
  %833 = vmatprep.subr.bf16.mxu0 0
  %834 = vmatpush1.bf16.msra.mxu0 %v665
  %835 = vmatprep.subr.bf16.mxu0 0
  %836 = vmatpush1.bf16.msra.mxu0 %v666
  %837 = vmatprep.subr.bf16.mxu0 0
  %838 = vmatpush1.bf16.msra.mxu0 %v667
  %839 = vmatprep.subr.bf16.mxu0 0
  %840 = vmatpush1.bf16.msra.mxu0 %v668
  %841 = vmatprep.subr.bf16.mxu0 0
  %842 = vmatpush1.bf16.msra.mxu0 %v669
  %843 = vmatprep.subr.bf16.mxu0 0
  %844 = vmatpush1.bf16.msra.mxu0 %v670
  %845 = vmatprep.subr.bf16.mxu0 0
  %846 = vmatpush1.bf16.msra.mxu0 %v671
  %847 = vmatprep.subr.bf16.mxu0 0
  %848 = vmatpush1.bf16.msra.mxu0 %v672
  %849 = vmatprep.subr.bf16.mxu0 0
  %850 = vmatpush1.bf16.msra.mxu0 %v673
  %851 = vmatprep.subr.bf16.mxu0 0
  %852 = vmatpush1.bf16.msra.mxu0 %v674
  %853 = vmatprep.mubr.bf16.mxu0 %v325
  %854 = vmatmul.mubr.bf16.gmra.mrb[0].mxu0 %v324
  %v855 = vpop.f32.mrb[0].mxu0
  %v856 = vadd.f32 %v807, %v855
  %v857 = vpop.f32.mrb[0].mxu0
  %v858 = vpop.f32.mrb[0].mxu0
  %v859 = vadd.f32 %v810, %v858
  %v860 = vpop.f32.mrb[0].mxu0
  %861 = vmatprep.mubr.bf16.mxu0 %v331
  %862 = vmatmul.mubr.bf16.gmra.mrb[0].mxu0 %v330
  %v863 = vpop.f32.mrb[0].mxu0
  %v864 = vadd.f32 %v815, %v863
  %v865 = vpop.f32.mrb[0].mxu0
  %v866 = vpop.f32.mrb[0].mxu0
  %v867 = vadd.f32 %v818, %v866
  %v868 = vpop.f32.mrb[0].mxu0
  %869 = vdwg.mxu0
  %v870 = vld [vmem:[%s4] sm:$0x1]
  %v871 = vld [vmem:[%s5] sm:$0x1]
  %vm872 = vcmask 523264
  %v873 = vsel %vm872, %v856, 0.0
  %v874 = vsel %vm872, %v859, 0.0
  %v875 = vadd.f32 %v873, %v874
  %v876 = vsel %vm872, %v864, 0.0
  %v877 = vadd.f32 %v875, %v876
  %v878 = vsel %vm872, %v867, 0.0
  %v879 = vadd.f32 %v877, %v878
  %v880 = vrot.slane %v879, 4
  %v881 = vadd.f32 %v879, %v880
  %v882 = vrot.slane %v881, 2
  %v883 = vadd.f32 %v881, %v882
  %v884 = vrot.slane %v883, 1
  %v885 = vadd.f32 %v883, %v884
  %v886 = vrcp.pop 32.0
  %v887 = vmul.f32 %v885, %v886
  %v888 = vsub.f32 %v856, %v887
  %v889 = vsub.f32 %v859, %v887
  %v890 = vsub.f32 %v864, %v887
  %v891 = vsub.f32 %v867, %v887
  %v892 = vmul.f32 %v888, %v888
  %v893 = vmul.f32 %v889, %v889
  %v894 = vmul.f32 %v890, %v890
  %v895 = vmul.f32 %v891, %v891
  %v896 = vsel %vm872, %v892, 0.0
  %v897 = vsel %vm872, %v893, 0.0
  %v898 = vadd.f32 %v896, %v897
  %v899 = vsel %vm872, %v894, 0.0
  %v900 = vadd.f32 %v898, %v899
  %v901 = vsel %vm872, %v895, 0.0
  %v902 = vadd.f32 %v900, %v901
  %v903 = vrot.slane %v902, 4
  %v904 = vadd.f32 %v902, %v903
  %v905 = vrot.slane %v904, 2
  %v906 = vadd.f32 %v904, %v905
  %v907 = vrot.slane %v906, 1
  %v908 = vadd.f32 %v906, %v907
  %v909 = vmul.f32 %v908, %v886
  %v910 = vadd.f32 %v909, 1e-05
  %v911 = vrsqrt.pop %v910
  %v912 = vmul.f32 %v888, %v911
  %v913 = vmul.f32 %v889, %v911
  %v914 = vmul.f32 %v890, %v911
  %v915 = vmul.f32 %v891, %v911
  %v917 = vlaneseq
  %v918 = vshrl.u32 %v917, 7
  %v919 = vsub.s32 0, %v918
  %v920 = vrot.slane %v870, %v919
  %v922 = vmul.f32 %v912, %v920
  %v923 = vmul.f32 %v913, %v920
  %v924 = vmul.f32 %v914, %v920
  %v925 = vmul.f32 %v915, %v920
  %v927 = vlaneseq
  %v928 = vshrl.u32 %v927, 7
  %v929 = vsub.s32 0, %v928
  %v930 = vrot.slane %v871, %v929
  %v932 = vadd.f32 %v922, %v930
  %v933 = vadd.f32 %v923, %v930
  %v934 = vadd.f32 %v924, %v930
  %v935 = vadd.f32 %v925, %v930
  %v936 = vmax.f32 %v932, 0.0
  %v937 = vmax.f32 %v933, 0.0
  %v938 = vmax.f32 %v934, 0.0
  %v939 = vmax.f32 %v935, 0.0
  %v944 = vrot.slane %v936, 7
  %v945 = vrot.slane %v937, 7
  %v946 = vsel %vm76, %v944, %v945
  %v947 = vrot.slane %v938, 7
  %v948 = vrot.slane %v939, 7
  %v949 = vsel %vm76, %v947, %v948
  %vm956 = vcmask 523265
  %957 = vst.msk [vmem:[#allocation2] sm:$0xfe] %vm956, %v944
  %958 = vst.msk [vmem:[#allocation2 + $0x10] sm:$0xff] %vm872, %v946
  %vm959 = vcmask 516096
  %960 = vst.msk [vmem:[#allocation2 + $0x20] sm:$0x1] %vm959, %v945
  %961 = vst.msk [vmem:[#allocation2 + $0x30] sm:$0xfe] %vm956, %v947
  %962 = vst.msk [vmem:[#allocation2 + $0x40] sm:$0xff] %vm872, %v949
  %963 = vst.msk [vmem:[#allocation2 + $0x50] sm:$0x1] %vm959, %v948
  %v964 = vld [vmem:[#allocation2] sm:$0xff]
  %v965 = vld [vmem:[#allocation2 + $0x10] sm:$0xff]
  %v966 = vld [vmem:[#allocation2 + $0x30] sm:$0xff]
  %v967 = vld [vmem:[#allocation2 + $0x40] sm:$0xff]
  %v968 = vld [vmem:[#allocation2] sm:$0xfe]
  %v969 = vld [vmem:[#allocation2 + $0x20] sm:$0x1]
  %v970 = vld [vmem:[#allocation2 + $0x30] sm:$0xfe]
  %v971 = vld [vmem:[#allocation2 + $0x50] sm:$0x1]
  %v972 = vld [vmem:[#allocation2] sm:$0xfc]
  %v973 = vld [vmem:[#allocation2 + $0x20] sm:$0x3]
  %v974 = vld [vmem:[#allocation2 + $0x30] sm:$0xfc]
  %v975 = vld [vmem:[#allocation2 + $0x50] sm:$0x3]
  %v982 = vrot.slane %v968, 1
  %v983 = vrot.slane %v965, 1
  %v984 = vsel %vm254, %v982, %v983
  %v985 = vrot.slane %v969, 1
  %v986 = vsel %vm254, %v983, %v985
  %v987 = vrot.slane %v970, 1
  %v988 = vrot.slane %v967, 1
  %v989 = vsel %vm254, %v987, %v988
  %v990 = vrot.slane %v971, 1
  %v991 = vsel %vm254, %v988, %v990
  %992 = vrot.lane.b32.xlu0 %v984, 64
  %v993 = vpop.permute.xlu0 %992
  %994 = vrot.lane.b32.xlu0 %v986, 64
  %v995 = vpop.permute.xlu0 %994
  %996 = vrot.lane.b32.xlu0 %v989, 64
  %v997 = vpop.permute.xlu0 %996
  %998 = vrot.lane.b32.xlu0 %v991, 64
  %v999 = vpop.permute.xlu0 %998
  %v1008 = vrot.slane %v972, 2
  %v1009 = vrot.slane %v965, 2
  %v1010 = vsel %vm291, %v1008, %v1009
  %v1011 = vrot.slane %v973, 2
  %v1012 = vsel %vm291, %v1009, %v1011
  %v1013 = vrot.slane %v974, 2
  %v1014 = vrot.slane %v967, 2
  %v1015 = vsel %vm291, %v1013, %v1014
  %v1016 = vrot.slane %v975, 2
  %v1017 = vsel %vm291, %v1014, %v1016
  %v1022 = vsel %vm872, %v964, %v993
  %v1023 = vsel %vm872, %v965, %v995
  %v1024 = vsel %vm872, %v966, %v997
  %v1025 = vsel %vm872, %v967, %v999
  %v1026 = vpack.c.bf16 %v1023, %v1022
  %v1027 = vpack.c.bf16 %v1012, %v1010
  %v1028 = vpack.c.bf16 %v1025, %v1024
  %v1029 = vpack.c.bf16 %v1017, %v1015
  %v1030 = vld [vmem:[%s6] sm:$0xf]
  %v1031 = vld [vmem:[%s6 + $0x4] sm:$0xf]
  %v1032 = vld [vmem:[%s6 + $0x8] sm:$0xf]
  %v1033 = vld [vmem:[%s6 + $0xc] sm:$0xf]
  %v1034 = vld [vmem:[%s6 + $0x10] sm:$0xf]
  %v1035 = vld [vmem:[%s6 + $0x14] sm:$0xf]
  %v1036 = vld [vmem:[%s6 + $0x18] sm:$0xf]
  %v1037 = vld [vmem:[%s6 + $0x1c] sm:$0xf]
  %v1038 = vld [vmem:[%s6 + $0x20] sm:$0xf]
  %v1039 = vld [vmem:[%s6 + $0x24] sm:$0xf]
  %v1040 = vld [vmem:[%s6 + $0x28] sm:$0xf]
  %v1041 = vld [vmem:[%s6 + $0x2c] sm:$0xf]
  %v1042 = vld [vmem:[%s6 + $0x30] sm:$0xf]
  %v1043 = vld [vmem:[%s6 + $0x34] sm:$0xf]
  %v1044 = vld [vmem:[%s6 + $0x38] sm:$0xf]
  %v1045 = vld [vmem:[%s6 + $0x3c] sm:$0xf]
  %v1046 = vld [vmem:[%s6 + $0x40] sm:$0xf]
  %v1047 = vld [vmem:[%s6 + $0x44] sm:$0xf]
  %v1048 = vld [vmem:[%s6 + $0x48] sm:$0xf]
  %v1049 = vld [vmem:[%s6 + $0x4c] sm:$0xf]
  %v1050 = vld [vmem:[%s6 + $0x50] sm:$0xf]
  %v1051 = vld [vmem:[%s6 + $0x54] sm:$0xf]
  %v1052 = vld [vmem:[%s6 + $0x58] sm:$0xf]
  %v1053 = vld [vmem:[%s6 + $0x5c] sm:$0xf]
  %v1054 = vld [vmem:[%s7] sm:$0x1]
  %v1056 = vlaneseq
  %v1057 = vshrl.u32 %v1056, 7
  %v1058 = vsub.s32 0, %v1057
  %v1059 = vrot.slane %v1054, %v1058
  %v1085 = vunpack.c.l.b16 %v1030
  %v1086 = vunpack.c.l.b16 %v1031
  %v1087 = vunpack.c.l.b16 %v1032
  %v1088 = vunpack.c.l.b16 %v1033
  %v1089 = vunpack.c.l.b16 %v1034
  %v1090 = vunpack.c.l.b16 %v1035
  %v1091 = vunpack.c.l.b16 %v1036
  %v1092 = vunpack.c.l.b16 %v1037
  %v1093 = vunpack.c.l.b16 %v1038
  %v1094 = vunpack.c.l.b16 %v1039
  %v1095 = vunpack.c.l.b16 %v1040
  %v1096 = vunpack.c.l.b16 %v1041
  %v1097 = vunpack.c.l.b16 %v1042
  %v1098 = vunpack.c.l.b16 %v1043
  %v1099 = vunpack.c.l.b16 %v1044
  %v1100 = vunpack.c.l.b16 %v1045
  %v1101 = vunpack.c.l.b16 %v1046
  %v1102 = vunpack.c.l.b16 %v1047
  %v1103 = vunpack.c.l.b16 %v1048
  %v1104 = vunpack.c.l.b16 %v1049
  %v1105 = vunpack.c.l.b16 %v1050
  %v1106 = vunpack.c.l.b16 %v1051
  %v1107 = vunpack.c.l.b16 %v1052
  %v1108 = vunpack.c.l.b16 %v1053
  %v1109 = vpack.c.b16 %v1086, %v1085
  %v1110 = vpack.c.b16 %v1088, %v1087
  %v1111 = vpack.c.b16 %v1090, %v1089
  %v1112 = vpack.c.b16 %v1092, %v1091
  %v1113 = vpack.c.b16 %v1094, %v1093
  %v1114 = vpack.c.b16 %v1096, %v1095
  %v1115 = vpack.c.b16 %v1098, %v1097
  %v1116 = vpack.c.b16 %v1100, %v1099
  %v1117 = vpack.c.b16 %v1102, %v1101
  %v1118 = vpack.c.b16 %v1104, %v1103
  %v1119 = vpack.c.b16 %v1106, %v1105
  %v1120 = vpack.c.b16 %v1108, %v1107
  %v1134 = vsel %vm872, %v1027, 0
  %v1137 = vsel %vm872, %v1029, 0
  %1139 = vmatprep.subr.bf16.mxu0 0
  %1140 = vmatpush1.bf16.msra.mxu0 %v1109
  %1141 = vmatprep.subr.bf16.mxu0 0
  %1142 = vmatpush1.bf16.msra.mxu0 %v1110
  %1143 = vmatprep.subr.bf16.mxu0 0
  %1144 = vmatpush1.bf16.msra.mxu0 %v1111
  %1145 = vmatprep.subr.bf16.mxu0 0
  %1146 = vmatpush1.bf16.msra.mxu0 %v1112
  %1147 = vmatprep.subr.bf16.mxu0 0
  %1148 = vmatpush1.bf16.msra.mxu0 %v1113
  %1149 = vmatprep.subr.bf16.mxu0 0
  %1150 = vmatpush1.bf16.msra.mxu0 %v1114
  %1151 = vmatprep.subr.bf16.mxu0 0
  %1152 = vmatpush1.bf16.msra.mxu0 %v1115
  %1153 = vmatprep.subr.bf16.mxu0 0
  %1154 = vmatpush1.bf16.msra.mxu0 %v1116
  %1155 = vmatprep.subr.bf16.mxu0 0
  %1156 = vmatpush1.bf16.msra.mxu0 %v1117
  %1157 = vmatprep.subr.bf16.mxu0 0
  %1158 = vmatpush1.bf16.msra.mxu0 %v1118
  %1159 = vmatprep.subr.bf16.mxu0 0
  %1160 = vmatpush1.bf16.msra.mxu0 %v1119
  %1161 = vmatprep.subr.bf16.mxu0 0
  %1162 = vmatpush1.bf16.msra.mxu0 %v1120
  %1163 = vmatprep.subr.bf16.mxu0 0
  %1164 = vmatpush1.bf16.msra.mxu0 0
  %1165 = vmatprep.subr.bf16.mxu0 0
  %1166 = vmatpush1.bf16.msra.mxu0 0
  %1167 = vmatprep.subr.bf16.mxu0 0
  %1168 = vmatpush1.bf16.msra.mxu0 0
  %1169 = vmatprep.subr.bf16.mxu0 0
  %1170 = vmatpush1.bf16.msra.mxu0 0
  %1171 = vmatprep.mubr.bf16.mxu0 %v1134
  %1172 = vmatmul.mubr.bf16.gmra.mrb[0].mxu0 %v1026
  %v1173 = vpop.f32.mrb[0].mxu0
  %v1174 = vadd.f32 %v1059, %v1173
  %v1175 = vpop.f32.mrb[0].mxu0
  %v1176 = vpop.f32.mrb[0].mxu0
  %v1177 = vadd.f32 %v1059, %v1176
  %v1178 = vpop.f32.mrb[0].mxu0
  %1179 = vmatprep.mubr.bf16.mxu0 %v1137
  %1180 = vmatmul.mubr.bf16.gmra.mrb[0].mxu0 %v1028
  %v1181 = vpop.f32.mrb[0].mxu0
  %v1182 = vadd.f32 %v1059, %v1181
  %v1183 = vpop.f32.mrb[0].mxu0
  %v1184 = vpop.f32.mrb[0].mxu0
  %v1185 = vadd.f32 %v1059, %v1184
  %v1186 = vpop.f32.mrb[0].mxu0
  %1187 = vdwg.mxu0
  %v1188 = vld [vmem:[%s8] sm:$0x1]
  %v1189 = vld [vmem:[%s9] sm:$0x1]
  %v1190 = vadd.f32 %v1174, %v1177
  %v1191 = vadd.f32 %v1190, %v1182
  %v1192 = vadd.f32 %v1191, %v1185
  %v1193 = vrot.slane %v1192, 4
  %v1194 = vadd.f32 %v1192, %v1193
  %v1195 = vrot.slane %v1194, 2
  %v1196 = vadd.f32 %v1194, %v1195
  %v1197 = vrot.slane %v1196, 1
  %v1198 = vadd.f32 %v1196, %v1197
  %v1199 = vmul.f32 %v1198, %v886
  %v1200 = vsub.f32 %v1174, %v1199
  %v1201 = vsub.f32 %v1177, %v1199
  %v1202 = vsub.f32 %v1182, %v1199
  %v1203 = vsub.f32 %v1185, %v1199
  %v1204 = vmul.f32 %v1200, %v1200
  %v1205 = vmul.f32 %v1201, %v1201
  %v1206 = vmul.f32 %v1202, %v1202
  %v1207 = vmul.f32 %v1203, %v1203
  %v1208 = vadd.f32 %v1204, %v1205
  %v1209 = vadd.f32 %v1208, %v1206
  %v1210 = vadd.f32 %v1209, %v1207
  %v1211 = vrot.slane %v1210, 4
  %v1212 = vadd.f32 %v1210, %v1211
  %v1213 = vrot.slane %v1212, 2
  %v1214 = vadd.f32 %v1212, %v1213
  %v1215 = vrot.slane %v1214, 1
  %v1216 = vadd.f32 %v1214, %v1215
  %v1217 = vmul.f32 %v1216, %v886
  %v1218 = vadd.f32 %v1217, 1e-05
  %v1219 = vrsqrt.pop %v1218
  %v1220 = vmul.f32 %v1200, %v1219
  %v1221 = vmul.f32 %v1201, %v1219
  %v1222 = vmul.f32 %v1202, %v1219
  %v1223 = vmul.f32 %v1203, %v1219
  %v1225 = vlaneseq
  %v1226 = vshrl.u32 %v1225, 7
  %v1227 = vsub.s32 0, %v1226
  %v1228 = vrot.slane %v1188, %v1227
  %v1230 = vmul.f32 %v1220, %v1228
  %v1231 = vmul.f32 %v1221, %v1228
  %v1232 = vmul.f32 %v1222, %v1228
  %v1233 = vmul.f32 %v1223, %v1228
  %v1235 = vlaneseq
  %v1236 = vshrl.u32 %v1235, 7
  %v1237 = vsub.s32 0, %v1236
  %v1238 = vrot.slane %v1189, %v1237
  %v1240 = vadd.f32 %v1230, %v1238
  %v1241 = vadd.f32 %v1231, %v1238
  %v1242 = vadd.f32 %v1232, %v1238
  %v1243 = vadd.f32 %v1233, %v1238
  %v1244 = vld [vmem:[%s1] sm:$0xff]
  %v1245 = vld [vmem:[%s1 + $0x8] sm:$0xff]
  %v1246 = vld [vmem:[%s1 + $0x10] sm:$0xff]
  %v1247 = vld [vmem:[%s1 + $0x18] sm:$0xff]
  %v1248 = vadd.f32 %v1240, %v1244
  %v1249 = vadd.f32 %v1241, %v1245
  %v1250 = vadd.f32 %v1242, %v1246
  %v1251 = vadd.f32 %v1243, %v1247
  %v1252 = vld [vmem:[%s10] sm:$0xf]
  %v1253 = vld [vmem:[%s10 + $0x4] sm:$0xf]
  %v1254 = vld [vmem:[%s10 + $0x8] sm:$0xf]
  %v1255 = vld [vmem:[%s10 + $0xc] sm:$0xf]
  %v1256 = vld [vmem:[%s10 + $0x10] sm:$0xf]
  %v1257 = vld [vmem:[%s10 + $0x14] sm:$0xf]
  %v1258 = vld [vmem:[%s10 + $0x18] sm:$0xf]
  %v1259 = vld [vmem:[%s10 + $0x1c] sm:$0xf]
  %v1260 = vld [vmem:[%s10 + $0x20] sm:$0xf]
  %v1261 = vld [vmem:[%s10 + $0x24] sm:$0xf]
  %v1262 = vld [vmem:[%s10 + $0x28] sm:$0xf]
  %v1263 = vld [vmem:[%s10 + $0x2c] sm:$0xf]
  %v1264 = vld [vmem:[%s10 + $0x30] sm:$0xf]
  %v1265 = vld [vmem:[%s10 + $0x34] sm:$0xf]
  %v1266 = vld [vmem:[%s10 + $0x38] sm:$0xf]
  %v1267 = vld [vmem:[%s10 + $0x3c] sm:$0xf]
  %v1268 = vld [vmem:[%s10 + $0x40] sm:$0xf]
  %v1269 = vld [vmem:[%s10 + $0x44] sm:$0xf]
  %v1270 = vld [vmem:[%s10 + $0x48] sm:$0xf]
  %v1271 = vld [vmem:[%s10 + $0x4c] sm:$0xf]
  %v1272 = vld [vmem:[%s10 + $0x50] sm:$0xf]
  %v1273 = vld [vmem:[%s10 + $0x54] sm:$0xf]
  %v1274 = vld [vmem:[%s10 + $0x58] sm:$0xf]
  %v1275 = vld [vmem:[%s10 + $0x5c] sm:$0xf]
  %v1276 = vld [vmem:[%s10 + $0x60] sm:$0xf]
  %v1277 = vld [vmem:[%s10 + $0x64] sm:$0xf]
  %v1278 = vld [vmem:[%s10 + $0x68] sm:$0xf]
  %v1279 = vld [vmem:[%s10 + $0x6c] sm:$0xf]
  %v1280 = vld [vmem:[%s10 + $0x70] sm:$0xf]
  %v1281 = vld [vmem:[%s10 + $0x74] sm:$0xf]
  %v1282 = vld [vmem:[%s10 + $0x78] sm:$0xf]
  %v1283 = vld [vmem:[%s10 + $0x7c] sm:$0xf]
  %v1284 = vld [vmem:[%s10 + $0x80] sm:$0xf]
  %v1285 = vld [vmem:[%s10 + $0x84] sm:$0xf]
  %v1286 = vld [vmem:[%s10 + $0x88] sm:$0xf]
  %v1287 = vld [vmem:[%s10 + $0x8c] sm:$0xf]
  %v1288 = vld [vmem:[%s10 + $0x90] sm:$0xf]
  %v1289 = vld [vmem:[%s10 + $0x94] sm:$0xf]
  %v1290 = vld [vmem:[%s10 + $0x98] sm:$0xf]
  %v1291 = vld [vmem:[%s10 + $0x9c] sm:$0xf]
  %v1292 = vld [vmem:[%s10 + $0xa0] sm:$0xf]
  %v1293 = vld [vmem:[%s10 + $0xa4] sm:$0xf]
  %v1294 = vld [vmem:[%s10 + $0xa8] sm:$0xf]
  %v1295 = vld [vmem:[%s10 + $0xac] sm:$0xf]
  %v1296 = vld [vmem:[%s10 + $0xb0] sm:$0xf]
  %v1297 = vld [vmem:[%s10 + $0xb4] sm:$0xf]
  %v1298 = vld [vmem:[%s10 + $0xb8] sm:$0xf]
  %v1299 = vld [vmem:[%s10 + $0xbc] sm:$0xf]
  %v1300 = vld [vmem:[%s10 + $0xc0] sm:$0xf]
  %v1301 = vld [vmem:[%s10 + $0xc4] sm:$0xf]
  %v1302 = vld [vmem:[%s10 + $0xc8] sm:$0xf]
  %v1303 = vld [vmem:[%s10 + $0xcc] sm:$0xf]
  %v1304 = vld [vmem:[%s10 + $0xd0] sm:$0xf]
  %v1305 = vld [vmem:[%s10 + $0xd4] sm:$0xf]
  %v1306 = vld [vmem:[%s10 + $0xd8] sm:$0xf]
  %v1307 = vld [vmem:[%s10 + $0xdc] sm:$0xf]
  %v1308 = vld [vmem:[%s10 + $0xe0] sm:$0xf]
  %v1309 = vld [vmem:[%s10 + $0xe4] sm:$0xf]
  %v1310 = vld [vmem:[%s10 + $0xe8] sm:$0xf]
  %v1311 = vld [vmem:[%s10 + $0xec] sm:$0xf]
  %v1312 = vld [vmem:[%s10 + $0xf0] sm:$0xf]
  %v1313 = vld [vmem:[%s10 + $0xf4] sm:$0xf]
  %v1314 = vld [vmem:[%s10 + $0xf8] sm:$0xf]
  %v1315 = vld [vmem:[%s10 + $0xfc] sm:$0xf]
  %v1316 = vld [vmem:[%s11] sm:$0x1]
  %v1317 = vld [vmem:[%s11 + $0x1] sm:$0x1]
  %v1318 = vld [vmem:[%s11 + $0x2] sm:$0x1]
  %v1319 = vld [vmem:[%s11 + $0x3] sm:$0x1]
  %v1320 = vld [vmem:[%s12] sm:$0xf]
  %v1321 = vld [vmem:[%s12 + $0x4] sm:$0xf]
  %v1322 = vld [vmem:[%s12 + $0x8] sm:$0xf]
  %v1323 = vld [vmem:[%s12 + $0xc] sm:$0xf]
  %v1324 = vld [vmem:[%s12 + $0x10] sm:$0xf]
  %v1325 = vld [vmem:[%s12 + $0x14] sm:$0xf]
  %v1326 = vld [vmem:[%s12 + $0x18] sm:$0xf]
  %v1327 = vld [vmem:[%s12 + $0x1c] sm:$0xf]
  %v1328 = vld [vmem:[%s12 + $0x20] sm:$0xf]
  %v1329 = vld [vmem:[%s12 + $0x24] sm:$0xf]
  %v1330 = vld [vmem:[%s12 + $0x28] sm:$0xf]
  %v1331 = vld [vmem:[%s12 + $0x2c] sm:$0xf]
  %v1332 = vld [vmem:[%s12 + $0x30] sm:$0xf]
  %v1333 = vld [vmem:[%s12 + $0x34] sm:$0xf]
  %v1334 = vld [vmem:[%s12 + $0x38] sm:$0xf]
  %v1335 = vld [vmem:[%s12 + $0x3c] sm:$0xf]
  %v1336 = vld [vmem:[%s12 + $0x40] sm:$0xf]
  %v1337 = vld [vmem:[%s12 + $0x44] sm:$0xf]
  %v1338 = vld [vmem:[%s12 + $0x48] sm:$0xf]
  %v1339 = vld [vmem:[%s12 + $0x4c] sm:$0xf]
  %v1340 = vld [vmem:[%s12 + $0x50] sm:$0xf]
  %v1341 = vld [vmem:[%s12 + $0x54] sm:$0xf]
  %v1342 = vld [vmem:[%s12 + $0x58] sm:$0xf]
  %v1343 = vld [vmem:[%s12 + $0x5c] sm:$0xf]
  %v1344 = vld [vmem:[%s12 + $0x60] sm:$0xf]
  %v1345 = vld [vmem:[%s12 + $0x64] sm:$0xf]
  %v1346 = vld [vmem:[%s12 + $0x68] sm:$0xf]
  %v1347 = vld [vmem:[%s12 + $0x6c] sm:$0xf]
  %v1348 = vld [vmem:[%s12 + $0x70] sm:$0xf]
  %v1349 = vld [vmem:[%s12 + $0x74] sm:$0xf]
  %v1350 = vld [vmem:[%s12 + $0x78] sm:$0xf]
  %v1351 = vld [vmem:[%s12 + $0x7c] sm:$0xf]
  %v1352 = vld [vmem:[%s12 + $0x80] sm:$0xf]
  %v1353 = vld [vmem:[%s12 + $0x84] sm:$0xf]
  %v1354 = vld [vmem:[%s12 + $0x88] sm:$0xf]
  %v1355 = vld [vmem:[%s12 + $0x8c] sm:$0xf]
  %v1356 = vld [vmem:[%s12 + $0x90] sm:$0xf]
  %v1357 = vld [vmem:[%s12 + $0x94] sm:$0xf]
  %v1358 = vld [vmem:[%s12 + $0x98] sm:$0xf]
  %v1359 = vld [vmem:[%s12 + $0x9c] sm:$0xf]
  %v1360 = vld [vmem:[%s12 + $0xa0] sm:$0xf]
  %v1361 = vld [vmem:[%s12 + $0xa4] sm:$0xf]
  %v1362 = vld [vmem:[%s12 + $0xa8] sm:$0xf]
  %v1363 = vld [vmem:[%s12 + $0xac] sm:$0xf]
  %v1364 = vld [vmem:[%s12 + $0xb0] sm:$0xf]
  %v1365 = vld [vmem:[%s12 + $0xb4] sm:$0xf]
  %v1366 = vld [vmem:[%s12 + $0xb8] sm:$0xf]
  %v1367 = vld [vmem:[%s12 + $0xbc] sm:$0xf]
  %v1368 = vld [vmem:[%s12 + $0xc0] sm:$0xf]
  %v1369 = vld [vmem:[%s12 + $0xc4] sm:$0xf]
  %v1370 = vld [vmem:[%s12 + $0xc8] sm:$0xf]
  %v1371 = vld [vmem:[%s12 + $0xcc] sm:$0xf]
  %v1372 = vld [vmem:[%s12 + $0xd0] sm:$0xf]
  %v1373 = vld [vmem:[%s12 + $0xd4] sm:$0xf]
  %v1374 = vld [vmem:[%s12 + $0xd8] sm:$0xf]
  %v1375 = vld [vmem:[%s12 + $0xdc] sm:$0xf]
  %v1376 = vld [vmem:[%s12 + $0xe0] sm:$0xf]
  %v1377 = vld [vmem:[%s12 + $0xe4] sm:$0xf]
  %v1378 = vld [vmem:[%s12 + $0xe8] sm:$0xf]
  %v1379 = vld [vmem:[%s12 + $0xec] sm:$0xf]
  %v1380 = vld [vmem:[%s12 + $0xf0] sm:$0xf]
  %v1381 = vld [vmem:[%s12 + $0xf4] sm:$0xf]
  %v1382 = vld [vmem:[%s12 + $0xf8] sm:$0xf]
  %v1383 = vld [vmem:[%s12 + $0xfc] sm:$0xf]
  %v1384 = vld [vmem:[%s13] sm:$0x1]
  %v1385 = vld [vmem:[%s13 + $0x1] sm:$0x1]
  %v1386 = vld [vmem:[%s13 + $0x2] sm:$0x1]
  %v1387 = vld [vmem:[%s13 + $0x3] sm:$0x1]
  %v1388 = vpack.c.bf16 %v1249, %v1248
  %v1389 = vpack.c.bf16 %v1251, %v1250
  %v1391 = vlaneseq
  %v1392 = vshrl.u32 %v1391, 7
  %v1393 = vsub.s32 0, %v1392
  %v1394 = vrot.slane %v1316, %v1393
  %v1412 = vunpack.c.l.b16 %v1252
  %v1413 = vunpack.c.l.b16 %v1253
  %v1414 = vunpack.c.l.b16 %v1254
  %v1415 = vunpack.c.l.b16 %v1255
  %v1416 = vunpack.c.l.b16 %v1256
  %v1417 = vunpack.c.l.b16 %v1257
  %v1418 = vunpack.c.l.b16 %v1258
  %v1419 = vunpack.c.l.b16 %v1259
  %v1420 = vunpack.c.l.b16 %v1260
  %v1421 = vunpack.c.l.b16 %v1261
  %v1422 = vunpack.c.l.b16 %v1262
  %v1423 = vunpack.c.l.b16 %v1263
  %v1424 = vunpack.c.l.b16 %v1264
  %v1425 = vunpack.c.l.b16 %v1265
  %v1426 = vunpack.c.l.b16 %v1266
  %v1427 = vunpack.c.l.b16 %v1267
  %v1428 = vpack.c.b16 %v1413, %v1412
  %v1429 = vpack.c.b16 %v1415, %v1414
  %v1430 = vpack.c.b16 %v1417, %v1416
  %v1431 = vpack.c.b16 %v1419, %v1418
  %v1432 = vpack.c.b16 %v1421, %v1420
  %v1433 = vpack.c.b16 %v1423, %v1422
  %v1434 = vpack.c.b16 %v1425, %v1424
  %v1435 = vpack.c.b16 %v1427, %v1426
  %1444 = vmatprep.subr.bf16.mxu0 0
  %1445 = vmatpush1.bf16.msra.mxu0 %v1428
  %1446 = vmatprep.subr.bf16.mxu0 0
  %1447 = vmatpush1.bf16.msra.mxu0 %v1429
  %1448 = vmatprep.subr.bf16.mxu0 0
  %1449 = vmatpush1.bf16.msra.mxu0 %v1430
  %1450 = vmatprep.subr.bf16.mxu0 0
  %1451 = vmatpush1.bf16.msra.mxu0 %v1431
  %1452 = vmatprep.subr.bf16.mxu0 0
  %1453 = vmatpush1.bf16.msra.mxu0 %v1432
  %1454 = vmatprep.subr.bf16.mxu0 0
  %1455 = vmatpush1.bf16.msra.mxu0 %v1433
  %1456 = vmatprep.subr.bf16.mxu0 0
  %1457 = vmatpush1.bf16.msra.mxu0 %v1434
  %1458 = vmatprep.subr.bf16.mxu0 0
  %1459 = vmatpush1.bf16.msra.mxu0 %v1435
  %1460 = vmatprep.subr.bf16.mxu0 0
  %1461 = vmatpush1.bf16.msra.mxu0 0
  %1462 = vmatprep.subr.bf16.mxu0 0
  %1463 = vmatpush1.bf16.msra.mxu0 0
  %1464 = vmatprep.subr.bf16.mxu0 0
  %1465 = vmatpush1.bf16.msra.mxu0 0
  %1466 = vmatprep.subr.bf16.mxu0 0
  %1467 = vmatpush1.bf16.msra.mxu0 0
  %1468 = vmatprep.subr.bf16.mxu0 0
  %1469 = vmatpush1.bf16.msra.mxu0 0
  %1470 = vmatprep.subr.bf16.mxu0 0
  %1471 = vmatpush1.bf16.msra.mxu0 0
  %1472 = vmatprep.subr.bf16.mxu0 0
  %1473 = vmatpush1.bf16.msra.mxu0 0
  %1474 = vmatprep.subr.bf16.mxu0 0
  %1475 = vmatpush1.bf16.msra.mxu0 0
  %1476 = vmatprep.mubr.bf16.mxu0 0
  %1477 = vmatmul.mubr.bf16.gmra.mrb[0].mxu0 %v1388
  %v1478 = vpop.f32.mrb[0].mxu0
  %v1479 = vadd.f32 %v1394, %v1478
  %v1480 = vpop.f32.mrb[0].mxu0
  %v1481 = vpop.f32.mrb[0].mxu0
  %v1482 = vadd.f32 %v1394, %v1481
  %v1483 = vpop.f32.mrb[0].mxu0
  %1484 = vmatprep.mubr.bf16.mxu0 0
  %1485 = vmatmul.mubr.bf16.gmra.mrb[0].mxu0 %v1389
  %v1486 = vpop.f32.mrb[0].mxu0
  %v1487 = vadd.f32 %v1394, %v1486
  %v1488 = vpop.f32.mrb[0].mxu0
  %v1489 = vpop.f32.mrb[0].mxu0
  %v1490 = vadd.f32 %v1394, %v1489
  %v1491 = vpop.f32.mrb[0].mxu0
  %1492 = vdwg.mxu0
  %v1493 = vmax.f32 %v1479, 0.0
  %v1494 = vmax.f32 %v1482, 0.0
  %v1495 = vmax.f32 %v1487, 0.0
  %v1496 = vmax.f32 %v1490, 0.0
  %v1498 = vlaneseq
  %v1499 = vshrl.u32 %v1498, 7
  %v1500 = vsub.s32 0, %v1499
  %v1501 = vrot.slane %v1384, %v1500
  %v1519 = vunpack.c.l.b16 %v1320
  %v1520 = vunpack.c.l.b16 %v1321
  %v1521 = vunpack.c.l.b16 %v1322
  %v1522 = vunpack.c.l.b16 %v1323
  %v1523 = vunpack.c.l.b16 %v1324
  %v1524 = vunpack.c.l.b16 %v1325
  %v1525 = vunpack.c.l.b16 %v1326
  %v1526 = vunpack.c.l.b16 %v1327
  %v1527 = vunpack.c.l.b16 %v1328
  %v1528 = vunpack.c.l.b16 %v1329
  %v1529 = vunpack.c.l.b16 %v1330
  %v1530 = vunpack.c.l.b16 %v1331
  %v1531 = vunpack.c.l.b16 %v1332
  %v1532 = vunpack.c.l.b16 %v1333
  %v1533 = vunpack.c.l.b16 %v1334
  %v1534 = vunpack.c.l.b16 %v1335
  %v1535 = vpack.c.b16 %v1520, %v1519
  %v1536 = vpack.c.b16 %v1522, %v1521
  %v1537 = vpack.c.b16 %v1524, %v1523
  %v1538 = vpack.c.b16 %v1526, %v1525
  %v1539 = vpack.c.b16 %v1528, %v1527
  %v1540 = vpack.c.b16 %v1530, %v1529
  %v1541 = vpack.c.b16 %v1532, %v1531
  %v1542 = vpack.c.b16 %v1534, %v1533
  %1551 = vmatprep.subr.bf16.mxu0 0
  %1552 = vmatpush1.bf16.msra.mxu0 %v1535
  %1553 = vmatprep.subr.bf16.mxu0 0
  %1554 = vmatpush1.bf16.msra.mxu0 %v1536
  %1555 = vmatprep.subr.bf16.mxu0 0
  %1556 = vmatpush1.bf16.msra.mxu0 %v1537
  %1557 = vmatprep.subr.bf16.mxu0 0
  %1558 = vmatpush1.bf16.msra.mxu0 %v1538
  %1559 = vmatprep.subr.bf16.mxu0 0
  %1560 = vmatpush1.bf16.msra.mxu0 %v1539
  %1561 = vmatprep.subr.bf16.mxu0 0
  %1562 = vmatpush1.bf16.msra.mxu0 %v1540
  %1563 = vmatprep.subr.bf16.mxu0 0
  %1564 = vmatpush1.bf16.msra.mxu0 %v1541
  %1565 = vmatprep.subr.bf16.mxu0 0
  %1566 = vmatpush1.bf16.msra.mxu0 %v1542
  %1567 = vmatprep.subr.bf16.mxu0 0
  %1568 = vmatpush1.bf16.msra.mxu0 0
  %1569 = vmatprep.subr.bf16.mxu0 0
  %1570 = vmatpush1.bf16.msra.mxu0 0
  %1571 = vmatprep.subr.bf16.mxu0 0
  %1572 = vmatpush1.bf16.msra.mxu0 0
  %1573 = vmatprep.subr.bf16.mxu0 0
  %1574 = vmatpush1.bf16.msra.mxu0 0
  %1575 = vmatprep.subr.bf16.mxu0 0
  %1576 = vmatpush1.bf16.msra.mxu0 0
  %1577 = vmatprep.subr.bf16.mxu0 0
  %1578 = vmatpush1.bf16.msra.mxu0 0
  %1579 = vmatprep.subr.bf16.mxu0 0
  %1580 = vmatpush1.bf16.msra.mxu0 0
  %1581 = vmatprep.subr.bf16.mxu0 0
  %1582 = vmatpush1.bf16.msra.mxu0 0
  %1583 = vmatprep.mubr.bf16.mxu0 0
  %1584 = vmatmul.mubr.bf16.gmra.mrb[0].mxu0 %v1388
  %v1585 = vpop.f32.mrb[0].mxu0
  %v1586 = vadd.f32 %v1501, %v1585
  %v1587 = vpop.f32.mrb[0].mxu0
  %v1588 = vpop.f32.mrb[0].mxu0
  %v1589 = vadd.f32 %v1501, %v1588
  %v1590 = vpop.f32.mrb[0].mxu0
  %1591 = vmatprep.mubr.bf16.mxu0 0
  %1592 = vmatmul.mubr.bf16.gmra.mrb[0].mxu0 %v1389
  %v1593 = vpop.f32.mrb[0].mxu0
  %v1594 = vadd.f32 %v1501, %v1593
  %v1595 = vpop.f32.mrb[0].mxu0
  %v1596 = vpop.f32.mrb[0].mxu0
  %v1597 = vadd.f32 %v1501, %v1596
  %v1598 = vpop.f32.mrb[0].mxu0
  %1599 = vdwg.mxu0
  %v1600 = vxor.u32 %v1586, 2147483648
  %v1601 = vxor.u32 %v1589, 2147483648
  %v1602 = vxor.u32 %v1594, 2147483648
  %v1603 = vxor.u32 %v1597, 2147483648
  %v1604 = vmul.f32 %v1600, 1.442695
  %v1605 = vpow.pop %v1604
  %v1606 = vmul.f32 %v1601, 1.442695
  %v1607 = vpow.pop %v1606
  %v1608 = vmul.f32 %v1602, 1.442695
  %v1609 = vpow.pop %v1608
  %v1610 = vmul.f32 %v1603, 1.442695
  %v1611 = vpow.pop %v1610
  %v1612 = vadd.f32 %v1605, 1.0
  %v1613 = vadd.f32 %v1607, 1.0
  %v1614 = vadd.f32 %v1609, 1.0
  %v1615 = vadd.f32 %v1611, 1.0
  %v1616 = vrcp.pop %v1612
  %v1617 = vmul.f32 1.0, %v1616
  %v1618 = vrcp.pop %v1613
  %v1619 = vmul.f32 1.0, %v1618
  %v1620 = vrcp.pop %v1614
  %v1621 = vmul.f32 1.0, %v1620
  %v1622 = vrcp.pop %v1615
  %v1623 = vmul.f32 1.0, %v1622
  %v1624 = vsub.f32 %v1493, %v1248
  %v1625 = vsub.f32 %v1494, %v1249
  %v1626 = vsub.f32 %v1495, %v1250
  %v1627 = vsub.f32 %v1496, %v1251
  %v1628 = vmul.f32 %v1617, %v1624
  %v1629 = vmul.f32 %v1619, %v1625
  %v1630 = vmul.f32 %v1621, %v1626
  %v1631 = vmul.f32 %v1623, %v1627
  %v1632 = vadd.f32 %v1248, %v1628
  %v1633 = vadd.f32 %v1249, %v1629
  %v1634 = vadd.f32 %v1250, %v1630
  %v1635 = vadd.f32 %v1251, %v1631
  %v1636 = vpack.c.bf16 %v1633, %v1632
  %v1637 = vpack.c.bf16 %v1635, %v1634
  %v1639 = vlaneseq
  %v1640 = vshrl.u32 %v1639, 7
  %v1641 = vsub.s32 0, %v1640
  %v1642 = vrot.slane %v1317, %v1641
  %v1660 = vunpack.c.l.b16 %v1268
  %v1661 = vunpack.c.l.b16 %v1269
  %v1662 = vunpack.c.l.b16 %v1270
  %v1663 = vunpack.c.l.b16 %v1271
  %v1664 = vunpack.c.l.b16 %v1272
  %v1665 = vunpack.c.l.b16 %v1273
  %v1666 = vunpack.c.l.b16 %v1274
  %v1667 = vunpack.c.l.b16 %v1275
  %v1668 = vunpack.c.l.b16 %v1276
  %v1669 = vunpack.c.l.b16 %v1277
  %v1670 = vunpack.c.l.b16 %v1278
  %v1671 = vunpack.c.l.b16 %v1279
  %v1672 = vunpack.c.l.b16 %v1280
  %v1673 = vunpack.c.l.b16 %v1281
  %v1674 = vunpack.c.l.b16 %v1282
  %v1675 = vunpack.c.l.b16 %v1283
  %v1676 = vpack.c.b16 %v1661, %v1660
  %v1677 = vpack.c.b16 %v1663, %v1662
  %v1678 = vpack.c.b16 %v1665, %v1664
  %v1679 = vpack.c.b16 %v1667, %v1666
  %v1680 = vpack.c.b16 %v1669, %v1668
  %v1681 = vpack.c.b16 %v1671, %v1670
  %v1682 = vpack.c.b16 %v1673, %v1672
  %v1683 = vpack.c.b16 %v1675, %v1674
  %1692 = vmatprep.subr.bf16.mxu0 0
  %1693 = vmatpush1.bf16.msra.mxu0 %v1676
  %1694 = vmatprep.subr.bf16.mxu0 0
  %1695 = vmatpush1.bf16.msra.mxu0 %v1677
  %1696 = vmatprep.subr.bf16.mxu0 0
  %1697 = vmatpush1.bf16.msra.mxu0 %v1678
  %1698 = vmatprep.subr.bf16.mxu0 0
  %1699 = vmatpush1.bf16.msra.mxu0 %v1679
  %1700 = vmatprep.subr.bf16.mxu0 0
  %1701 = vmatpush1.bf16.msra.mxu0 %v1680
  %1702 = vmatprep.subr.bf16.mxu0 0
  %1703 = vmatpush1.bf16.msra.mxu0 %v1681
  %1704 = vmatprep.subr.bf16.mxu0 0
  %1705 = vmatpush1.bf16.msra.mxu0 %v1682
  %1706 = vmatprep.subr.bf16.mxu0 0
  %1707 = vmatpush1.bf16.msra.mxu0 %v1683
  %1708 = vmatprep.subr.bf16.mxu0 0
  %1709 = vmatpush1.bf16.msra.mxu0 0
  %1710 = vmatprep.subr.bf16.mxu0 0
  %1711 = vmatpush1.bf16.msra.mxu0 0
  %1712 = vmatprep.subr.bf16.mxu0 0
  %1713 = vmatpush1.bf16.msra.mxu0 0
  %1714 = vmatprep.subr.bf16.mxu0 0
  %1715 = vmatpush1.bf16.msra.mxu0 0
  %1716 = vmatprep.subr.bf16.mxu0 0
  %1717 = vmatpush1.bf16.msra.mxu0 0
  %1718 = vmatprep.subr.bf16.mxu0 0
  %1719 = vmatpush1.bf16.msra.mxu0 0
  %1720 = vmatprep.subr.bf16.mxu0 0
  %1721 = vmatpush1.bf16.msra.mxu0 0
  %1722 = vmatprep.subr.bf16.mxu0 0
  %1723 = vmatpush1.bf16.msra.mxu0 0
  %1724 = vmatprep.mubr.bf16.mxu0 0
  %1725 = vmatmul.mubr.bf16.gmra.mrb[0].mxu0 %v1636
  %v1726 = vpop.f32.mrb[0].mxu0
  %v1727 = vadd.f32 %v1642, %v1726
  %v1728 = vpop.f32.mrb[0].mxu0
  %v1729 = vpop.f32.mrb[0].mxu0
  %v1730 = vadd.f32 %v1642, %v1729
  %v1731 = vpop.f32.mrb[0].mxu0
  %1732 = vmatprep.mubr.bf16.mxu0 0
  %1733 = vmatmul.mubr.bf16.gmra.mrb[0].mxu0 %v1637
  %v1734 = vpop.f32.mrb[0].mxu0
  %v1735 = vadd.f32 %v1642, %v1734
  %v1736 = vpop.f32.mrb[0].mxu0
  %v1737 = vpop.f32.mrb[0].mxu0
  %v1738 = vadd.f32 %v1642, %v1737
  %v1739 = vpop.f32.mrb[0].mxu0
  %1740 = vdwg.mxu0
  %v1741 = vmax.f32 %v1727, 0.0
  %v1742 = vmax.f32 %v1730, 0.0
  %v1743 = vmax.f32 %v1735, 0.0
  %v1744 = vmax.f32 %v1738, 0.0
  %v1746 = vlaneseq
  %v1747 = vshrl.u32 %v1746, 7
  %v1748 = vsub.s32 0, %v1747
  %v1749 = vrot.slane %v1385, %v1748
  %v1767 = vunpack.c.l.b16 %v1336
  %v1768 = vunpack.c.l.b16 %v1337
  %v1769 = vunpack.c.l.b16 %v1338
  %v1770 = vunpack.c.l.b16 %v1339
  %v1771 = vunpack.c.l.b16 %v1340
  %v1772 = vunpack.c.l.b16 %v1341
  %v1773 = vunpack.c.l.b16 %v1342
  %v1774 = vunpack.c.l.b16 %v1343
  %v1775 = vunpack.c.l.b16 %v1344
  %v1776 = vunpack.c.l.b16 %v1345
  %v1777 = vunpack.c.l.b16 %v1346
  %v1778 = vunpack.c.l.b16 %v1347
  %v1779 = vunpack.c.l.b16 %v1348
  %v1780 = vunpack.c.l.b16 %v1349
  %v1781 = vunpack.c.l.b16 %v1350
  %v1782 = vunpack.c.l.b16 %v1351
  %v1783 = vpack.c.b16 %v1768, %v1767
  %v1784 = vpack.c.b16 %v1770, %v1769
  %v1785 = vpack.c.b16 %v1772, %v1771
  %v1786 = vpack.c.b16 %v1774, %v1773
  %v1787 = vpack.c.b16 %v1776, %v1775
  %v1788 = vpack.c.b16 %v1778, %v1777
  %v1789 = vpack.c.b16 %v1780, %v1779
  %v1790 = vpack.c.b16 %v1782, %v1781
  %1799 = vmatprep.subr.bf16.mxu0 0
  %1800 = vmatpush1.bf16.msra.mxu0 %v1783
  %1801 = vmatprep.subr.bf16.mxu0 0
  %1802 = vmatpush1.bf16.msra.mxu0 %v1784
  %1803 = vmatprep.subr.bf16.mxu0 0
  %1804 = vmatpush1.bf16.msra.mxu0 %v1785
  %1805 = vmatprep.subr.bf16.mxu0 0
  %1806 = vmatpush1.bf16.msra.mxu0 %v1786
  %1807 = vmatprep.subr.bf16.mxu0 0
  %1808 = vmatpush1.bf16.msra.mxu0 %v1787
  %1809 = vmatprep.subr.bf16.mxu0 0
  %1810 = vmatpush1.bf16.msra.mxu0 %v1788
  %1811 = vmatprep.subr.bf16.mxu0 0
  %1812 = vmatpush1.bf16.msra.mxu0 %v1789
  %1813 = vmatprep.subr.bf16.mxu0 0
  %1814 = vmatpush1.bf16.msra.mxu0 %v1790
  %1815 = vmatprep.subr.bf16.mxu0 0
  %1816 = vmatpush1.bf16.msra.mxu0 0
  %1817 = vmatprep.subr.bf16.mxu0 0
  %1818 = vmatpush1.bf16.msra.mxu0 0
  %1819 = vmatprep.subr.bf16.mxu0 0
  %1820 = vmatpush1.bf16.msra.mxu0 0
  %1821 = vmatprep.subr.bf16.mxu0 0
  %1822 = vmatpush1.bf16.msra.mxu0 0
  %1823 = vmatprep.subr.bf16.mxu0 0
  %1824 = vmatpush1.bf16.msra.mxu0 0
  %1825 = vmatprep.subr.bf16.mxu0 0
  %1826 = vmatpush1.bf16.msra.mxu0 0
  %1827 = vmatprep.subr.bf16.mxu0 0
  %1828 = vmatpush1.bf16.msra.mxu0 0
  %1829 = vmatprep.subr.bf16.mxu0 0
  %1830 = vmatpush1.bf16.msra.mxu0 0
  %1831 = vmatprep.mubr.bf16.mxu0 0
  %1832 = vmatmul.mubr.bf16.gmra.mrb[0].mxu0 %v1636
  %v1833 = vpop.f32.mrb[0].mxu0
  %v1834 = vadd.f32 %v1749, %v1833
  %v1835 = vpop.f32.mrb[0].mxu0
  %v1836 = vpop.f32.mrb[0].mxu0
  %v1837 = vadd.f32 %v1749, %v1836
  %v1838 = vpop.f32.mrb[0].mxu0
  %1839 = vmatprep.mubr.bf16.mxu0 0
  %1840 = vmatmul.mubr.bf16.gmra.mrb[0].mxu0 %v1637
  %v1841 = vpop.f32.mrb[0].mxu0
  %v1842 = vadd.f32 %v1749, %v1841
  %v1843 = vpop.f32.mrb[0].mxu0
  %v1844 = vpop.f32.mrb[0].mxu0
  %v1845 = vadd.f32 %v1749, %v1844
  %v1846 = vpop.f32.mrb[0].mxu0
  %1847 = vdwg.mxu0
  %v1848 = vxor.u32 %v1834, 2147483648
  %v1849 = vxor.u32 %v1837, 2147483648
  %v1850 = vxor.u32 %v1842, 2147483648
  %v1851 = vxor.u32 %v1845, 2147483648
  %v1852 = vmul.f32 %v1848, 1.442695
  %v1853 = vpow.pop %v1852
  %v1854 = vmul.f32 %v1849, 1.442695
  %v1855 = vpow.pop %v1854
  %v1856 = vmul.f32 %v1850, 1.442695
  %v1857 = vpow.pop %v1856
  %v1858 = vmul.f32 %v1851, 1.442695
  %v1859 = vpow.pop %v1858
  %v1860 = vadd.f32 %v1853, 1.0
  %v1861 = vadd.f32 %v1855, 1.0
  %v1862 = vadd.f32 %v1857, 1.0
  %v1863 = vadd.f32 %v1859, 1.0
  %v1864 = vrcp.pop %v1860
  %v1865 = vmul.f32 1.0, %v1864
  %v1866 = vrcp.pop %v1861
  %v1867 = vmul.f32 1.0, %v1866
  %v1868 = vrcp.pop %v1862
  %v1869 = vmul.f32 1.0, %v1868
  %v1870 = vrcp.pop %v1863
  %v1871 = vmul.f32 1.0, %v1870
  %v1872 = vsub.f32 %v1741, %v1632
  %v1873 = vsub.f32 %v1742, %v1633
  %v1874 = vsub.f32 %v1743, %v1634
  %v1875 = vsub.f32 %v1744, %v1635
  %v1876 = vmul.f32 %v1865, %v1872
  %v1877 = vmul.f32 %v1867, %v1873
  %v1878 = vmul.f32 %v1869, %v1874
  %v1879 = vmul.f32 %v1871, %v1875
  %v1880 = vadd.f32 %v1632, %v1876
  %v1881 = vadd.f32 %v1633, %v1877
  %v1882 = vadd.f32 %v1634, %v1878
  %v1883 = vadd.f32 %v1635, %v1879
  %v1884 = vpack.c.bf16 %v1881, %v1880
  %v1885 = vpack.c.bf16 %v1883, %v1882
  %v1887 = vlaneseq
  %v1888 = vshrl.u32 %v1887, 7
  %v1889 = vsub.s32 0, %v1888
  %v1890 = vrot.slane %v1318, %v1889
  %v1908 = vunpack.c.l.b16 %v1284
  %v1909 = vunpack.c.l.b16 %v1285
  %v1910 = vunpack.c.l.b16 %v1286
  %v1911 = vunpack.c.l.b16 %v1287
  %v1912 = vunpack.c.l.b16 %v1288
  %v1913 = vunpack.c.l.b16 %v1289
  %v1914 = vunpack.c.l.b16 %v1290
  %v1915 = vunpack.c.l.b16 %v1291
  %v1916 = vunpack.c.l.b16 %v1292
  %v1917 = vunpack.c.l.b16 %v1293
  %v1918 = vunpack.c.l.b16 %v1294
  %v1919 = vunpack.c.l.b16 %v1295
  %v1920 = vunpack.c.l.b16 %v1296
  %v1921 = vunpack.c.l.b16 %v1297
  %v1922 = vunpack.c.l.b16 %v1298
  %v1923 = vunpack.c.l.b16 %v1299
  %v1924 = vpack.c.b16 %v1909, %v1908
  %v1925 = vpack.c.b16 %v1911, %v1910
  %v1926 = vpack.c.b16 %v1913, %v1912
  %v1927 = vpack.c.b16 %v1915, %v1914
  %v1928 = vpack.c.b16 %v1917, %v1916
  %v1929 = vpack.c.b16 %v1919, %v1918
  %v1930 = vpack.c.b16 %v1921, %v1920
  %v1931 = vpack.c.b16 %v1923, %v1922
  %1940 = vmatprep.subr.bf16.mxu0 0
  %1941 = vmatpush1.bf16.msra.mxu0 %v1924
  %1942 = vmatprep.subr.bf16.mxu0 0
  %1943 = vmatpush1.bf16.msra.mxu0 %v1925
  %1944 = vmatprep.subr.bf16.mxu0 0
  %1945 = vmatpush1.bf16.msra.mxu0 %v1926
  %1946 = vmatprep.subr.bf16.mxu0 0
  %1947 = vmatpush1.bf16.msra.mxu0 %v1927
  %1948 = vmatprep.subr.bf16.mxu0 0
  %1949 = vmatpush1.bf16.msra.mxu0 %v1928
  %1950 = vmatprep.subr.bf16.mxu0 0
  %1951 = vmatpush1.bf16.msra.mxu0 %v1929
  %1952 = vmatprep.subr.bf16.mxu0 0
  %1953 = vmatpush1.bf16.msra.mxu0 %v1930
  %1954 = vmatprep.subr.bf16.mxu0 0
  %1955 = vmatpush1.bf16.msra.mxu0 %v1931
  %1956 = vmatprep.subr.bf16.mxu0 0
  %1957 = vmatpush1.bf16.msra.mxu0 0
  %1958 = vmatprep.subr.bf16.mxu0 0
  %1959 = vmatpush1.bf16.msra.mxu0 0
  %1960 = vmatprep.subr.bf16.mxu0 0
  %1961 = vmatpush1.bf16.msra.mxu0 0
  %1962 = vmatprep.subr.bf16.mxu0 0
  %1963 = vmatpush1.bf16.msra.mxu0 0
  %1964 = vmatprep.subr.bf16.mxu0 0
  %1965 = vmatpush1.bf16.msra.mxu0 0
  %1966 = vmatprep.subr.bf16.mxu0 0
  %1967 = vmatpush1.bf16.msra.mxu0 0
  %1968 = vmatprep.subr.bf16.mxu0 0
  %1969 = vmatpush1.bf16.msra.mxu0 0
  %1970 = vmatprep.subr.bf16.mxu0 0
  %1971 = vmatpush1.bf16.msra.mxu0 0
  %1972 = vmatprep.mubr.bf16.mxu0 0
  %1973 = vmatmul.mubr.bf16.gmra.mrb[0].mxu0 %v1884
  %v1974 = vpop.f32.mrb[0].mxu0
  %v1975 = vadd.f32 %v1890, %v1974
  %v1976 = vpop.f32.mrb[0].mxu0
  %v1977 = vpop.f32.mrb[0].mxu0
  %v1978 = vadd.f32 %v1890, %v1977
  %v1979 = vpop.f32.mrb[0].mxu0
  %1980 = vmatprep.mubr.bf16.mxu0 0
  %1981 = vmatmul.mubr.bf16.gmra.mrb[0].mxu0 %v1885
  %v1982 = vpop.f32.mrb[0].mxu0
  %v1983 = vadd.f32 %v1890, %v1982
  %v1984 = vpop.f32.mrb[0].mxu0
  %v1985 = vpop.f32.mrb[0].mxu0
  %v1986 = vadd.f32 %v1890, %v1985
  %v1987 = vpop.f32.mrb[0].mxu0
  %1988 = vdwg.mxu0
  %v1989 = vmax.f32 %v1975, 0.0
  %v1990 = vmax.f32 %v1978, 0.0
  %v1991 = vmax.f32 %v1983, 0.0
  %v1992 = vmax.f32 %v1986, 0.0
  %v1994 = vlaneseq
  %v1995 = vshrl.u32 %v1994, 7
  %v1996 = vsub.s32 0, %v1995
  %v1997 = vrot.slane %v1386, %v1996
  %v2015 = vunpack.c.l.b16 %v1352
  %v2016 = vunpack.c.l.b16 %v1353
  %v2017 = vunpack.c.l.b16 %v1354
  %v2018 = vunpack.c.l.b16 %v1355
  %v2019 = vunpack.c.l.b16 %v1356
  %v2020 = vunpack.c.l.b16 %v1357
  %v2021 = vunpack.c.l.b16 %v1358
  %v2022 = vunpack.c.l.b16 %v1359
  %v2023 = vunpack.c.l.b16 %v1360
  %v2024 = vunpack.c.l.b16 %v1361
  %v2025 = vunpack.c.l.b16 %v1362
  %v2026 = vunpack.c.l.b16 %v1363
  %v2027 = vunpack.c.l.b16 %v1364
  %v2028 = vunpack.c.l.b16 %v1365
  %v2029 = vunpack.c.l.b16 %v1366
  %v2030 = vunpack.c.l.b16 %v1367
  %v2031 = vpack.c.b16 %v2016, %v2015
  %v2032 = vpack.c.b16 %v2018, %v2017
  %v2033 = vpack.c.b16 %v2020, %v2019
  %v2034 = vpack.c.b16 %v2022, %v2021
  %v2035 = vpack.c.b16 %v2024, %v2023
  %v2036 = vpack.c.b16 %v2026, %v2025
  %v2037 = vpack.c.b16 %v2028, %v2027
  %v2038 = vpack.c.b16 %v2030, %v2029
  %2047 = vmatprep.subr.bf16.mxu0 0
  %2048 = vmatpush1.bf16.msra.mxu0 %v2031
  %2049 = vmatprep.subr.bf16.mxu0 0
  %2050 = vmatpush1.bf16.msra.mxu0 %v2032
  %2051 = vmatprep.subr.bf16.mxu0 0
  %2052 = vmatpush1.bf16.msra.mxu0 %v2033
  %2053 = vmatprep.subr.bf16.mxu0 0
  %2054 = vmatpush1.bf16.msra.mxu0 %v2034
  %2055 = vmatprep.subr.bf16.mxu0 0
  %2056 = vmatpush1.bf16.msra.mxu0 %v2035
  %2057 = vmatprep.subr.bf16.mxu0 0
  %2058 = vmatpush1.bf16.msra.mxu0 %v2036
  %2059 = vmatprep.subr.bf16.mxu0 0
  %2060 = vmatpush1.bf16.msra.mxu0 %v2037
  %2061 = vmatprep.subr.bf16.mxu0 0
  %2062 = vmatpush1.bf16.msra.mxu0 %v2038
  %2063 = vmatprep.subr.bf16.mxu0 0
  %2064 = vmatpush1.bf16.msra.mxu0 0
  %2065 = vmatprep.subr.bf16.mxu0 0
  %2066 = vmatpush1.bf16.msra.mxu0 0
  %2067 = vmatprep.subr.bf16.mxu0 0
  %2068 = vmatpush1.bf16.msra.mxu0 0
  %2069 = vmatprep.subr.bf16.mxu0 0
  %2070 = vmatpush1.bf16.msra.mxu0 0
  %2071 = vmatprep.subr.bf16.mxu0 0
  %2072 = vmatpush1.bf16.msra.mxu0 0
  %2073 = vmatprep.subr.bf16.mxu0 0
  %2074 = vmatpush1.bf16.msra.mxu0 0
  %2075 = vmatprep.subr.bf16.mxu0 0
  %2076 = vmatpush1.bf16.msra.mxu0 0
  %2077 = vmatprep.subr.bf16.mxu0 0
  %2078 = vmatpush1.bf16.msra.mxu0 0
  %2079 = vmatprep.mubr.bf16.mxu0 0
  %2080 = vmatmul.mubr.bf16.gmra.mrb[0].mxu0 %v1884
  %v2081 = vpop.f32.mrb[0].mxu0
  %v2082 = vadd.f32 %v1997, %v2081
  %v2083 = vpop.f32.mrb[0].mxu0
  %v2084 = vpop.f32.mrb[0].mxu0
  %v2085 = vadd.f32 %v1997, %v2084
  %v2086 = vpop.f32.mrb[0].mxu0
  %2087 = vmatprep.mubr.bf16.mxu0 0
  %2088 = vmatmul.mubr.bf16.gmra.mrb[0].mxu0 %v1885
  %v2089 = vpop.f32.mrb[0].mxu0
  %v2090 = vadd.f32 %v1997, %v2089
  %v2091 = vpop.f32.mrb[0].mxu0
  %v2092 = vpop.f32.mrb[0].mxu0
  %v2093 = vadd.f32 %v1997, %v2092
  %v2094 = vpop.f32.mrb[0].mxu0
  %2095 = vdwg.mxu0
  %v2096 = vxor.u32 %v2082, 2147483648
  %v2097 = vxor.u32 %v2085, 2147483648
  %v2098 = vxor.u32 %v2090, 2147483648
  %v2099 = vxor.u32 %v2093, 2147483648
  %v2100 = vmul.f32 %v2096, 1.442695
  %v2101 = vpow.pop %v2100
  %v2102 = vmul.f32 %v2097, 1.442695
  %v2103 = vpow.pop %v2102
  %v2104 = vmul.f32 %v2098, 1.442695
  %v2105 = vpow.pop %v2104
  %v2106 = vmul.f32 %v2099, 1.442695
  %v2107 = vpow.pop %v2106
  %v2108 = vadd.f32 %v2101, 1.0
  %v2109 = vadd.f32 %v2103, 1.0
  %v2110 = vadd.f32 %v2105, 1.0
  %v2111 = vadd.f32 %v2107, 1.0
  %v2112 = vrcp.pop %v2108
  %v2113 = vmul.f32 1.0, %v2112
  %v2114 = vrcp.pop %v2109
  %v2115 = vmul.f32 1.0, %v2114
  %v2116 = vrcp.pop %v2110
  %v2117 = vmul.f32 1.0, %v2116
  %v2118 = vrcp.pop %v2111
  %v2119 = vmul.f32 1.0, %v2118
  %v2120 = vsub.f32 %v1989, %v1880
  %v2121 = vsub.f32 %v1990, %v1881
  %v2122 = vsub.f32 %v1991, %v1882
  %v2123 = vsub.f32 %v1992, %v1883
  %v2124 = vmul.f32 %v2113, %v2120
  %v2125 = vmul.f32 %v2115, %v2121
  %v2126 = vmul.f32 %v2117, %v2122
  %v2127 = vmul.f32 %v2119, %v2123
  %v2128 = vadd.f32 %v1880, %v2124
  %v2129 = vadd.f32 %v1881, %v2125
  %v2130 = vadd.f32 %v1882, %v2126
  %v2131 = vadd.f32 %v1883, %v2127
  %v2132 = vpack.c.bf16 %v2129, %v2128
  %v2133 = vpack.c.bf16 %v2131, %v2130
  %v2135 = vlaneseq
  %v2136 = vshrl.u32 %v2135, 7
  %v2137 = vsub.s32 0, %v2136
  %v2138 = vrot.slane %v1319, %v2137
  %v2156 = vunpack.c.l.b16 %v1300
  %v2157 = vunpack.c.l.b16 %v1301
  %v2158 = vunpack.c.l.b16 %v1302
  %v2159 = vunpack.c.l.b16 %v1303
  %v2160 = vunpack.c.l.b16 %v1304
  %v2161 = vunpack.c.l.b16 %v1305
  %v2162 = vunpack.c.l.b16 %v1306
  %v2163 = vunpack.c.l.b16 %v1307
  %v2164 = vunpack.c.l.b16 %v1308
  %v2165 = vunpack.c.l.b16 %v1309
  %v2166 = vunpack.c.l.b16 %v1310
  %v2167 = vunpack.c.l.b16 %v1311
  %v2168 = vunpack.c.l.b16 %v1312
  %v2169 = vunpack.c.l.b16 %v1313
  %v2170 = vunpack.c.l.b16 %v1314
  %v2171 = vunpack.c.l.b16 %v1315
  %v2172 = vpack.c.b16 %v2157, %v2156
  %v2173 = vpack.c.b16 %v2159, %v2158
  %v2174 = vpack.c.b16 %v2161, %v2160
  %v2175 = vpack.c.b16 %v2163, %v2162
  %v2176 = vpack.c.b16 %v2165, %v2164
  %v2177 = vpack.c.b16 %v2167, %v2166
  %v2178 = vpack.c.b16 %v2169, %v2168
  %v2179 = vpack.c.b16 %v2171, %v2170
  %2188 = vmatprep.subr.bf16.mxu0 0
  %2189 = vmatpush1.bf16.msra.mxu0 %v2172
  %2190 = vmatprep.subr.bf16.mxu0 0
  %2191 = vmatpush1.bf16.msra.mxu0 %v2173
  %2192 = vmatprep.subr.bf16.mxu0 0
  %2193 = vmatpush1.bf16.msra.mxu0 %v2174
  %2194 = vmatprep.subr.bf16.mxu0 0
  %2195 = vmatpush1.bf16.msra.mxu0 %v2175
  %2196 = vmatprep.subr.bf16.mxu0 0
  %2197 = vmatpush1.bf16.msra.mxu0 %v2176
  %2198 = vmatprep.subr.bf16.mxu0 0
  %2199 = vmatpush1.bf16.msra.mxu0 %v2177
  %2200 = vmatprep.subr.bf16.mxu0 0
  %2201 = vmatpush1.bf16.msra.mxu0 %v2178
  %2202 = vmatprep.subr.bf16.mxu0 0
  %2203 = vmatpush1.bf16.msra.mxu0 %v2179
  %2204 = vmatprep.subr.bf16.mxu0 0
  %2205 = vmatpush1.bf16.msra.mxu0 0
  %2206 = vmatprep.subr.bf16.mxu0 0
  %2207 = vmatpush1.bf16.msra.mxu0 0
  %2208 = vmatprep.subr.bf16.mxu0 0
  %2209 = vmatpush1.bf16.msra.mxu0 0
  %2210 = vmatprep.subr.bf16.mxu0 0
  %2211 = vmatpush1.bf16.msra.mxu0 0
  %2212 = vmatprep.subr.bf16.mxu0 0
  %2213 = vmatpush1.bf16.msra.mxu0 0
  %2214 = vmatprep.subr.bf16.mxu0 0
  %2215 = vmatpush1.bf16.msra.mxu0 0
  %2216 = vmatprep.subr.bf16.mxu0 0
  %2217 = vmatpush1.bf16.msra.mxu0 0
  %2218 = vmatprep.subr.bf16.mxu0 0
  %2219 = vmatpush1.bf16.msra.mxu0 0
  %2220 = vmatprep.mubr.bf16.mxu0 0
  %2221 = vmatmul.mubr.bf16.gmra.mrb[0].mxu0 %v2132
  %v2222 = vpop.f32.mrb[0].mxu0
  %v2223 = vadd.f32 %v2138, %v2222
  %v2224 = vpop.f32.mrb[0].mxu0
  %v2225 = vpop.f32.mrb[0].mxu0
  %v2226 = vadd.f32 %v2138, %v2225
  %v2227 = vpop.f32.mrb[0].mxu0
  %2228 = vmatprep.mubr.bf16.mxu0 0
  %2229 = vmatmul.mubr.bf16.gmra.mrb[0].mxu0 %v2133
  %v2230 = vpop.f32.mrb[0].mxu0
  %v2231 = vadd.f32 %v2138, %v2230
  %v2232 = vpop.f32.mrb[0].mxu0
  %v2233 = vpop.f32.mrb[0].mxu0
  %v2234 = vadd.f32 %v2138, %v2233
  %v2235 = vpop.f32.mrb[0].mxu0
  %2236 = vdwg.mxu0
  %v2237 = vmax.f32 %v2223, 0.0
  %v2238 = vmax.f32 %v2226, 0.0
  %v2239 = vmax.f32 %v2231, 0.0
  %v2240 = vmax.f32 %v2234, 0.0
  %v2242 = vlaneseq
  %v2243 = vshrl.u32 %v2242, 7
  %v2244 = vsub.s32 0, %v2243
  %v2245 = vrot.slane %v1387, %v2244
  %v2263 = vunpack.c.l.b16 %v1368
  %v2264 = vunpack.c.l.b16 %v1369
  %v2265 = vunpack.c.l.b16 %v1370
  %v2266 = vunpack.c.l.b16 %v1371
  %v2267 = vunpack.c.l.b16 %v1372
  %v2268 = vunpack.c.l.b16 %v1373
  %v2269 = vunpack.c.l.b16 %v1374
  %v2270 = vunpack.c.l.b16 %v1375
  %v2271 = vunpack.c.l.b16 %v1376
  %v2272 = vunpack.c.l.b16 %v1377
  %v2273 = vunpack.c.l.b16 %v1378
  %v2274 = vunpack.c.l.b16 %v1379
  %v2275 = vunpack.c.l.b16 %v1380
  %v2276 = vunpack.c.l.b16 %v1381
  %v2277 = vunpack.c.l.b16 %v1382
  %v2278 = vunpack.c.l.b16 %v1383
  %v2279 = vpack.c.b16 %v2264, %v2263
  %v2280 = vpack.c.b16 %v2266, %v2265
  %v2281 = vpack.c.b16 %v2268, %v2267
  %v2282 = vpack.c.b16 %v2270, %v2269
  %v2283 = vpack.c.b16 %v2272, %v2271
  %v2284 = vpack.c.b16 %v2274, %v2273
  %v2285 = vpack.c.b16 %v2276, %v2275
  %v2286 = vpack.c.b16 %v2278, %v2277
  %2295 = vmatprep.subr.bf16.mxu0 0
  %2296 = vmatpush1.bf16.msra.mxu0 %v2279
  %2297 = vmatprep.subr.bf16.mxu0 0
  %2298 = vmatpush1.bf16.msra.mxu0 %v2280
  %2299 = vmatprep.subr.bf16.mxu0 0
  %2300 = vmatpush1.bf16.msra.mxu0 %v2281
  %2301 = vmatprep.subr.bf16.mxu0 0
  %2302 = vmatpush1.bf16.msra.mxu0 %v2282
  %2303 = vmatprep.subr.bf16.mxu0 0
  %2304 = vmatpush1.bf16.msra.mxu0 %v2283
  %2305 = vmatprep.subr.bf16.mxu0 0
  %2306 = vmatpush1.bf16.msra.mxu0 %v2284
  %2307 = vmatprep.subr.bf16.mxu0 0
  %2308 = vmatpush1.bf16.msra.mxu0 %v2285
  %2309 = vmatprep.subr.bf16.mxu0 0
  %2310 = vmatpush1.bf16.msra.mxu0 %v2286
  %2311 = vmatprep.subr.bf16.mxu0 0
  %2312 = vmatpush1.bf16.msra.mxu0 0
  %2313 = vmatprep.subr.bf16.mxu0 0
  %2314 = vmatpush1.bf16.msra.mxu0 0
  %2315 = vmatprep.subr.bf16.mxu0 0
  %2316 = vmatpush1.bf16.msra.mxu0 0
  %2317 = vmatprep.subr.bf16.mxu0 0
  %2318 = vmatpush1.bf16.msra.mxu0 0
  %2319 = vmatprep.subr.bf16.mxu0 0
  %2320 = vmatpush1.bf16.msra.mxu0 0
  %2321 = vmatprep.subr.bf16.mxu0 0
  %2322 = vmatpush1.bf16.msra.mxu0 0
  %2323 = vmatprep.subr.bf16.mxu0 0
  %2324 = vmatpush1.bf16.msra.mxu0 0
  %2325 = vmatprep.subr.bf16.mxu0 0
  %2326 = vmatpush1.bf16.msra.mxu0 0
  %2327 = vmatprep.mubr.bf16.mxu0 0
  %2328 = vmatmul.mubr.bf16.gmra.mrb[0].mxu0 %v2132
  %v2329 = vpop.f32.mrb[0].mxu0
  %v2330 = vadd.f32 %v2245, %v2329
  %v2331 = vpop.f32.mrb[0].mxu0
  %v2332 = vpop.f32.mrb[0].mxu0
  %v2333 = vadd.f32 %v2245, %v2332
  %v2334 = vpop.f32.mrb[0].mxu0
  %2335 = vmatprep.mubr.bf16.mxu0 0
  %2336 = vmatmul.mubr.bf16.gmra.mrb[0].mxu0 %v2133
  %v2337 = vpop.f32.mrb[0].mxu0
  %v2338 = vadd.f32 %v2245, %v2337
  %v2339 = vpop.f32.mrb[0].mxu0
  %v2340 = vpop.f32.mrb[0].mxu0
  %v2341 = vadd.f32 %v2245, %v2340
  %v2342 = vpop.f32.mrb[0].mxu0
  %2343 = vdwg.mxu0
  %v2344 = vxor.u32 %v2330, 2147483648
  %v2345 = vxor.u32 %v2333, 2147483648
  %v2346 = vxor.u32 %v2338, 2147483648
  %v2347 = vxor.u32 %v2341, 2147483648
  %v2348 = vmul.f32 %v2344, 1.442695
  %v2349 = vpow.pop %v2348
  %v2350 = vmul.f32 %v2345, 1.442695
  %v2351 = vpow.pop %v2350
  %v2352 = vmul.f32 %v2346, 1.442695
  %v2353 = vpow.pop %v2352
  %v2354 = vmul.f32 %v2347, 1.442695
  %v2355 = vpow.pop %v2354
  %v2356 = vadd.f32 %v2349, 1.0
  %v2357 = vadd.f32 %v2351, 1.0
  %v2358 = vadd.f32 %v2353, 1.0
  %v2359 = vadd.f32 %v2355, 1.0
  %v2360 = vrcp.pop %v2356
  %v2361 = vmul.f32 1.0, %v2360
  %v2362 = vrcp.pop %v2357
  %v2363 = vmul.f32 1.0, %v2362
  %v2364 = vrcp.pop %v2358
  %v2365 = vmul.f32 1.0, %v2364
  %v2366 = vrcp.pop %v2359
  %v2367 = vmul.f32 1.0, %v2366
  %v2368 = vsub.f32 %v2237, %v2128
  %v2369 = vsub.f32 %v2238, %v2129
  %v2370 = vsub.f32 %v2239, %v2130
  %v2371 = vsub.f32 %v2240, %v2131
  %v2372 = vmul.f32 %v2361, %v2368
  %v2373 = vmul.f32 %v2363, %v2369
  %v2374 = vmul.f32 %v2365, %v2370
  %v2375 = vmul.f32 %v2367, %v2371
  %v2376 = vadd.f32 %v2128, %v2372
  %v2377 = vadd.f32 %v2129, %v2373
  %v2378 = vadd.f32 %v2130, %v2374
  %v2379 = vadd.f32 %v2131, %v2375
  %2380 = vst [vmem:[%s14] sm:$0xff] %v2376
  %2381 = vst [vmem:[%s14 + $0x8] sm:$0xff] %v2377
  %2382 = vst [vmem:[%s14 + $0x10] sm:$0xff] %v2378
  %2383 = vst [vmem:[%s14 + $0x18] sm:$0xff] %v2379
  // Predicated region
  $region58: #{cbhg_forward.5} parent=0 // pred_check
    _
  $region59: #{cbhg_forward.5} parent=0 // pred_check_branch
    %2385 = sbr.rel (0) target = $region61
  $region60: #{cbhg_forward.5} parent=0 // pred_region
    _
  $region61: #{cbhg_forward.5} parent=0 // pred_fallthru
    _
  // Predicated region
  $region62: #{cbhg_forward.5} parent=0 // pred_check
    _
  $region63: #{cbhg_forward.5} parent=0 // pred_check_branch
    %2387 = sbr.rel (0) target = $region65
  $region64: #{cbhg_forward.5} parent=0 // pred_region
    _
  $region65: #{cbhg_forward.5} parent=0 // pred_fallthru
    _

// kernel: cbhg_forward.6
$region0: #{cbhg_forward.6}
  #allocation0 [shape = 'u32[]', space=smem, size = 0x4, offset = 0x4, fixed_abs, tag = 'smem constant byte address 0x4 - core index']
  #allocation1 [shape = 'u32[144,128]{1,0:T(1,128)}', space=vmem, size = 0x12000, scoped, tag = 'internal scratch']
  #allocation2 [shape = 'f32[16,2,384]{2,1,0:T(2,128)}', space=vmem, size = 0xc000, scoped, tag = 'scratch operand']
  #allocation3 [shape = 'f32[16,2,64]{2,1,0:T(2,128)}', space=vmem, size = 0x4000, scoped, tag = 'scratch operand']
  #allocation4 [shape = 'f32[16,2,64]{2,1,0:T(2,128)}', space=vmem, size = 0x4000, scoped, tag = 'scratch operand']
  %s0 = inlined_call_operand.vmem [shape: f32[16,2,128], index: 0, kind: input, shape index: {}]
  %s1 = inlined_call_operand.vmem [shape: bf16[128,384], index: 1, kind: input, shape index: {}]
  %s2 = inlined_call_operand.vmem [shape: f32[1,384], index: 2, kind: input, shape index: {}]
  %s3 = inlined_call_operand.vmem [shape: bf16[64,192], index: 3, kind: input, shape index: {}]
  %s4 = inlined_call_operand.vmem [shape: f32[1,192], index: 4, kind: input, shape index: {}]
  %s5 = inlined_call_operand.vmem [shape: bf16[64,192], index: 5, kind: input, shape index: {}]
  %s6 = inlined_call_operand.vmem [shape: f32[1,192], index: 6, kind: input, shape index: {}]
  %s7 = inlined_call_operand.vmem [shape: f32[16,2,128], index: 7, kind: output, shape index: {}]
  %s8 = sld [smem:[#allocation0]]
  $region38: #{cbhg_forward.6} parent=0
    _
  %s10 = ssub.s32 1, %s8
  %s11 = scalar_select 0, %s10, %s8
  // Predicated region
  $region2: #{cbhg_forward.6} parent=0 // pred_check
    _
  $region3: #{cbhg_forward.6} parent=0 // pred_check_branch
    %13 = sbr.rel (0) target = $region5
  $region4: #{cbhg_forward.6} parent=0 // pred_region
    _
  $region5: #{cbhg_forward.6} parent=0 // pred_fallthru
    _
  // Predicated region
  $region6: #{cbhg_forward.6} parent=0 // pred_check
    _
  $region7: #{cbhg_forward.6} parent=0 // pred_check_branch
    %15 = sbr.rel (0) target = $region9
  $region8: #{cbhg_forward.6} parent=0 // pred_region
    _
  $region9: #{cbhg_forward.6} parent=0 // pred_fallthru
    _
  // Predicated region
  $region10: #{cbhg_forward.6} parent=0 // pred_check
    _
  $region11: #{cbhg_forward.6} parent=0 // pred_check_branch
    %17 = sbr.rel (0) target = $region13
  $region12: #{cbhg_forward.6} parent=0 // pred_region
    _
  $region13: #{cbhg_forward.6} parent=0 // pred_fallthru
    _
  // Predicated region
  $region14: #{cbhg_forward.6} parent=0 // pred_check
    _
  $region15: #{cbhg_forward.6} parent=0 // pred_check_branch
    %19 = sbr.rel (0) target = $region17
  $region16: #{cbhg_forward.6} parent=0 // pred_region
    _
  $region17: #{cbhg_forward.6} parent=0 // pred_fallthru
    _
  // Predicated region
  $region18: #{cbhg_forward.6} parent=0 // pred_check
    _
  $region19: #{cbhg_forward.6} parent=0 // pred_check_branch
    %21 = sbr.rel (0) target = $region21
  $region20: #{cbhg_forward.6} parent=0 // pred_region
    _
  $region21: #{cbhg_forward.6} parent=0 // pred_fallthru
    _
  // Predicated region
  $region22: #{cbhg_forward.6} parent=0 // pred_check
    _
  $region23: #{cbhg_forward.6} parent=0 // pred_check_branch
    %23 = sbr.rel (0) target = $region25
  $region24: #{cbhg_forward.6} parent=0 // pred_region
    _
  $region25: #{cbhg_forward.6} parent=0 // pred_fallthru
    _
  // Predicated region
  $region26: #{cbhg_forward.6} parent=0 // pred_check
    _
  $region27: #{cbhg_forward.6} parent=0 // pred_check_branch
    %25 = sbr.rel (0) target = $region29
  $region28: #{cbhg_forward.6} parent=0 // pred_region
    _
  $region29: #{cbhg_forward.6} parent=0 // pred_fallthru
    _
  %v27 = vld [vmem:[%s0] sm:$0x3]
  %v28 = vld [vmem:[%s0 + $0x2] sm:$0x3]
  %v29 = vld [vmem:[%s0 + $0x4] sm:$0x3]
  %v30 = vld [vmem:[%s0 + $0x6] sm:$0x3]
  %v31 = vld [vmem:[%s0 + $0x8] sm:$0x3]
  %v32 = vld [vmem:[%s0 + $0xa] sm:$0x3]
  %v33 = vld [vmem:[%s0 + $0xc] sm:$0x3]
  %v34 = vld [vmem:[%s0 + $0xe] sm:$0x3]
  %v35 = vld [vmem:[%s0 + $0x10] sm:$0x3]
  %v36 = vld [vmem:[%s0 + $0x12] sm:$0x3]
  %v37 = vld [vmem:[%s0 + $0x14] sm:$0x3]
  %v38 = vld [vmem:[%s0 + $0x16] sm:$0x3]
  %v39 = vld [vmem:[%s0 + $0x18] sm:$0x3]
  %v40 = vld [vmem:[%s0 + $0x1a] sm:$0x3]
  %v41 = vld [vmem:[%s0 + $0x1c] sm:$0x3]
  %v42 = vld [vmem:[%s0 + $0x1e] sm:$0x3]
  %v59 = vcombine.low %v27, %v28
  %v60 = vcombine.low %v29, %v30
  %v62 = vunpack.c.l.s4 1983009808
  %v63 = vunpack.c.0.s8 %v62
  %v64 = vlaneseq
  %v65 = vshrl.u32 %v64, 7
  %v66 = vsub.s32 %v63, %v65
  %v67 = vrot.slane %v59, %v66
  %v69 = vunpack.c.l.s4 1983009808
  %v70 = vunpack.c.0.s8 %v69
  %v71 = vlaneseq
  %v72 = vshrl.u32 %v71, 7
  %v73 = vsub.s32 %v70, %v72
  %v74 = vrot.slane %v60, %v73
  %v75 = vcombine.low %v67, %v74
  %v76 = vcombine.low %v31, %v32
  %v77 = vcombine.low %v33, %v34
  %v79 = vunpack.c.l.s4 1983009808
  %v80 = vunpack.c.0.s8 %v79
  %v81 = vlaneseq
  %v82 = vshrl.u32 %v81, 7
  %v83 = vsub.s32 %v80, %v82
  %v84 = vrot.slane %v76, %v83
  %v86 = vunpack.c.l.s4 1983009808
  %v87 = vunpack.c.0.s8 %v86
  %v88 = vlaneseq
  %v89 = vshrl.u32 %v88, 7
  %v90 = vsub.s32 %v87, %v89
  %v91 = vrot.slane %v77, %v90
  %v92 = vcombine.low %v84, %v91
  %v93 = vcombine.low %v35, %v36
  %v94 = vcombine.low %v37, %v38
  %v96 = vunpack.c.l.s4 1983009808
  %v97 = vunpack.c.0.s8 %v96
  %v98 = vlaneseq
  %v99 = vshrl.u32 %v98, 7
  %v100 = vsub.s32 %v97, %v99
  %v101 = vrot.slane %v93, %v100
  %v103 = vunpack.c.l.s4 1983009808
  %v104 = vunpack.c.0.s8 %v103
  %v105 = vlaneseq
  %v106 = vshrl.u32 %v105, 7
  %v107 = vsub.s32 %v104, %v106
  %v108 = vrot.slane %v94, %v107
  %v109 = vcombine.low %v101, %v108
  %v110 = vcombine.low %v39, %v40
  %v111 = vcombine.low %v41, %v42
  %v113 = vunpack.c.l.s4 1983009808
  %v114 = vunpack.c.0.s8 %v113
  %v115 = vlaneseq
  %v116 = vshrl.u32 %v115, 7
  %v117 = vsub.s32 %v114, %v116
  %v118 = vrot.slane %v110, %v117
  %v120 = vunpack.c.l.s4 1983009808
  %v121 = vunpack.c.0.s8 %v120
  %v122 = vlaneseq
  %v123 = vshrl.u32 %v122, 7
  %v124 = vsub.s32 %v121, %v123
  %v125 = vrot.slane %v111, %v124
  %v126 = vcombine.low %v118, %v125
  %v131 = vpack.c.bf16 %v92, %v75
  %v132 = vpack.c.bf16 %v126, %v109
  %v133 = vld [vmem:[%s1] sm:$0xff]
  %v134 = vld [vmem:[%s1 + $0x8] sm:$0xf]
  %v135 = vld [vmem:[%s1 + $0xc] sm:$0xff]
  %v136 = vld [vmem:[%s1 + $0x14] sm:$0xf]
  %v137 = vld [vmem:[%s1 + $0x18] sm:$0xff]
  %v138 = vld [vmem:[%s1 + $0x20] sm:$0xf]
  %v139 = vld [vmem:[%s1 + $0x24] sm:$0xff]
  %v140 = vld [vmem:[%s1 + $0x2c] sm:$0xf]
  %v141 = vld [vmem:[%s1 + $0x30] sm:$0xff]
  %v142 = vld [vmem:[%s1 + $0x38] sm:$0xf]
  %v143 = vld [vmem:[%s1 + $0x3c] sm:$0xff]
  %v144 = vld [vmem:[%s1 + $0x44] sm:$0xf]
  %v145 = vld [vmem:[%s1 + $0x48] sm:$0xff]
  %v146 = vld [vmem:[%s1 + $0x50] sm:$0xf]
  %v147 = vld [vmem:[%s1 + $0x54] sm:$0xff]
  %v148 = vld [vmem:[%s1 + $0x5c] sm:$0xf]
  %v149 = vld [vmem:[%s1 + $0x60] sm:$0xff]
  %v150 = vld [vmem:[%s1 + $0x68] sm:$0xf]
  %v151 = vld [vmem:[%s1 + $0x6c] sm:$0xff]
  %v152 = vld [vmem:[%s1 + $0x74] sm:$0xf]
  %v153 = vld [vmem:[%s1 + $0x78] sm:$0xff]
  %v154 = vld [vmem:[%s1 + $0x80] sm:$0xf]
  %v155 = vld [vmem:[%s1 + $0x84] sm:$0xff]
  %v156 = vld [vmem:[%s1 + $0x8c] sm:$0xf]
  %v157 = vld [vmem:[%s1 + $0x90] sm:$0xff]
  %v158 = vld [vmem:[%s1 + $0x98] sm:$0xf]
  %v159 = vld [vmem:[%s1 + $0x9c] sm:$0xff]
  %v160 = vld [vmem:[%s1 + $0xa4] sm:$0xf]
  %v161 = vld [vmem:[%s1 + $0xa8] sm:$0xff]
  %v162 = vld [vmem:[%s1 + $0xb0] sm:$0xf]
  %v163 = vld [vmem:[%s1 + $0xb4] sm:$0xff]
  %v164 = vld [vmem:[%s1 + $0xbc] sm:$0xf]
  %v165 = vld [vmem:[%s2] sm:$0x7]
  %v167 = vlaneseq
  %v168 = vshrl.u32 %v167, 7
  %v169 = vsub.s32 0, %v168
  %v170 = vrot.slane %v165, %v169
  %v171 = vlaneseq
  %v172 = vshrl.u32 %v171, 7
  %v173 = vsub.s32 1, %v172
  %v174 = vrot.slane %v165, %v173
  %v175 = vlaneseq
  %v176 = vshrl.u32 %v175, 7
  %v177 = vsub.s32 2, %v176
  %v178 = vrot.slane %v165, %v177
  %v214 = vunpack.c.l.b16 %v133
  %v215 = vunpack.c.h.b16 %v133
  %v216 = vunpack.c.l.b16 %v134
  %v217 = vunpack.c.l.b16 %v135
  %v218 = vunpack.c.h.b16 %v135
  %v219 = vunpack.c.l.b16 %v136
  %v220 = vunpack.c.l.b16 %v137
  %v221 = vunpack.c.h.b16 %v137
  %v222 = vunpack.c.l.b16 %v138
  %v223 = vunpack.c.l.b16 %v139
  %v224 = vunpack.c.h.b16 %v139
  %v225 = vunpack.c.l.b16 %v140
  %v226 = vunpack.c.l.b16 %v141
  %v227 = vunpack.c.h.b16 %v141
  %v228 = vunpack.c.l.b16 %v142
  %v229 = vunpack.c.l.b16 %v143
  %v230 = vunpack.c.h.b16 %v143
  %v231 = vunpack.c.l.b16 %v144
  %v232 = vunpack.c.l.b16 %v145
  %v233 = vunpack.c.h.b16 %v145
  %v234 = vunpack.c.l.b16 %v146
  %v235 = vunpack.c.l.b16 %v147
  %v236 = vunpack.c.h.b16 %v147
  %v237 = vunpack.c.l.b16 %v148
  %v238 = vunpack.c.l.b16 %v149
  %v239 = vunpack.c.h.b16 %v149
  %v240 = vunpack.c.l.b16 %v150
  %v241 = vunpack.c.l.b16 %v151
  %v242 = vunpack.c.h.b16 %v151
  %v243 = vunpack.c.l.b16 %v152
  %v244 = vunpack.c.l.b16 %v153
  %v245 = vunpack.c.h.b16 %v153
  %v246 = vunpack.c.l.b16 %v154
  %v247 = vunpack.c.l.b16 %v155
  %v248 = vunpack.c.h.b16 %v155
  %v249 = vunpack.c.l.b16 %v156
  %v250 = vunpack.c.l.b16 %v157
  %v251 = vunpack.c.h.b16 %v157
  %v252 = vunpack.c.l.b16 %v158
  %v253 = vunpack.c.l.b16 %v159
  %v254 = vunpack.c.h.b16 %v159
  %v255 = vunpack.c.l.b16 %v160
  %v256 = vunpack.c.l.b16 %v161
  %v257 = vunpack.c.h.b16 %v161
  %v258 = vunpack.c.l.b16 %v162
  %v259 = vunpack.c.l.b16 %v163
  %v260 = vunpack.c.h.b16 %v163
  %v261 = vunpack.c.l.b16 %v164
  %v262 = vpack.c.b16 %v217, %v214
  %v263 = vpack.c.b16 %v218, %v215
  %v264 = vpack.c.b16 %v219, %v216
  %v265 = vpack.c.b16 %v223, %v220
  %v266 = vpack.c.b16 %v224, %v221
  %v267 = vpack.c.b16 %v225, %v222
  %v268 = vpack.c.b16 %v229, %v226
  %v269 = vpack.c.b16 %v230, %v227
  %v270 = vpack.c.b16 %v231, %v228
  %v271 = vpack.c.b16 %v235, %v232
  %v272 = vpack.c.b16 %v236, %v233
  %v273 = vpack.c.b16 %v237, %v234
  %v274 = vpack.c.b16 %v241, %v238
  %v275 = vpack.c.b16 %v242, %v239
  %v276 = vpack.c.b16 %v243, %v240
  %v277 = vpack.c.b16 %v247, %v244
  %v278 = vpack.c.b16 %v248, %v245
  %v279 = vpack.c.b16 %v249, %v246
  %v280 = vpack.c.b16 %v253, %v250
  %v281 = vpack.c.b16 %v254, %v251
  %v282 = vpack.c.b16 %v255, %v252
  %v283 = vpack.c.b16 %v259, %v256
  %v284 = vpack.c.b16 %v260, %v257
  %v285 = vpack.c.b16 %v261, %v258
  %310 = vmatprep.subr.bf16.mxu0 %v263
  %311 = vmatpush1.bf16.msra.mxu0 %v262
  %312 = vmatprep.subr.bf16.mxu0 %v266
  %313 = vmatpush1.bf16.msra.mxu0 %v265
  %314 = vmatprep.subr.bf16.mxu0 %v269
  %315 = vmatpush1.bf16.msra.mxu0 %v268
  %316 = vmatprep.subr.bf16.mxu0 %v272
  %317 = vmatpush1.bf16.msra.mxu0 %v271
  %318 = vmatprep.subr.bf16.mxu0 %v275
  %319 = vmatpush1.bf16.msra.mxu0 %v274
  %320 = vmatprep.subr.bf16.mxu0 %v278
  %321 = vmatpush1.bf16.msra.mxu0 %v277
  %322 = vmatprep.subr.bf16.mxu0 %v281
  %323 = vmatpush1.bf16.msra.mxu0 %v280
  %324 = vmatprep.subr.bf16.mxu0 %v284
  %325 = vmatpush1.bf16.msra.mxu0 %v283
  %326 = vmatprep.subr.bf16.mxu0 0
  %327 = vmatpush1.bf16.msra.mxu0 0
  %328 = vmatprep.subr.bf16.mxu0 0
  %329 = vmatpush1.bf16.msra.mxu0 0
  %330 = vmatprep.subr.bf16.mxu0 0
  %331 = vmatpush1.bf16.msra.mxu0 0
  %332 = vmatprep.subr.bf16.mxu0 0
  %333 = vmatpush1.bf16.msra.mxu0 0
  %334 = vmatprep.subr.bf16.mxu0 0
  %335 = vmatpush1.bf16.msra.mxu0 0
  %336 = vmatprep.subr.bf16.mxu0 0
  %337 = vmatpush1.bf16.msra.mxu0 0
  %338 = vmatprep.subr.bf16.mxu0 0
  %339 = vmatpush1.bf16.msra.mxu0 0
  %340 = vmatprep.subr.bf16.mxu0 0
  %341 = vmatpush1.bf16.msra.mxu0 0
  %342 = vmatprep.mubr.bf16.mxu0 0
  %343 = vmatmul.mubr.bf16.gmra.mrb[0].mxu0 %v131
  %v344 = vpop.f32.mrb[0].mxu0
  %v345 = vadd.f32 %v170, %v344
  %v346 = vpop.f32.mrb[0].mxu0
  %v347 = vadd.f32 %v174, %v346
  %v348 = vpop.f32.mrb[0].mxu0
  %v349 = vadd.f32 %v170, %v348
  %v350 = vpop.f32.mrb[0].mxu0
  %v351 = vadd.f32 %v174, %v350
  %352 = vmatprep.mubr.bf16.mxu0 0
  %353 = vmatmul.mubr.bf16.gmra.mrb[0].mxu0 %v132
  %v354 = vpop.f32.mrb[0].mxu0
  %v355 = vadd.f32 %v170, %v354
  %v356 = vpop.f32.mrb[0].mxu0
  %v357 = vadd.f32 %v174, %v356
  %v358 = vpop.f32.mrb[0].mxu0
  %v359 = vadd.f32 %v170, %v358
  %v360 = vpop.f32.mrb[0].mxu0
  %v361 = vadd.f32 %v174, %v360
  %362 = vdwg.mxu0
  %363 = vmatprep.subr.bf16.mxu0 0
  %364 = vmatpush1.bf16.msra.mxu0 %v264
  %365 = vmatprep.subr.bf16.mxu0 0
  %366 = vmatpush1.bf16.msra.mxu0 %v267
  %367 = vmatprep.subr.bf16.mxu0 0
  %368 = vmatpush1.bf16.msra.mxu0 %v270
  %369 = vmatprep.subr.bf16.mxu0 0
  %370 = vmatpush1.bf16.msra.mxu0 %v273
  %371 = vmatprep.subr.bf16.mxu0 0
  %372 = vmatpush1.bf16.msra.mxu0 %v276
  %373 = vmatprep.subr.bf16.mxu0 0
  %374 = vmatpush1.bf16.msra.mxu0 %v279
  %375 = vmatprep.subr.bf16.mxu0 0
  %376 = vmatpush1.bf16.msra.mxu0 %v282
  %377 = vmatprep.subr.bf16.mxu0 0
  %378 = vmatpush1.bf16.msra.mxu0 %v285
  %379 = vmatprep.subr.bf16.mxu0 0
  %380 = vmatpush1.bf16.msra.mxu0 0
  %381 = vmatprep.subr.bf16.mxu0 0
  %382 = vmatpush1.bf16.msra.mxu0 0
  %383 = vmatprep.subr.bf16.mxu0 0
  %384 = vmatpush1.bf16.msra.mxu0 0
  %385 = vmatprep.subr.bf16.mxu0 0
  %386 = vmatpush1.bf16.msra.mxu0 0
  %387 = vmatprep.subr.bf16.mxu0 0
  %388 = vmatpush1.bf16.msra.mxu0 0
  %389 = vmatprep.subr.bf16.mxu0 0
  %390 = vmatpush1.bf16.msra.mxu0 0
  %391 = vmatprep.subr.bf16.mxu0 0
  %392 = vmatpush1.bf16.msra.mxu0 0
  %393 = vmatprep.subr.bf16.mxu0 0
  %394 = vmatpush1.bf16.msra.mxu0 0
  %395 = vmatprep.mubr.bf16.mxu0 0
  %396 = vmatmul.mubr.bf16.gmra.mrb[0].mxu0 %v131
  %v397 = vpop.f32.mrb[0].mxu0
  %v398 = vadd.f32 %v178, %v397
  %v399 = vpop.f32.mrb[0].mxu0
  %v400 = vpop.f32.mrb[0].mxu0
  %v401 = vadd.f32 %v178, %v400
  %v402 = vpop.f32.mrb[0].mxu0
  %403 = vmatprep.mubr.bf16.mxu0 0
  %404 = vmatmul.mubr.bf16.gmra.mrb[0].mxu0 %v132
  %v405 = vpop.f32.mrb[0].mxu0
  %v406 = vadd.f32 %v178, %v405
  %v407 = vpop.f32.mrb[0].mxu0
  %v408 = vpop.f32.mrb[0].mxu0
  %v409 = vadd.f32 %v178, %v408
  %v410 = vpop.f32.mrb[0].mxu0
  %411 = vdwg.mxu0
  %v424 = vcombine.low %v345, %v347
  %v425 = vcombine.high %v345, %v347
  %v426 = vcombine.high %v398, %v398
  %v428 = vunpack.c.l.s4 1983009808
  %v429 = vunpack.c.0.s8 %v428
  %v430 = vlaneseq
  %v431 = vshrl.u32 %v430, 7
  %v432 = vsub.s32 %v429, %v431
  %v433 = vrot.slane %v424, %v432
  %v435 = vunpack.c.l.s4 1983009808
  %v436 = vunpack.c.0.s8 %v435
  %v437 = vlaneseq
  %v438 = vshrl.u32 %v437, 7
  %v439 = vsub.s32 %v436, %v438
  %v440 = vrot.slane %v425, %v439
  %v442 = vunpack.c.l.s4 1983009808
  %v443 = vunpack.c.0.s8 %v442
  %v444 = vlaneseq
  %v445 = vshrl.u32 %v444, 7
  %v446 = vsub.s32 %v443, %v445
  %v447 = vrot.slane %v398, %v446
  %v449 = vunpack.c.l.s4 1983009808
  %v450 = vunpack.c.0.s8 %v449
  %v451 = vlaneseq
  %v452 = vshrl.u32 %v451, 7
  %v453 = vsub.s32 %v450, %v452
  %v454 = vrot.slane %v426, %v453
  %v455 = vcombine.low %v433, %v447
  %v456 = vcombine.high %v433, %v447
  %v457 = vcombine.low %v440, %v454
  %v458 = vcombine.high %v440, %v454
  %v459 = vcombine.low %v349, %v351
  %v460 = vcombine.high %v349, %v351
  %v461 = vcombine.high %v401, %v401
  %v463 = vunpack.c.l.s4 1983009808
  %v464 = vunpack.c.0.s8 %v463
  %v465 = vlaneseq
  %v466 = vshrl.u32 %v465, 7
  %v467 = vsub.s32 %v464, %v466
  %v468 = vrot.slane %v459, %v467
  %v470 = vunpack.c.l.s4 1983009808
  %v471 = vunpack.c.0.s8 %v470
  %v472 = vlaneseq
  %v473 = vshrl.u32 %v472, 7
  %v474 = vsub.s32 %v471, %v473
  %v475 = vrot.slane %v460, %v474
  %v477 = vunpack.c.l.s4 1983009808
  %v478 = vunpack.c.0.s8 %v477
  %v479 = vlaneseq
  %v480 = vshrl.u32 %v479, 7
  %v481 = vsub.s32 %v478, %v480
  %v482 = vrot.slane %v401, %v481
  %v484 = vunpack.c.l.s4 1983009808
  %v485 = vunpack.c.0.s8 %v484
  %v486 = vlaneseq
  %v487 = vshrl.u32 %v486, 7
  %v488 = vsub.s32 %v485, %v487
  %v489 = vrot.slane %v461, %v488
  %v490 = vcombine.low %v468, %v482
  %v491 = vcombine.high %v468, %v482
  %v492 = vcombine.low %v475, %v489
  %v493 = vcombine.high %v475, %v489
  %v494 = vcombine.low %v355, %v357
  %v495 = vcombine.high %v355, %v357
  %v496 = vcombine.high %v406, %v406
  %v498 = vunpack.c.l.s4 1983009808
  %v499 = vunpack.c.0.s8 %v498
  %v500 = vlaneseq
  %v501 = vshrl.u32 %v500, 7
  %v502 = vsub.s32 %v499, %v501
  %v503 = vrot.slane %v494, %v502
  %v505 = vunpack.c.l.s4 1983009808
  %v506 = vunpack.c.0.s8 %v505
  %v507 = vlaneseq
  %v508 = vshrl.u32 %v507, 7
  %v509 = vsub.s32 %v506, %v508
  %v510 = vrot.slane %v495, %v509
  %v512 = vunpack.c.l.s4 1983009808
  %v513 = vunpack.c.0.s8 %v512
  %v514 = vlaneseq
  %v515 = vshrl.u32 %v514, 7
  %v516 = vsub.s32 %v513, %v515
  %v517 = vrot.slane %v406, %v516
  %v519 = vunpack.c.l.s4 1983009808
  %v520 = vunpack.c.0.s8 %v519
  %v521 = vlaneseq
  %v522 = vshrl.u32 %v521, 7
  %v523 = vsub.s32 %v520, %v522
  %v524 = vrot.slane %v496, %v523
  %v525 = vcombine.low %v503, %v517
  %v526 = vcombine.high %v503, %v517
  %v527 = vcombine.low %v510, %v524
  %v528 = vcombine.high %v510, %v524
  %v529 = vcombine.low %v359, %v361
  %v530 = vcombine.high %v359, %v361
  %v531 = vcombine.high %v409, %v409
  %v533 = vunpack.c.l.s4 1983009808
  %v534 = vunpack.c.0.s8 %v533
  %v535 = vlaneseq
  %v536 = vshrl.u32 %v535, 7
  %v537 = vsub.s32 %v534, %v536
  %v538 = vrot.slane %v529, %v537
  %v540 = vunpack.c.l.s4 1983009808
  %v541 = vunpack.c.0.s8 %v540
  %v542 = vlaneseq
  %v543 = vshrl.u32 %v542, 7
  %v544 = vsub.s32 %v541, %v543
  %v545 = vrot.slane %v530, %v544
  %v547 = vunpack.c.l.s4 1983009808
  %v548 = vunpack.c.0.s8 %v547
  %v549 = vlaneseq
  %v550 = vshrl.u32 %v549, 7
  %v551 = vsub.s32 %v548, %v550
  %v552 = vrot.slane %v409, %v551
  %v554 = vunpack.c.l.s4 1983009808
  %v555 = vunpack.c.0.s8 %v554
  %v556 = vlaneseq
  %v557 = vshrl.u32 %v556, 7
  %v558 = vsub.s32 %v555, %v557
  %v559 = vrot.slane %v531, %v558
  %v560 = vcombine.low %v538, %v552
  %v561 = vcombine.high %v538, %v552
  %v562 = vcombine.low %v545, %v559
  %v563 = vcombine.high %v545, %v559
  %580 = vst [vmem:[#allocation2] sm:$0x3f] %v455
  %581 = vst [vmem:[#allocation2 + $0x6] sm:$0x3f] %v456
  %582 = vst [vmem:[#allocation2 + $0xc] sm:$0x3f] %v457
  %583 = vst [vmem:[#allocation2 + $0x12] sm:$0x3f] %v458
  %584 = vst [vmem:[#allocation2 + $0x18] sm:$0x3f] %v490
  %585 = vst [vmem:[#allocation2 + $0x1e] sm:$0x3f] %v491
  %586 = vst [vmem:[#allocation2 + $0x24] sm:$0x3f] %v492
  %587 = vst [vmem:[#allocation2 + $0x2a] sm:$0x3f] %v493
  %588 = vst [vmem:[#allocation2 + $0x30] sm:$0x3f] %v525
  %589 = vst [vmem:[#allocation2 + $0x36] sm:$0x3f] %v526
  %590 = vst [vmem:[#allocation2 + $0x3c] sm:$0x3f] %v527
  %591 = vst [vmem:[#allocation2 + $0x42] sm:$0x3f] %v528
  %592 = vst [vmem:[#allocation2 + $0x48] sm:$0x3f] %v560
  %593 = vst [vmem:[#allocation2 + $0x4e] sm:$0x3f] %v561
  %594 = vst [vmem:[#allocation2 + $0x54] sm:$0x3f] %v562
  %595 = vst [vmem:[#allocation2 + $0x5a] sm:$0x3f] %v563
  %v596 = vld [vmem:[%s3] sm:$0xff]
  %v597 = vld [vmem:[%s3 + $0x8] sm:$0xff]
  %v598 = vld [vmem:[%s3 + $0x10] sm:$0xff]
  %v599 = vld [vmem:[%s3 + $0x18] sm:$0xff]
  %v600 = vld [vmem:[%s3 + $0x20] sm:$0xff]
  %v601 = vld [vmem:[%s3 + $0x28] sm:$0xff]
  %v602 = vld [vmem:[%s3 + $0x30] sm:$0xff]
  %v603 = vld [vmem:[%s3 + $0x38] sm:$0xff]
  %v604 = vld [vmem:[%s4] sm:$0x3]
  %v605 = vld [vmem:[%s5] sm:$0xff]
  %v606 = vld [vmem:[%s5 + $0x8] sm:$0xff]
  %v607 = vld [vmem:[%s5 + $0x10] sm:$0xff]
  %v608 = vld [vmem:[%s5 + $0x18] sm:$0xff]
  %v609 = vld [vmem:[%s5 + $0x20] sm:$0xff]
  %v610 = vld [vmem:[%s5 + $0x28] sm:$0xff]
  %v611 = vld [vmem:[%s5 + $0x30] sm:$0xff]
  %v612 = vld [vmem:[%s5 + $0x38] sm:$0xff]
  %v613 = vld [vmem:[%s6] sm:$0x3]
  %v614 = vld [vmem:[#allocation2] sm:$0x3f]
  %s615 = scalar_lea.vmem [#allocation2], 90
  %v616 = vld [vmem:[%s615] sm:$0x3f]
  %v618 = vlaneseq
  %v619 = vshrl.u32 %v618, 7
  %v620 = vsub.s32 0, %v619
  %v621 = vrot.slane %v604, %v620
  %v622 = vlaneseq
  %v623 = vshrl.u32 %v622, 7
  %v624 = vsub.s32 1, %v623
  %v625 = vrot.slane %v604, %v624
  %v636 = vunpack.c.l.b16 %v596
  %v637 = vunpack.c.h.b16 %v596
  %v638 = vunpack.c.l.b16 %v597
  %v639 = vunpack.c.h.b16 %v597
  %v640 = vunpack.c.l.b16 %v598
  %v641 = vunpack.c.h.b16 %v598
  %v642 = vunpack.c.l.b16 %v599
  %v643 = vunpack.c.h.b16 %v599
  %v644 = vunpack.c.l.b16 %v600
  %v645 = vunpack.c.h.b16 %v600
  %v646 = vunpack.c.l.b16 %v601
  %v647 = vunpack.c.h.b16 %v601
  %v648 = vunpack.c.l.b16 %v602
  %v649 = vunpack.c.h.b16 %v602
  %v650 = vunpack.c.l.b16 %v603
  %v651 = vunpack.c.h.b16 %v603
  %v652 = vpack.c.b16 %v638, %v636
  %v653 = vpack.c.b16 %v639, %v637
  %v654 = vpack.c.b16 %v642, %v640
  %v655 = vpack.c.b16 %v643, %v641
  %v656 = vpack.c.b16 %v646, %v644
  %v657 = vpack.c.b16 %v647, %v645
  %v658 = vpack.c.b16 %v650, %v648
  %v659 = vpack.c.b16 %v651, %v649
  %vm668 = vcmask 523264
  %v670 = vsel %vm668, 0, 0
  %672 = vmatprep.subr.bf16.mxu0 %v653
  %673 = vmatpush1.bf16.msra.mxu0 %v652
  %674 = vmatprep.subr.bf16.mxu0 %v655
  %675 = vmatpush1.bf16.msra.mxu0 %v654
  %676 = vmatprep.subr.bf16.mxu0 %v657
  %677 = vmatpush1.bf16.msra.mxu0 %v656
  %678 = vmatprep.subr.bf16.mxu0 %v659
  %679 = vmatpush1.bf16.msra.mxu0 %v658
  %680 = vmatprep.subr.bf16.mxu0 0
  %681 = vmatpush1.bf16.msra.mxu0 0
  %682 = vmatprep.subr.bf16.mxu0 0
  %683 = vmatpush1.bf16.msra.mxu0 0
  %684 = vmatprep.subr.bf16.mxu0 0
  %685 = vmatpush1.bf16.msra.mxu0 0
  %686 = vmatprep.subr.bf16.mxu0 0
  %687 = vmatpush1.bf16.msra.mxu0 0
  %688 = vmatprep.subr.bf16.mxu0 0
  %689 = vmatpush1.bf16.msra.mxu0 0
  %690 = vmatprep.subr.bf16.mxu0 0
  %691 = vmatpush1.bf16.msra.mxu0 0
  %692 = vmatprep.subr.bf16.mxu0 0
  %693 = vmatpush1.bf16.msra.mxu0 0
  %694 = vmatprep.subr.bf16.mxu0 0
  %695 = vmatpush1.bf16.msra.mxu0 0
  %696 = vmatprep.subr.bf16.mxu0 0
  %697 = vmatpush1.bf16.msra.mxu0 0
  %698 = vmatprep.subr.bf16.mxu0 0
  %699 = vmatpush1.bf16.msra.mxu0 0
  %700 = vmatprep.subr.bf16.mxu0 0
  %701 = vmatpush1.bf16.msra.mxu0 0
  %702 = vmatprep.subr.bf16.mxu0 0
  %703 = vmatpush1.bf16.msra.mxu0 0
  %704 = vmatprep.mubr.bf16.mxu0 0
  %705 = vmatmul.mubr.bf16.gmra.mrb[0].mxu0 %v670
  %v706 = vpop.f32.mrb[0].mxu0
  %v707 = vadd.f32 %v621, %v706
  %v708 = vpop.f32.mrb[0].mxu0
  %v709 = vadd.f32 %v625, %v708
  %v710 = vpop.f32.mrb[0].mxu0
  %v711 = vpop.f32.mrb[0].mxu0
  %712 = vdwg.mxu0
  %v713 = vadd.f32 %v614, %v707
  %v714 = vxor.u32 %v713, 2147483648
  %v715 = vmul.f32 %v714, 1.442695
  %v716 = vpow.pop %v715
  %v717 = vadd.f32 %v716, 1.0
  %v718 = vrcp.pop %v717
  %v719 = vmul.f32 1.0, %v718
  %v720 = vmul.f32 %v719, %v709
  %v722 = vrot.slane %v614, 2
  %v724 = vadd.f32 %v722, %v720
  %v725 = vtanh.pop %v724
  %v726 = vsub.f32 0.0, %v725
  %728 = vrot.lane.b32.xlu0 %v726, 64
  %v729 = vpop.permute.xlu0 %728
  %v731 = vmul.f32 %v719, %v729
  %733 = vrot.lane.b32.xlu0 %v731, 64
  %v734 = vpop.permute.xlu0 %733
  %v736 = vadd.f32 %v725, %v734
  %v738 = vlaneseq
  %v739 = vshrl.u32 %v738, 7
  %v740 = vsub.s32 0, %v739
  %v741 = vrot.slane %v613, %v740
  %v742 = vlaneseq
  %v743 = vshrl.u32 %v742, 7
  %v744 = vsub.s32 1, %v743
  %v745 = vrot.slane %v613, %v744
  %v756 = vunpack.c.l.b16 %v605
  %v757 = vunpack.c.h.b16 %v605
  %v758 = vunpack.c.l.b16 %v606
  %v759 = vunpack.c.h.b16 %v606
  %v760 = vunpack.c.l.b16 %v607
  %v761 = vunpack.c.h.b16 %v607
  %v762 = vunpack.c.l.b16 %v608
  %v763 = vunpack.c.h.b16 %v608
  %v764 = vunpack.c.l.b16 %v609
  %v765 = vunpack.c.h.b16 %v609
  %v766 = vunpack.c.l.b16 %v610
  %v767 = vunpack.c.h.b16 %v610
  %v768 = vunpack.c.l.b16 %v611
  %v769 = vunpack.c.h.b16 %v611
  %v770 = vunpack.c.l.b16 %v612
  %v771 = vunpack.c.h.b16 %v612
  %v772 = vpack.c.b16 %v758, %v756
  %v773 = vpack.c.b16 %v759, %v757
  %v774 = vpack.c.b16 %v762, %v760
  %v775 = vpack.c.b16 %v763, %v761
  %v776 = vpack.c.b16 %v766, %v764
  %v777 = vpack.c.b16 %v767, %v765
  %v778 = vpack.c.b16 %v770, %v768
  %v779 = vpack.c.b16 %v771, %v769
  %788 = vmatprep.subr.bf16.mxu0 %v773
  %789 = vmatpush1.bf16.msra.mxu0 %v772
  %790 = vmatprep.subr.bf16.mxu0 %v775
  %791 = vmatpush1.bf16.msra.mxu0 %v774
  %792 = vmatprep.subr.bf16.mxu0 %v777
  %793 = vmatpush1.bf16.msra.mxu0 %v776
  %794 = vmatprep.subr.bf16.mxu0 %v779
  %795 = vmatpush1.bf16.msra.mxu0 %v778
  %796 = vmatprep.subr.bf16.mxu0 0
  %797 = vmatpush1.bf16.msra.mxu0 0
  %798 = vmatprep.subr.bf16.mxu0 0
  %799 = vmatpush1.bf16.msra.mxu0 0
  %800 = vmatprep.subr.bf16.mxu0 0
  %801 = vmatpush1.bf16.msra.mxu0 0
  %802 = vmatprep.subr.bf16.mxu0 0
  %803 = vmatpush1.bf16.msra.mxu0 0
  %804 = vmatprep.subr.bf16.mxu0 0
  %805 = vmatpush1.bf16.msra.mxu0 0
  %806 = vmatprep.subr.bf16.mxu0 0
  %807 = vmatpush1.bf16.msra.mxu0 0
  %808 = vmatprep.subr.bf16.mxu0 0
  %809 = vmatpush1.bf16.msra.mxu0 0
  %810 = vmatprep.subr.bf16.mxu0 0
  %811 = vmatpush1.bf16.msra.mxu0 0
  %812 = vmatprep.subr.bf16.mxu0 0
  %813 = vmatpush1.bf16.msra.mxu0 0
  %814 = vmatprep.subr.bf16.mxu0 0
  %815 = vmatpush1.bf16.msra.mxu0 0
  %816 = vmatprep.subr.bf16.mxu0 0
  %817 = vmatpush1.bf16.msra.mxu0 0
  %818 = vmatprep.subr.bf16.mxu0 0
  %819 = vmatpush1.bf16.msra.mxu0 0
  %820 = vmatprep.mubr.bf16.mxu0 0
  %821 = vmatmul.mubr.bf16.gmra.mrb[0].mxu0 %v670
  %v822 = vpop.f32.mrb[0].mxu0
  %v823 = vadd.f32 %v741, %v822
  %v824 = vpop.f32.mrb[0].mxu0
  %v825 = vadd.f32 %v745, %v824
  %v826 = vpop.f32.mrb[0].mxu0
  %v827 = vpop.f32.mrb[0].mxu0
  %828 = vdwg.mxu0
  %830 = vrot.lane.b32.xlu0 %v616, 64
  %v831 = vpop.permute.xlu0 %830
  %v832 = vrot.slane %v831, 2
  %v834 = vadd.f32 %v832, %v823
  %v835 = vxor.u32 %v834, 2147483648
  %v836 = vmul.f32 %v835, 1.442695
  %v837 = vpow.pop %v836
  %v838 = vadd.f32 %v837, 1.0
  %v839 = vrcp.pop %v838
  %v840 = vmul.f32 1.0, %v839
  %v841 = vrot.slane %v616, 4
  %v845 = vunpack.c.l.s4 1983009808
  %v846 = vunpack.c.0.s8 %v845
  %v847 = vlaneseq
  %v848 = vshrl.u32 %v847, 7
  %v849 = vsub.s32 %v846, %v848
  %v850 = vrot.slane %v823, %v849
  %851 = vrot.lane.b32.xlu0 %v850, 64
  %v852 = vpop.permute.xlu0 %851
  %v854 = vadd.f32 %v841, %v852
  %v855 = vxor.u32 %v854, 2147483648
  %v856 = vmul.f32 %v855, 1.442695
  %v857 = vpow.pop %v856
  %v858 = vadd.f32 %v857, 1.0
  %v859 = vrcp.pop %v858
  %v860 = vmul.f32 1.0, %v859
  %v861 = vmul.f32 %v840, %v825
  %v862 = vrot.slane %v831, 4
  %v864 = vadd.f32 %v862, %v861
  %v865 = vtanh.pop %v864
  %v866 = vsub.f32 0.0, %v865
  %v867 = vmul.f32 %v860, %v866
  %v868 = vadd.f32 %v865, %v867
  %vm869 = vcmask 517120
  %870 = vst.msk [vmem:[#allocation3] sm:$0x3] %vm869, %v736
  %s871 = scalar_lea.vmem [#allocation4], 30
  %872 = vst.msk [vmem:[%s871] sm:$0x3] %vm869, %v868
  %s873 = scalar_lea.vmem [#allocation2], 6
  %v874 = vld [vmem:[%s873] sm:$0x3f]
  %s875 = scalar_lea.vmem [#allocation2], 84
  %v876 = vld [vmem:[%s875] sm:$0x3f]
  %v877 = vpack.c.bf16 %v736, %v736
  %v879 = vsel %vm668, %v877, 0
  %881 = vmatprep.subr.bf16.mxu0 %v653
  %882 = vmatpush1.bf16.msra.mxu0 %v652
  %883 = vmatprep.subr.bf16.mxu0 %v655
  %884 = vmatpush1.bf16.msra.mxu0 %v654
  %885 = vmatprep.subr.bf16.mxu0 %v657
  %886 = vmatpush1.bf16.msra.mxu0 %v656
  %887 = vmatprep.subr.bf16.mxu0 %v659
  %888 = vmatpush1.bf16.msra.mxu0 %v658
  %889 = vmatprep.subr.bf16.mxu0 0
  %890 = vmatpush1.bf16.msra.mxu0 0
  %891 = vmatprep.subr.bf16.mxu0 0
  %892 = vmatpush1.bf16.msra.mxu0 0
  %893 = vmatprep.subr.bf16.mxu0 0
  %894 = vmatpush1.bf16.msra.mxu0 0
  %895 = vmatprep.subr.bf16.mxu0 0
  %896 = vmatpush1.bf16.msra.mxu0 0
  %897 = vmatprep.subr.bf16.mxu0 0
  %898 = vmatpush1.bf16.msra.mxu0 0
  %899 = vmatprep.subr.bf16.mxu0 0
  %900 = vmatpush1.bf16.msra.mxu0 0
  %901 = vmatprep.subr.bf16.mxu0 0
  %902 = vmatpush1.bf16.msra.mxu0 0
  %903 = vmatprep.subr.bf16.mxu0 0
  %904 = vmatpush1.bf16.msra.mxu0 0
  %905 = vmatprep.subr.bf16.mxu0 0
  %906 = vmatpush1.bf16.msra.mxu0 0
  %907 = vmatprep.subr.bf16.mxu0 0
  %908 = vmatpush1.bf16.msra.mxu0 0
  %909 = vmatprep.subr.bf16.mxu0 0
  %910 = vmatpush1.bf16.msra.mxu0 0
  %911 = vmatprep.subr.bf16.mxu0 0
  %912 = vmatpush1.bf16.msra.mxu0 0
  %913 = vmatprep.mubr.bf16.mxu0 0
  %914 = vmatmul.mubr.bf16.gmra.mrb[0].mxu0 %v879
  %v915 = vpop.f32.mrb[0].mxu0
  %v916 = vadd.f32 %v621, %v915
  %v917 = vpop.f32.mrb[0].mxu0
  %v918 = vadd.f32 %v625, %v917
  %v919 = vpop.f32.mrb[0].mxu0
  %v920 = vpop.f32.mrb[0].mxu0
  %921 = vdwg.mxu0
  %v922 = vadd.f32 %v874, %v916
  %v923 = vxor.u32 %v922, 2147483648
  %v924 = vmul.f32 %v923, 1.442695
  %v925 = vpow.pop %v924
  %v926 = vadd.f32 %v925, 1.0
  %v927 = vrcp.pop %v926
  %v928 = vmul.f32 1.0, %v927
  %v929 = vmul.f32 %v928, %v918
  %v931 = vrot.slane %v874, 2
  %v933 = vadd.f32 %v931, %v929
  %v934 = vtanh.pop %v933
  %v935 = vsub.f32 %v736, %v934
  %937 = vrot.lane.b32.xlu0 %v935, 64
  %v938 = vpop.permute.xlu0 %937
  %v940 = vmul.f32 %v928, %v938
  %942 = vrot.lane.b32.xlu0 %v940, 64
  %v943 = vpop.permute.xlu0 %942
  %v945 = vadd.f32 %v934, %v943
  %v946 = vpack.c.bf16 %v868, %v868
  %v948 = vsel %vm668, %v946, 0
  %950 = vmatprep.subr.bf16.mxu0 %v773
  %951 = vmatpush1.bf16.msra.mxu0 %v772
  %952 = vmatprep.subr.bf16.mxu0 %v775
  %953 = vmatpush1.bf16.msra.mxu0 %v774
  %954 = vmatprep.subr.bf16.mxu0 %v777
  %955 = vmatpush1.bf16.msra.mxu0 %v776
  %956 = vmatprep.subr.bf16.mxu0 %v779
  %957 = vmatpush1.bf16.msra.mxu0 %v778
  %958 = vmatprep.subr.bf16.mxu0 0
  %959 = vmatpush1.bf16.msra.mxu0 0
  %960 = vmatprep.subr.bf16.mxu0 0
  %961 = vmatpush1.bf16.msra.mxu0 0
  %962 = vmatprep.subr.bf16.mxu0 0
  %963 = vmatpush1.bf16.msra.mxu0 0
  %964 = vmatprep.subr.bf16.mxu0 0
  %965 = vmatpush1.bf16.msra.mxu0 0
  %966 = vmatprep.subr.bf16.mxu0 0
  %967 = vmatpush1.bf16.msra.mxu0 0
  %968 = vmatprep.subr.bf16.mxu0 0
  %969 = vmatpush1.bf16.msra.mxu0 0
  %970 = vmatprep.subr.bf16.mxu0 0
  %971 = vmatpush1.bf16.msra.mxu0 0
  %972 = vmatprep.subr.bf16.mxu0 0
  %973 = vmatpush1.bf16.msra.mxu0 0
  %974 = vmatprep.subr.bf16.mxu0 0
  %975 = vmatpush1.bf16.msra.mxu0 0
  %976 = vmatprep.subr.bf16.mxu0 0
  %977 = vmatpush1.bf16.msra.mxu0 0
  %978 = vmatprep.subr.bf16.mxu0 0
  %979 = vmatpush1.bf16.msra.mxu0 0
  %980 = vmatprep.subr.bf16.mxu0 0
  %981 = vmatpush1.bf16.msra.mxu0 0
  %982 = vmatprep.mubr.bf16.mxu0 0
  %983 = vmatmul.mubr.bf16.gmra.mrb[0].mxu0 %v948
  %v984 = vpop.f32.mrb[0].mxu0
  %v985 = vadd.f32 %v741, %v984
  %v986 = vpop.f32.mrb[0].mxu0
  %v987 = vadd.f32 %v745, %v986
  %v988 = vpop.f32.mrb[0].mxu0
  %v989 = vpop.f32.mrb[0].mxu0
  %990 = vdwg.mxu0
  %992 = vrot.lane.b32.xlu0 %v876, 64
  %v993 = vpop.permute.xlu0 %992
  %v994 = vrot.slane %v993, 2
  %v996 = vadd.f32 %v994, %v985
  %v997 = vxor.u32 %v996, 2147483648
  %v998 = vmul.f32 %v997, 1.442695
  %v999 = vpow.pop %v998
  %v1000 = vadd.f32 %v999, 1.0
  %v1001 = vrcp.pop %v1000
  %v1002 = vmul.f32 1.0, %v1001
  %v1003 = vrot.slane %v876, 4
  %v1007 = vunpack.c.l.s4 1983009808
  %v1008 = vunpack.c.0.s8 %v1007
  %v1009 = vlaneseq
  %v1010 = vshrl.u32 %v1009, 7
  %v1011 = vsub.s32 %v1008, %v1010
  %v1012 = vrot.slane %v985, %v1011
  %1013 = vrot.lane.b32.xlu0 %v1012, 64
  %v1014 = vpop.permute.xlu0 %1013
  %v1016 = vadd.f32 %v1003, %v1014
  %v1017 = vxor.u32 %v1016, 2147483648
  %v1018 = vmul.f32 %v1017, 1.442695
  %v1019 = vpow.pop %v1018
  %v1020 = vadd.f32 %v1019, 1.0
  %v1021 = vrcp.pop %v1020
  %v1022 = vmul.f32 1.0, %v1021
  %v1023 = vmul.f32 %v1002, %v987
  %v1024 = vrot.slane %v993, 4
  %v1026 = vadd.f32 %v1024, %v1023
  %v1027 = vtanh.pop %v1026
  %v1028 = vsub.f32 %v868, %v1027
  %v1029 = vmul.f32 %v1022, %v1028
  %v1030 = vadd.f32 %v1027, %v1029
  %s1031 = scalar_lea.vmem [#allocation3], 2
  %1032 = vst.msk [vmem:[%s1031] sm:$0x3] %vm869, %v945
  %s1033 = scalar_lea.vmem [#allocation4], 28
  %1034 = vst.msk [vmem:[%s1033] sm:$0x3] %vm869, %v1030
  %s1035 = scalar_lea.vmem [#allocation2], 12
  %v1036 = vld [vmem:[%s1035] sm:$0x3f]
  %s1037 = scalar_lea.vmem [#allocation2], 78
  %v1038 = vld [vmem:[%s1037] sm:$0x3f]
  %v1039 = vpack.c.bf16 %v945, %v945
  %v1041 = vsel %vm668, %v1039, 0
  %1043 = vmatprep.subr.bf16.mxu0 %v653
  %1044 = vmatpush1.bf16.msra.mxu0 %v652
  %1045 = vmatprep.subr.bf16.mxu0 %v655
  %1046 = vmatpush1.bf16.msra.mxu0 %v654
  %1047 = vmatprep.subr.bf16.mxu0 %v657
  %1048 = vmatpush1.bf16.msra.mxu0 %v656
  %1049 = vmatprep.subr.bf16.mxu0 %v659
  %1050 = vmatpush1.bf16.msra.mxu0 %v658
  %1051 = vmatprep.subr.bf16.mxu0 0
  %1052 = vmatpush1.bf16.msra.mxu0 0
  %1053 = vmatprep.subr.bf16.mxu0 0
  %1054 = vmatpush1.bf16.msra.mxu0 0
  %1055 = vmatprep.subr.bf16.mxu0 0
  %1056 = vmatpush1.bf16.msra.mxu0 0
  %1057 = vmatprep.subr.bf16.mxu0 0
  %1058 = vmatpush1.bf16.msra.mxu0 0
  %1059 = vmatprep.subr.bf16.mxu0 0
  %1060 = vmatpush1.bf16.msra.mxu0 0
  %1061 = vmatprep.subr.bf16.mxu0 0
  %1062 = vmatpush1.bf16.msra.mxu0 0
  %1063 = vmatprep.subr.bf16.mxu0 0
  %1064 = vmatpush1.bf16.msra.mxu0 0
  %1065 = vmatprep.subr.bf16.mxu0 0
  %1066 = vmatpush1.bf16.msra.mxu0 0
  %1067 = vmatprep.subr.bf16.mxu0 0
  %1068 = vmatpush1.bf16.msra.mxu0 0
  %1069 = vmatprep.subr.bf16.mxu0 0
  %1070 = vmatpush1.bf16.msra.mxu0 0
  %1071 = vmatprep.subr.bf16.mxu0 0
  %1072 = vmatpush1.bf16.msra.mxu0 0
  %1073 = vmatprep.subr.bf16.mxu0 0
  %1074 = vmatpush1.bf16.msra.mxu0 0
  %1075 = vmatprep.mubr.bf16.mxu0 0
  %1076 = vmatmul.mubr.bf16.gmra.mrb[0].mxu0 %v1041
  %v1077 = vpop.f32.mrb[0].mxu0
  %v1078 = vadd.f32 %v621, %v1077
  %v1079 = vpop.f32.mrb[0].mxu0
  %v1080 = vadd.f32 %v625, %v1079
  %v1081 = vpop.f32.mrb[0].mxu0
  %v1082 = vpop.f32.mrb[0].mxu0
  %1083 = vdwg.mxu0
  %v1084 = vadd.f32 %v1036, %v1078
  %v1085 = vxor.u32 %v1084, 2147483648
  %v1086 = vmul.f32 %v1085, 1.442695
  %v1087 = vpow.pop %v1086
  %v1088 = vadd.f32 %v1087, 1.0
  %v1089 = vrcp.pop %v1088
  %v1090 = vmul.f32 1.0, %v1089
  %v1091 = vmul.f32 %v1090, %v1080
  %v1093 = vrot.slane %v1036, 2
  %v1095 = vadd.f32 %v1093, %v1091
  %v1096 = vtanh.pop %v1095
  %v1097 = vsub.f32 %v945, %v1096
  %1099 = vrot.lane.b32.xlu0 %v1097, 64
  %v1100 = vpop.permute.xlu0 %1099
  %v1102 = vmul.f32 %v1090, %v1100
  %1104 = vrot.lane.b32.xlu0 %v1102, 64
  %v1105 = vpop.permute.xlu0 %1104
  %v1107 = vadd.f32 %v1096, %v1105
  %v1108 = vpack.c.bf16 %v1030, %v1030
  %v1110 = vsel %vm668, %v1108, 0
  %1112 = vmatprep.subr.bf16.mxu0 %v773
  %1113 = vmatpush1.bf16.msra.mxu0 %v772
  %1114 = vmatprep.subr.bf16.mxu0 %v775
  %1115 = vmatpush1.bf16.msra.mxu0 %v774
  %1116 = vmatprep.subr.bf16.mxu0 %v777
  %1117 = vmatpush1.bf16.msra.mxu0 %v776
  %1118 = vmatprep.subr.bf16.mxu0 %v779
  %1119 = vmatpush1.bf16.msra.mxu0 %v778
  %1120 = vmatprep.subr.bf16.mxu0 0
  %1121 = vmatpush1.bf16.msra.mxu0 0
  %1122 = vmatprep.subr.bf16.mxu0 0
  %1123 = vmatpush1.bf16.msra.mxu0 0
  %1124 = vmatprep.subr.bf16.mxu0 0
  %1125 = vmatpush1.bf16.msra.mxu0 0
  %1126 = vmatprep.subr.bf16.mxu0 0
  %1127 = vmatpush1.bf16.msra.mxu0 0
  %1128 = vmatprep.subr.bf16.mxu0 0
  %1129 = vmatpush1.bf16.msra.mxu0 0
  %1130 = vmatprep.subr.bf16.mxu0 0
  %1131 = vmatpush1.bf16.msra.mxu0 0
  %1132 = vmatprep.subr.bf16.mxu0 0
  %1133 = vmatpush1.bf16.msra.mxu0 0
  %1134 = vmatprep.subr.bf16.mxu0 0
  %1135 = vmatpush1.bf16.msra.mxu0 0
  %1136 = vmatprep.subr.bf16.mxu0 0
  %1137 = vmatpush1.bf16.msra.mxu0 0
  %1138 = vmatprep.subr.bf16.mxu0 0
  %1139 = vmatpush1.bf16.msra.mxu0 0
  %1140 = vmatprep.subr.bf16.mxu0 0
  %1141 = vmatpush1.bf16.msra.mxu0 0
  %1142 = vmatprep.subr.bf16.mxu0 0
  %1143 = vmatpush1.bf16.msra.mxu0 0
  %1144 = vmatprep.mubr.bf16.mxu0 0
  %1145 = vmatmul.mubr.bf16.gmra.mrb[0].mxu0 %v1110
  %v1146 = vpop.f32.mrb[0].mxu0
  %v1147 = vadd.f32 %v741, %v1146
  %v1148 = vpop.f32.mrb[0].mxu0
  %v1149 = vadd.f32 %v745, %v1148
  %v1150 = vpop.f32.mrb[0].mxu0
  %v1151 = vpop.f32.mrb[0].mxu0
  %1152 = vdwg.mxu0
  %1154 = vrot.lane.b32.xlu0 %v1038, 64
  %v1155 = vpop.permute.xlu0 %1154
  %v1156 = vrot.slane %v1155, 2
  %v1158 = vadd.f32 %v1156, %v1147
  %v1159 = vxor.u32 %v1158, 2147483648
  %v1160 = vmul.f32 %v1159, 1.442695
  %v1161 = vpow.pop %v1160
  %v1162 = vadd.f32 %v1161, 1.0
  %v1163 = vrcp.pop %v1162
  %v1164 = vmul.f32 1.0, %v1163
  %v1165 = vrot.slane %v1038, 4
  %v1169 = vunpack.c.l.s4 1983009808
  %v1170 = vunpack.c.0.s8 %v1169
  %v1171 = vlaneseq
  %v1172 = vshrl.u32 %v1171, 7
  %v1173 = vsub.s32 %v1170, %v1172
  %v1174 = vrot.slane %v1147, %v1173
  %1175 = vrot.lane.b32.xlu0 %v1174, 64
  %v1176 = vpop.permute.xlu0 %1175
  %v1178 = vadd.f32 %v1165, %v1176
  %v1179 = vxor.u32 %v1178, 2147483648
  %v1180 = vmul.f32 %v1179, 1.442695
  %v1181 = vpow.pop %v1180
  %v1182 = vadd.f32 %v1181, 1.0
  %v1183 = vrcp.pop %v1182
  %v1184 = vmul.f32 1.0, %v1183
  %v1185 = vmul.f32 %v1164, %v1149
  %v1186 = vrot.slane %v1155, 4
  %v1188 = vadd.f32 %v1186, %v1185
  %v1189 = vtanh.pop %v1188
  %v1190 = vsub.f32 %v1030, %v1189
  %v1191 = vmul.f32 %v1184, %v1190
  %v1192 = vadd.f32 %v1189, %v1191
  %s1193 = scalar_lea.vmem [#allocation3], 4
  %1194 = vst.msk [vmem:[%s1193] sm:$0x3] %vm869, %v1107
  %s1195 = scalar_lea.vmem [#allocation4], 26
  %1196 = vst.msk [vmem:[%s1195] sm:$0x3] %vm869, %v1192
  %s1197 = scalar_lea.vmem [#allocation2], 18
  %v1198 = vld [vmem:[%s1197] sm:$0x3f]
  %s1199 = scalar_lea.vmem [#allocation2], 72
  %v1200 = vld [vmem:[%s1199] sm:$0x3f]
  %v1201 = vpack.c.bf16 %v1107, %v1107
  %v1203 = vsel %vm668, %v1201, 0
  %1205 = vmatprep.subr.bf16.mxu0 %v653
  %1206 = vmatpush1.bf16.msra.mxu0 %v652
  %1207 = vmatprep.subr.bf16.mxu0 %v655
  %1208 = vmatpush1.bf16.msra.mxu0 %v654
  %1209 = vmatprep.subr.bf16.mxu0 %v657
  %1210 = vmatpush1.bf16.msra.mxu0 %v656
  %1211 = vmatprep.subr.bf16.mxu0 %v659
  %1212 = vmatpush1.bf16.msra.mxu0 %v658
  %1213 = vmatprep.subr.bf16.mxu0 0
  %1214 = vmatpush1.bf16.msra.mxu0 0
  %1215 = vmatprep.subr.bf16.mxu0 0
  %1216 = vmatpush1.bf16.msra.mxu0 0
  %1217 = vmatprep.subr.bf16.mxu0 0
  %1218 = vmatpush1.bf16.msra.mxu0 0
  %1219 = vmatprep.subr.bf16.mxu0 0
  %1220 = vmatpush1.bf16.msra.mxu0 0
  %1221 = vmatprep.subr.bf16.mxu0 0
  %1222 = vmatpush1.bf16.msra.mxu0 0
  %1223 = vmatprep.subr.bf16.mxu0 0
  %1224 = vmatpush1.bf16.msra.mxu0 0
  %1225 = vmatprep.subr.bf16.mxu0 0
  %1226 = vmatpush1.bf16.msra.mxu0 0
  %1227 = vmatprep.subr.bf16.mxu0 0
  %1228 = vmatpush1.bf16.msra.mxu0 0
  %1229 = vmatprep.subr.bf16.mxu0 0
  %1230 = vmatpush1.bf16.msra.mxu0 0
  %1231 = vmatprep.subr.bf16.mxu0 0
  %1232 = vmatpush1.bf16.msra.mxu0 0
  %1233 = vmatprep.subr.bf16.mxu0 0
  %1234 = vmatpush1.bf16.msra.mxu0 0
  %1235 = vmatprep.subr.bf16.mxu0 0
  %1236 = vmatpush1.bf16.msra.mxu0 0
  %1237 = vmatprep.mubr.bf16.mxu0 0
  %1238 = vmatmul.mubr.bf16.gmra.mrb[0].mxu0 %v1203
  %v1239 = vpop.f32.mrb[0].mxu0
  %v1240 = vadd.f32 %v621, %v1239
  %v1241 = vpop.f32.mrb[0].mxu0
  %v1242 = vadd.f32 %v625, %v1241
  %v1243 = vpop.f32.mrb[0].mxu0
  %v1244 = vpop.f32.mrb[0].mxu0
  %1245 = vdwg.mxu0
  %v1246 = vadd.f32 %v1198, %v1240
  %v1247 = vxor.u32 %v1246, 2147483648
  %v1248 = vmul.f32 %v1247, 1.442695
  %v1249 = vpow.pop %v1248
  %v1250 = vadd.f32 %v1249, 1.0
  %v1251 = vrcp.pop %v1250
  %v1252 = vmul.f32 1.0, %v1251
  %v1253 = vmul.f32 %v1252, %v1242
  %v1255 = vrot.slane %v1198, 2
  %v1257 = vadd.f32 %v1255, %v1253
  %v1258 = vtanh.pop %v1257
  %v1259 = vsub.f32 %v1107, %v1258
  %1261 = vrot.lane.b32.xlu0 %v1259, 64
  %v1262 = vpop.permute.xlu0 %1261
  %v1264 = vmul.f32 %v1252, %v1262
  %1266 = vrot.lane.b32.xlu0 %v1264, 64
  %v1267 = vpop.permute.xlu0 %1266
  %v1269 = vadd.f32 %v1258, %v1267
  %v1270 = vpack.c.bf16 %v1192, %v1192
  %v1272 = vsel %vm668, %v1270, 0
  %1274 = vmatprep.subr.bf16.mxu0 %v773
  %1275 = vmatpush1.bf16.msra.mxu0 %v772
  %1276 = vmatprep.subr.bf16.mxu0 %v775
  %1277 = vmatpush1.bf16.msra.mxu0 %v774
  %1278 = vmatprep.subr.bf16.mxu0 %v777
  %1279 = vmatpush1.bf16.msra.mxu0 %v776
  %1280 = vmatprep.subr.bf16.mxu0 %v779
  %1281 = vmatpush1.bf16.msra.mxu0 %v778
  %1282 = vmatprep.subr.bf16.mxu0 0
  %1283 = vmatpush1.bf16.msra.mxu0 0
  %1284 = vmatprep.subr.bf16.mxu0 0
  %1285 = vmatpush1.bf16.msra.mxu0 0
  %1286 = vmatprep.subr.bf16.mxu0 0
  %1287 = vmatpush1.bf16.msra.mxu0 0
  %1288 = vmatprep.subr.bf16.mxu0 0
  %1289 = vmatpush1.bf16.msra.mxu0 0
  %1290 = vmatprep.subr.bf16.mxu0 0
  %1291 = vmatpush1.bf16.msra.mxu0 0
  %1292 = vmatprep.subr.bf16.mxu0 0
  %1293 = vmatpush1.bf16.msra.mxu0 0
  %1294 = vmatprep.subr.bf16.mxu0 0
  %1295 = vmatpush1.bf16.msra.mxu0 0
  %1296 = vmatprep.subr.bf16.mxu0 0
  %1297 = vmatpush1.bf16.msra.mxu0 0
  %1298 = vmatprep.subr.bf16.mxu0 0
  %1299 = vmatpush1.bf16.msra.mxu0 0
  %1300 = vmatprep.subr.bf16.mxu0 0
  %1301 = vmatpush1.bf16.msra.mxu0 0
  %1302 = vmatprep.subr.bf16.mxu0 0
  %1303 = vmatpush1.bf16.msra.mxu0 0
  %1304 = vmatprep.subr.bf16.mxu0 0
  %1305 = vmatpush1.bf16.msra.mxu0 0
  %1306 = vmatprep.mubr.bf16.mxu0 0
  %1307 = vmatmul.mubr.bf16.gmra.mrb[0].mxu0 %v1272
  %v1308 = vpop.f32.mrb[0].mxu0
  %v1309 = vadd.f32 %v741, %v1308
  %v1310 = vpop.f32.mrb[0].mxu0
  %v1311 = vadd.f32 %v745, %v1310
  %v1312 = vpop.f32.mrb[0].mxu0
  %v1313 = vpop.f32.mrb[0].mxu0
  %1314 = vdwg.mxu0
  %1316 = vrot.lane.b32.xlu0 %v1200, 64
  %v1317 = vpop.permute.xlu0 %1316
  %v1318 = vrot.slane %v1317, 2
  %v1320 = vadd.f32 %v1318, %v1309
  %v1321 = vxor.u32 %v1320, 2147483648
  %v1322 = vmul.f32 %v1321, 1.442695
  %v1323 = vpow.pop %v1322
  %v1324 = vadd.f32 %v1323, 1.0
  %v1325 = vrcp.pop %v1324
  %v1326 = vmul.f32 1.0, %v1325
  %v1327 = vrot.slane %v1200, 4
  %v1331 = vunpack.c.l.s4 1983009808
  %v1332 = vunpack.c.0.s8 %v1331
  %v1333 = vlaneseq
  %v1334 = vshrl.u32 %v1333, 7
  %v1335 = vsub.s32 %v1332, %v1334
  %v1336 = vrot.slane %v1309, %v1335
  %1337 = vrot.lane.b32.xlu0 %v1336, 64
  %v1338 = vpop.permute.xlu0 %1337
  %v1340 = vadd.f32 %v1327, %v1338
  %v1341 = vxor.u32 %v1340, 2147483648
  %v1342 = vmul.f32 %v1341, 1.442695
  %v1343 = vpow.pop %v1342
  %v1344 = vadd.f32 %v1343, 1.0
  %v1345 = vrcp.pop %v1344
  %v1346 = vmul.f32 1.0, %v1345
  %v1347 = vmul.f32 %v1326, %v1311
  %v1348 = vrot.slane %v1317, 4
  %v1350 = vadd.f32 %v1348, %v1347
  %v1351 = vtanh.pop %v1350
  %v1352 = vsub.f32 %v1192, %v1351
  %v1353 = vmul.f32 %v1346, %v1352
  %v1354 = vadd.f32 %v1351, %v1353
  %s1355 = scalar_lea.vmem [#allocation3], 6
  %1356 = vst.msk [vmem:[%s1355] sm:$0x3] %vm869, %v1269
  %s1357 = scalar_lea.vmem [#allocation4], 24
  %1358 = vst.msk [vmem:[%s1357] sm:$0x3] %vm869, %v1354
  %s1359 = scalar_lea.vmem [#allocation2], 24
  %v1360 = vld [vmem:[%s1359] sm:$0x3f]
  %s1361 = scalar_lea.vmem [#allocation2], 66
  %v1362 = vld [vmem:[%s1361] sm:$0x3f]
  %v1363 = vpack.c.bf16 %v1269, %v1269
  %v1365 = vsel %vm668, %v1363, 0
  %1367 = vmatprep.subr.bf16.mxu0 %v653
  %1368 = vmatpush1.bf16.msra.mxu0 %v652
  %1369 = vmatprep.subr.bf16.mxu0 %v655
  %1370 = vmatpush1.bf16.msra.mxu0 %v654
  %1371 = vmatprep.subr.bf16.mxu0 %v657
  %1372 = vmatpush1.bf16.msra.mxu0 %v656
  %1373 = vmatprep.subr.bf16.mxu0 %v659
  %1374 = vmatpush1.bf16.msra.mxu0 %v658
  %1375 = vmatprep.subr.bf16.mxu0 0
  %1376 = vmatpush1.bf16.msra.mxu0 0
  %1377 = vmatprep.subr.bf16.mxu0 0
  %1378 = vmatpush1.bf16.msra.mxu0 0
  %1379 = vmatprep.subr.bf16.mxu0 0
  %1380 = vmatpush1.bf16.msra.mxu0 0
  %1381 = vmatprep.subr.bf16.mxu0 0
  %1382 = vmatpush1.bf16.msra.mxu0 0
  %1383 = vmatprep.subr.bf16.mxu0 0
  %1384 = vmatpush1.bf16.msra.mxu0 0
  %1385 = vmatprep.subr.bf16.mxu0 0
  %1386 = vmatpush1.bf16.msra.mxu0 0
  %1387 = vmatprep.subr.bf16.mxu0 0
  %1388 = vmatpush1.bf16.msra.mxu0 0
  %1389 = vmatprep.subr.bf16.mxu0 0
  %1390 = vmatpush1.bf16.msra.mxu0 0
  %1391 = vmatprep.subr.bf16.mxu0 0
  %1392 = vmatpush1.bf16.msra.mxu0 0
  %1393 = vmatprep.subr.bf16.mxu0 0
  %1394 = vmatpush1.bf16.msra.mxu0 0
  %1395 = vmatprep.subr.bf16.mxu0 0
  %1396 = vmatpush1.bf16.msra.mxu0 0
  %1397 = vmatprep.subr.bf16.mxu0 0
  %1398 = vmatpush1.bf16.msra.mxu0 0
  %1399 = vmatprep.mubr.bf16.mxu0 0
  %1400 = vmatmul.mubr.bf16.gmra.mrb[0].mxu0 %v1365
  %v1401 = vpop.f32.mrb[0].mxu0
  %v1402 = vadd.f32 %v621, %v1401
  %v1403 = vpop.f32.mrb[0].mxu0
  %v1404 = vadd.f32 %v625, %v1403
  %v1405 = vpop.f32.mrb[0].mxu0
  %v1406 = vpop.f32.mrb[0].mxu0
  %1407 = vdwg.mxu0
  %v1408 = vadd.f32 %v1360, %v1402
  %v1409 = vxor.u32 %v1408, 2147483648
  %v1410 = vmul.f32 %v1409, 1.442695
  %v1411 = vpow.pop %v1410
  %v1412 = vadd.f32 %v1411, 1.0
  %v1413 = vrcp.pop %v1412
  %v1414 = vmul.f32 1.0, %v1413
  %v1415 = vmul.f32 %v1414, %v1404
  %v1417 = vrot.slane %v1360, 2
  %v1419 = vadd.f32 %v1417, %v1415
  %v1420 = vtanh.pop %v1419
  %v1421 = vsub.f32 %v1269, %v1420
  %1423 = vrot.lane.b32.xlu0 %v1421, 64
  %v1424 = vpop.permute.xlu0 %1423
  %v1426 = vmul.f32 %v1414, %v1424
  %1428 = vrot.lane.b32.xlu0 %v1426, 64
  %v1429 = vpop.permute.xlu0 %1428
  %v1431 = vadd.f32 %v1420, %v1429
  %v1432 = vpack.c.bf16 %v1354, %v1354
  %v1434 = vsel %vm668, %v1432, 0
  %1436 = vmatprep.subr.bf16.mxu0 %v773
  %1437 = vmatpush1.bf16.msra.mxu0 %v772
  %1438 = vmatprep.subr.bf16.mxu0 %v775
  %1439 = vmatpush1.bf16.msra.mxu0 %v774
  %1440 = vmatprep.subr.bf16.mxu0 %v777
  %1441 = vmatpush1.bf16.msra.mxu0 %v776
  %1442 = vmatprep.subr.bf16.mxu0 %v779
  %1443 = vmatpush1.bf16.msra.mxu0 %v778
  %1444 = vmatprep.subr.bf16.mxu0 0
  %1445 = vmatpush1.bf16.msra.mxu0 0
  %1446 = vmatprep.subr.bf16.mxu0 0
  %1447 = vmatpush1.bf16.msra.mxu0 0
  %1448 = vmatprep.subr.bf16.mxu0 0
  %1449 = vmatpush1.bf16.msra.mxu0 0
  %1450 = vmatprep.subr.bf16.mxu0 0
  %1451 = vmatpush1.bf16.msra.mxu0 0
  %1452 = vmatprep.subr.bf16.mxu0 0
  %1453 = vmatpush1.bf16.msra.mxu0 0
  %1454 = vmatprep.subr.bf16.mxu0 0
  %1455 = vmatpush1.bf16.msra.mxu0 0
  %1456 = vmatprep.subr.bf16.mxu0 0
  %1457 = vmatpush1.bf16.msra.mxu0 0
  %1458 = vmatprep.subr.bf16.mxu0 0
  %1459 = vmatpush1.bf16.msra.mxu0 0
  %1460 = vmatprep.subr.bf16.mxu0 0
  %1461 = vmatpush1.bf16.msra.mxu0 0
  %1462 = vmatprep.subr.bf16.mxu0 0
  %1463 = vmatpush1.bf16.msra.mxu0 0
  %1464 = vmatprep.subr.bf16.mxu0 0
  %1465 = vmatpush1.bf16.msra.mxu0 0
  %1466 = vmatprep.subr.bf16.mxu0 0
  %1467 = vmatpush1.bf16.msra.mxu0 0
  %1468 = vmatprep.mubr.bf16.mxu0 0
  %1469 = vmatmul.mubr.bf16.gmra.mrb[0].mxu0 %v1434
  %v1470 = vpop.f32.mrb[0].mxu0
  %v1471 = vadd.f32 %v741, %v1470
  %v1472 = vpop.f32.mrb[0].mxu0
  %v1473 = vadd.f32 %v745, %v1472
  %v1474 = vpop.f32.mrb[0].mxu0
  %v1475 = vpop.f32.mrb[0].mxu0
  %1476 = vdwg.mxu0
  %1478 = vrot.lane.b32.xlu0 %v1362, 64
  %v1479 = vpop.permute.xlu0 %1478
  %v1480 = vrot.slane %v1479, 2
  %v1482 = vadd.f32 %v1480, %v1471
  %v1483 = vxor.u32 %v1482, 2147483648
  %v1484 = vmul.f32 %v1483, 1.442695
  %v1485 = vpow.pop %v1484
  %v1486 = vadd.f32 %v1485, 1.0
  %v1487 = vrcp.pop %v1486
  %v1488 = vmul.f32 1.0, %v1487
  %v1489 = vrot.slane %v1362, 4
  %v1493 = vunpack.c.l.s4 1983009808
  %v1494 = vunpack.c.0.s8 %v1493
  %v1495 = vlaneseq
  %v1496 = vshrl.u32 %v1495, 7
  %v1497 = vsub.s32 %v1494, %v1496
  %v1498 = vrot.slane %v1471, %v1497
  %1499 = vrot.lane.b32.xlu0 %v1498, 64
  %v1500 = vpop.permute.xlu0 %1499
  %v1502 = vadd.f32 %v1489, %v1500
  %v1503 = vxor.u32 %v1502, 2147483648
  %v1504 = vmul.f32 %v1503, 1.442695
  %v1505 = vpow.pop %v1504
  %v1506 = vadd.f32 %v1505, 1.0
  %v1507 = vrcp.pop %v1506
  %v1508 = vmul.f32 1.0, %v1507
  %v1509 = vmul.f32 %v1488, %v1473
  %v1510 = vrot.slane %v1479, 4
  %v1512 = vadd.f32 %v1510, %v1509
  %v1513 = vtanh.pop %v1512
  %v1514 = vsub.f32 %v1354, %v1513
  %v1515 = vmul.f32 %v1508, %v1514
  %v1516 = vadd.f32 %v1513, %v1515
  %s1517 = scalar_lea.vmem [#allocation3], 8
  %1518 = vst.msk [vmem:[%s1517] sm:$0x3] %vm869, %v1431
  %s1519 = scalar_lea.vmem [#allocation4], 22
  %1520 = vst.msk [vmem:[%s1519] sm:$0x3] %vm869, %v1516
  %s1521 = scalar_lea.vmem [#allocation2], 30
  %v1522 = vld [vmem:[%s1521] sm:$0x3f]
  %s1523 = scalar_lea.vmem [#allocation2], 60
  %v1524 = vld [vmem:[%s1523] sm:$0x3f]
  %v1525 = vpack.c.bf16 %v1431, %v1431
  %v1527 = vsel %vm668, %v1525, 0
  %1529 = vmatprep.subr.bf16.mxu0 %v653
  %1530 = vmatpush1.bf16.msra.mxu0 %v652
  %1531 = vmatprep.subr.bf16.mxu0 %v655
  %1532 = vmatpush1.bf16.msra.mxu0 %v654
  %1533 = vmatprep.subr.bf16.mxu0 %v657
  %1534 = vmatpush1.bf16.msra.mxu0 %v656
  %1535 = vmatprep.subr.bf16.mxu0 %v659
  %1536 = vmatpush1.bf16.msra.mxu0 %v658
  %1537 = vmatprep.subr.bf16.mxu0 0
  %1538 = vmatpush1.bf16.msra.mxu0 0
  %1539 = vmatprep.subr.bf16.mxu0 0
  %1540 = vmatpush1.bf16.msra.mxu0 0
  %1541 = vmatprep.subr.bf16.mxu0 0
  %1542 = vmatpush1.bf16.msra.mxu0 0
  %1543 = vmatprep.subr.bf16.mxu0 0
  %1544 = vmatpush1.bf16.msra.mxu0 0
  %1545 = vmatprep.subr.bf16.mxu0 0
  %1546 = vmatpush1.bf16.msra.mxu0 0
  %1547 = vmatprep.subr.bf16.mxu0 0
  %1548 = vmatpush1.bf16.msra.mxu0 0
  %1549 = vmatprep.subr.bf16.mxu0 0
  %1550 = vmatpush1.bf16.msra.mxu0 0
  %1551 = vmatprep.subr.bf16.mxu0 0
  %1552 = vmatpush1.bf16.msra.mxu0 0
  %1553 = vmatprep.subr.bf16.mxu0 0
  %1554 = vmatpush1.bf16.msra.mxu0 0
  %1555 = vmatprep.subr.bf16.mxu0 0
  %1556 = vmatpush1.bf16.msra.mxu0 0
  %1557 = vmatprep.subr.bf16.mxu0 0
  %1558 = vmatpush1.bf16.msra.mxu0 0
  %1559 = vmatprep.subr.bf16.mxu0 0
  %1560 = vmatpush1.bf16.msra.mxu0 0
  %1561 = vmatprep.mubr.bf16.mxu0 0
  %1562 = vmatmul.mubr.bf16.gmra.mrb[0].mxu0 %v1527
  %v1563 = vpop.f32.mrb[0].mxu0
  %v1564 = vadd.f32 %v621, %v1563
  %v1565 = vpop.f32.mrb[0].mxu0
  %v1566 = vadd.f32 %v625, %v1565
  %v1567 = vpop.f32.mrb[0].mxu0
  %v1568 = vpop.f32.mrb[0].mxu0
  %1569 = vdwg.mxu0
  %v1570 = vadd.f32 %v1522, %v1564
  %v1571 = vxor.u32 %v1570, 2147483648
  %v1572 = vmul.f32 %v1571, 1.442695
  %v1573 = vpow.pop %v1572
  %v1574 = vadd.f32 %v1573, 1.0
  %v1575 = vrcp.pop %v1574
  %v1576 = vmul.f32 1.0, %v1575
  %v1577 = vmul.f32 %v1576, %v1566
  %v1579 = vrot.slane %v1522, 2
  %v1581 = vadd.f32 %v1579, %v1577
  %v1582 = vtanh.pop %v1581
  %v1583 = vsub.f32 %v1431, %v1582
  %1585 = vrot.lane.b32.xlu0 %v1583, 64
  %v1586 = vpop.permute.xlu0 %1585
  %v1588 = vmul.f32 %v1576, %v1586
  %1590 = vrot.lane.b32.xlu0 %v1588, 64
  %v1591 = vpop.permute.xlu0 %1590
  %v1593 = vadd.f32 %v1582, %v1591
  %v1594 = vpack.c.bf16 %v1516, %v1516
  %v1596 = vsel %vm668, %v1594, 0
  %1598 = vmatprep.subr.bf16.mxu0 %v773
  %1599 = vmatpush1.bf16.msra.mxu0 %v772
  %1600 = vmatprep.subr.bf16.mxu0 %v775
  %1601 = vmatpush1.bf16.msra.mxu0 %v774
  %1602 = vmatprep.subr.bf16.mxu0 %v777
  %1603 = vmatpush1.bf16.msra.mxu0 %v776
  %1604 = vmatprep.subr.bf16.mxu0 %v779
  %1605 = vmatpush1.bf16.msra.mxu0 %v778
  %1606 = vmatprep.subr.bf16.mxu0 0
  %1607 = vmatpush1.bf16.msra.mxu0 0
  %1608 = vmatprep.subr.bf16.mxu0 0
  %1609 = vmatpush1.bf16.msra.mxu0 0
  %1610 = vmatprep.subr.bf16.mxu0 0
  %1611 = vmatpush1.bf16.msra.mxu0 0
  %1612 = vmatprep.subr.bf16.mxu0 0
  %1613 = vmatpush1.bf16.msra.mxu0 0
  %1614 = vmatprep.subr.bf16.mxu0 0
  %1615 = vmatpush1.bf16.msra.mxu0 0
  %1616 = vmatprep.subr.bf16.mxu0 0
  %1617 = vmatpush1.bf16.msra.mxu0 0
  %1618 = vmatprep.subr.bf16.mxu0 0
  %1619 = vmatpush1.bf16.msra.mxu0 0
  %1620 = vmatprep.subr.bf16.mxu0 0
  %1621 = vmatpush1.bf16.msra.mxu0 0
  %1622 = vmatprep.subr.bf16.mxu0 0
  %1623 = vmatpush1.bf16.msra.mxu0 0
  %1624 = vmatprep.subr.bf16.mxu0 0
  %1625 = vmatpush1.bf16.msra.mxu0 0
  %1626 = vmatprep.subr.bf16.mxu0 0
  %1627 = vmatpush1.bf16.msra.mxu0 0
  %1628 = vmatprep.subr.bf16.mxu0 0
  %1629 = vmatpush1.bf16.msra.mxu0 0
  %1630 = vmatprep.mubr.bf16.mxu0 0
  %1631 = vmatmul.mubr.bf16.gmra.mrb[0].mxu0 %v1596
  %v1632 = vpop.f32.mrb[0].mxu0
  %v1633 = vadd.f32 %v741, %v1632
  %v1634 = vpop.f32.mrb[0].mxu0
  %v1635 = vadd.f32 %v745, %v1634
  %v1636 = vpop.f32.mrb[0].mxu0
  %v1637 = vpop.f32.mrb[0].mxu0
  %1638 = vdwg.mxu0
  %1640 = vrot.lane.b32.xlu0 %v1524, 64
  %v1641 = vpop.permute.xlu0 %1640
  %v1642 = vrot.slane %v1641, 2
  %v1644 = vadd.f32 %v1642, %v1633
  %v1645 = vxor.u32 %v1644, 2147483648
  %v1646 = vmul.f32 %v1645, 1.442695
  %v1647 = vpow.pop %v1646
  %v1648 = vadd.f32 %v1647, 1.0
  %v1649 = vrcp.pop %v1648
  %v1650 = vmul.f32 1.0, %v1649
  %v1651 = vrot.slane %v1524, 4
  %v1655 = vunpack.c.l.s4 1983009808
  %v1656 = vunpack.c.0.s8 %v1655
  %v1657 = vlaneseq
  %v1658 = vshrl.u32 %v1657, 7
  %v1659 = vsub.s32 %v1656, %v1658
  %v1660 = vrot.slane %v1633, %v1659
  %1661 = vrot.lane.b32.xlu0 %v1660, 64
  %v1662 = vpop.permute.xlu0 %1661
  %v1664 = vadd.f32 %v1651, %v1662
  %v1665 = vxor.u32 %v1664, 2147483648
  %v1666 = vmul.f32 %v1665, 1.442695
  %v1667 = vpow.pop %v1666
  %v1668 = vadd.f32 %v1667, 1.0
  %v1669 = vrcp.pop %v1668
  %v1670 = vmul.f32 1.0, %v1669
  %v1671 = vmul.f32 %v1650, %v1635
  %v1672 = vrot.slane %v1641, 4
  %v1674 = vadd.f32 %v1672, %v1671
  %v1675 = vtanh.pop %v1674
  %v1676 = vsub.f32 %v1516, %v1675
  %v1677 = vmul.f32 %v1670, %v1676
  %v1678 = vadd.f32 %v1675, %v1677
  %s1679 = scalar_lea.vmem [#allocation3], 10
  %1680 = vst.msk [vmem:[%s1679] sm:$0x3] %vm869, %v1593
  %s1681 = scalar_lea.vmem [#allocation4], 20
  %1682 = vst.msk [vmem:[%s1681] sm:$0x3] %vm869, %v1678
  %s1683 = scalar_lea.vmem [#allocation2], 36
  %v1684 = vld [vmem:[%s1683] sm:$0x3f]
  %s1685 = scalar_lea.vmem [#allocation2], 54
  %v1686 = vld [vmem:[%s1685] sm:$0x3f]
  %v1687 = vpack.c.bf16 %v1593, %v1593
  %v1689 = vsel %vm668, %v1687, 0
  %1691 = vmatprep.subr.bf16.mxu0 %v653
  %1692 = vmatpush1.bf16.msra.mxu0 %v652
  %1693 = vmatprep.subr.bf16.mxu0 %v655
  %1694 = vmatpush1.bf16.msra.mxu0 %v654
  %1695 = vmatprep.subr.bf16.mxu0 %v657
  %1696 = vmatpush1.bf16.msra.mxu0 %v656
  %1697 = vmatprep.subr.bf16.mxu0 %v659
  %1698 = vmatpush1.bf16.msra.mxu0 %v658
  %1699 = vmatprep.subr.bf16.mxu0 0
  %1700 = vmatpush1.bf16.msra.mxu0 0
  %1701 = vmatprep.subr.bf16.mxu0 0
  %1702 = vmatpush1.bf16.msra.mxu0 0
  %1703 = vmatprep.subr.bf16.mxu0 0
  %1704 = vmatpush1.bf16.msra.mxu0 0
  %1705 = vmatprep.subr.bf16.mxu0 0
  %1706 = vmatpush1.bf16.msra.mxu0 0
  %1707 = vmatprep.subr.bf16.mxu0 0
  %1708 = vmatpush1.bf16.msra.mxu0 0
  %1709 = vmatprep.subr.bf16.mxu0 0
  %1710 = vmatpush1.bf16.msra.mxu0 0
  %1711 = vmatprep.subr.bf16.mxu0 0
  %1712 = vmatpush1.bf16.msra.mxu0 0
  %1713 = vmatprep.subr.bf16.mxu0 0
  %1714 = vmatpush1.bf16.msra.mxu0 0
  %1715 = vmatprep.subr.bf16.mxu0 0
  %1716 = vmatpush1.bf16.msra.mxu0 0
  %1717 = vmatprep.subr.bf16.mxu0 0
  %1718 = vmatpush1.bf16.msra.mxu0 0
  %1719 = vmatprep.subr.bf16.mxu0 0
  %1720 = vmatpush1.bf16.msra.mxu0 0
  %1721 = vmatprep.subr.bf16.mxu0 0
  %1722 = vmatpush1.bf16.msra.mxu0 0
  %1723 = vmatprep.mubr.bf16.mxu0 0
  %1724 = vmatmul.mubr.bf16.gmra.mrb[0].mxu0 %v1689
  %v1725 = vpop.f32.mrb[0].mxu0
  %v1726 = vadd.f32 %v621, %v1725
  %v1727 = vpop.f32.mrb[0].mxu0
  %v1728 = vadd.f32 %v625, %v1727
  %v1729 = vpop.f32.mrb[0].mxu0
  %v1730 = vpop.f32.mrb[0].mxu0
  %1731 = vdwg.mxu0
  %v1732 = vadd.f32 %v1684, %v1726
  %v1733 = vxor.u32 %v1732, 2147483648
  %v1734 = vmul.f32 %v1733, 1.442695
  %v1735 = vpow.pop %v1734
  %v1736 = vadd.f32 %v1735, 1.0
  %v1737 = vrcp.pop %v1736
  %v1738 = vmul.f32 1.0, %v1737
  %v1739 = vmul.f32 %v1738, %v1728
  %v1741 = vrot.slane %v1684, 2
  %v1743 = vadd.f32 %v1741, %v1739
  %v1744 = vtanh.pop %v1743
  %v1745 = vsub.f32 %v1593, %v1744
  %1747 = vrot.lane.b32.xlu0 %v1745, 64
  %v1748 = vpop.permute.xlu0 %1747
  %v1750 = vmul.f32 %v1738, %v1748
  %1752 = vrot.lane.b32.xlu0 %v1750, 64
  %v1753 = vpop.permute.xlu0 %1752
  %v1755 = vadd.f32 %v1744, %v1753
  %v1756 = vpack.c.bf16 %v1678, %v1678
  %v1758 = vsel %vm668, %v1756, 0
  %1760 = vmatprep.subr.bf16.mxu0 %v773
  %1761 = vmatpush1.bf16.msra.mxu0 %v772
  %1762 = vmatprep.subr.bf16.mxu0 %v775
  %1763 = vmatpush1.bf16.msra.mxu0 %v774
  %1764 = vmatprep.subr.bf16.mxu0 %v777
  %1765 = vmatpush1.bf16.msra.mxu0 %v776
  %1766 = vmatprep.subr.bf16.mxu0 %v779
  %1767 = vmatpush1.bf16.msra.mxu0 %v778
  %1768 = vmatprep.subr.bf16.mxu0 0
  %1769 = vmatpush1.bf16.msra.mxu0 0
  %1770 = vmatprep.subr.bf16.mxu0 0
  %1771 = vmatpush1.bf16.msra.mxu0 0
  %1772 = vmatprep.subr.bf16.mxu0 0
  %1773 = vmatpush1.bf16.msra.mxu0 0
  %1774 = vmatprep.subr.bf16.mxu0 0
  %1775 = vmatpush1.bf16.msra.mxu0 0
  %1776 = vmatprep.subr.bf16.mxu0 0
  %1777 = vmatpush1.bf16.msra.mxu0 0
  %1778 = vmatprep.subr.bf16.mxu0 0
  %1779 = vmatpush1.bf16.msra.mxu0 0
  %1780 = vmatprep.subr.bf16.mxu0 0
  %1781 = vmatpush1.bf16.msra.mxu0 0
  %1782 = vmatprep.subr.bf16.mxu0 0
  %1783 = vmatpush1.bf16.msra.mxu0 0
  %1784 = vmatprep.subr.bf16.mxu0 0
  %1785 = vmatpush1.bf16.msra.mxu0 0
  %1786 = vmatprep.subr.bf16.mxu0 0
  %1787 = vmatpush1.bf16.msra.mxu0 0
  %1788 = vmatprep.subr.bf16.mxu0 0
  %1789 = vmatpush1.bf16.msra.mxu0 0
  %1790 = vmatprep.subr.bf16.mxu0 0
  %1791 = vmatpush1.bf16.msra.mxu0 0
  %1792 = vmatprep.mubr.bf16.mxu0 0
  %1793 = vmatmul.mubr.bf16.gmra.mrb[0].mxu0 %v1758
  %v1794 = vpop.f32.mrb[0].mxu0
  %v1795 = vadd.f32 %v741, %v1794
  %v1796 = vpop.f32.mrb[0].mxu0
  %v1797 = vadd.f32 %v745, %v1796
  %v1798 = vpop.f32.mrb[0].mxu0
  %v1799 = vpop.f32.mrb[0].mxu0
  %1800 = vdwg.mxu0
  %1802 = vrot.lane.b32.xlu0 %v1686, 64
  %v1803 = vpop.permute.xlu0 %1802
  %v1804 = vrot.slane %v1803, 2
  %v1806 = vadd.f32 %v1804, %v1795
  %v1807 = vxor.u32 %v1806, 2147483648
  %v1808 = vmul.f32 %v1807, 1.442695
  %v1809 = vpow.pop %v1808
  %v1810 = vadd.f32 %v1809, 1.0
  %v1811 = vrcp.pop %v1810
  %v1812 = vmul.f32 1.0, %v1811
  %v1813 = vrot.slane %v1686, 4
  %v1817 = vunpack.c.l.s4 1983009808
  %v1818 = vunpack.c.0.s8 %v1817
  %v1819 = vlaneseq
  %v1820 = vshrl.u32 %v1819, 7
  %v1821 = vsub.s32 %v1818, %v1820
  %v1822 = vrot.slane %v1795, %v1821
  %1823 = vrot.lane.b32.xlu0 %v1822, 64
  %v1824 = vpop.permute.xlu0 %1823
  %v1826 = vadd.f32 %v1813, %v1824
  %v1827 = vxor.u32 %v1826, 2147483648
  %v1828 = vmul.f32 %v1827, 1.442695
  %v1829 = vpow.pop %v1828
  %v1830 = vadd.f32 %v1829, 1.0
  %v1831 = vrcp.pop %v1830
  %v1832 = vmul.f32 1.0, %v1831
  %v1833 = vmul.f32 %v1812, %v1797
  %v1834 = vrot.slane %v1803, 4
  %v1836 = vadd.f32 %v1834, %v1833
  %v1837 = vtanh.pop %v1836
  %v1838 = vsub.f32 %v1678, %v1837
  %v1839 = vmul.f32 %v1832, %v1838
  %v1840 = vadd.f32 %v1837, %v1839
  %s1841 = scalar_lea.vmem [#allocation3], 12
  %1842 = vst.msk [vmem:[%s1841] sm:$0x3] %vm869, %v1755
  %s1843 = scalar_lea.vmem [#allocation4], 18
  %1844 = vst.msk [vmem:[%s1843] sm:$0x3] %vm869, %v1840
  %s1845 = scalar_lea.vmem [#allocation2], 42
  %v1846 = vld [vmem:[%s1845] sm:$0x3f]
  %s1847 = scalar_lea.vmem [#allocation2], 48
  %v1848 = vld [vmem:[%s1847] sm:$0x3f]
  %v1849 = vpack.c.bf16 %v1755, %v1755
  %v1851 = vsel %vm668, %v1849, 0
  %1853 = vmatprep.subr.bf16.mxu0 %v653
  %1854 = vmatpush1.bf16.msra.mxu0 %v652
  %1855 = vmatprep.subr.bf16.mxu0 %v655
  %1856 = vmatpush1.bf16.msra.mxu0 %v654
  %1857 = vmatprep.subr.bf16.mxu0 %v657
  %1858 = vmatpush1.bf16.msra.mxu0 %v656
  %1859 = vmatprep.subr.bf16.mxu0 %v659
  %1860 = vmatpush1.bf16.msra.mxu0 %v658
  %1861 = vmatprep.subr.bf16.mxu0 0
  %1862 = vmatpush1.bf16.msra.mxu0 0
  %1863 = vmatprep.subr.bf16.mxu0 0
  %1864 = vmatpush1.bf16.msra.mxu0 0
  %1865 = vmatprep.subr.bf16.mxu0 0
  %1866 = vmatpush1.bf16.msra.mxu0 0
  %1867 = vmatprep.subr.bf16.mxu0 0
  %1868 = vmatpush1.bf16.msra.mxu0 0
  %1869 = vmatprep.subr.bf16.mxu0 0
  %1870 = vmatpush1.bf16.msra.mxu0 0
  %1871 = vmatprep.subr.bf16.mxu0 0
  %1872 = vmatpush1.bf16.msra.mxu0 0
  %1873 = vmatprep.subr.bf16.mxu0 0
  %1874 = vmatpush1.bf16.msra.mxu0 0
  %1875 = vmatprep.subr.bf16.mxu0 0
  %1876 = vmatpush1.bf16.msra.mxu0 0
  %1877 = vmatprep.subr.bf16.mxu0 0
  %1878 = vmatpush1.bf16.msra.mxu0 0
  %1879 = vmatprep.subr.bf16.mxu0 0
  %1880 = vmatpush1.bf16.msra.mxu0 0
  %1881 = vmatprep.subr.bf16.mxu0 0
  %1882 = vmatpush1.bf16.msra.mxu0 0
  %1883 = vmatprep.subr.bf16.mxu0 0
  %1884 = vmatpush1.bf16.msra.mxu0 0
  %1885 = vmatprep.mubr.bf16.mxu0 0
  %1886 = vmatmul.mubr.bf16.gmra.mrb[0].mxu0 %v1851
  %v1887 = vpop.f32.mrb[0].mxu0
  %v1888 = vadd.f32 %v621, %v1887
  %v1889 = vpop.f32.mrb[0].mxu0
  %v1890 = vadd.f32 %v625, %v1889
  %v1891 = vpop.f32.mrb[0].mxu0
  %v1892 = vpop.f32.mrb[0].mxu0
  %1893 = vdwg.mxu0
  %v1894 = vadd.f32 %v1846, %v1888
  %v1895 = vxor.u32 %v1894, 2147483648
  %v1896 = vmul.f32 %v1895, 1.442695
  %v1897 = vpow.pop %v1896
  %v1898 = vadd.f32 %v1897, 1.0
  %v1899 = vrcp.pop %v1898
  %v1900 = vmul.f32 1.0, %v1899
  %v1901 = vmul.f32 %v1900, %v1890
  %v1903 = vrot.slane %v1846, 2
  %v1905 = vadd.f32 %v1903, %v1901
  %v1906 = vtanh.pop %v1905
  %v1907 = vsub.f32 %v1755, %v1906
  %1909 = vrot.lane.b32.xlu0 %v1907, 64
  %v1910 = vpop.permute.xlu0 %1909
  %v1912 = vmul.f32 %v1900, %v1910
  %1914 = vrot.lane.b32.xlu0 %v1912, 64
  %v1915 = vpop.permute.xlu0 %1914
  %v1917 = vadd.f32 %v1906, %v1915
  %v1918 = vpack.c.bf16 %v1840, %v1840
  %v1920 = vsel %vm668, %v1918, 0
  %1922 = vmatprep.subr.bf16.mxu0 %v773
  %1923 = vmatpush1.bf16.msra.mxu0 %v772
  %1924 = vmatprep.subr.bf16.mxu0 %v775
  %1925 = vmatpush1.bf16.msra.mxu0 %v774
  %1926 = vmatprep.subr.bf16.mxu0 %v777
  %1927 = vmatpush1.bf16.msra.mxu0 %v776
  %1928 = vmatprep.subr.bf16.mxu0 %v779
  %1929 = vmatpush1.bf16.msra.mxu0 %v778
  %1930 = vmatprep.subr.bf16.mxu0 0
  %1931 = vmatpush1.bf16.msra.mxu0 0
  %1932 = vmatprep.subr.bf16.mxu0 0
  %1933 = vmatpush1.bf16.msra.mxu0 0
  %1934 = vmatprep.subr.bf16.mxu0 0
  %1935 = vmatpush1.bf16.msra.mxu0 0
  %1936 = vmatprep.subr.bf16.mxu0 0
  %1937 = vmatpush1.bf16.msra.mxu0 0
  %1938 = vmatprep.subr.bf16.mxu0 0
  %1939 = vmatpush1.bf16.msra.mxu0 0
  %1940 = vmatprep.subr.bf16.mxu0 0
  %1941 = vmatpush1.bf16.msra.mxu0 0
  %1942 = vmatprep.subr.bf16.mxu0 0
  %1943 = vmatpush1.bf16.msra.mxu0 0
  %1944 = vmatprep.subr.bf16.mxu0 0
  %1945 = vmatpush1.bf16.msra.mxu0 0
  %1946 = vmatprep.subr.bf16.mxu0 0
  %1947 = vmatpush1.bf16.msra.mxu0 0
  %1948 = vmatprep.subr.bf16.mxu0 0
  %1949 = vmatpush1.bf16.msra.mxu0 0
  %1950 = vmatprep.subr.bf16.mxu0 0
  %1951 = vmatpush1.bf16.msra.mxu0 0
  %1952 = vmatprep.subr.bf16.mxu0 0
  %1953 = vmatpush1.bf16.msra.mxu0 0
  %1954 = vmatprep.mubr.bf16.mxu0 0
  %1955 = vmatmul.mubr.bf16.gmra.mrb[0].mxu0 %v1920
  %v1956 = vpop.f32.mrb[0].mxu0
  %v1957 = vadd.f32 %v741, %v1956
  %v1958 = vpop.f32.mrb[0].mxu0
  %v1959 = vadd.f32 %v745, %v1958
  %v1960 = vpop.f32.mrb[0].mxu0
  %v1961 = vpop.f32.mrb[0].mxu0
  %1962 = vdwg.mxu0
  %1964 = vrot.lane.b32.xlu0 %v1848, 64
  %v1965 = vpop.permute.xlu0 %1964
  %v1966 = vrot.slane %v1965, 2
  %v1968 = vadd.f32 %v1966, %v1957
  %v1969 = vxor.u32 %v1968, 2147483648
  %v1970 = vmul.f32 %v1969, 1.442695
  %v1971 = vpow.pop %v1970
  %v1972 = vadd.f32 %v1971, 1.0
  %v1973 = vrcp.pop %v1972
  %v1974 = vmul.f32 1.0, %v1973
  %v1975 = vrot.slane %v1848, 4
  %v1979 = vunpack.c.l.s4 1983009808
  %v1980 = vunpack.c.0.s8 %v1979
  %v1981 = vlaneseq
  %v1982 = vshrl.u32 %v1981, 7
  %v1983 = vsub.s32 %v1980, %v1982
  %v1984 = vrot.slane %v1957, %v1983
  %1985 = vrot.lane.b32.xlu0 %v1984, 64
  %v1986 = vpop.permute.xlu0 %1985
  %v1988 = vadd.f32 %v1975, %v1986
  %v1989 = vxor.u32 %v1988, 2147483648
  %v1990 = vmul.f32 %v1989, 1.442695
  %v1991 = vpow.pop %v1990
  %v1992 = vadd.f32 %v1991, 1.0
  %v1993 = vrcp.pop %v1992
  %v1994 = vmul.f32 1.0, %v1993
  %v1995 = vmul.f32 %v1974, %v1959
  %v1996 = vrot.slane %v1965, 4
  %v1998 = vadd.f32 %v1996, %v1995
  %v1999 = vtanh.pop %v1998
  %v2000 = vsub.f32 %v1840, %v1999
  %v2001 = vmul.f32 %v1994, %v2000
  %v2002 = vadd.f32 %v1999, %v2001
  %s2003 = scalar_lea.vmem [#allocation3], 14
  %2004 = vst.msk [vmem:[%s2003] sm:$0x3] %vm869, %v1917
  %s2005 = scalar_lea.vmem [#allocation4], 16
  %2006 = vst.msk [vmem:[%s2005] sm:$0x3] %vm869, %v2002
  %v2007 = vld [vmem:[%s1847] sm:$0x3f]
  %v2008 = vld [vmem:[%s1845] sm:$0x3f]
  %v2009 = vpack.c.bf16 %v1917, %v1917
  %v2011 = vsel %vm668, %v2009, 0
  %2013 = vmatprep.subr.bf16.mxu0 %v653
  %2014 = vmatpush1.bf16.msra.mxu0 %v652
  %2015 = vmatprep.subr.bf16.mxu0 %v655
  %2016 = vmatpush1.bf16.msra.mxu0 %v654
  %2017 = vmatprep.subr.bf16.mxu0 %v657
  %2018 = vmatpush1.bf16.msra.mxu0 %v656
  %2019 = vmatprep.subr.bf16.mxu0 %v659
  %2020 = vmatpush1.bf16.msra.mxu0 %v658
  %2021 = vmatprep.subr.bf16.mxu0 0
  %2022 = vmatpush1.bf16.msra.mxu0 0
  %2023 = vmatprep.subr.bf16.mxu0 0
  %2024 = vmatpush1.bf16.msra.mxu0 0
  %2025 = vmatprep.subr.bf16.mxu0 0
  %2026 = vmatpush1.bf16.msra.mxu0 0
  %2027 = vmatprep.subr.bf16.mxu0 0
  %2028 = vmatpush1.bf16.msra.mxu0 0
  %2029 = vmatprep.subr.bf16.mxu0 0
  %2030 = vmatpush1.bf16.msra.mxu0 0
  %2031 = vmatprep.subr.bf16.mxu0 0
  %2032 = vmatpush1.bf16.msra.mxu0 0
  %2033 = vmatprep.subr.bf16.mxu0 0
  %2034 = vmatpush1.bf16.msra.mxu0 0
  %2035 = vmatprep.subr.bf16.mxu0 0
  %2036 = vmatpush1.bf16.msra.mxu0 0
  %2037 = vmatprep.subr.bf16.mxu0 0
  %2038 = vmatpush1.bf16.msra.mxu0 0
  %2039 = vmatprep.subr.bf16.mxu0 0
  %2040 = vmatpush1.bf16.msra.mxu0 0
  %2041 = vmatprep.subr.bf16.mxu0 0
  %2042 = vmatpush1.bf16.msra.mxu0 0
  %2043 = vmatprep.subr.bf16.mxu0 0
  %2044 = vmatpush1.bf16.msra.mxu0 0
  %2045 = vmatprep.mubr.bf16.mxu0 0
  %2046 = vmatmul.mubr.bf16.gmra.mrb[0].mxu0 %v2011
  %v2047 = vpop.f32.mrb[0].mxu0
  %v2048 = vadd.f32 %v621, %v2047
  %v2049 = vpop.f32.mrb[0].mxu0
  %v2050 = vadd.f32 %v625, %v2049
  %v2051 = vpop.f32.mrb[0].mxu0
  %v2052 = vpop.f32.mrb[0].mxu0
  %2053 = vdwg.mxu0
  %v2054 = vadd.f32 %v2007, %v2048
  %v2055 = vxor.u32 %v2054, 2147483648
  %v2056 = vmul.f32 %v2055, 1.442695
  %v2057 = vpow.pop %v2056
  %v2058 = vadd.f32 %v2057, 1.0
  %v2059 = vrcp.pop %v2058
  %v2060 = vmul.f32 1.0, %v2059
  %v2061 = vmul.f32 %v2060, %v2050
  %v2063 = vrot.slane %v2007, 2
  %v2065 = vadd.f32 %v2063, %v2061
  %v2066 = vtanh.pop %v2065
  %v2067 = vsub.f32 %v1917, %v2066
  %2069 = vrot.lane.b32.xlu0 %v2067, 64
  %v2070 = vpop.permute.xlu0 %2069
  %v2072 = vmul.f32 %v2060, %v2070
  %2074 = vrot.lane.b32.xlu0 %v2072, 64
  %v2075 = vpop.permute.xlu0 %2074
  %v2077 = vadd.f32 %v2066, %v2075
  %v2078 = vpack.c.bf16 %v2002, %v2002
  %v2080 = vsel %vm668, %v2078, 0
  %2082 = vmatprep.subr.bf16.mxu0 %v773
  %2083 = vmatpush1.bf16.msra.mxu0 %v772
  %2084 = vmatprep.subr.bf16.mxu0 %v775
  %2085 = vmatpush1.bf16.msra.mxu0 %v774
  %2086 = vmatprep.subr.bf16.mxu0 %v777
  %2087 = vmatpush1.bf16.msra.mxu0 %v776
  %2088 = vmatprep.subr.bf16.mxu0 %v779
  %2089 = vmatpush1.bf16.msra.mxu0 %v778
  %2090 = vmatprep.subr.bf16.mxu0 0
  %2091 = vmatpush1.bf16.msra.mxu0 0
  %2092 = vmatprep.subr.bf16.mxu0 0
  %2093 = vmatpush1.bf16.msra.mxu0 0
  %2094 = vmatprep.subr.bf16.mxu0 0
  %2095 = vmatpush1.bf16.msra.mxu0 0
  %2096 = vmatprep.subr.bf16.mxu0 0
  %2097 = vmatpush1.bf16.msra.mxu0 0
  %2098 = vmatprep.subr.bf16.mxu0 0
  %2099 = vmatpush1.bf16.msra.mxu0 0
  %2100 = vmatprep.subr.bf16.mxu0 0
  %2101 = vmatpush1.bf16.msra.mxu0 0
  %2102 = vmatprep.subr.bf16.mxu0 0
  %2103 = vmatpush1.bf16.msra.mxu0 0
  %2104 = vmatprep.subr.bf16.mxu0 0
  %2105 = vmatpush1.bf16.msra.mxu0 0
  %2106 = vmatprep.subr.bf16.mxu0 0
  %2107 = vmatpush1.bf16.msra.mxu0 0
  %2108 = vmatprep.subr.bf16.mxu0 0
  %2109 = vmatpush1.bf16.msra.mxu0 0
  %2110 = vmatprep.subr.bf16.mxu0 0
  %2111 = vmatpush1.bf16.msra.mxu0 0
  %2112 = vmatprep.subr.bf16.mxu0 0
  %2113 = vmatpush1.bf16.msra.mxu0 0
  %2114 = vmatprep.mubr.bf16.mxu0 0
  %2115 = vmatmul.mubr.bf16.gmra.mrb[0].mxu0 %v2080
  %v2116 = vpop.f32.mrb[0].mxu0
  %v2117 = vadd.f32 %v741, %v2116
  %v2118 = vpop.f32.mrb[0].mxu0
  %v2119 = vadd.f32 %v745, %v2118
  %v2120 = vpop.f32.mrb[0].mxu0
  %v2121 = vpop.f32.mrb[0].mxu0
  %2122 = vdwg.mxu0
  %2124 = vrot.lane.b32.xlu0 %v2008, 64
  %v2125 = vpop.permute.xlu0 %2124
  %v2126 = vrot.slane %v2125, 2
  %v2128 = vadd.f32 %v2126, %v2117
  %v2129 = vxor.u32 %v2128, 2147483648
  %v2130 = vmul.f32 %v2129, 1.442695
  %v2131 = vpow.pop %v2130
  %v2132 = vadd.f32 %v2131, 1.0
  %v2133 = vrcp.pop %v2132
  %v2134 = vmul.f32 1.0, %v2133
  %v2135 = vrot.slane %v2008, 4
  %v2139 = vunpack.c.l.s4 1983009808
  %v2140 = vunpack.c.0.s8 %v2139
  %v2141 = vlaneseq
  %v2142 = vshrl.u32 %v2141, 7
  %v2143 = vsub.s32 %v2140, %v2142
  %v2144 = vrot.slane %v2117, %v2143
  %2145 = vrot.lane.b32.xlu0 %v2144, 64
  %v2146 = vpop.permute.xlu0 %2145
  %v2148 = vadd.f32 %v2135, %v2146
  %v2149 = vxor.u32 %v2148, 2147483648
  %v2150 = vmul.f32 %v2149, 1.442695
  %v2151 = vpow.pop %v2150
  %v2152 = vadd.f32 %v2151, 1.0
  %v2153 = vrcp.pop %v2152
  %v2154 = vmul.f32 1.0, %v2153
  %v2155 = vmul.f32 %v2134, %v2119
  %v2156 = vrot.slane %v2125, 4
  %v2158 = vadd.f32 %v2156, %v2155
  %v2159 = vtanh.pop %v2158
  %v2160 = vsub.f32 %v2002, %v2159
  %v2161 = vmul.f32 %v2154, %v2160
  %v2162 = vadd.f32 %v2159, %v2161
  %s2163 = scalar_lea.vmem [#allocation3], 16
  %2164 = vst.msk [vmem:[%s2163] sm:$0x3] %vm869, %v2077
  %s2165 = scalar_lea.vmem [#allocation4], 14
  %2166 = vst.msk [vmem:[%s2165] sm:$0x3] %vm869, %v2162
  %v2167 = vld [vmem:[%s1685] sm:$0x3f]
  %v2168 = vld [vmem:[%s1683] sm:$0x3f]
  %v2169 = vpack.c.bf16 %v2077, %v2077
  %v2171 = vsel %vm668, %v2169, 0
  %2173 = vmatprep.subr.bf16.mxu0 %v653
  %2174 = vmatpush1.bf16.msra.mxu0 %v652
  %2175 = vmatprep.subr.bf16.mxu0 %v655
  %2176 = vmatpush1.bf16.msra.mxu0 %v654
  %2177 = vmatprep.subr.bf16.mxu0 %v657
  %2178 = vmatpush1.bf16.msra.mxu0 %v656
  %2179 = vmatprep.subr.bf16.mxu0 %v659
  %2180 = vmatpush1.bf16.msra.mxu0 %v658
  %2181 = vmatprep.subr.bf16.mxu0 0
  %2182 = vmatpush1.bf16.msra.mxu0 0
  %2183 = vmatprep.subr.bf16.mxu0 0
  %2184 = vmatpush1.bf16.msra.mxu0 0
  %2185 = vmatprep.subr.bf16.mxu0 0
  %2186 = vmatpush1.bf16.msra.mxu0 0
  %2187 = vmatprep.subr.bf16.mxu0 0
  %2188 = vmatpush1.bf16.msra.mxu0 0
  %2189 = vmatprep.subr.bf16.mxu0 0
  %2190 = vmatpush1.bf16.msra.mxu0 0
  %2191 = vmatprep.subr.bf16.mxu0 0
  %2192 = vmatpush1.bf16.msra.mxu0 0
  %2193 = vmatprep.subr.bf16.mxu0 0
  %2194 = vmatpush1.bf16.msra.mxu0 0
  %2195 = vmatprep.subr.bf16.mxu0 0
  %2196 = vmatpush1.bf16.msra.mxu0 0
  %2197 = vmatprep.subr.bf16.mxu0 0
  %2198 = vmatpush1.bf16.msra.mxu0 0
  %2199 = vmatprep.subr.bf16.mxu0 0
  %2200 = vmatpush1.bf16.msra.mxu0 0
  %2201 = vmatprep.subr.bf16.mxu0 0
  %2202 = vmatpush1.bf16.msra.mxu0 0
  %2203 = vmatprep.subr.bf16.mxu0 0
  %2204 = vmatpush1.bf16.msra.mxu0 0
  %2205 = vmatprep.mubr.bf16.mxu0 0
  %2206 = vmatmul.mubr.bf16.gmra.mrb[0].mxu0 %v2171
  %v2207 = vpop.f32.mrb[0].mxu0
  %v2208 = vadd.f32 %v621, %v2207
  %v2209 = vpop.f32.mrb[0].mxu0
  %v2210 = vadd.f32 %v625, %v2209
  %v2211 = vpop.f32.mrb[0].mxu0
  %v2212 = vpop.f32.mrb[0].mxu0
  %2213 = vdwg.mxu0
  %v2214 = vadd.f32 %v2167, %v2208
  %v2215 = vxor.u32 %v2214, 2147483648
  %v2216 = vmul.f32 %v2215, 1.442695
  %v2217 = vpow.pop %v2216
  %v2218 = vadd.f32 %v2217, 1.0
  %v2219 = vrcp.pop %v2218
  %v2220 = vmul.f32 1.0, %v2219
  %v2221 = vmul.f32 %v2220, %v2210
  %v2223 = vrot.slane %v2167, 2
  %v2225 = vadd.f32 %v2223, %v2221
  %v2226 = vtanh.pop %v2225
  %v2227 = vsub.f32 %v2077, %v2226
  %2229 = vrot.lane.b32.xlu0 %v2227, 64
  %v2230 = vpop.permute.xlu0 %2229
  %v2232 = vmul.f32 %v2220, %v2230
  %2234 = vrot.lane.b32.xlu0 %v2232, 64
  %v2235 = vpop.permute.xlu0 %2234
  %v2237 = vadd.f32 %v2226, %v2235
  %v2238 = vpack.c.bf16 %v2162, %v2162
  %v2240 = vsel %vm668, %v2238, 0
  %2242 = vmatprep.subr.bf16.mxu0 %v773
  %2243 = vmatpush1.bf16.msra.mxu0 %v772
  %2244 = vmatprep.subr.bf16.mxu0 %v775
  %2245 = vmatpush1.bf16.msra.mxu0 %v774
  %2246 = vmatprep.subr.bf16.mxu0 %v777
  %2247 = vmatpush1.bf16.msra.mxu0 %v776
  %2248 = vmatprep.subr.bf16.mxu0 %v779
  %2249 = vmatpush1.bf16.msra.mxu0 %v778
  %2250 = vmatprep.subr.bf16.mxu0 0
  %2251 = vmatpush1.bf16.msra.mxu0 0
  %2252 = vmatprep.subr.bf16.mxu0 0
  %2253 = vmatpush1.bf16.msra.mxu0 0
  %2254 = vmatprep.subr.bf16.mxu0 0
  %2255 = vmatpush1.bf16.msra.mxu0 0
  %2256 = vmatprep.subr.bf16.mxu0 0
  %2257 = vmatpush1.bf16.msra.mxu0 0
  %2258 = vmatprep.subr.bf16.mxu0 0
  %2259 = vmatpush1.bf16.msra.mxu0 0
  %2260 = vmatprep.subr.bf16.mxu0 0
  %2261 = vmatpush1.bf16.msra.mxu0 0
  %2262 = vmatprep.subr.bf16.mxu0 0
  %2263 = vmatpush1.bf16.msra.mxu0 0
  %2264 = vmatprep.subr.bf16.mxu0 0
  %2265 = vmatpush1.bf16.msra.mxu0 0
  %2266 = vmatprep.subr.bf16.mxu0 0
  %2267 = vmatpush1.bf16.msra.mxu0 0
  %2268 = vmatprep.subr.bf16.mxu0 0
  %2269 = vmatpush1.bf16.msra.mxu0 0
  %2270 = vmatprep.subr.bf16.mxu0 0
  %2271 = vmatpush1.bf16.msra.mxu0 0
  %2272 = vmatprep.subr.bf16.mxu0 0
  %2273 = vmatpush1.bf16.msra.mxu0 0
  %2274 = vmatprep.mubr.bf16.mxu0 0
  %2275 = vmatmul.mubr.bf16.gmra.mrb[0].mxu0 %v2240
  %v2276 = vpop.f32.mrb[0].mxu0
  %v2277 = vadd.f32 %v741, %v2276
  %v2278 = vpop.f32.mrb[0].mxu0
  %v2279 = vadd.f32 %v745, %v2278
  %v2280 = vpop.f32.mrb[0].mxu0
  %v2281 = vpop.f32.mrb[0].mxu0
  %2282 = vdwg.mxu0
  %2284 = vrot.lane.b32.xlu0 %v2168, 64
  %v2285 = vpop.permute.xlu0 %2284
  %v2286 = vrot.slane %v2285, 2
  %v2288 = vadd.f32 %v2286, %v2277
  %v2289 = vxor.u32 %v2288, 2147483648
  %v2290 = vmul.f32 %v2289, 1.442695
  %v2291 = vpow.pop %v2290
  %v2292 = vadd.f32 %v2291, 1.0
  %v2293 = vrcp.pop %v2292
  %v2294 = vmul.f32 1.0, %v2293
  %v2295 = vrot.slane %v2168, 4
  %v2299 = vunpack.c.l.s4 1983009808
  %v2300 = vunpack.c.0.s8 %v2299
  %v2301 = vlaneseq
  %v2302 = vshrl.u32 %v2301, 7
  %v2303 = vsub.s32 %v2300, %v2302
  %v2304 = vrot.slane %v2277, %v2303
  %2305 = vrot.lane.b32.xlu0 %v2304, 64
  %v2306 = vpop.permute.xlu0 %2305
  %v2308 = vadd.f32 %v2295, %v2306
  %v2309 = vxor.u32 %v2308, 2147483648
  %v2310 = vmul.f32 %v2309, 1.442695
  %v2311 = vpow.pop %v2310
  %v2312 = vadd.f32 %v2311, 1.0
  %v2313 = vrcp.pop %v2312
  %v2314 = vmul.f32 1.0, %v2313
  %v2315 = vmul.f32 %v2294, %v2279
  %v2316 = vrot.slane %v2285, 4
  %v2318 = vadd.f32 %v2316, %v2315
  %v2319 = vtanh.pop %v2318
  %v2320 = vsub.f32 %v2162, %v2319
  %v2321 = vmul.f32 %v2314, %v2320
  %v2322 = vadd.f32 %v2319, %v2321
  %s2323 = scalar_lea.vmem [#allocation3], 18
  %2324 = vst.msk [vmem:[%s2323] sm:$0x3] %vm869, %v2237
  %s2325 = scalar_lea.vmem [#allocation4], 12
  %2326 = vst.msk [vmem:[%s2325] sm:$0x3] %vm869, %v2322
  %v2327 = vld [vmem:[%s1523] sm:$0x3f]
  %v2328 = vld [vmem:[%s1521] sm:$0x3f]
  %v2329 = vpack.c.bf16 %v2237, %v2237
  %v2331 = vsel %vm668, %v2329, 0
  %2333 = vmatprep.subr.bf16.mxu0 %v653
  %2334 = vmatpush1.bf16.msra.mxu0 %v652
  %2335 = vmatprep.subr.bf16.mxu0 %v655
  %2336 = vmatpush1.bf16.msra.mxu0 %v654
  %2337 = vmatprep.subr.bf16.mxu0 %v657
  %2338 = vmatpush1.bf16.msra.mxu0 %v656
  %2339 = vmatprep.subr.bf16.mxu0 %v659
  %2340 = vmatpush1.bf16.msra.mxu0 %v658
  %2341 = vmatprep.subr.bf16.mxu0 0
  %2342 = vmatpush1.bf16.msra.mxu0 0
  %2343 = vmatprep.subr.bf16.mxu0 0
  %2344 = vmatpush1.bf16.msra.mxu0 0
  %2345 = vmatprep.subr.bf16.mxu0 0
  %2346 = vmatpush1.bf16.msra.mxu0 0
  %2347 = vmatprep.subr.bf16.mxu0 0
  %2348 = vmatpush1.bf16.msra.mxu0 0
  %2349 = vmatprep.subr.bf16.mxu0 0
  %2350 = vmatpush1.bf16.msra.mxu0 0
  %2351 = vmatprep.subr.bf16.mxu0 0
  %2352 = vmatpush1.bf16.msra.mxu0 0
  %2353 = vmatprep.subr.bf16.mxu0 0
  %2354 = vmatpush1.bf16.msra.mxu0 0
  %2355 = vmatprep.subr.bf16.mxu0 0
  %2356 = vmatpush1.bf16.msra.mxu0 0
  %2357 = vmatprep.subr.bf16.mxu0 0
  %2358 = vmatpush1.bf16.msra.mxu0 0
  %2359 = vmatprep.subr.bf16.mxu0 0
  %2360 = vmatpush1.bf16.msra.mxu0 0
  %2361 = vmatprep.subr.bf16.mxu0 0
  %2362 = vmatpush1.bf16.msra.mxu0 0
  %2363 = vmatprep.subr.bf16.mxu0 0
  %2364 = vmatpush1.bf16.msra.mxu0 0
  %2365 = vmatprep.mubr.bf16.mxu0 0
  %2366 = vmatmul.mubr.bf16.gmra.mrb[0].mxu0 %v2331
  %v2367 = vpop.f32.mrb[0].mxu0
  %v2368 = vadd.f32 %v621, %v2367
  %v2369 = vpop.f32.mrb[0].mxu0
  %v2370 = vadd.f32 %v625, %v2369
  %v2371 = vpop.f32.mrb[0].mxu0
  %v2372 = vpop.f32.mrb[0].mxu0
  %2373 = vdwg.mxu0
  %v2374 = vadd.f32 %v2327, %v2368
  %v2375 = vxor.u32 %v2374, 2147483648
  %v2376 = vmul.f32 %v2375, 1.442695
  %v2377 = vpow.pop %v2376
  %v2378 = vadd.f32 %v2377, 1.0
  %v2379 = vrcp.pop %v2378
  %v2380 = vmul.f32 1.0, %v2379
  %v2381 = vmul.f32 %v2380, %v2370
  %v2383 = vrot.slane %v2327, 2
  %v2385 = vadd.f32 %v2383, %v2381
  %v2386 = vtanh.pop %v2385
  %v2387 = vsub.f32 %v2237, %v2386
  %2389 = vrot.lane.b32.xlu0 %v2387, 64
  %v2390 = vpop.permute.xlu0 %2389
  %v2392 = vmul.f32 %v2380, %v2390
  %2394 = vrot.lane.b32.xlu0 %v2392, 64
  %v2395 = vpop.permute.xlu0 %2394
  %v2397 = vadd.f32 %v2386, %v2395
  %v2398 = vpack.c.bf16 %v2322, %v2322
  %v2400 = vsel %vm668, %v2398, 0
  %2402 = vmatprep.subr.bf16.mxu0 %v773
  %2403 = vmatpush1.bf16.msra.mxu0 %v772
  %2404 = vmatprep.subr.bf16.mxu0 %v775
  %2405 = vmatpush1.bf16.msra.mxu0 %v774
  %2406 = vmatprep.subr.bf16.mxu0 %v777
  %2407 = vmatpush1.bf16.msra.mxu0 %v776
  %2408 = vmatprep.subr.bf16.mxu0 %v779
  %2409 = vmatpush1.bf16.msra.mxu0 %v778
  %2410 = vmatprep.subr.bf16.mxu0 0
  %2411 = vmatpush1.bf16.msra.mxu0 0
  %2412 = vmatprep.subr.bf16.mxu0 0
  %2413 = vmatpush1.bf16.msra.mxu0 0
  %2414 = vmatprep.subr.bf16.mxu0 0
  %2415 = vmatpush1.bf16.msra.mxu0 0
  %2416 = vmatprep.subr.bf16.mxu0 0
  %2417 = vmatpush1.bf16.msra.mxu0 0
  %2418 = vmatprep.subr.bf16.mxu0 0
  %2419 = vmatpush1.bf16.msra.mxu0 0
  %2420 = vmatprep.subr.bf16.mxu0 0
  %2421 = vmatpush1.bf16.msra.mxu0 0
  %2422 = vmatprep.subr.bf16.mxu0 0
  %2423 = vmatpush1.bf16.msra.mxu0 0
  %2424 = vmatprep.subr.bf16.mxu0 0
  %2425 = vmatpush1.bf16.msra.mxu0 0
  %2426 = vmatprep.subr.bf16.mxu0 0
  %2427 = vmatpush1.bf16.msra.mxu0 0
  %2428 = vmatprep.subr.bf16.mxu0 0
  %2429 = vmatpush1.bf16.msra.mxu0 0
  %2430 = vmatprep.subr.bf16.mxu0 0
  %2431 = vmatpush1.bf16.msra.mxu0 0
  %2432 = vmatprep.subr.bf16.mxu0 0
  %2433 = vmatpush1.bf16.msra.mxu0 0
  %2434 = vmatprep.mubr.bf16.mxu0 0
  %2435 = vmatmul.mubr.bf16.gmra.mrb[0].mxu0 %v2400
  %v2436 = vpop.f32.mrb[0].mxu0
  %v2437 = vadd.f32 %v741, %v2436
  %v2438 = vpop.f32.mrb[0].mxu0
  %v2439 = vadd.f32 %v745, %v2438
  %v2440 = vpop.f32.mrb[0].mxu0
  %v2441 = vpop.f32.mrb[0].mxu0
  %2442 = vdwg.mxu0
  %2444 = vrot.lane.b32.xlu0 %v2328, 64
  %v2445 = vpop.permute.xlu0 %2444
  %v2446 = vrot.slane %v2445, 2
  %v2448 = vadd.f32 %v2446, %v2437
  %v2449 = vxor.u32 %v2448, 2147483648
  %v2450 = vmul.f32 %v2449, 1.442695
  %v2451 = vpow.pop %v2450
  %v2452 = vadd.f32 %v2451, 1.0
  %v2453 = vrcp.pop %v2452
  %v2454 = vmul.f32 1.0, %v2453
  %v2455 = vrot.slane %v2328, 4
  %v2459 = vunpack.c.l.s4 1983009808
  %v2460 = vunpack.c.0.s8 %v2459
  %v2461 = vlaneseq
  %v2462 = vshrl.u32 %v2461, 7
  %v2463 = vsub.s32 %v2460, %v2462
  %v2464 = vrot.slane %v2437, %v2463
  %2465 = vrot.lane.b32.xlu0 %v2464, 64
  %v2466 = vpop.permute.xlu0 %2465
  %v2468 = vadd.f32 %v2455, %v2466
  %v2469 = vxor.u32 %v2468, 2147483648
  %v2470 = vmul.f32 %v2469, 1.442695
  %v2471 = vpow.pop %v2470
  %v2472 = vadd.f32 %v2471, 1.0
  %v2473 = vrcp.pop %v2472
  %v2474 = vmul.f32 1.0, %v2473
  %v2475 = vmul.f32 %v2454, %v2439
  %v2476 = vrot.slane %v2445, 4
  %v2478 = vadd.f32 %v2476, %v2475
  %v2479 = vtanh.pop %v2478
  %v2480 = vsub.f32 %v2322, %v2479
  %v2481 = vmul.f32 %v2474, %v2480
  %v2482 = vadd.f32 %v2479, %v2481
  %s2483 = scalar_lea.vmem [#allocation3], 20
  %2484 = vst.msk [vmem:[%s2483] sm:$0x3] %vm869, %v2397
  %s2485 = scalar_lea.vmem [#allocation4], 10
  %2486 = vst.msk [vmem:[%s2485] sm:$0x3] %vm869, %v2482
  %v2487 = vld [vmem:[%s1361] sm:$0x3f]
  %v2488 = vld [vmem:[%s1359] sm:$0x3f]
  %v2489 = vpack.c.bf16 %v2397, %v2397
  %v2491 = vsel %vm668, %v2489, 0
  %2493 = vmatprep.subr.bf16.mxu0 %v653
  %2494 = vmatpush1.bf16.msra.mxu0 %v652
  %2495 = vmatprep.subr.bf16.mxu0 %v655
  %2496 = vmatpush1.bf16.msra.mxu0 %v654
  %2497 = vmatprep.subr.bf16.mxu0 %v657
  %2498 = vmatpush1.bf16.msra.mxu0 %v656
  %2499 = vmatprep.subr.bf16.mxu0 %v659
  %2500 = vmatpush1.bf16.msra.mxu0 %v658
  %2501 = vmatprep.subr.bf16.mxu0 0
  %2502 = vmatpush1.bf16.msra.mxu0 0
  %2503 = vmatprep.subr.bf16.mxu0 0
  %2504 = vmatpush1.bf16.msra.mxu0 0
  %2505 = vmatprep.subr.bf16.mxu0 0
  %2506 = vmatpush1.bf16.msra.mxu0 0
  %2507 = vmatprep.subr.bf16.mxu0 0
  %2508 = vmatpush1.bf16.msra.mxu0 0
  %2509 = vmatprep.subr.bf16.mxu0 0
  %2510 = vmatpush1.bf16.msra.mxu0 0
  %2511 = vmatprep.subr.bf16.mxu0 0
  %2512 = vmatpush1.bf16.msra.mxu0 0
  %2513 = vmatprep.subr.bf16.mxu0 0
  %2514 = vmatpush1.bf16.msra.mxu0 0
  %2515 = vmatprep.subr.bf16.mxu0 0
  %2516 = vmatpush1.bf16.msra.mxu0 0
  %2517 = vmatprep.subr.bf16.mxu0 0
  %2518 = vmatpush1.bf16.msra.mxu0 0
  %2519 = vmatprep.subr.bf16.mxu0 0
  %2520 = vmatpush1.bf16.msra.mxu0 0
  %2521 = vmatprep.subr.bf16.mxu0 0
  %2522 = vmatpush1.bf16.msra.mxu0 0
  %2523 = vmatprep.subr.bf16.mxu0 0
  %2524 = vmatpush1.bf16.msra.mxu0 0
  %2525 = vmatprep.mubr.bf16.mxu0 0
  %2526 = vmatmul.mubr.bf16.gmra.mrb[0].mxu0 %v2491
  %v2527 = vpop.f32.mrb[0].mxu0
  %v2528 = vadd.f32 %v621, %v2527
  %v2529 = vpop.f32.mrb[0].mxu0
  %v2530 = vadd.f32 %v625, %v2529
  %v2531 = vpop.f32.mrb[0].mxu0
  %v2532 = vpop.f32.mrb[0].mxu0
  %2533 = vdwg.mxu0
  %v2534 = vadd.f32 %v2487, %v2528
  %v2535 = vxor.u32 %v2534, 2147483648
  %v2536 = vmul.f32 %v2535, 1.442695
  %v2537 = vpow.pop %v2536
  %v2538 = vadd.f32 %v2537, 1.0
  %v2539 = vrcp.pop %v2538
  %v2540 = vmul.f32 1.0, %v2539
  %v2541 = vmul.f32 %v2540, %v2530
  %v2543 = vrot.slane %v2487, 2
  %v2545 = vadd.f32 %v2543, %v2541
  %v2546 = vtanh.pop %v2545
  %v2547 = vsub.f32 %v2397, %v2546
  %2549 = vrot.lane.b32.xlu0 %v2547, 64
  %v2550 = vpop.permute.xlu0 %2549
  %v2552 = vmul.f32 %v2540, %v2550
  %2554 = vrot.lane.b32.xlu0 %v2552, 64
  %v2555 = vpop.permute.xlu0 %2554
  %v2557 = vadd.f32 %v2546, %v2555
  %v2558 = vpack.c.bf16 %v2482, %v2482
  %v2560 = vsel %vm668, %v2558, 0
  %2562 = vmatprep.subr.bf16.mxu0 %v773
  %2563 = vmatpush1.bf16.msra.mxu0 %v772
  %2564 = vmatprep.subr.bf16.mxu0 %v775
  %2565 = vmatpush1.bf16.msra.mxu0 %v774
  %2566 = vmatprep.subr.bf16.mxu0 %v777
  %2567 = vmatpush1.bf16.msra.mxu0 %v776
  %2568 = vmatprep.subr.bf16.mxu0 %v779
  %2569 = vmatpush1.bf16.msra.mxu0 %v778
  %2570 = vmatprep.subr.bf16.mxu0 0
  %2571 = vmatpush1.bf16.msra.mxu0 0
  %2572 = vmatprep.subr.bf16.mxu0 0
  %2573 = vmatpush1.bf16.msra.mxu0 0
  %2574 = vmatprep.subr.bf16.mxu0 0
  %2575 = vmatpush1.bf16.msra.mxu0 0
  %2576 = vmatprep.subr.bf16.mxu0 0
  %2577 = vmatpush1.bf16.msra.mxu0 0
  %2578 = vmatprep.subr.bf16.mxu0 0
  %2579 = vmatpush1.bf16.msra.mxu0 0
  %2580 = vmatprep.subr.bf16.mxu0 0
  %2581 = vmatpush1.bf16.msra.mxu0 0
  %2582 = vmatprep.subr.bf16.mxu0 0
  %2583 = vmatpush1.bf16.msra.mxu0 0
  %2584 = vmatprep.subr.bf16.mxu0 0
  %2585 = vmatpush1.bf16.msra.mxu0 0
  %2586 = vmatprep.subr.bf16.mxu0 0
  %2587 = vmatpush1.bf16.msra.mxu0 0
  %2588 = vmatprep.subr.bf16.mxu0 0
  %2589 = vmatpush1.bf16.msra.mxu0 0
  %2590 = vmatprep.subr.bf16.mxu0 0
  %2591 = vmatpush1.bf16.msra.mxu0 0
  %2592 = vmatprep.subr.bf16.mxu0 0
  %2593 = vmatpush1.bf16.msra.mxu0 0
  %2594 = vmatprep.mubr.bf16.mxu0 0
  %2595 = vmatmul.mubr.bf16.gmra.mrb[0].mxu0 %v2560
  %v2596 = vpop.f32.mrb[0].mxu0
  %v2597 = vadd.f32 %v741, %v2596
  %v2598 = vpop.f32.mrb[0].mxu0
  %v2599 = vadd.f32 %v745, %v2598
  %v2600 = vpop.f32.mrb[0].mxu0
  %v2601 = vpop.f32.mrb[0].mxu0
  %2602 = vdwg.mxu0
  %2604 = vrot.lane.b32.xlu0 %v2488, 64
  %v2605 = vpop.permute.xlu0 %2604
  %v2606 = vrot.slane %v2605, 2
  %v2608 = vadd.f32 %v2606, %v2597
  %v2609 = vxor.u32 %v2608, 2147483648
  %v2610 = vmul.f32 %v2609, 1.442695
  %v2611 = vpow.pop %v2610
  %v2612 = vadd.f32 %v2611, 1.0
  %v2613 = vrcp.pop %v2612
  %v2614 = vmul.f32 1.0, %v2613
  %v2615 = vrot.slane %v2488, 4
  %v2619 = vunpack.c.l.s4 1983009808
  %v2620 = vunpack.c.0.s8 %v2619
  %v2621 = vlaneseq
  %v2622 = vshrl.u32 %v2621, 7
  %v2623 = vsub.s32 %v2620, %v2622
  %v2624 = vrot.slane %v2597, %v2623
  %2625 = vrot.lane.b32.xlu0 %v2624, 64
  %v2626 = vpop.permute.xlu0 %2625
  %v2628 = vadd.f32 %v2615, %v2626
  %v2629 = vxor.u32 %v2628, 2147483648
  %v2630 = vmul.f32 %v2629, 1.442695
  %v2631 = vpow.pop %v2630
  %v2632 = vadd.f32 %v2631, 1.0
  %v2633 = vrcp.pop %v2632
  %v2634 = vmul.f32 1.0, %v2633
  %v2635 = vmul.f32 %v2614, %v2599
  %v2636 = vrot.slane %v2605, 4
  %v2638 = vadd.f32 %v2636, %v2635
  %v2639 = vtanh.pop %v2638
  %v2640 = vsub.f32 %v2482, %v2639
  %v2641 = vmul.f32 %v2634, %v2640
  %v2642 = vadd.f32 %v2639, %v2641
  %s2643 = scalar_lea.vmem [#allocation3], 22
  %2644 = vst.msk [vmem:[%s2643] sm:$0x3] %vm869, %v2557
  %s2645 = scalar_lea.vmem [#allocation4], 8
  %2646 = vst.msk [vmem:[%s2645] sm:$0x3] %vm869, %v2642
  %v2647 = vld [vmem:[%s1199] sm:$0x3f]
  %v2648 = vld [vmem:[%s1197] sm:$0x3f]
  %v2649 = vpack.c.bf16 %v2557, %v2557
  %v2651 = vsel %vm668, %v2649, 0
  %2653 = vmatprep.subr.bf16.mxu0 %v653
  %2654 = vmatpush1.bf16.msra.mxu0 %v652
  %2655 = vmatprep.subr.bf16.mxu0 %v655
  %2656 = vmatpush1.bf16.msra.mxu0 %v654
  %2657 = vmatprep.subr.bf16.mxu0 %v657
  %2658 = vmatpush1.bf16.msra.mxu0 %v656
  %2659 = vmatprep.subr.bf16.mxu0 %v659
  %2660 = vmatpush1.bf16.msra.mxu0 %v658
  %2661 = vmatprep.subr.bf16.mxu0 0
  %2662 = vmatpush1.bf16.msra.mxu0 0
  %2663 = vmatprep.subr.bf16.mxu0 0
  %2664 = vmatpush1.bf16.msra.mxu0 0
  %2665 = vmatprep.subr.bf16.mxu0 0
  %2666 = vmatpush1.bf16.msra.mxu0 0
  %2667 = vmatprep.subr.bf16.mxu0 0
  %2668 = vmatpush1.bf16.msra.mxu0 0
  %2669 = vmatprep.subr.bf16.mxu0 0
  %2670 = vmatpush1.bf16.msra.mxu0 0
  %2671 = vmatprep.subr.bf16.mxu0 0
  %2672 = vmatpush1.bf16.msra.mxu0 0
  %2673 = vmatprep.subr.bf16.mxu0 0
  %2674 = vmatpush1.bf16.msra.mxu0 0
  %2675 = vmatprep.subr.bf16.mxu0 0
  %2676 = vmatpush1.bf16.msra.mxu0 0
  %2677 = vmatprep.subr.bf16.mxu0 0
  %2678 = vmatpush1.bf16.msra.mxu0 0
  %2679 = vmatprep.subr.bf16.mxu0 0
  %2680 = vmatpush1.bf16.msra.mxu0 0
  %2681 = vmatprep.subr.bf16.mxu0 0
  %2682 = vmatpush1.bf16.msra.mxu0 0
  %2683 = vmatprep.subr.bf16.mxu0 0
  %2684 = vmatpush1.bf16.msra.mxu0 0
  %2685 = vmatprep.mubr.bf16.mxu0 0
  %2686 = vmatmul.mubr.bf16.gmra.mrb[0].mxu0 %v2651
  %v2687 = vpop.f32.mrb[0].mxu0
  %v2688 = vadd.f32 %v621, %v2687
  %v2689 = vpop.f32.mrb[0].mxu0
  %v2690 = vadd.f32 %v625, %v2689
  %v2691 = vpop.f32.mrb[0].mxu0
  %v2692 = vpop.f32.mrb[0].mxu0
  %2693 = vdwg.mxu0
  %v2694 = vadd.f32 %v2647, %v2688
  %v2695 = vxor.u32 %v2694, 2147483648
  %v2696 = vmul.f32 %v2695, 1.442695
  %v2697 = vpow.pop %v2696
  %v2698 = vadd.f32 %v2697, 1.0
  %v2699 = vrcp.pop %v2698
  %v2700 = vmul.f32 1.0, %v2699
  %v2701 = vmul.f32 %v2700, %v2690
  %v2703 = vrot.slane %v2647, 2
  %v2705 = vadd.f32 %v2703, %v2701
  %v2706 = vtanh.pop %v2705
  %v2707 = vsub.f32 %v2557, %v2706
  %2709 = vrot.lane.b32.xlu0 %v2707, 64
  %v2710 = vpop.permute.xlu0 %2709
  %v2712 = vmul.f32 %v2700, %v2710
  %2714 = vrot.lane.b32.xlu0 %v2712, 64
  %v2715 = vpop.permute.xlu0 %2714
  %v2717 = vadd.f32 %v2706, %v2715
  %v2718 = vpack.c.bf16 %v2642, %v2642
  %v2720 = vsel %vm668, %v2718, 0
  %2722 = vmatprep.subr.bf16.mxu0 %v773
  %2723 = vmatpush1.bf16.msra.mxu0 %v772
  %2724 = vmatprep.subr.bf16.mxu0 %v775
  %2725 = vmatpush1.bf16.msra.mxu0 %v774
  %2726 = vmatprep.subr.bf16.mxu0 %v777
  %2727 = vmatpush1.bf16.msra.mxu0 %v776
  %2728 = vmatprep.subr.bf16.mxu0 %v779
  %2729 = vmatpush1.bf16.msra.mxu0 %v778
  %2730 = vmatprep.subr.bf16.mxu0 0
  %2731 = vmatpush1.bf16.msra.mxu0 0
  %2732 = vmatprep.subr.bf16.mxu0 0
  %2733 = vmatpush1.bf16.msra.mxu0 0
  %2734 = vmatprep.subr.bf16.mxu0 0
  %2735 = vmatpush1.bf16.msra.mxu0 0
  %2736 = vmatprep.subr.bf16.mxu0 0
  %2737 = vmatpush1.bf16.msra.mxu0 0
  %2738 = vmatprep.subr.bf16.mxu0 0
  %2739 = vmatpush1.bf16.msra.mxu0 0
  %2740 = vmatprep.subr.bf16.mxu0 0
  %2741 = vmatpush1.bf16.msra.mxu0 0
  %2742 = vmatprep.subr.bf16.mxu0 0
  %2743 = vmatpush1.bf16.msra.mxu0 0
  %2744 = vmatprep.subr.bf16.mxu0 0
  %2745 = vmatpush1.bf16.msra.mxu0 0
  %2746 = vmatprep.subr.bf16.mxu0 0
  %2747 = vmatpush1.bf16.msra.mxu0 0
  %2748 = vmatprep.subr.bf16.mxu0 0
  %2749 = vmatpush1.bf16.msra.mxu0 0
  %2750 = vmatprep.subr.bf16.mxu0 0
  %2751 = vmatpush1.bf16.msra.mxu0 0
  %2752 = vmatprep.subr.bf16.mxu0 0
  %2753 = vmatpush1.bf16.msra.mxu0 0
  %2754 = vmatprep.mubr.bf16.mxu0 0
  %2755 = vmatmul.mubr.bf16.gmra.mrb[0].mxu0 %v2720
  %v2756 = vpop.f32.mrb[0].mxu0
  %v2757 = vadd.f32 %v741, %v2756
  %v2758 = vpop.f32.mrb[0].mxu0
  %v2759 = vadd.f32 %v745, %v2758
  %v2760 = vpop.f32.mrb[0].mxu0
  %v2761 = vpop.f32.mrb[0].mxu0
  %2762 = vdwg.mxu0
  %2764 = vrot.lane.b32.xlu0 %v2648, 64
  %v2765 = vpop.permute.xlu0 %2764
  %v2766 = vrot.slane %v2765, 2
  %v2768 = vadd.f32 %v2766, %v2757
  %v2769 = vxor.u32 %v2768, 2147483648
  %v2770 = vmul.f32 %v2769, 1.442695
  %v2771 = vpow.pop %v2770
  %v2772 = vadd.f32 %v2771, 1.0
  %v2773 = vrcp.pop %v2772
  %v2774 = vmul.f32 1.0, %v2773
  %v2775 = vrot.slane %v2648, 4
  %v2779 = vunpack.c.l.s4 1983009808
  %v2780 = vunpack.c.0.s8 %v2779
  %v2781 = vlaneseq
  %v2782 = vshrl.u32 %v2781, 7
  %v2783 = vsub.s32 %v2780, %v2782
  %v2784 = vrot.slane %v2757, %v2783
  %2785 = vrot.lane.b32.xlu0 %v2784, 64
  %v2786 = vpop.permute.xlu0 %2785
  %v2788 = vadd.f32 %v2775, %v2786
  %v2789 = vxor.u32 %v2788, 2147483648
  %v2790 = vmul.f32 %v2789, 1.442695
  %v2791 = vpow.pop %v2790
  %v2792 = vadd.f32 %v2791, 1.0
  %v2793 = vrcp.pop %v2792
  %v2794 = vmul.f32 1.0, %v2793
  %v2795 = vmul.f32 %v2774, %v2759
  %v2796 = vrot.slane %v2765, 4
  %v2798 = vadd.f32 %v2796, %v2795
  %v2799 = vtanh.pop %v2798
  %v2800 = vsub.f32 %v2642, %v2799
  %v2801 = vmul.f32 %v2794, %v2800
  %v2802 = vadd.f32 %v2799, %v2801
  %s2803 = scalar_lea.vmem [#allocation3], 24
  %2804 = vst.msk [vmem:[%s2803] sm:$0x3] %vm869, %v2717
  %s2805 = scalar_lea.vmem [#allocation4], 6
  %2806 = vst.msk [vmem:[%s2805] sm:$0x3] %vm869, %v2802
  %v2807 = vld [vmem:[%s1037] sm:$0x3f]
  %v2808 = vld [vmem:[%s1035] sm:$0x3f]
  %v2809 = vpack.c.bf16 %v2717, %v2717
  %v2811 = vsel %vm668, %v2809, 0
  %2813 = vmatprep.subr.bf16.mxu0 %v653
  %2814 = vmatpush1.bf16.msra.mxu0 %v652
  %2815 = vmatprep.subr.bf16.mxu0 %v655
  %2816 = vmatpush1.bf16.msra.mxu0 %v654
  %2817 = vmatprep.subr.bf16.mxu0 %v657
  %2818 = vmatpush1.bf16.msra.mxu0 %v656
  %2819 = vmatprep.subr.bf16.mxu0 %v659
  %2820 = vmatpush1.bf16.msra.mxu0 %v658
  %2821 = vmatprep.subr.bf16.mxu0 0
  %2822 = vmatpush1.bf16.msra.mxu0 0
  %2823 = vmatprep.subr.bf16.mxu0 0
  %2824 = vmatpush1.bf16.msra.mxu0 0
  %2825 = vmatprep.subr.bf16.mxu0 0
  %2826 = vmatpush1.bf16.msra.mxu0 0
  %2827 = vmatprep.subr.bf16.mxu0 0
  %2828 = vmatpush1.bf16.msra.mxu0 0
  %2829 = vmatprep.subr.bf16.mxu0 0
  %2830 = vmatpush1.bf16.msra.mxu0 0
  %2831 = vmatprep.subr.bf16.mxu0 0
  %2832 = vmatpush1.bf16.msra.mxu0 0
  %2833 = vmatprep.subr.bf16.mxu0 0
  %2834 = vmatpush1.bf16.msra.mxu0 0
  %2835 = vmatprep.subr.bf16.mxu0 0
  %2836 = vmatpush1.bf16.msra.mxu0 0
  %2837 = vmatprep.subr.bf16.mxu0 0
  %2838 = vmatpush1.bf16.msra.mxu0 0
  %2839 = vmatprep.subr.bf16.mxu0 0
  %2840 = vmatpush1.bf16.msra.mxu0 0
  %2841 = vmatprep.subr.bf16.mxu0 0
  %2842 = vmatpush1.bf16.msra.mxu0 0
  %2843 = vmatprep.subr.bf16.mxu0 0
  %2844 = vmatpush1.bf16.msra.mxu0 0
  %2845 = vmatprep.mubr.bf16.mxu0 0
  %2846 = vmatmul.mubr.bf16.gmra.mrb[0].mxu0 %v2811
  %v2847 = vpop.f32.mrb[0].mxu0
  %v2848 = vadd.f32 %v621, %v2847
  %v2849 = vpop.f32.mrb[0].mxu0
  %v2850 = vadd.f32 %v625, %v2849
  %v2851 = vpop.f32.mrb[0].mxu0
  %v2852 = vpop.f32.mrb[0].mxu0
  %2853 = vdwg.mxu0
  %v2854 = vadd.f32 %v2807, %v2848
  %v2855 = vxor.u32 %v2854, 2147483648
  %v2856 = vmul.f32 %v2855, 1.442695
  %v2857 = vpow.pop %v2856
  %v2858 = vadd.f32 %v2857, 1.0
  %v2859 = vrcp.pop %v2858
  %v2860 = vmul.f32 1.0, %v2859
  %v2861 = vmul.f32 %v2860, %v2850
  %v2863 = vrot.slane %v2807, 2
  %v2865 = vadd.f32 %v2863, %v2861
  %v2866 = vtanh.pop %v2865
  %v2867 = vsub.f32 %v2717, %v2866
  %2869 = vrot.lane.b32.xlu0 %v2867, 64
  %v2870 = vpop.permute.xlu0 %2869
  %v2872 = vmul.f32 %v2860, %v2870
  %2874 = vrot.lane.b32.xlu0 %v2872, 64
  %v2875 = vpop.permute.xlu0 %2874
  %v2877 = vadd.f32 %v2866, %v2875
  %v2878 = vpack.c.bf16 %v2802, %v2802
  %v2880 = vsel %vm668, %v2878, 0
  %2882 = vmatprep.subr.bf16.mxu0 %v773
  %2883 = vmatpush1.bf16.msra.mxu0 %v772
  %2884 = vmatprep.subr.bf16.mxu0 %v775
  %2885 = vmatpush1.bf16.msra.mxu0 %v774
  %2886 = vmatprep.subr.bf16.mxu0 %v777
  %2887 = vmatpush1.bf16.msra.mxu0 %v776
  %2888 = vmatprep.subr.bf16.mxu0 %v779
  %2889 = vmatpush1.bf16.msra.mxu0 %v778
  %2890 = vmatprep.subr.bf16.mxu0 0
  %2891 = vmatpush1.bf16.msra.mxu0 0
  %2892 = vmatprep.subr.bf16.mxu0 0
  %2893 = vmatpush1.bf16.msra.mxu0 0
  %2894 = vmatprep.subr.bf16.mxu0 0
  %2895 = vmatpush1.bf16.msra.mxu0 0
  %2896 = vmatprep.subr.bf16.mxu0 0
  %2897 = vmatpush1.bf16.msra.mxu0 0
  %2898 = vmatprep.subr.bf16.mxu0 0
  %2899 = vmatpush1.bf16.msra.mxu0 0
  %2900 = vmatprep.subr.bf16.mxu0 0
  %2901 = vmatpush1.bf16.msra.mxu0 0
  %2902 = vmatprep.subr.bf16.mxu0 0
  %2903 = vmatpush1.bf16.msra.mxu0 0
  %2904 = vmatprep.subr.bf16.mxu0 0
  %2905 = vmatpush1.bf16.msra.mxu0 0
  %2906 = vmatprep.subr.bf16.mxu0 0
  %2907 = vmatpush1.bf16.msra.mxu0 0
  %2908 = vmatprep.subr.bf16.mxu0 0
  %2909 = vmatpush1.bf16.msra.mxu0 0
  %2910 = vmatprep.subr.bf16.mxu0 0
  %2911 = vmatpush1.bf16.msra.mxu0 0
  %2912 = vmatprep.subr.bf16.mxu0 0
  %2913 = vmatpush1.bf16.msra.mxu0 0
  %2914 = vmatprep.mubr.bf16.mxu0 0
  %2915 = vmatmul.mubr.bf16.gmra.mrb[0].mxu0 %v2880
  %v2916 = vpop.f32.mrb[0].mxu0
  %v2917 = vadd.f32 %v741, %v2916
  %v2918 = vpop.f32.mrb[0].mxu0
  %v2919 = vadd.f32 %v745, %v2918
  %v2920 = vpop.f32.mrb[0].mxu0
  %v2921 = vpop.f32.mrb[0].mxu0
  %2922 = vdwg.mxu0
  %2924 = vrot.lane.b32.xlu0 %v2808, 64
  %v2925 = vpop.permute.xlu0 %2924
  %v2926 = vrot.slane %v2925, 2
  %v2928 = vadd.f32 %v2926, %v2917
  %v2929 = vxor.u32 %v2928, 2147483648
  %v2930 = vmul.f32 %v2929, 1.442695
  %v2931 = vpow.pop %v2930
  %v2932 = vadd.f32 %v2931, 1.0
  %v2933 = vrcp.pop %v2932
  %v2934 = vmul.f32 1.0, %v2933
  %v2935 = vrot.slane %v2808, 4
  %v2939 = vunpack.c.l.s4 1983009808
  %v2940 = vunpack.c.0.s8 %v2939
  %v2941 = vlaneseq
  %v2942 = vshrl.u32 %v2941, 7
  %v2943 = vsub.s32 %v2940, %v2942
  %v2944 = vrot.slane %v2917, %v2943
  %2945 = vrot.lane.b32.xlu0 %v2944, 64
  %v2946 = vpop.permute.xlu0 %2945
  %v2948 = vadd.f32 %v2935, %v2946
  %v2949 = vxor.u32 %v2948, 2147483648
  %v2950 = vmul.f32 %v2949, 1.442695
  %v2951 = vpow.pop %v2950
  %v2952 = vadd.f32 %v2951, 1.0
  %v2953 = vrcp.pop %v2952
  %v2954 = vmul.f32 1.0, %v2953
  %v2955 = vmul.f32 %v2934, %v2919
  %v2956 = vrot.slane %v2925, 4
  %v2958 = vadd.f32 %v2956, %v2955
  %v2959 = vtanh.pop %v2958
  %v2960 = vsub.f32 %v2802, %v2959
  %v2961 = vmul.f32 %v2954, %v2960
  %v2962 = vadd.f32 %v2959, %v2961
  %s2963 = scalar_lea.vmem [#allocation3], 26
  %2964 = vst.msk [vmem:[%s2963] sm:$0x3] %vm869, %v2877
  %s2965 = scalar_lea.vmem [#allocation4], 4
  %2966 = vst.msk [vmem:[%s2965] sm:$0x3] %vm869, %v2962
  %v2967 = vld [vmem:[%s875] sm:$0x3f]
  %v2968 = vld [vmem:[%s873] sm:$0x3f]
  %v2969 = vpack.c.bf16 %v2877, %v2877
  %v2971 = vsel %vm668, %v2969, 0
  %2973 = vmatprep.subr.bf16.mxu0 %v653
  %2974 = vmatpush1.bf16.msra.mxu0 %v652
  %2975 = vmatprep.subr.bf16.mxu0 %v655
  %2976 = vmatpush1.bf16.msra.mxu0 %v654
  %2977 = vmatprep.subr.bf16.mxu0 %v657
  %2978 = vmatpush1.bf16.msra.mxu0 %v656
  %2979 = vmatprep.subr.bf16.mxu0 %v659
  %2980 = vmatpush1.bf16.msra.mxu0 %v658
  %2981 = vmatprep.subr.bf16.mxu0 0
  %2982 = vmatpush1.bf16.msra.mxu0 0
  %2983 = vmatprep.subr.bf16.mxu0 0
  %2984 = vmatpush1.bf16.msra.mxu0 0
  %2985 = vmatprep.subr.bf16.mxu0 0
  %2986 = vmatpush1.bf16.msra.mxu0 0
  %2987 = vmatprep.subr.bf16.mxu0 0
  %2988 = vmatpush1.bf16.msra.mxu0 0
  %2989 = vmatprep.subr.bf16.mxu0 0
  %2990 = vmatpush1.bf16.msra.mxu0 0
  %2991 = vmatprep.subr.bf16.mxu0 0
  %2992 = vmatpush1.bf16.msra.mxu0 0
  %2993 = vmatprep.subr.bf16.mxu0 0
  %2994 = vmatpush1.bf16.msra.mxu0 0
  %2995 = vmatprep.subr.bf16.mxu0 0
  %2996 = vmatpush1.bf16.msra.mxu0 0
  %2997 = vmatprep.subr.bf16.mxu0 0
  %2998 = vmatpush1.bf16.msra.mxu0 0
  %2999 = vmatprep.subr.bf16.mxu0 0
  %3000 = vmatpush1.bf16.msra.mxu0 0
  %3001 = vmatprep.subr.bf16.mxu0 0
  %3002 = vmatpush1.bf16.msra.mxu0 0
  %3003 = vmatprep.subr.bf16.mxu0 0
  %3004 = vmatpush1.bf16.msra.mxu0 0
  %3005 = vmatprep.mubr.bf16.mxu0 0
  %3006 = vmatmul.mubr.bf16.gmra.mrb[0].mxu0 %v2971
  %v3007 = vpop.f32.mrb[0].mxu0
  %v3008 = vadd.f32 %v621, %v3007
  %v3009 = vpop.f32.mrb[0].mxu0
  %v3010 = vadd.f32 %v625, %v3009
  %v3011 = vpop.f32.mrb[0].mxu0
  %v3012 = vpop.f32.mrb[0].mxu0
  %3013 = vdwg.mxu0
  %v3014 = vadd.f32 %v2967, %v3008
  %v3015 = vxor.u32 %v3014, 2147483648
  %v3016 = vmul.f32 %v3015, 1.442695
  %v3017 = vpow.pop %v3016
  %v3018 = vadd.f32 %v3017, 1.0
  %v3019 = vrcp.pop %v3018
  %v3020 = vmul.f32 1.0, %v3019
  %v3021 = vmul.f32 %v3020, %v3010
  %v3023 = vrot.slane %v2967, 2
  %v3025 = vadd.f32 %v3023, %v3021
  %v3026 = vtanh.pop %v3025
  %v3027 = vsub.f32 %v2877, %v3026
  %3029 = vrot.lane.b32.xlu0 %v3027, 64
  %v3030 = vpop.permute.xlu0 %3029
  %v3032 = vmul.f32 %v3020, %v3030
  %3034 = vrot.lane.b32.xlu0 %v3032, 64
  %v3035 = vpop.permute.xlu0 %3034
  %v3037 = vadd.f32 %v3026, %v3035
  %v3038 = vpack.c.bf16 %v2962, %v2962
  %v3040 = vsel %vm668, %v3038, 0
  %3042 = vmatprep.subr.bf16.mxu0 %v773
  %3043 = vmatpush1.bf16.msra.mxu0 %v772
  %3044 = vmatprep.subr.bf16.mxu0 %v775
  %3045 = vmatpush1.bf16.msra.mxu0 %v774
  %3046 = vmatprep.subr.bf16.mxu0 %v777
  %3047 = vmatpush1.bf16.msra.mxu0 %v776
  %3048 = vmatprep.subr.bf16.mxu0 %v779
  %3049 = vmatpush1.bf16.msra.mxu0 %v778
  %3050 = vmatprep.subr.bf16.mxu0 0
  %3051 = vmatpush1.bf16.msra.mxu0 0
  %3052 = vmatprep.subr.bf16.mxu0 0
  %3053 = vmatpush1.bf16.msra.mxu0 0
  %3054 = vmatprep.subr.bf16.mxu0 0
  %3055 = vmatpush1.bf16.msra.mxu0 0
  %3056 = vmatprep.subr.bf16.mxu0 0
  %3057 = vmatpush1.bf16.msra.mxu0 0
  %3058 = vmatprep.subr.bf16.mxu0 0
  %3059 = vmatpush1.bf16.msra.mxu0 0
  %3060 = vmatprep.subr.bf16.mxu0 0
  %3061 = vmatpush1.bf16.msra.mxu0 0
  %3062 = vmatprep.subr.bf16.mxu0 0
  %3063 = vmatpush1.bf16.msra.mxu0 0
  %3064 = vmatprep.subr.bf16.mxu0 0
  %3065 = vmatpush1.bf16.msra.mxu0 0
  %3066 = vmatprep.subr.bf16.mxu0 0
  %3067 = vmatpush1.bf16.msra.mxu0 0
  %3068 = vmatprep.subr.bf16.mxu0 0
  %3069 = vmatpush1.bf16.msra.mxu0 0
  %3070 = vmatprep.subr.bf16.mxu0 0
  %3071 = vmatpush1.bf16.msra.mxu0 0
  %3072 = vmatprep.subr.bf16.mxu0 0
  %3073 = vmatpush1.bf16.msra.mxu0 0
  %3074 = vmatprep.mubr.bf16.mxu0 0
  %3075 = vmatmul.mubr.bf16.gmra.mrb[0].mxu0 %v3040
  %v3076 = vpop.f32.mrb[0].mxu0
  %v3077 = vadd.f32 %v741, %v3076
  %v3078 = vpop.f32.mrb[0].mxu0
  %v3079 = vadd.f32 %v745, %v3078
  %v3080 = vpop.f32.mrb[0].mxu0
  %v3081 = vpop.f32.mrb[0].mxu0
  %3082 = vdwg.mxu0
  %3084 = vrot.lane.b32.xlu0 %v2968, 64
  %v3085 = vpop.permute.xlu0 %3084
  %v3086 = vrot.slane %v3085, 2
  %v3088 = vadd.f32 %v3086, %v3077
  %v3089 = vxor.u32 %v3088, 2147483648
  %v3090 = vmul.f32 %v3089, 1.442695
  %v3091 = vpow.pop %v3090
  %v3092 = vadd.f32 %v3091, 1.0
  %v3093 = vrcp.pop %v3092
  %v3094 = vmul.f32 1.0, %v3093
  %v3095 = vrot.slane %v2968, 4
  %v3099 = vunpack.c.l.s4 1983009808
  %v3100 = vunpack.c.0.s8 %v3099
  %v3101 = vlaneseq
  %v3102 = vshrl.u32 %v3101, 7
  %v3103 = vsub.s32 %v3100, %v3102
  %v3104 = vrot.slane %v3077, %v3103
  %3105 = vrot.lane.b32.xlu0 %v3104, 64
  %v3106 = vpop.permute.xlu0 %3105
  %v3108 = vadd.f32 %v3095, %v3106
  %v3109 = vxor.u32 %v3108, 2147483648
  %v3110 = vmul.f32 %v3109, 1.442695
  %v3111 = vpow.pop %v3110
  %v3112 = vadd.f32 %v3111, 1.0
  %v3113 = vrcp.pop %v3112
  %v3114 = vmul.f32 1.0, %v3113
  %v3115 = vmul.f32 %v3094, %v3079
  %v3116 = vrot.slane %v3085, 4
  %v3118 = vadd.f32 %v3116, %v3115
  %v3119 = vtanh.pop %v3118
  %v3120 = vsub.f32 %v2962, %v3119
  %v3121 = vmul.f32 %v3114, %v3120
  %v3122 = vadd.f32 %v3119, %v3121
  %s3123 = scalar_lea.vmem [#allocation3], 28
  %3124 = vst.msk [vmem:[%s3123] sm:$0x3] %vm869, %v3037
  %s3125 = scalar_lea.vmem [#allocation4], 2
  %3126 = vst.msk [vmem:[%s3125] sm:$0x3] %vm869, %v3122
  %v3127 = vld [vmem:[%s615] sm:$0x3f]
  %v3128 = vld [vmem:[#allocation2] sm:$0x3f]
  %v3129 = vpack.c.bf16 %v3037, %v3037
  %v3131 = vsel %vm668, %v3129, 0
  %3133 = vmatprep.subr.bf16.mxu0 %v653
  %3134 = vmatpush1.bf16.msra.mxu0 %v652
  %3135 = vmatprep.subr.bf16.mxu0 %v655
  %3136 = vmatpush1.bf16.msra.mxu0 %v654
  %3137 = vmatprep.subr.bf16.mxu0 %v657
  %3138 = vmatpush1.bf16.msra.mxu0 %v656
  %3139 = vmatprep.subr.bf16.mxu0 %v659
  %3140 = vmatpush1.bf16.msra.mxu0 %v658
  %3141 = vmatprep.subr.bf16.mxu0 0
  %3142 = vmatpush1.bf16.msra.mxu0 0
  %3143 = vmatprep.subr.bf16.mxu0 0
  %3144 = vmatpush1.bf16.msra.mxu0 0
  %3145 = vmatprep.subr.bf16.mxu0 0
  %3146 = vmatpush1.bf16.msra.mxu0 0
  %3147 = vmatprep.subr.bf16.mxu0 0
  %3148 = vmatpush1.bf16.msra.mxu0 0
  %3149 = vmatprep.subr.bf16.mxu0 0
  %3150 = vmatpush1.bf16.msra.mxu0 0
  %3151 = vmatprep.subr.bf16.mxu0 0
  %3152 = vmatpush1.bf16.msra.mxu0 0
  %3153 = vmatprep.subr.bf16.mxu0 0
  %3154 = vmatpush1.bf16.msra.mxu0 0
  %3155 = vmatprep.subr.bf16.mxu0 0
  %3156 = vmatpush1.bf16.msra.mxu0 0
  %3157 = vmatprep.subr.bf16.mxu0 0
  %3158 = vmatpush1.bf16.msra.mxu0 0
  %3159 = vmatprep.subr.bf16.mxu0 0
  %3160 = vmatpush1.bf16.msra.mxu0 0
  %3161 = vmatprep.subr.bf16.mxu0 0
  %3162 = vmatpush1.bf16.msra.mxu0 0
  %3163 = vmatprep.subr.bf16.mxu0 0
  %3164 = vmatpush1.bf16.msra.mxu0 0
  %3165 = vmatprep.mubr.bf16.mxu0 0
  %3166 = vmatmul.mubr.bf16.gmra.mrb[0].mxu0 %v3131
  %v3167 = vpop.f32.mrb[0].mxu0
  %v3168 = vadd.f32 %v621, %v3167
  %v3169 = vpop.f32.mrb[0].mxu0
  %v3170 = vadd.f32 %v625, %v3169
  %v3171 = vpop.f32.mrb[0].mxu0
  %v3172 = vpop.f32.mrb[0].mxu0
  %3173 = vdwg.mxu0
  %v3174 = vadd.f32 %v3127, %v3168
  %v3175 = vxor.u32 %v3174, 2147483648
  %v3176 = vmul.f32 %v3175, 1.442695
  %v3177 = vpow.pop %v3176
  %v3178 = vadd.f32 %v3177, 1.0
  %v3179 = vrcp.pop %v3178
  %v3180 = vmul.f32 1.0, %v3179
  %v3181 = vmul.f32 %v3180, %v3170
  %v3183 = vrot.slane %v3127, 2
  %v3185 = vadd.f32 %v3183, %v3181
  %v3186 = vtanh.pop %v3185
  %v3187 = vsub.f32 %v3037, %v3186
  %3189 = vrot.lane.b32.xlu0 %v3187, 64
  %v3190 = vpop.permute.xlu0 %3189
  %v3192 = vmul.f32 %v3180, %v3190
  %3194 = vrot.lane.b32.xlu0 %v3192, 64
  %v3195 = vpop.permute.xlu0 %3194
  %v3197 = vadd.f32 %v3186, %v3195
  %v3198 = vpack.c.bf16 %v3122, %v3122
  %v3200 = vsel %vm668, %v3198, 0
  %3202 = vmatprep.subr.bf16.mxu0 %v773
  %3203 = vmatpush1.bf16.msra.mxu0 %v772
  %3204 = vmatprep.subr.bf16.mxu0 %v775
  %3205 = vmatpush1.bf16.msra.mxu0 %v774
  %3206 = vmatprep.subr.bf16.mxu0 %v777
  %3207 = vmatpush1.bf16.msra.mxu0 %v776
  %3208 = vmatprep.subr.bf16.mxu0 %v779
  %3209 = vmatpush1.bf16.msra.mxu0 %v778
  %3210 = vmatprep.subr.bf16.mxu0 0
  %3211 = vmatpush1.bf16.msra.mxu0 0
  %3212 = vmatprep.subr.bf16.mxu0 0
  %3213 = vmatpush1.bf16.msra.mxu0 0
  %3214 = vmatprep.subr.bf16.mxu0 0
  %3215 = vmatpush1.bf16.msra.mxu0 0
  %3216 = vmatprep.subr.bf16.mxu0 0
  %3217 = vmatpush1.bf16.msra.mxu0 0
  %3218 = vmatprep.subr.bf16.mxu0 0
  %3219 = vmatpush1.bf16.msra.mxu0 0
  %3220 = vmatprep.subr.bf16.mxu0 0
  %3221 = vmatpush1.bf16.msra.mxu0 0
  %3222 = vmatprep.subr.bf16.mxu0 0
  %3223 = vmatpush1.bf16.msra.mxu0 0
  %3224 = vmatprep.subr.bf16.mxu0 0
  %3225 = vmatpush1.bf16.msra.mxu0 0
  %3226 = vmatprep.subr.bf16.mxu0 0
  %3227 = vmatpush1.bf16.msra.mxu0 0
  %3228 = vmatprep.subr.bf16.mxu0 0
  %3229 = vmatpush1.bf16.msra.mxu0 0
  %3230 = vmatprep.subr.bf16.mxu0 0
  %3231 = vmatpush1.bf16.msra.mxu0 0
  %3232 = vmatprep.subr.bf16.mxu0 0
  %3233 = vmatpush1.bf16.msra.mxu0 0
  %3234 = vmatprep.mubr.bf16.mxu0 0
  %3235 = vmatmul.mubr.bf16.gmra.mrb[0].mxu0 %v3200
  %v3236 = vpop.f32.mrb[0].mxu0
  %v3237 = vadd.f32 %v741, %v3236
  %v3238 = vpop.f32.mrb[0].mxu0
  %v3239 = vadd.f32 %v745, %v3238
  %v3240 = vpop.f32.mrb[0].mxu0
  %v3241 = vpop.f32.mrb[0].mxu0
  %3242 = vdwg.mxu0
  %3244 = vrot.lane.b32.xlu0 %v3128, 64
  %v3245 = vpop.permute.xlu0 %3244
  %v3246 = vrot.slane %v3245, 2
  %v3248 = vadd.f32 %v3246, %v3237
  %v3249 = vxor.u32 %v3248, 2147483648
  %v3250 = vmul.f32 %v3249, 1.442695
  %v3251 = vpow.pop %v3250
  %v3252 = vadd.f32 %v3251, 1.0
  %v3253 = vrcp.pop %v3252
  %v3254 = vmul.f32 1.0, %v3253
  %v3255 = vrot.slane %v3128, 4
  %v3259 = vunpack.c.l.s4 1983009808
  %v3260 = vunpack.c.0.s8 %v3259
  %v3261 = vlaneseq
  %v3262 = vshrl.u32 %v3261, 7
  %v3263 = vsub.s32 %v3260, %v3262
  %v3264 = vrot.slane %v3237, %v3263
  %3265 = vrot.lane.b32.xlu0 %v3264, 64
  %v3266 = vpop.permute.xlu0 %3265
  %v3268 = vadd.f32 %v3255, %v3266
  %v3269 = vxor.u32 %v3268, 2147483648
  %v3270 = vmul.f32 %v3269, 1.442695
  %v3271 = vpow.pop %v3270
  %v3272 = vadd.f32 %v3271, 1.0
  %v3273 = vrcp.pop %v3272
  %v3274 = vmul.f32 1.0, %v3273
  %v3275 = vmul.f32 %v3254, %v3239
  %v3276 = vrot.slane %v3245, 4
  %v3278 = vadd.f32 %v3276, %v3275
  %v3279 = vtanh.pop %v3278
  %v3280 = vsub.f32 %v3122, %v3279
  %v3281 = vmul.f32 %v3274, %v3280
  %v3282 = vadd.f32 %v3279, %v3281
  %s3283 = scalar_lea.vmem [#allocation3], 30
  %3284 = vst.msk [vmem:[%s3283] sm:$0x3] %vm869, %v3197
  %3285 = vst.msk [vmem:[#allocation4] sm:$0x3] %vm869, %v3282
  %v3286 = vld [vmem:[#allocation3] sm:$0x3]
  %v3287 = vld [vmem:[#allocation3 + $0x2] sm:$0x3]
  %v3288 = vld [vmem:[#allocation3 + $0x4] sm:$0x3]
  %v3289 = vld [vmem:[#allocation3 + $0x6] sm:$0x3]
  %v3290 = vld [vmem:[#allocation3 + $0x8] sm:$0x3]
  %v3291 = vld [vmem:[#allocation3 + $0xa] sm:$0x3]
  %v3292 = vld [vmem:[#allocation3 + $0xc] sm:$0x3]
  %v3293 = vld [vmem:[#allocation3 + $0xe] sm:$0x3]
  %v3294 = vld [vmem:[#allocation3 + $0x10] sm:$0x3]
  %v3295 = vld [vmem:[#allocation3 + $0x12] sm:$0x3]
  %v3296 = vld [vmem:[#allocation3 + $0x14] sm:$0x3]
  %v3297 = vld [vmem:[#allocation3 + $0x16] sm:$0x3]
  %v3298 = vld [vmem:[#allocation3 + $0x18] sm:$0x3]
  %v3299 = vld [vmem:[#allocation3 + $0x1a] sm:$0x3]
  %v3300 = vld [vmem:[#allocation3 + $0x1c] sm:$0x3]
  %v3301 = vld [vmem:[#allocation3 + $0x1e] sm:$0x3]
  %v3302 = vld [vmem:[#allocation4] sm:$0x3]
  %v3303 = vld [vmem:[#allocation4 + $0x2] sm:$0x3]
  %v3304 = vld [vmem:[#allocation4 + $0x4] sm:$0x3]
  %v3305 = vld [vmem:[#allocation4 + $0x6] sm:$0x3]
  %v3306 = vld [vmem:[#allocation4 + $0x8] sm:$0x3]
  %v3307 = vld [vmem:[#allocation4 + $0xa] sm:$0x3]
  %v3308 = vld [vmem:[#allocation4 + $0xc] sm:$0x3]
  %v3309 = vld [vmem:[#allocation4 + $0xe] sm:$0x3]
  %v3310 = vld [vmem:[#allocation4 + $0x10] sm:$0x3]
  %v3311 = vld [vmem:[#allocation4 + $0x12] sm:$0x3]
  %v3312 = vld [vmem:[#allocation4 + $0x14] sm:$0x3]
  %v3313 = vld [vmem:[#allocation4 + $0x16] sm:$0x3]
  %v3314 = vld [vmem:[#allocation4 + $0x18] sm:$0x3]
  %v3315 = vld [vmem:[#allocation4 + $0x1a] sm:$0x3]
  %v3316 = vld [vmem:[#allocation4 + $0x1c] sm:$0x3]
  %v3317 = vld [vmem:[#allocation4 + $0x1e] sm:$0x3]
  %3334 = vrot.lane.b32.xlu0 %v3302, 64
  %v3335 = vpop.permute.xlu0 %3334
  %3336 = vrot.lane.b32.xlu0 %v3303, 64
  %v3337 = vpop.permute.xlu0 %3336
  %3338 = vrot.lane.b32.xlu0 %v3304, 64
  %v3339 = vpop.permute.xlu0 %3338
  %3340 = vrot.lane.b32.xlu0 %v3305, 64
  %v3341 = vpop.permute.xlu0 %3340
  %3342 = vrot.lane.b32.xlu0 %v3306, 64
  %v3343 = vpop.permute.xlu0 %3342
  %3344 = vrot.lane.b32.xlu0 %v3307, 64
  %v3345 = vpop.permute.xlu0 %3344
  %3346 = vrot.lane.b32.xlu0 %v3308, 64
  %v3347 = vpop.permute.xlu0 %3346
  %3348 = vrot.lane.b32.xlu0 %v3309, 64
  %v3349 = vpop.permute.xlu0 %3348
  %3350 = vrot.lane.b32.xlu0 %v3310, 64
  %v3351 = vpop.permute.xlu0 %3350
  %3352 = vrot.lane.b32.xlu0 %v3311, 64
  %v3353 = vpop.permute.xlu0 %3352
  %3354 = vrot.lane.b32.xlu0 %v3312, 64
  %v3355 = vpop.permute.xlu0 %3354
  %3356 = vrot.lane.b32.xlu0 %v3313, 64
  %v3357 = vpop.permute.xlu0 %3356
  %3358 = vrot.lane.b32.xlu0 %v3314, 64
  %v3359 = vpop.permute.xlu0 %3358
  %3360 = vrot.lane.b32.xlu0 %v3315, 64
  %v3361 = vpop.permute.xlu0 %3360
  %3362 = vrot.lane.b32.xlu0 %v3316, 64
  %v3363 = vpop.permute.xlu0 %3362
  %3364 = vrot.lane.b32.xlu0 %v3317, 64
  %v3365 = vpop.permute.xlu0 %3364
  %v3382 = vsel %vm668, %v3286, %v3335
  %v3383 = vsel %vm668, %v3287, %v3337
  %v3384 = vsel %vm668, %v3288, %v3339
  %v3385 = vsel %vm668, %v3289, %v3341
  %v3386 = vsel %vm668, %v3290, %v3343
  %v3387 = vsel %vm668, %v3291, %v3345
  %v3388 = vsel %vm668, %v3292, %v3347
  %v3389 = vsel %vm668, %v3293, %v3349
  %v3390 = vsel %vm668, %v3294, %v3351
  %v3391 = vsel %vm668, %v3295, %v3353
  %v3392 = vsel %vm668, %v3296, %v3355
  %v3393 = vsel %vm668, %v3297, %v3357
  %v3394 = vsel %vm668, %v3298, %v3359
  %v3395 = vsel %vm668, %v3299, %v3361
  %v3396 = vsel %vm668, %v3300, %v3363
  %v3397 = vsel %vm668, %v3301, %v3365
  %3398 = vst [vmem:[%s7] sm:$0x3] %v3382
  %3399 = vst [vmem:[%s7 + $0x2] sm:$0x3] %v3383
  %3400 = vst [vmem:[%s7 + $0x4] sm:$0x3] %v3384
  %3401 = vst [vmem:[%s7 + $0x6] sm:$0x3] %v3385
  %3402 = vst [vmem:[%s7 + $0x8] sm:$0x3] %v3386
  %3403 = vst [vmem:[%s7 + $0xa] sm:$0x3] %v3387
  %3404 = vst [vmem:[%s7 + $0xc] sm:$0x3] %v3388
  %3405 = vst [vmem:[%s7 + $0xe] sm:$0x3] %v3389
  %3406 = vst [vmem:[%s7 + $0x10] sm:$0x3] %v3390
  %3407 = vst [vmem:[%s7 + $0x12] sm:$0x3] %v3391
  %3408 = vst [vmem:[%s7 + $0x14] sm:$0x3] %v3392
  %3409 = vst [vmem:[%s7 + $0x16] sm:$0x3] %v3393
  %3410 = vst [vmem:[%s7 + $0x18] sm:$0x3] %v3394
  %3411 = vst [vmem:[%s7 + $0x1a] sm:$0x3] %v3395
  %3412 = vst [vmem:[%s7 + $0x1c] sm:$0x3] %v3396
  %3413 = vst [vmem:[%s7 + $0x1e] sm:$0x3] %v3397
  // Predicated region
  $region30: #{cbhg_forward.6} parent=0 // pred_check
    _
  $region31: #{cbhg_forward.6} parent=0 // pred_check_branch
    %3415 = sbr.rel (0) target = $region33
  $region32: #{cbhg_forward.6} parent=0 // pred_region
    _
  $region33: #{cbhg_forward.6} parent=0 // pred_fallthru
    _
  // Predicated region
  $region34: #{cbhg_forward.6} parent=0 // pred_check
    _
  $region35: #{cbhg_forward.6} parent=0 // pred_check_branch
    %3417 = sbr.rel (0) target = $region37
  $region36: #{cbhg_forward.6} parent=0 // pred_region
    _
  $region37: #{cbhg_forward.6} parent=0 // pred_fallthru
    _

</llo_original>
